<compile_context>
chip_gen: v7x
topology: tpu7x:2x2x1
jax: 0.10.0
libtpu: 0.0.40
codegen_flags: <defaults>
</compile_context>

<pallas_src>
import functools

import numpy as np
import jax
import jax.numpy as jnp
from jax.experimental import pallas as pl
from jax.experimental.pallas import tpu as pltpu


# ----------------------------------------------------------------------------
# Host-side rotary helpers
# ----------------------------------------------------------------------------
def get_rotary_matrix_np(context_window: int, d: int) -> np.ndarray:
    """Direct numpy port of the PyTorch get_rotary_matrix (reference only)."""
    R = np.zeros((context_window, d, d), dtype=np.float32)
    for position in range(context_window):
        for i in range(d // 2):
            theta = 10000.0 ** (-2.0 * (i - 1) / d)   # keeps the source's (i-1)
            m_theta = position * theta
            R[position, 2 * i, 2 * i] = np.cos(m_theta)
            R[position, 2 * i, 2 * i + 1] = -np.sin(m_theta)
            R[position, 2 * i + 1, 2 * i] = np.sin(m_theta)
            R[position, 2 * i + 1, 2 * i + 1] = np.cos(m_theta)
    return R


def rope_tables(context_window: int, d: int):
    """cos/sin tables + signed pair-swap matrix S such that
       q @ R[p] == q * cos[p] + (q @ S) * sin[p]."""
    cosf = np.zeros((context_window, d), dtype=np.float32)
    sinf = np.zeros((context_window, d), dtype=np.float32)
    S = np.zeros((d, d), dtype=np.float32)
    pos = np.arange(context_window, dtype=np.float64)
    for i in range(d // 2):
        theta = 10000.0 ** (-2.0 * (i - 1) / d)
        c = np.cos(pos * theta)
        s = np.sin(pos * theta)
        cosf[:, 2 * i] = c
        cosf[:, 2 * i + 1] = c
        sinf[:, 2 * i] = s
        sinf[:, 2 * i + 1] = s
        S[2 * i + 1, 2 * i] = 1.0     # (q @ S)[2i]   =  q[2i+1]
        S[2 * i, 2 * i + 1] = -1.0    # (q @ S)[2i+1] = -q[2i]
    return jnp.asarray(cosf), jnp.asarray(sinf), jnp.asarray(S)


# ----------------------------------------------------------------------------
# Fused LlamaBlock kernel (one batch element per grid step)
# ----------------------------------------------------------------------------
def _llama_block_kernel(x_ref, scale_ref, wqkv_ref, cos_ref, sin_ref, mask_ref,
                        wo_ref, bo_ref, w1_ref, b1_ref, wgl_ref, bgl_ref,
                        beta_ref, out_ref, *, n_heads, d_head):
    x = x_ref[...]                           # (m, d) f32 — one batch element
    m, dm = x.shape
    scale = scale_ref[...]                   # (m, d) RMSNorm scale (shared by both norms)

    # ---- RMSNorm #1: global Frobenius norm over the whole (m, d) slab ------
    ssq = jnp.sum(jnp.sum(x * x, axis=1, keepdims=True), axis=0, keepdims=True)  # (1, 1)
    inv_rms = jax.lax.rsqrt(ssq / float(m * dm))
    x1 = scale * (x * inv_rms)

    # ---- fused multi-head RoPE attention ------------------------------------
    # One wide bf16 MXU matmul produces [q | q@S | k | k@S | v] for ALL heads.
    proj = jnp.dot(x1.astype(jnp.bfloat16), wqkv_ref[...],
                   preferred_element_type=jnp.float32)        # (m, 5*H*d) f32
    hd = n_heads * d_head
    q, q_s = proj[:, 0 * hd:1 * hd], proj[:, 1 * hd:2 * hd]
    k, k_s = proj[:, 2 * hd:3 * hd], proj[:, 3 * hd:4 * hd]
    v = proj[:, 4 * hd:5 * hd]

    cosf = cos_ref[...]                      # (m, H*d) f32, head-tiled
    sinf = sin_ref[...]
    sm_scale = float(1.0 / np.sqrt(d_head))
    q_rot = (q * cosf + q_s * sinf) * sm_scale     # softmax scale folded into q
    k_rot = k * cosf + k_s * sinf

    mask = mask_ref[...]                     # (m, m) additive: 0 / -1e30 (finite)
    q_bf = q_rot.astype(jnp.bfloat16)
    k_bf = k_rot.astype(jnp.bfloat16)
    v_bf = v.astype(jnp.bfloat16)

    # At context_window=64 each sequence is a single flash block (16 KiB scores/head).
    # TODO(synk): for long contexts, convert this per-head body to a KV-block
    # online-softmax loop (m_i / l_i / acc) with a parallel q-block grid axis.
    head_outs = []
    for h in range(n_heads):
        lo = h * d_head
        qh = q_bf[:, lo:lo + d_head]
        kh = k_bf[:, lo:lo + d_head]
        vh = v_bf[:, lo:lo + d_head]
        s = jax.lax.dot_general(qh, kh, (((1,), (1,)), ((), ())),
                                preferred_element_type=jnp.float32) + mask
        s_max = jnp.max(s, axis=-1, keepdims=True)
        p = jnp.exp(s - s_max)
        p = p * pl.reciprocal(jnp.sum(p, axis=-1, keepdims=True), approx=True)
        head_outs.append(jnp.dot(p.astype(jnp.bfloat16), vh,
                                 preferred_element_type=jnp.float32))
    attn_cat = jnp.concatenate(head_outs, axis=-1)            # (m, H*d) lane-dense

    # TODO(synk): dropout_p=0.1 inside scaled_dot_product_attention and the
    # nn.Dropout(0.1) after the output projection are training-time stochastic ops;
    # the kernel implements eval semantics.
    attn_out = jnp.dot(attn_cat.astype(jnp.bfloat16), wo_ref[...],
                       preferred_element_type=jnp.float32) + bo_ref[...]

    x2 = x1 + attn_out                       # residual on the normalized input (as in the module)

    # ---- RMSNorm #2 (same scale parameter) ----------------------------------
    ssq2 = jnp.sum(jnp.sum(x2 * x2, axis=1, keepdims=True), axis=0, keepdims=True)
    inv_rms2 = jax.lax.rsqrt(ssq2 / float(m * dm))
    x3 = scale * (x2 * inv_rms2)

    # ---- feedforward: Linear(d, d) -> SwiGLU(d) ------------------------------
    y = jnp.dot(x3.astype(jnp.bfloat16), w1_ref[...],
                preferred_element_type=jnp.float32) + b1_ref[...]
    gl = jnp.dot(y.astype(jnp.bfloat16), wgl_ref[...],
                 preferred_element_type=jnp.float32) + bgl_ref[...]   # [gate | linear]
    g, lin = gl[:, :dm], gl[:, dm:]
    beta = beta_ref[0]
    swish = g * pl.reciprocal(1.0 + jnp.exp(-beta * g), approx=True)  # sigmoid via EUP
    out_ref[...] = (x3 + swish * lin).astype(out_ref.dtype)


def llama_block_forward(x, scale, wq, wk, wv, wo, bo, w1, b1, wg, bg, wl, bl, beta):
    """Pallas forward of LlamaBlock (eval semantics). Linear weights are stored
    transposed as (d_in, d_out), so y = x @ W  ==  nn.Linear(x)."""
    b, m, d = x.shape
    H = wq.shape[0]
    hd = H * d

    cosf, sinf, S = rope_tables(m, d)

    # Fold rotary pair-swap S into the Q/K weights; concatenate all heads + V into
    # one (d, 5*H*d) bf16 matrix -> single wide MXU matmul in the kernel.
    wq_cat = jnp.concatenate([wq[h] for h in range(H)], axis=1)
    wk_cat = jnp.concatenate([wk[h] for h in range(H)], axis=1)
    wv_cat = jnp.concatenate([wv[h] for h in range(H)], axis=1)
    wqs_cat = jnp.concatenate([wq[h] @ S for h in range(H)], axis=1)
    wks_cat = jnp.concatenate([wk[h] @ S for h in range(H)], axis=1)
    wqkv = jnp.concatenate([wq_cat, wqs_cat, wk_cat, wks_cat, wv_cat],
                           axis=1).astype(jnp.bfloat16)               # (d, 5*H*d)

    cos_t = jnp.tile(cosf, (1, H))                                    # (m, H*d)
    sin_t = jnp.tile(sinf, (1, H))

    # Precomputed additive causal mask with a large *finite* negative constant.
    mask = jnp.where(jnp.asarray(np.tril(np.ones((m, m), dtype=bool))),
                     jnp.float32(0.0), jnp.float32(-1e30))

    wgl = jnp.concatenate([wg, wl], axis=1).astype(jnp.bfloat16)      # (d, 2d)
    bgl = jnp.concatenate([bg, bl], axis=1)                           # (1, 2d)

    kernel = functools.partial(_llama_block_kernel, n_heads=H, d_head=d)

    def invariant(shape):
        # Grid-invariant operand: constant index_map, single-buffered (no 2x VMEM).
        n = len(shape)
        return pl.BlockSpec(shape, lambda i: (0,) * n, pipeline_mode=pl.Buffered(1))

    grid_spec = pltpu.PrefetchScalarGridSpec(
        num_scalar_prefetch=0,
        grid=(b,),
        in_specs=[
            pl.BlockSpec((pl.Squeezed(), m, d), lambda i: (i, 0, 0)),   # x
            invariant((m, d)),            # RMSNorm scale
            invariant((d, 5 * hd)),       # [Wq|WqS|Wk|WkS|Wv]  (bf16)
            invariant((m, hd)),           # cos (head-tiled)
            invariant((m, hd)),           # sin (head-tiled)
            invariant((m, m)),            # additive causal mask
            invariant((hd, d)),           # Wo (bf16)
            invariant((1, d)),            # bo
            invariant((d, d)),            # W1 (bf16)
            invariant((1, d)),            # b1
            invariant((d, 2 * d)),        # [Wg|Wl] (bf16)
            invariant((1, 2 * d)),        # [bg|bl]
            pl.BlockSpec(memory_space=pltpu.MemorySpace.SMEM),          # beta scalar
        ],
        out_specs=pl.BlockSpec((pl.Squeezed(), m, d), lambda i: (i, 0, 0)),
    )

    return pl.pallas_call(
        kernel,
        out_shape=jax.ShapeDtypeStruct((b, m, d), x.dtype),
        grid_spec=grid_spec,
        compiler_params=pltpu.CompilerParams(
            dimension_semantics=("parallel",)),   # batch splits across v7x's 2 TCs
    )(x, scale, wqkv, cos_t, sin_t, mask,
      wo.astype(jnp.bfloat16), bo, w1.astype(jnp.bfloat16), b1, wgl, bgl, beta)


# ----------------------------------------------------------------------------
# Pure-JAX f32 reference with PyTorch LlamaBlock (eval) semantics
# ----------------------------------------------------------------------------
def reference_llama_block(x, scale, wq, wk, wv, wo, bo, w1, b1, wg, bg, wl, bl, beta, R):
    b, m, d = x.shape
    H = wq.shape[0]

    def rms(z):
        ff = jnp.sqrt(jnp.sum(z * z, axis=(1, 2)) / (m * d))   # ||z||_F / sqrt(m*d)
        return scale[None] * (z / ff[:, None, None])

    x1 = rms(x)
    tri = np.tril(np.ones((m, m), dtype=bool))
    heads = []
    for h in range(H):
        q = x1 @ wq[h]
        k = x1 @ wk[h]
        v = x1 @ wv[h]
        q_rot = jnp.einsum('bmd,mde->bme', q, R)
        k_rot = jnp.einsum('bmd,mde->bme', k, R)
        s = jnp.einsum('bqe,bke->bqk', q_rot, k_rot) / np.sqrt(d)
        s = jnp.where(tri[None], s, -jnp.inf)
        a = jax.nn.softmax(s, axis=-1)
        heads.append(jnp.einsum('bqk,bkd->bqd', a, v))
    attn = jnp.concatenate(heads, axis=-1) @ wo + bo
    x2 = x1 + attn
    x3 = rms(x2)
    y = x3 @ w1 + b1
    g = y @ wg + bg
    lin = y @ wl + bl
    return x3 + (g * jax.nn.sigmoid(beta[0] * g)) * lin


if __name__ == "__main__":
    # Small shapes consistent with the module config:
    # d_model=128, n_heads=8, context_window=64; batch reduced from 24 to 4.
    batch, seq, d_model, n_heads = 4, 64, 128, 8

    key = jax.random.PRNGKey(0)
    ks = jax.random.split(key, 13)

    x = jax.random.normal(ks[0], (batch, seq, d_model), dtype=jnp.float32)

    bd = 1.0 / np.sqrt(d_model)
    bh = 1.0 / np.sqrt(n_heads * d_model)
    u = lambda k, shape, bound: jax.random.uniform(k, shape, jnp.float32, -bound, bound)

    # nn.Linear weights stored transposed: (d_in, d_out).
    wq = u(ks[1], (n_heads, d_model, d_model), bd)
    wk = u(ks[2], (n_heads, d_model, d_model), bd)
    wv = u(ks[3], (n_heads, d_model, d_model), bd)
    wo = u(ks[4], (n_heads * d_model, d_model), bh)     # MHA output projection
    bo = u(ks[5], (1, d_model), bh)
    w1 = u(ks[6], (d_model, d_model), bd)               # feedforward first Linear
    b1 = u(ks[7], (1, d_model), bd)
    wg = u(ks[8], (d_model, d_model), bd)               # SwiGLU gate Linear
    bg = u(ks[9], (1, d_model), bd)
    wl = u(ks[10], (d_model, d_model), bd)              # SwiGLU linear
    bl = u(ks[11], (1, d_model), bd)
    scale = jax.random.uniform(ks[12], (seq, d_model), jnp.float32, 0.9, 1.1)  # RMSNorm scale
    beta = jnp.ones((1,), jnp.float32)                  # SwiGLU beta (init = 1)

    out = llama_block_forward(x, scale, wq, wk, wv, wo, bo, w1, b1, wg, bg, wl, bl, beta)
    out = jax.block_until_ready(out)

    R = jnp.asarray(get_rotary_matrix_np(seq, d_model))
    ref = jax.block_until_ready(
        reference_llama_block(x, scale, wq, wk, wv, wo, bo, w1, b1, wg, bg, wl, bl, beta, R))

    # Tolerance reflects bf16 MXU operands (f32 accumulation) + approx reciprocals
    # in the kernel vs. a pure-f32 reference.
    np.testing.assert_allclose(np.asarray(out), np.asarray(ref), rtol=5e-2, atol=5e-2)
    print("KERNEL_OK")
</pallas_src>

<mosaic_0001>
module attributes {stable_mosaic.version = 11 : i64} {
  func.func @_llama_block_kernel(%arg0: i32, %arg1: memref<1x64x128xf32, #tpu.memory_space<vmem>>, %arg2: memref<64x128xf32, #tpu.memory_space<vmem>>, %arg3: memref<128x5120xbf16, #tpu.memory_space<vmem>>, %arg4: memref<64x1024xf32, #tpu.memory_space<vmem>>, %arg5: memref<64x1024xf32, #tpu.memory_space<vmem>>, %arg6: memref<64x64xf32, #tpu.memory_space<vmem>>, %arg7: memref<1024x128xbf16, #tpu.memory_space<vmem>>, %arg8: memref<1x128xf32, #tpu.memory_space<vmem>>, %arg9: memref<128x128xbf16, #tpu.memory_space<vmem>>, %arg10: memref<1x128xf32, #tpu.memory_space<vmem>>, %arg11: memref<128x256xbf16, #tpu.memory_space<vmem>>, %arg12: memref<1x256xf32, #tpu.memory_space<vmem>>, %arg13: memref<1xf32, #tpu.memory_space<smem>>, %arg14: memref<1x64x128xf32, #tpu.memory_space<vmem>>) attributes {dimension_semantics = [#tpu.dimension_semantics<parallel>], iteration_bounds = array<i64: 4>, scalar_prefetch = 0 : i64, scratch_operands = 0 : i64, tpu.core_type = #tpu.core_type<tc>, window_params = [{transform_indices = @transform_0, window_bounds = array<i64: 1, 64, 128>}, {pipeline_mode = #tpu.pipeline_mode<synchronous>, transform_indices = @transform_1, window_bounds = array<i64: 64, 128>}, {pipeline_mode = #tpu.pipeline_mode<synchronous>, transform_indices = @transform_2, window_bounds = array<i64: 128, 5120>}, {pipeline_mode = #tpu.pipeline_mode<synchronous>, transform_indices = @transform_3, window_bounds = array<i64: 64, 1024>}, {pipeline_mode = #tpu.pipeline_mode<synchronous>, transform_indices = @transform_4, window_bounds = array<i64: 64, 1024>}, {pipeline_mode = #tpu.pipeline_mode<synchronous>, transform_indices = @transform_5, window_bounds = array<i64: 64, 64>}, {pipeline_mode = #tpu.pipeline_mode<synchronous>, transform_indices = @transform_6, window_bounds = array<i64: 1024, 128>}, {pipeline_mode = #tpu.pipeline_mode<synchronous>, transform_indices = @transform_7, window_bounds = array<i64: 1, 128>}, {pipeline_mode = #tpu.pipeline_mode<synchronous>, transform_indices = @transform_8, window_bounds = array<i64: 128, 128>}, {pipeline_mode = #tpu.pipeline_mode<synchronous>, transform_indices = @transform_9, window_bounds = array<i64: 1, 128>}, {pipeline_mode = #tpu.pipeline_mode<synchronous>, transform_indices = @transform_10, window_bounds = array<i64: 128, 256>}, {pipeline_mode = #tpu.pipeline_mode<synchronous>, transform_indices = @transform_11, window_bounds = array<i64: 1, 256>}, {transform_indices = @transform_12, window_bounds = array<i64: 1>}, {transform_indices = @transform_13, window_bounds = array<i64: 1, 64, 128>}]} {
    %c0 = arith.constant 0 : index
    %c0_0 = arith.constant 0 : index
    %c0_1 = arith.constant 0 : index
    %0 = vector.load %arg1[%c0, %c0_0, %c0_1] : memref<1x64x128xf32, #tpu.memory_space<vmem>>, vector<1x64x128xf32>
    %1 = vector.shape_cast %0 : vector<1x64x128xf32> to vector<64x128xf32>
    %c0_2 = arith.constant 0 : index
    %c0_3 = arith.constant 0 : index
    %2 = vector.load %arg2[%c0_2, %c0_3] : memref<64x128xf32, #tpu.memory_space<vmem>>, vector<64x128xf32>
    %3 = arith.mulf %1, %1 : vector<64x128xf32>
    %cst = arith.constant dense<0.000000e+00> : vector<64xf32>
    %4 = vector.multi_reduction <add>, %3, %cst [1] : vector<64x128xf32> to vector<64xf32>
    %5 = vector.shape_cast %4 : vector<64xf32> to vector<64x1xf32>
    %cst_4 = arith.constant dense<0.000000e+00> : vector<1xf32>
    %6 = vector.multi_reduction <add>, %5, %cst_4 [0] : vector<64x1xf32> to vector<1xf32>
    %7 = vector.shape_cast %6 : vector<1xf32> to vector<1x1xf32>
    %cst_5 = arith.constant 8.192000e+03 : f32
    %8 = vector.broadcast %cst_5 : f32 to vector<1x1xf32>
    %9 = arith.divf %7, %8 : vector<1x1xf32>
    %10 = math.rsqrt %9 : vector<1x1xf32>
    %11 = vector.broadcast %10 : vector<1x1xf32> to vector<64x128xf32>
    %12 = arith.mulf %1, %11 : vector<64x128xf32>
    %13 = arith.mulf %2, %12 : vector<64x128xf32>
    %14 = arith.truncf %13 : vector<64x128xf32> to vector<64x128xbf16>
    %c0_6 = arith.constant 0 : index
    %c0_7 = arith.constant 0 : index
    %15 = vector.load %arg3[%c0_6, %c0_7] : memref<128x5120xbf16, #tpu.memory_space<vmem>>, vector<128x5120xbf16>
    %cst_8 = arith.constant dense<0.000000e+00> : vector<64x5120xf32>
    %16 = tpu.matmul %14, %15, %cst_8 {dimension_numbers = #tpu.dot_dimension_numbers<[1], [0], [0], [1], [0, 0, 1, 1], [], []>} : vector<64x128xbf16>, vector<128x5120xbf16>, vector<64x5120xf32> -> vector<64x5120xf32>
    %17 = vector.extract_strided_slice %16 {offsets = [0, 0], sizes = [64, 1024], strides = [1, 1]} : vector<64x5120xf32> to vector<64x1024xf32>
    %18 = vector.extract_strided_slice %16 {offsets = [0, 1024], sizes = [64, 1024], strides = [1, 1]} : vector<64x5120xf32> to vector<64x1024xf32>
    %19 = vector.extract_strided_slice %16 {offsets = [0, 2048], sizes = [64, 1024], strides = [1, 1]} : vector<64x5120xf32> to vector<64x1024xf32>
    %20 = vector.extract_strided_slice %16 {offsets = [0, 3072], sizes = [64, 1024], strides = [1, 1]} : vector<64x5120xf32> to vector<64x1024xf32>
    %21 = vector.extract_strided_slice %16 {offsets = [0, 4096], sizes = [64, 1024], strides = [1, 1]} : vector<64x5120xf32> to vector<64x1024xf32>
    %c0_9 = arith.constant 0 : index
    %c0_10 = arith.constant 0 : index
    %22 = vector.load %arg4[%c0_9, %c0_10] : memref<64x1024xf32, #tpu.memory_space<vmem>>, vector<64x1024xf32>
    %c0_11 = arith.constant 0 : index
    %c0_12 = arith.constant 0 : index
    %23 = vector.load %arg5[%c0_11, %c0_12] : memref<64x1024xf32, #tpu.memory_space<vmem>>, vector<64x1024xf32>
    %24 = arith.mulf %17, %22 : vector<64x1024xf32>
    %25 = arith.mulf %18, %23 : vector<64x1024xf32>
    %26 = arith.addf %24, %25 : vector<64x1024xf32>
    %cst_13 = arith.constant 0.0883883461 : f32
    %27 = vector.broadcast %cst_13 : f32 to vector<64x1024xf32>
    %28 = arith.mulf %26, %27 : vector<64x1024xf32>
    %29 = arith.mulf %19, %22 : vector<64x1024xf32>
    %30 = arith.mulf %20, %23 : vector<64x1024xf32>
    %31 = arith.addf %29, %30 : vector<64x1024xf32>
    %c0_14 = arith.constant 0 : index
    %c0_15 = arith.constant 0 : index
    %32 = vector.load %arg6[%c0_14, %c0_15] : memref<64x64xf32, #tpu.memory_space<vmem>>, vector<64x64xf32>
    %33 = arith.truncf %28 : vector<64x1024xf32> to vector<64x1024xbf16>
    %34 = arith.truncf %31 : vector<64x1024xf32> to vector<64x1024xbf16>
    %35 = arith.truncf %21 : vector<64x1024xf32> to vector<64x1024xbf16>
    %36 = vector.extract_strided_slice %33 {offsets = [0, 0], sizes = [64, 128], strides = [1, 1]} : vector<64x1024xbf16> to vector<64x128xbf16>
    %37 = vector.extract_strided_slice %34 {offsets = [0, 0], sizes = [64, 128], strides = [1, 1]} : vector<64x1024xbf16> to vector<64x128xbf16>
    %38 = vector.extract_strided_slice %35 {offsets = [0, 0], sizes = [64, 128], strides = [1, 1]} : vector<64x1024xbf16> to vector<64x128xbf16>
    %cst_16 = arith.constant dense<0.000000e+00> : vector<64x64xf32>
    %39 = tpu.matmul %36, %37, %cst_16 {dimension_numbers = #tpu.dot_dimension_numbers<[1], [1], [0], [0], [0, 0, 1, 0], [], []>} : vector<64x128xbf16>, vector<64x128xbf16>, vector<64x64xf32> -> vector<64x64xf32>
    %40 = arith.addf %39, %32 : vector<64x64xf32>
    %cst_17 = arith.constant dense<0xFF800000> : vector<64xf32>
    %41 = vector.multi_reduction <maximumf>, %40, %cst_17 [1] : vector<64x64xf32> to vector<64xf32>
    %42 = vector.shape_cast %41 : vector<64xf32> to vector<64x1xf32>
    %43 = vector.broadcast %42 : vector<64x1xf32> to vector<64x64xf32>
    %44 = arith.subf %40, %43 : vector<64x64xf32>
    %45 = math.exp %44 : vector<64x64xf32>
    %cst_18 = arith.constant dense<0.000000e+00> : vector<64xf32>
    %46 = vector.multi_reduction <add>, %45, %cst_18 [1] : vector<64x64xf32> to vector<64xf32>
    %47 = vector.shape_cast %46 : vector<64xf32> to vector<64x1xf32>
    %48 = tpu.reciprocal %47 {approx = true} : vector<64x1xf32> -> vector<64x1xf32>
    %49 = vector.broadcast %48 : vector<64x1xf32> to vector<64x64xf32>
    %50 = arith.mulf %45, %49 : vector<64x64xf32>
    %51 = arith.truncf %50 : vector<64x64xf32> to vector<64x64xbf16>
    %cst_19 = arith.constant dense<0.000000e+00> : vector<64x128xf32>
    %52 = tpu.matmul %51, %38, %cst_19 {dimension_numbers = #tpu.dot_dimension_numbers<[1], [0], [0], [1], [0, 0, 1, 1], [], []>} : vector<64x64xbf16>, vector<64x128xbf16>, vector<64x128xf32> -> vector<64x128xf32>
    %53 = vector.extract_strided_slice %33 {offsets = [0, 128], sizes = [64, 128], strides = [1, 1]} : vector<64x1024xbf16> to vector<64x128xbf16>
    %54 = vector.extract_strided_slice %34 {offsets = [0, 128], sizes = [64, 128], strides = [1, 1]} : vector<64x1024xbf16> to vector<64x128xbf16>
    %55 = vector.extract_strided_slice %35 {offsets = [0, 128], sizes = [64, 128], strides = [1, 1]} : vector<64x1024xbf16> to vector<64x128xbf16>
    %cst_20 = arith.constant dense<0.000000e+00> : vector<64x64xf32>
    %56 = tpu.matmul %53, %54, %cst_20 {dimension_numbers = #tpu.dot_dimension_numbers<[1], [1], [0], [0], [0, 0, 1, 0], [], []>} : vector<64x128xbf16>, vector<64x128xbf16>, vector<64x64xf32> -> vector<64x64xf32>
    %57 = arith.addf %56, %32 : vector<64x64xf32>
    %cst_21 = arith.constant dense<0xFF800000> : vector<64xf32>
    %58 = vector.multi_reduction <maximumf>, %57, %cst_21 [1] : vector<64x64xf32> to vector<64xf32>
    %59 = vector.shape_cast %58 : vector<64xf32> to vector<64x1xf32>
    %60 = vector.broadcast %59 : vector<64x1xf32> to vector<64x64xf32>
    %61 = arith.subf %57, %60 : vector<64x64xf32>
    %62 = math.exp %61 : vector<64x64xf32>
    %cst_22 = arith.constant dense<0.000000e+00> : vector<64xf32>
    %63 = vector.multi_reduction <add>, %62, %cst_22 [1] : vector<64x64xf32> to vector<64xf32>
    %64 = vector.shape_cast %63 : vector<64xf32> to vector<64x1xf32>
    %65 = tpu.reciprocal %64 {approx = true} : vector<64x1xf32> -> vector<64x1xf32>
    %66 = vector.broadcast %65 : vector<64x1xf32> to vector<64x64xf32>
    %67 = arith.mulf %62, %66 : vector<64x64xf32>
    %68 = arith.truncf %67 : vector<64x64xf32> to vector<64x64xbf16>
    %cst_23 = arith.constant dense<0.000000e+00> : vector<64x128xf32>
    %69 = tpu.matmul %68, %55, %cst_23 {dimension_numbers = #tpu.dot_dimension_numbers<[1], [0], [0], [1], [0, 0, 1, 1], [], []>} : vector<64x64xbf16>, vector<64x128xbf16>, vector<64x128xf32> -> vector<64x128xf32>
    %70 = vector.extract_strided_slice %33 {offsets = [0, 256], sizes = [64, 128], strides = [1, 1]} : vector<64x1024xbf16> to vector<64x128xbf16>
    %71 = vector.extract_strided_slice %34 {offsets = [0, 256], sizes = [64, 128], strides = [1, 1]} : vector<64x1024xbf16> to vector<64x128xbf16>
    %72 = vector.extract_strided_slice %35 {offsets = [0, 256], sizes = [64, 128], strides = [1, 1]} : vector<64x1024xbf16> to vector<64x128xbf16>
    %cst_24 = arith.constant dense<0.000000e+00> : vector<64x64xf32>
    %73 = tpu.matmul %70, %71, %cst_24 {dimension_numbers = #tpu.dot_dimension_numbers<[1], [1], [0], [0], [0, 0, 1, 0], [], []>} : vector<64x128xbf16>, vector<64x128xbf16>, vector<64x64xf32> -> vector<64x64xf32>
    %74 = arith.addf %73, %32 : vector<64x64xf32>
    %cst_25 = arith.constant dense<0xFF800000> : vector<64xf32>
    %75 = vector.multi_reduction <maximumf>, %74, %cst_25 [1] : vector<64x64xf32> to vector<64xf32>
    %76 = vector.shape_cast %75 : vector<64xf32> to vector<64x1xf32>
    %77 = vector.broadcast %76 : vector<64x1xf32> to vector<64x64xf32>
    %78 = arith.subf %74, %77 : vector<64x64xf32>
    %79 = math.exp %78 : vector<64x64xf32>
    %cst_26 = arith.constant dense<0.000000e+00> : vector<64xf32>
    %80 = vector.multi_reduction <add>, %79, %cst_26 [1] : vector<64x64xf32> to vector<64xf32>
    %81 = vector.shape_cast %80 : vector<64xf32> to vector<64x1xf32>
    %82 = tpu.reciprocal %81 {approx = true} : vector<64x1xf32> -> vector<64x1xf32>
    %83 = vector.broadcast %82 : vector<64x1xf32> to vector<64x64xf32>
    %84 = arith.mulf %79, %83 : vector<64x64xf32>
    %85 = arith.truncf %84 : vector<64x64xf32> to vector<64x64xbf16>
    %cst_27 = arith.constant dense<0.000000e+00> : vector<64x128xf32>
    %86 = tpu.matmul %85, %72, %cst_27 {dimension_numbers = #tpu.dot_dimension_numbers<[1], [0], [0], [1], [0, 0, 1, 1], [], []>} : vector<64x64xbf16>, vector<64x128xbf16>, vector<64x128xf32> -> vector<64x128xf32>
    %87 = vector.extract_strided_slice %33 {offsets = [0, 384], sizes = [64, 128], strides = [1, 1]} : vector<64x1024xbf16> to vector<64x128xbf16>
    %88 = vector.extract_strided_slice %34 {offsets = [0, 384], sizes = [64, 128], strides = [1, 1]} : vector<64x1024xbf16> to vector<64x128xbf16>
    %89 = vector.extract_strided_slice %35 {offsets = [0, 384], sizes = [64, 128], strides = [1, 1]} : vector<64x1024xbf16> to vector<64x128xbf16>
    %cst_28 = arith.constant dense<0.000000e+00> : vector<64x64xf32>
    %90 = tpu.matmul %87, %88, %cst_28 {dimension_numbers = #tpu.dot_dimension_numbers<[1], [1], [0], [0], [0, 0, 1, 0], [], []>} : vector<64x128xbf16>, vector<64x128xbf16>, vector<64x64xf32> -> vector<64x64xf32>
    %91 = arith.addf %90, %32 : vector<64x64xf32>
    %cst_29 = arith.constant dense<0xFF800000> : vector<64xf32>
    %92 = vector.multi_reduction <maximumf>, %91, %cst_29 [1] : vector<64x64xf32> to vector<64xf32>
    %93 = vector.shape_cast %92 : vector<64xf32> to vector<64x1xf32>
    %94 = vector.broadcast %93 : vector<64x1xf32> to vector<64x64xf32>
    %95 = arith.subf %91, %94 : vector<64x64xf32>
    %96 = math.exp %95 : vector<64x64xf32>
    %cst_30 = arith.constant dense<0.000000e+00> : vector<64xf32>
    %97 = vector.multi_reduction <add>, %96, %cst_30 [1] : vector<64x64xf32> to vector<64xf32>
    %98 = vector.shape_cast %97 : vector<64xf32> to vector<64x1xf32>
    %99 = tpu.reciprocal %98 {approx = true} : vector<64x1xf32> -> vector<64x1xf32>
    %100 = vector.broadcast %99 : vector<64x1xf32> to vector<64x64xf32>
    %101 = arith.mulf %96, %100 : vector<64x64xf32>
    %102 = arith.truncf %101 : vector<64x64xf32> to vector<64x64xbf16>
    %cst_31 = arith.constant dense<0.000000e+00> : vector<64x128xf32>
    %103 = tpu.matmul %102, %89, %cst_31 {dimension_numbers = #tpu.dot_dimension_numbers<[1], [0], [0], [1], [0, 0, 1, 1], [], []>} : vector<64x64xbf16>, vector<64x128xbf16>, vector<64x128xf32> -> vector<64x128xf32>
    %104 = vector.extract_strided_slice %33 {offsets = [0, 512], sizes = [64, 128], strides = [1, 1]} : vector<64x1024xbf16> to vector<64x128xbf16>
    %105 = vector.extract_strided_slice %34 {offsets = [0, 512], sizes = [64, 128], strides = [1, 1]} : vector<64x1024xbf16> to vector<64x128xbf16>
    %106 = vector.extract_strided_slice %35 {offsets = [0, 512], sizes = [64, 128], strides = [1, 1]} : vector<64x1024xbf16> to vector<64x128xbf16>
    %cst_32 = arith.constant dense<0.000000e+00> : vector<64x64xf32>
    %107 = tpu.matmul %104, %105, %cst_32 {dimension_numbers = #tpu.dot_dimension_numbers<[1], [1], [0], [0], [0, 0, 1, 0], [], []>} : vector<64x128xbf16>, vector<64x128xbf16>, vector<64x64xf32> -> vector<64x64xf32>
    %108 = arith.addf %107, %32 : vector<64x64xf32>
    %cst_33 = arith.constant dense<0xFF800000> : vector<64xf32>
    %109 = vector.multi_reduction <maximumf>, %108, %cst_33 [1] : vector<64x64xf32> to vector<64xf32>
    %110 = vector.shape_cast %109 : vector<64xf32> to vector<64x1xf32>
    %111 = vector.broadcast %110 : vector<64x1xf32> to vector<64x64xf32>
    %112 = arith.subf %108, %111 : vector<64x64xf32>
    %113 = math.exp %112 : vector<64x64xf32>
    %cst_34 = arith.constant dense<0.000000e+00> : vector<64xf32>
    %114 = vector.multi_reduction <add>, %113, %cst_34 [1] : vector<64x64xf32> to vector<64xf32>
    %115 = vector.shape_cast %114 : vector<64xf32> to vector<64x1xf32>
    %116 = tpu.reciprocal %115 {approx = true} : vector<64x1xf32> -> vector<64x1xf32>
    %117 = vector.broadcast %116 : vector<64x1xf32> to vector<64x64xf32>
    %118 = arith.mulf %113, %117 : vector<64x64xf32>
    %119 = arith.truncf %118 : vector<64x64xf32> to vector<64x64xbf16>
    %cst_35 = arith.constant dense<0.000000e+00> : vector<64x128xf32>
    %120 = tpu.matmul %119, %106, %cst_35 {dimension_numbers = #tpu.dot_dimension_numbers<[1], [0], [0], [1], [0, 0, 1, 1], [], []>} : vector<64x64xbf16>, vector<64x128xbf16>, vector<64x128xf32> -> vector<64x128xf32>
    %121 = vector.extract_strided_slice %33 {offsets = [0, 640], sizes = [64, 128], strides = [1, 1]} : vector<64x1024xbf16> to vector<64x128xbf16>
    %122 = vector.extract_strided_slice %34 {offsets = [0, 640], sizes = [64, 128], strides = [1, 1]} : vector<64x1024xbf16> to vector<64x128xbf16>
    %123 = vector.extract_strided_slice %35 {offsets = [0, 640], sizes = [64, 128], strides = [1, 1]} : vector<64x1024xbf16> to vector<64x128xbf16>
    %cst_36 = arith.constant dense<0.000000e+00> : vector<64x64xf32>
    %124 = tpu.matmul %121, %122, %cst_36 {dimension_numbers = #tpu.dot_dimension_numbers<[1], [1], [0], [0], [0, 0, 1, 0], [], []>} : vector<64x128xbf16>, vector<64x128xbf16>, vector<64x64xf32> -> vector<64x64xf32>
    %125 = arith.addf %124, %32 : vector<64x64xf32>
    %cst_37 = arith.constant dense<0xFF800000> : vector<64xf32>
    %126 = vector.multi_reduction <maximumf>, %125, %cst_37 [1] : vector<64x64xf32> to vector<64xf32>
    %127 = vector.shape_cast %126 : vector<64xf32> to vector<64x1xf32>
    %128 = vector.broadcast %127 : vector<64x1xf32> to vector<64x64xf32>
    %129 = arith.subf %125, %128 : vector<64x64xf32>
    %130 = math.exp %129 : vector<64x64xf32>
    %cst_38 = arith.constant dense<0.000000e+00> : vector<64xf32>
    %131 = vector.multi_reduction <add>, %130, %cst_38 [1] : vector<64x64xf32> to vector<64xf32>
    %132 = vector.shape_cast %131 : vector<64xf32> to vector<64x1xf32>
    %133 = tpu.reciprocal %132 {approx = true} : vector<64x1xf32> -> vector<64x1xf32>
    %134 = vector.broadcast %133 : vector<64x1xf32> to vector<64x64xf32>
    %135 = arith.mulf %130, %134 : vector<64x64xf32>
    %136 = arith.truncf %135 : vector<64x64xf32> to vector<64x64xbf16>
    %cst_39 = arith.constant dense<0.000000e+00> : vector<64x128xf32>
    %137 = tpu.matmul %136, %123, %cst_39 {dimension_numbers = #tpu.dot_dimension_numbers<[1], [0], [0], [1], [0, 0, 1, 1], [], []>} : vector<64x64xbf16>, vector<64x128xbf16>, vector<64x128xf32> -> vector<64x128xf32>
    %138 = vector.extract_strided_slice %33 {offsets = [0, 768], sizes = [64, 128], strides = [1, 1]} : vector<64x1024xbf16> to vector<64x128xbf16>
    %139 = vector.extract_strided_slice %34 {offsets = [0, 768], sizes = [64, 128], strides = [1, 1]} : vector<64x1024xbf16> to vector<64x128xbf16>
    %140 = vector.extract_strided_slice %35 {offsets = [0, 768], sizes = [64, 128], strides = [1, 1]} : vector<64x1024xbf16> to vector<64x128xbf16>
    %cst_40 = arith.constant dense<0.000000e+00> : vector<64x64xf32>
    %141 = tpu.matmul %138, %139, %cst_40 {dimension_numbers = #tpu.dot_dimension_numbers<[1], [1], [0], [0], [0, 0, 1, 0], [], []>} : vector<64x128xbf16>, vector<64x128xbf16>, vector<64x64xf32> -> vector<64x64xf32>
    %142 = arith.addf %141, %32 : vector<64x64xf32>
    %cst_41 = arith.constant dense<0xFF800000> : vector<64xf32>
    %143 = vector.multi_reduction <maximumf>, %142, %cst_41 [1] : vector<64x64xf32> to vector<64xf32>
    %144 = vector.shape_cast %143 : vector<64xf32> to vector<64x1xf32>
    %145 = vector.broadcast %144 : vector<64x1xf32> to vector<64x64xf32>
    %146 = arith.subf %142, %145 : vector<64x64xf32>
    %147 = math.exp %146 : vector<64x64xf32>
    %cst_42 = arith.constant dense<0.000000e+00> : vector<64xf32>
    %148 = vector.multi_reduction <add>, %147, %cst_42 [1] : vector<64x64xf32> to vector<64xf32>
    %149 = vector.shape_cast %148 : vector<64xf32> to vector<64x1xf32>
    %150 = tpu.reciprocal %149 {approx = true} : vector<64x1xf32> -> vector<64x1xf32>
    %151 = vector.broadcast %150 : vector<64x1xf32> to vector<64x64xf32>
    %152 = arith.mulf %147, %151 : vector<64x64xf32>
    %153 = arith.truncf %152 : vector<64x64xf32> to vector<64x64xbf16>
    %cst_43 = arith.constant dense<0.000000e+00> : vector<64x128xf32>
    %154 = tpu.matmul %153, %140, %cst_43 {dimension_numbers = #tpu.dot_dimension_numbers<[1], [0], [0], [1], [0, 0, 1, 1], [], []>} : vector<64x64xbf16>, vector<64x128xbf16>, vector<64x128xf32> -> vector<64x128xf32>
    %155 = vector.extract_strided_slice %33 {offsets = [0, 896], sizes = [64, 128], strides = [1, 1]} : vector<64x1024xbf16> to vector<64x128xbf16>
    %156 = vector.extract_strided_slice %34 {offsets = [0, 896], sizes = [64, 128], strides = [1, 1]} : vector<64x1024xbf16> to vector<64x128xbf16>
    %157 = vector.extract_strided_slice %35 {offsets = [0, 896], sizes = [64, 128], strides = [1, 1]} : vector<64x1024xbf16> to vector<64x128xbf16>
    %cst_44 = arith.constant dense<0.000000e+00> : vector<64x64xf32>
    %158 = tpu.matmul %155, %156, %cst_44 {dimension_numbers = #tpu.dot_dimension_numbers<[1], [1], [0], [0], [0, 0, 1, 0], [], []>} : vector<64x128xbf16>, vector<64x128xbf16>, vector<64x64xf32> -> vector<64x64xf32>
    %159 = arith.addf %158, %32 : vector<64x64xf32>
    %cst_45 = arith.constant dense<0xFF800000> : vector<64xf32>
    %160 = vector.multi_reduction <maximumf>, %159, %cst_45 [1] : vector<64x64xf32> to vector<64xf32>
    %161 = vector.shape_cast %160 : vector<64xf32> to vector<64x1xf32>
    %162 = vector.broadcast %161 : vector<64x1xf32> to vector<64x64xf32>
    %163 = arith.subf %159, %162 : vector<64x64xf32>
    %164 = math.exp %163 : vector<64x64xf32>
    %cst_46 = arith.constant dense<0.000000e+00> : vector<64xf32>
    %165 = vector.multi_reduction <add>, %164, %cst_46 [1] : vector<64x64xf32> to vector<64xf32>
    %166 = vector.shape_cast %165 : vector<64xf32> to vector<64x1xf32>
    %167 = tpu.reciprocal %166 {approx = true} : vector<64x1xf32> -> vector<64x1xf32>
    %168 = vector.broadcast %167 : vector<64x1xf32> to vector<64x64xf32>
    %169 = arith.mulf %164, %168 : vector<64x64xf32>
    %170 = arith.truncf %169 : vector<64x64xf32> to vector<64x64xbf16>
    %cst_47 = arith.constant dense<0.000000e+00> : vector<64x128xf32>
    %171 = tpu.matmul %170, %157, %cst_47 {dimension_numbers = #tpu.dot_dimension_numbers<[1], [0], [0], [1], [0, 0, 1, 1], [], []>} : vector<64x64xbf16>, vector<64x128xbf16>, vector<64x128xf32> -> vector<64x128xf32>
    %172 = tpu.concatenate %52, %69, %86, %103, %120, %137, %154, %171 in 1 : vector<64x128xf32>, vector<64x128xf32>, vector<64x128xf32>, vector<64x128xf32>, vector<64x128xf32>, vector<64x128xf32>, vector<64x128xf32>, vector<64x128xf32> -> vector<64x1024xf32>
    %173 = arith.truncf %172 : vector<64x1024xf32> to vector<64x1024xbf16>
    %c0_48 = arith.constant 0 : index
    %c0_49 = arith.constant 0 : index
    %174 = vector.load %arg7[%c0_48, %c0_49] : memref<1024x128xbf16, #tpu.memory_space<vmem>>, vector<1024x128xbf16>
    %cst_50 = arith.constant dense<0.000000e+00> : vector<64x128xf32>
    %175 = tpu.matmul %173, %174, %cst_50 {dimension_numbers = #tpu.dot_dimension_numbers<[1], [0], [0], [1], [0, 0, 1, 1], [], []>} : vector<64x1024xbf16>, vector<1024x128xbf16>, vector<64x128xf32> -> vector<64x128xf32>
    %c0_51 = arith.constant 0 : index
    %c0_52 = arith.constant 0 : index
    %176 = vector.load %arg8[%c0_51, %c0_52] : memref<1x128xf32, #tpu.memory_space<vmem>>, vector<1x128xf32>
    %177 = vector.broadcast %176 : vector<1x128xf32> to vector<64x128xf32>
    %178 = arith.addf %175, %177 : vector<64x128xf32>
    %179 = arith.addf %13, %178 : vector<64x128xf32>
    %180 = arith.mulf %179, %179 : vector<64x128xf32>
    %cst_53 = arith.constant dense<0.000000e+00> : vector<64xf32>
    %181 = vector.multi_reduction <add>, %180, %cst_53 [1] : vector<64x128xf32> to vector<64xf32>
    %182 = vector.shape_cast %181 : vector<64xf32> to vector<64x1xf32>
    %cst_54 = arith.constant dense<0.000000e+00> : vector<1xf32>
    %183 = vector.multi_reduction <add>, %182, %cst_54 [0] : vector<64x1xf32> to vector<1xf32>
    %184 = vector.shape_cast %183 : vector<1xf32> to vector<1x1xf32>
    %cst_55 = arith.constant 8.192000e+03 : f32
    %185 = vector.broadcast %cst_55 : f32 to vector<1x1xf32>
    %186 = arith.divf %184, %185 : vector<1x1xf32>
    %187 = math.rsqrt %186 : vector<1x1xf32>
    %188 = vector.broadcast %187 : vector<1x1xf32> to vector<64x128xf32>
    %189 = arith.mulf %179, %188 : vector<64x128xf32>
    %190 = arith.mulf %2, %189 : vector<64x128xf32>
    %191 = arith.truncf %190 : vector<64x128xf32> to vector<64x128xbf16>
    %c0_56 = arith.constant 0 : index
    %c0_57 = arith.constant 0 : index
    %192 = vector.load %arg9[%c0_56, %c0_57] : memref<128x128xbf16, #tpu.memory_space<vmem>>, vector<128x128xbf16>
    %cst_58 = arith.constant dense<0.000000e+00> : vector<64x128xf32>
    %193 = tpu.matmul %191, %192, %cst_58 {dimension_numbers = #tpu.dot_dimension_numbers<[1], [0], [0], [1], [0, 0, 1, 1], [], []>} : vector<64x128xbf16>, vector<128x128xbf16>, vector<64x128xf32> -> vector<64x128xf32>
    %c0_59 = arith.constant 0 : index
    %c0_60 = arith.constant 0 : index
    %194 = vector.load %arg10[%c0_59, %c0_60] : memref<1x128xf32, #tpu.memory_space<vmem>>, vector<1x128xf32>
    %195 = vector.broadcast %194 : vector<1x128xf32> to vector<64x128xf32>
    %196 = arith.addf %193, %195 : vector<64x128xf32>
    %197 = arith.truncf %196 : vector<64x128xf32> to vector<64x128xbf16>
    %c0_61 = arith.constant 0 : index
    %c0_62 = arith.constant 0 : index
    %198 = vector.load %arg11[%c0_61, %c0_62] : memref<128x256xbf16, #tpu.memory_space<vmem>>, vector<128x256xbf16>
    %cst_63 = arith.constant dense<0.000000e+00> : vector<64x256xf32>
    %199 = tpu.matmul %197, %198, %cst_63 {dimension_numbers = #tpu.dot_dimension_numbers<[1], [0], [0], [1], [0, 0, 1, 1], [], []>} : vector<64x128xbf16>, vector<128x256xbf16>, vector<64x256xf32> -> vector<64x256xf32>
    %c0_64 = arith.constant 0 : index
    %c0_65 = arith.constant 0 : index
    %200 = vector.load %arg12[%c0_64, %c0_65] : memref<1x256xf32, #tpu.memory_space<vmem>>, vector<1x256xf32>
    %201 = vector.broadcast %200 : vector<1x256xf32> to vector<64x256xf32>
    %202 = arith.addf %199, %201 : vector<64x256xf32>
    %203 = vector.extract_strided_slice %202 {offsets = [0, 0], sizes = [64, 128], strides = [1, 1]} : vector<64x256xf32> to vector<64x128xf32>
    %204 = vector.extract_strided_slice %202 {offsets = [0, 128], sizes = [64, 128], strides = [1, 1]} : vector<64x256xf32> to vector<64x128xf32>
    %c0_66 = arith.constant 0 : index
    %205 = memref.load %arg13[%c0_66] : memref<1xf32, #tpu.memory_space<smem>>
    %cst_67 = arith.constant 0.000000e+00 : f32
    %206 = arith.subf %cst_67, %205 : f32
    %207 = vector.broadcast %206 : f32 to vector<64x128xf32>
    %208 = arith.mulf %207, %203 : vector<64x128xf32>
    %209 = math.exp %208 : vector<64x128xf32>
    %cst_68 = arith.constant 1.000000e+00 : f32
    %210 = vector.broadcast %cst_68 : f32 to vector<64x128xf32>
    %211 = arith.addf %210, %209 : vector<64x128xf32>
    %212 = tpu.reciprocal %211 {approx = true} : vector<64x128xf32> -> vector<64x128xf32>
    %213 = arith.mulf %203, %212 : vector<64x128xf32>
    %214 = arith.mulf %213, %204 : vector<64x128xf32>
    %215 = arith.addf %190, %214 : vector<64x128xf32>
    %c0_69 = arith.constant 0 : index
    %c0_70 = arith.constant 0 : index
    %c0_71 = arith.constant 0 : index
    %216 = vector.load %arg14[%c0_69, %c0_70, %c0_71] : memref<1x64x128xf32, #tpu.memory_space<vmem>>, vector<1x64x128xf32>
    %217 = vector.shape_cast %216 : vector<1x64x128xf32> to vector<64x128xf32>
    %218 = vector.shape_cast %215 : vector<64x128xf32> to vector<1x64x128xf32>
    tpu.vector_store %arg14[%c0_69, %c0_70, %c0_71], %218 {strides = array<i32>} : memref<1x64x128xf32, #tpu.memory_space<vmem>>, vector<1x64x128xf32>,
    return
  }
  func.func @transform_0(%arg0: i32) -> (i32, i32, i32) {
    %c0_i32 = arith.constant 0 : i32
    %c0_i32_0 = arith.constant 0 : i32
    %c0_i32_1 = arith.constant 0 : i32
    return %arg0, %c0_i32, %c0_i32_0 : i32, i32, i32
  }
  func.func @transform_1(%arg0: i32) -> (i32, i32) {
    %c0_i32 = arith.constant 0 : i32
    %c0_i32_0 = arith.constant 0 : i32
    %c0_i32_1 = arith.constant 0 : i32
    return %c0_i32, %c0_i32_0 : i32, i32
  }
  func.func @transform_2(%arg0: i32) -> (i32, i32) {
    %c0_i32 = arith.constant 0 : i32
    %c0_i32_0 = arith.constant 0 : i32
    %c0_i32_1 = arith.constant 0 : i32
    return %c0_i32, %c0_i32_0 : i32, i32
  }
  func.func @transform_3(%arg0: i32) -> (i32, i32) {
    %c0_i32 = arith.constant 0 : i32
    %c0_i32_0 = arith.constant 0 : i32
    %c0_i32_1 = arith.constant 0 : i32
    return %c0_i32, %c0_i32_0 : i32, i32
  }
  func.func @transform_4(%arg0: i32) -> (i32, i32) {
    %c0_i32 = arith.constant 0 : i32
    %c0_i32_0 = arith.constant 0 : i32
    %c0_i32_1 = arith.constant 0 : i32
    return %c0_i32, %c0_i32_0 : i32, i32
  }
  func.func @transform_5(%arg0: i32) -> (i32, i32) {
    %c0_i32 = arith.constant 0 : i32
    %c0_i32_0 = arith.constant 0 : i32
    %c0_i32_1 = arith.constant 0 : i32
    return %c0_i32, %c0_i32_0 : i32, i32
  }
  func.func @transform_6(%arg0: i32) -> (i32, i32) {
    %c0_i32 = arith.constant 0 : i32
    %c0_i32_0 = arith.constant 0 : i32
    %c0_i32_1 = arith.constant 0 : i32
    return %c0_i32, %c0_i32_0 : i32, i32
  }
  func.func @transform_7(%arg0: i32) -> (i32, i32) {
    %c0_i32 = arith.constant 0 : i32
    %c0_i32_0 = arith.constant 0 : i32
    %c0_i32_1 = arith.constant 0 : i32
    return %c0_i32, %c0_i32_0 : i32, i32
  }
  func.func @transform_8(%arg0: i32) -> (i32, i32) {
    %c0_i32 = arith.constant 0 : i32
    %c0_i32_0 = arith.constant 0 : i32
    %c0_i32_1 = arith.constant 0 : i32
    return %c0_i32, %c0_i32_0 : i32, i32
  }
  func.func @transform_9(%arg0: i32) -> (i32, i32) {
    %c0_i32 = arith.constant 0 : i32
    %c0_i32_0 = arith.constant 0 : i32
    %c0_i32_1 = arith.constant 0 : i32
    return %c0_i32, %c0_i32_0 : i32, i32
  }
  func.func @transform_10(%arg0: i32) -> (i32, i32) {
    %c0_i32 = arith.constant 0 : i32
    %c0_i32_0 = arith.constant 0 : i32
    %c0_i32_1 = arith.constant 0 : i32
    return %c0_i32, %c0_i32_0 : i32, i32
  }
  func.func @transform_11(%arg0: i32) -> (i32, i32) {
    %c0_i32 = arith.constant 0 : i32
    %c0_i32_0 = arith.constant 0 : i32
    %c0_i32_1 = arith.constant 0 : i32
    return %c0_i32, %c0_i32_0 : i32, i32
  }
  func.func @transform_12(%arg0: i32) -> i32 {
    %c0_i32 = arith.constant 0 : i32
    %c0_i32_0 = arith.constant 0 : i32
    return %c0_i32 : i32
  }
  func.func @transform_13(%arg0: i32) -> (i32, i32, i32) {
    %c0_i32 = arith.constant 0 : i32
    %c0_i32_0 = arith.constant 0 : i32
    %c0_i32_1 = arith.constant 0 : i32
    return %arg0, %c0_i32, %c0_i32_0 : i32, i32, i32
  }
}

</mosaic_0001>

<llo_original>
// kernel: tpu_custom_call.1
$region0: #{tpu_custom_call.1}
  #allocation0 [shape = 'u32[]', space=smem, size = 0x4, offset = 0x4, fixed_abs, tag = 'smem constant byte address 0x4 - core index']
  #allocation1 [shape = 'u32[144,128]{1,0:T(1,128)}', space=vmem, size = 0x12000, scoped, tag = 'internal scratch']
  #allocation2 [shape = 'f32[1]{0:T(128)S(6)}', space=smem, size = 0x200, scoped, tag = 'scoped memory for tpu_custom_call.1']
  %s0 = inlined_call_operand.hbm [shape: f32[4,64,128], index: 0, kind: input, shape index: {}]
  %s1 = inlined_call_operand.hbm [shape: f32[64,128], index: 1, kind: input, shape index: {}]
  %s2 = inlined_call_operand.hbm [shape: bf16[128,5120], index: 2, kind: input, shape index: {}]
  %s3 = inlined_call_operand.hbm [shape: f32[64,1024], index: 3, kind: input, shape index: {}]
  %s4 = inlined_call_operand.hbm [shape: f32[64,1024], index: 4, kind: input, shape index: {}]
  %s5 = inlined_call_operand.hbm [shape: f32[64,64], index: 5, kind: input, shape index: {}]
  %s6 = inlined_call_operand.hbm [shape: bf16[1024,128], index: 6, kind: input, shape index: {}]
  %s7 = inlined_call_operand.hbm [shape: f32[1,128], index: 7, kind: input, shape index: {}]
  %s8 = inlined_call_operand.hbm [shape: bf16[128,128], index: 8, kind: input, shape index: {}]
  %s9 = inlined_call_operand.hbm [shape: f32[1,128], index: 9, kind: input, shape index: {}]
  %s10 = inlined_call_operand.hbm [shape: bf16[128,256], index: 10, kind: input, shape index: {}]
  %s11 = inlined_call_operand.hbm [shape: f32[1,256], index: 11, kind: input, shape index: {}]
  %s12 = inlined_call_operand.<no memory space> [shape: f32[1], index: 12, kind: input, shape index: {}]
  %s13 = inlined_call_operand.hbm [shape: f32[4,64,128], index: 13, kind: output, shape index: {}]
  %s14 = sld [smem:[#allocation0]]
  $region133: #{tpu_custom_call.1} parent=0
    _
  %s16 = ssub.s32 1, %s14
  %s17 = scalar_select 0, %s16, %s14
  %18 = sst [smem:[#allocation2]] %s12
  $region1: #{tpu_custom_call.1} parent=0
    #allocation3 [shape = 'u8[65536]{0}', space=vmem, size = 0x10000, scoped, tag = 'input window, operand 0']
    #allocation4 [shape = 's32[2]{0}', space=sflag, size = 0x8, scoped, tag = 'scoped memory for tpu_custom_call.1']
    #allocation5 [shape = 's32[2]{0}', space=sflag, size = 0x8, scoped, tag = 'scoped memory for tpu_custom_call.1']
    #allocation6 [shape = 'u8[32768]{0}', space=vmem, size = 0x8000, scoped, tag = 'input window, operand 1, single buffered']
    #allocation7 [shape = 's32[1]{0}', space=sflag, size = 0x4, scoped, tag = 'scoped memory for tpu_custom_call.1']
    #allocation8 [shape = 'u8[1310720]{0}', space=vmem, size = 0x140000, scoped, tag = 'input window, operand 2, single buffered']
    #allocation9 [shape = 'u8[262144]{0}', space=vmem, size = 0x40000, scoped, tag = 'input window, operand 3, single buffered']
    #allocation10 [shape = 's32[1]{0}', space=sflag, size = 0x4, scoped, tag = 'scoped memory for tpu_custom_call.1']
    #allocation11 [shape = 'u8[262144]{0}', space=vmem, size = 0x40000, scoped, tag = 'input window, operand 4, single buffered']
    #allocation12 [shape = 'u8[32768]{0}', space=vmem, size = 0x8000, scoped, tag = 'input window, operand 5, single buffered']
    #allocation13 [shape = 's32[1]{0}', space=sflag, size = 0x4, scoped, tag = 'scoped memory for tpu_custom_call.1']
    #allocation14 [shape = 'u8[262144]{0}', space=vmem, size = 0x40000, scoped, tag = 'input window, operand 6, single buffered']
    #allocation15 [shape = 'u8[512]{0}', space=vmem, size = 0x400, scoped, tag = 'input window, operand 7, single buffered']
    #allocation16 [shape = 's32[1]{0}', space=sflag, size = 0x4, scoped, tag = 'scoped memory for tpu_custom_call.1']
    #allocation17 [shape = 'u8[32768]{0}', space=vmem, size = 0x8000, scoped, tag = 'input window, operand 8, single buffered']
    #allocation18 [shape = 'u8[512]{0}', space=vmem, size = 0x400, scoped, tag = 'input window, operand 9, single buffered']
    #allocation19 [shape = 's32[1]{0}', space=sflag, size = 0x4, scoped, tag = 'scoped memory for tpu_custom_call.1']
    #allocation20 [shape = 'u8[65536]{0}', space=vmem, size = 0x10000, scoped, tag = 'input window, operand 10, single buffered']
    #allocation21 [shape = 'u8[1024]{0}', space=vmem, size = 0x400, scoped, tag = 'input window, operand 11, single buffered']
    #allocation22 [shape = 's32[1]{0}', space=sflag, size = 0x4, scoped, tag = 'scoped memory for tpu_custom_call.1']
    #allocation23 [shape = 'u8[65536]{0}', space=vmem, size = 0x10000, scoped, tag = 'output window, operand 0']
    %19 = vsyncpa [#allocation4], 0
    %s20 = scalar_lea.sflag [#allocation4], 1
    %21 = vsyncpa %s20, 0
    %22 = vsyncpa [#allocation7], 0
    %23 = vsyncpa [#allocation10], 0
    %24 = vsyncpa [#allocation13], 0
    %25 = vsyncpa [#allocation16], 0
    %26 = vsyncpa [#allocation19], 0
    %27 = vsyncpa [#allocation22], 0
    %28 = vsyncpa [#allocation5], 0
    %s29 = scalar_lea.sflag [#allocation5], 1
    %30 = vsyncpa %s29, 0
    loop: start=0, step=1, limit=6
    $region2: #{tpu_custom_call.1} parent=1 // loop_pre_header
      _
    $region3: #{tpu_custom_call.1} parent=1 // loop_header
      %s32 = sphi 0, %s36
      %p33 = scmp.ge.s32.totalorder %s32, 6
      %s42 = sphi 0, %s44
      %s45 = sphi 0, %s42
      %s46 = sphi 0, %s45
      %s62 = sphi 0, %s46
      %s66 = sphi 0, %s66
      %s68 = sphi 0, %s66
      %s69 = sphi 0, %s68
      %s83 = sphi 0, %s69
      %s87 = sphi 0, %s87
      %s89 = sphi 0, %s87
      %s90 = sphi 0, %s89
      %s104 = sphi 0, %s90
      %s108 = sphi 0, %s108
      %s110 = sphi 0, %s108
      %s111 = sphi 0, %s110
      %s125 = sphi 0, %s111
      %s129 = sphi 0, %s129
      %s131 = sphi 0, %s129
      %s132 = sphi 0, %s131
      %s146 = sphi 0, %s132
      %s150 = sphi 0, %s150
      %s152 = sphi 0, %s150
      %s153 = sphi 0, %s152
      %s167 = sphi 0, %s153
      %s171 = sphi 0, %s171
      %s173 = sphi 0, %s171
      %s174 = sphi 0, %s173
      %s188 = sphi 0, %s174
      %s192 = sphi 0, %s192
      %s194 = sphi 0, %s192
      %s195 = sphi 0, %s194
      %s209 = sphi 0, %s195
      %s213 = sphi 0, %s213
      %s215 = sphi 0, %s213
      %s216 = sphi 0, %s215
      %s230 = sphi 0, %s216
      %s234 = sphi 0, %s234
      %s236 = sphi 0, %s234
      %s237 = sphi 0, %s236
      %s251 = sphi 0, %s237
      %s255 = sphi 0, %s255
      %s257 = sphi 0, %s255
      %s258 = sphi 0, %s257
      %s272 = sphi 0, %s258
      %s276 = sphi 0, %s276
      %s278 = sphi 0, %s276
      %s279 = sphi 0, %s278
      %s293 = sphi 0, %s279
      %s297 = sphi 0, %s297
      %s299 = sphi 0, %s297
      %s300 = sphi 0, %s299
      %s314 = sphi 0, %s300
      %s320 = sphi 0, %s322
      %s323 = sphi 0, %s320
      %s324 = sphi 0, %s323
      %s340 = sphi 0, %s324
    $region4: #{tpu_custom_call.1} parent=1 // loop_header_branch
      %35 = sbr.rel (%p33) target = $region8
    $region5: #{tpu_custom_call.1} parent=1 // loop_body
      %s37 = ssub.s32 %s32, 1
      %s38 = ssub.s32 %s32, 2
      %s39 = sadd.s32 %s32, 1
      %s40 = ssub.s32 %s32, %s39
      %p41 = scmp.eq.s32.totalorder %s40, 0
      %s43 = sadd.s32 %s42, 1
      %s44 = scalar_select %p41, %s42, %s43
      %p47 = pneg %p41
      %p48 = scmp.eq.s32.totalorder %s32, 3
      %p49 = por %p47, %p48
      %p50 = scmp.ne.s32.totalorder %s42, %s45
      %p51 = scmp.eq.s32.totalorder %s32, 0
      %p52 = por %p50, %p51
      %p53 = scmp.ne.s32.totalorder %s42, %s45
      %p54 = scmp.eq.s32.totalorder %s37, 3
      %p55 = por %p53, %p54
      %p56 = scmp.ne.s32.totalorder %s45, %s46
      %p57 = scmp.eq.s32.totalorder %s37, 0
      %p58 = por %p56, %p57
      %p59 = scmp.ne.s32.totalorder %s45, %s46
      %p60 = scmp.eq.s32.totalorder %s38, 3
      %p61 = por %p59, %p60
      %p63 = scmp.ne.s32.totalorder %s46, %s62
      %p64 = scmp.eq.s32.totalorder %s38, 0
      %p65 = por %p63, %p64
      %s67 = sadd.s32 %s66, 1
      %p70 = scmp.eq.s32.totalorder %s32, 3
      %p71 = scmp.ne.s32.totalorder %s66, %s68
      %p72 = scmp.eq.s32.totalorder %s32, 0
      %p73 = por %p71, %p72
      %p74 = scmp.ne.s32.totalorder %s66, %s68
      %p75 = scmp.eq.s32.totalorder %s37, 3
      %p76 = por %p74, %p75
      %p77 = scmp.ne.s32.totalorder %s68, %s69
      %p78 = scmp.eq.s32.totalorder %s37, 0
      %p79 = por %p77, %p78
      %p80 = scmp.ne.s32.totalorder %s68, %s69
      %p81 = scmp.eq.s32.totalorder %s38, 3
      %p82 = por %p80, %p81
      %p84 = scmp.ne.s32.totalorder %s69, %s83
      %p85 = scmp.eq.s32.totalorder %s38, 0
      %p86 = por %p84, %p85
      %s88 = sadd.s32 %s87, 1
      %p91 = scmp.eq.s32.totalorder %s32, 3
      %p92 = scmp.ne.s32.totalorder %s87, %s89
      %p93 = scmp.eq.s32.totalorder %s32, 0
      %p94 = por %p92, %p93
      %p95 = scmp.ne.s32.totalorder %s87, %s89
      %p96 = scmp.eq.s32.totalorder %s37, 3
      %p97 = por %p95, %p96
      %p98 = scmp.ne.s32.totalorder %s89, %s90
      %p99 = scmp.eq.s32.totalorder %s37, 0
      %p100 = por %p98, %p99
      %p101 = scmp.ne.s32.totalorder %s89, %s90
      %p102 = scmp.eq.s32.totalorder %s38, 3
      %p103 = por %p101, %p102
      %p105 = scmp.ne.s32.totalorder %s90, %s104
      %p106 = scmp.eq.s32.totalorder %s38, 0
      %p107 = por %p105, %p106
      %s109 = sadd.s32 %s108, 1
      %p112 = scmp.eq.s32.totalorder %s32, 3
      %p113 = scmp.ne.s32.totalorder %s108, %s110
      %p114 = scmp.eq.s32.totalorder %s32, 0
      %p115 = por %p113, %p114
      %p116 = scmp.ne.s32.totalorder %s108, %s110
      %p117 = scmp.eq.s32.totalorder %s37, 3
      %p118 = por %p116, %p117
      %p119 = scmp.ne.s32.totalorder %s110, %s111
      %p120 = scmp.eq.s32.totalorder %s37, 0
      %p121 = por %p119, %p120
      %p122 = scmp.ne.s32.totalorder %s110, %s111
      %p123 = scmp.eq.s32.totalorder %s38, 3
      %p124 = por %p122, %p123
      %p126 = scmp.ne.s32.totalorder %s111, %s125
      %p127 = scmp.eq.s32.totalorder %s38, 0
      %p128 = por %p126, %p127
      %s130 = sadd.s32 %s129, 1
      %p133 = scmp.eq.s32.totalorder %s32, 3
      %p134 = scmp.ne.s32.totalorder %s129, %s131
      %p135 = scmp.eq.s32.totalorder %s32, 0
      %p136 = por %p134, %p135
      %p137 = scmp.ne.s32.totalorder %s129, %s131
      %p138 = scmp.eq.s32.totalorder %s37, 3
      %p139 = por %p137, %p138
      %p140 = scmp.ne.s32.totalorder %s131, %s132
      %p141 = scmp.eq.s32.totalorder %s37, 0
      %p142 = por %p140, %p141
      %p143 = scmp.ne.s32.totalorder %s131, %s132
      %p144 = scmp.eq.s32.totalorder %s38, 3
      %p145 = por %p143, %p144
      %p147 = scmp.ne.s32.totalorder %s132, %s146
      %p148 = scmp.eq.s32.totalorder %s38, 0
      %p149 = por %p147, %p148
      %s151 = sadd.s32 %s150, 1
      %p154 = scmp.eq.s32.totalorder %s32, 3
      %p155 = scmp.ne.s32.totalorder %s150, %s152
      %p156 = scmp.eq.s32.totalorder %s32, 0
      %p157 = por %p155, %p156
      %p158 = scmp.ne.s32.totalorder %s150, %s152
      %p159 = scmp.eq.s32.totalorder %s37, 3
      %p160 = por %p158, %p159
      %p161 = scmp.ne.s32.totalorder %s152, %s153
      %p162 = scmp.eq.s32.totalorder %s37, 0
      %p163 = por %p161, %p162
      %p164 = scmp.ne.s32.totalorder %s152, %s153
      %p165 = scmp.eq.s32.totalorder %s38, 3
      %p166 = por %p164, %p165
      %p168 = scmp.ne.s32.totalorder %s153, %s167
      %p169 = scmp.eq.s32.totalorder %s38, 0
      %p170 = por %p168, %p169
      %s172 = sadd.s32 %s171, 1
      %p175 = scmp.eq.s32.totalorder %s32, 3
      %p176 = scmp.ne.s32.totalorder %s171, %s173
      %p177 = scmp.eq.s32.totalorder %s32, 0
      %p178 = por %p176, %p177
      %p179 = scmp.ne.s32.totalorder %s171, %s173
      %p180 = scmp.eq.s32.totalorder %s37, 3
      %p181 = por %p179, %p180
      %p182 = scmp.ne.s32.totalorder %s173, %s174
      %p183 = scmp.eq.s32.totalorder %s37, 0
      %p184 = por %p182, %p183
      %p185 = scmp.ne.s32.totalorder %s173, %s174
      %p186 = scmp.eq.s32.totalorder %s38, 3
      %p187 = por %p185, %p186
      %p189 = scmp.ne.s32.totalorder %s174, %s188
      %p190 = scmp.eq.s32.totalorder %s38, 0
      %p191 = por %p189, %p190
      %s193 = sadd.s32 %s192, 1
      %p196 = scmp.eq.s32.totalorder %s32, 3
      %p197 = scmp.ne.s32.totalorder %s192, %s194
      %p198 = scmp.eq.s32.totalorder %s32, 0
      %p199 = por %p197, %p198
      %p200 = scmp.ne.s32.totalorder %s192, %s194
      %p201 = scmp.eq.s32.totalorder %s37, 3
      %p202 = por %p200, %p201
      %p203 = scmp.ne.s32.totalorder %s194, %s195
      %p204 = scmp.eq.s32.totalorder %s37, 0
      %p205 = por %p203, %p204
      %p206 = scmp.ne.s32.totalorder %s194, %s195
      %p207 = scmp.eq.s32.totalorder %s38, 3
      %p208 = por %p206, %p207
      %p210 = scmp.ne.s32.totalorder %s195, %s209
      %p211 = scmp.eq.s32.totalorder %s38, 0
      %p212 = por %p210, %p211
      %s214 = sadd.s32 %s213, 1
      %p217 = scmp.eq.s32.totalorder %s32, 3
      %p218 = scmp.ne.s32.totalorder %s213, %s215
      %p219 = scmp.eq.s32.totalorder %s32, 0
      %p220 = por %p218, %p219
      %p221 = scmp.ne.s32.totalorder %s213, %s215
      %p222 = scmp.eq.s32.totalorder %s37, 3
      %p223 = por %p221, %p222
      %p224 = scmp.ne.s32.totalorder %s215, %s216
      %p225 = scmp.eq.s32.totalorder %s37, 0
      %p226 = por %p224, %p225
      %p227 = scmp.ne.s32.totalorder %s215, %s216
      %p228 = scmp.eq.s32.totalorder %s38, 3
      %p229 = por %p227, %p228
      %p231 = scmp.ne.s32.totalorder %s216, %s230
      %p232 = scmp.eq.s32.totalorder %s38, 0
      %p233 = por %p231, %p232
      %s235 = sadd.s32 %s234, 1
      %p238 = scmp.eq.s32.totalorder %s32, 3
      %p239 = scmp.ne.s32.totalorder %s234, %s236
      %p240 = scmp.eq.s32.totalorder %s32, 0
      %p241 = por %p239, %p240
      %p242 = scmp.ne.s32.totalorder %s234, %s236
      %p243 = scmp.eq.s32.totalorder %s37, 3
      %p244 = por %p242, %p243
      %p245 = scmp.ne.s32.totalorder %s236, %s237
      %p246 = scmp.eq.s32.totalorder %s37, 0
      %p247 = por %p245, %p246
      %p248 = scmp.ne.s32.totalorder %s236, %s237
      %p249 = scmp.eq.s32.totalorder %s38, 3
      %p250 = por %p248, %p249
      %p252 = scmp.ne.s32.totalorder %s237, %s251
      %p253 = scmp.eq.s32.totalorder %s38, 0
      %p254 = por %p252, %p253
      %s256 = sadd.s32 %s255, 1
      %p259 = scmp.eq.s32.totalorder %s32, 3
      %p260 = scmp.ne.s32.totalorder %s255, %s257
      %p261 = scmp.eq.s32.totalorder %s32, 0
      %p262 = por %p260, %p261
      %p263 = scmp.ne.s32.totalorder %s255, %s257
      %p264 = scmp.eq.s32.totalorder %s37, 3
      %p265 = por %p263, %p264
      %p266 = scmp.ne.s32.totalorder %s257, %s258
      %p267 = scmp.eq.s32.totalorder %s37, 0
      %p268 = por %p266, %p267
      %p269 = scmp.ne.s32.totalorder %s257, %s258
      %p270 = scmp.eq.s32.totalorder %s38, 3
      %p271 = por %p269, %p270
      %p273 = scmp.ne.s32.totalorder %s258, %s272
      %p274 = scmp.eq.s32.totalorder %s38, 0
      %p275 = por %p273, %p274
      %s277 = sadd.s32 %s276, 1
      %p280 = scmp.eq.s32.totalorder %s32, 3
      %p281 = scmp.ne.s32.totalorder %s276, %s278
      %p282 = scmp.eq.s32.totalorder %s32, 0
      %p283 = por %p281, %p282
      %p284 = scmp.ne.s32.totalorder %s276, %s278
      %p285 = scmp.eq.s32.totalorder %s37, 3
      %p286 = por %p284, %p285
      %p287 = scmp.ne.s32.totalorder %s278, %s279
      %p288 = scmp.eq.s32.totalorder %s37, 0
      %p289 = por %p287, %p288
      %p290 = scmp.ne.s32.totalorder %s278, %s279
      %p291 = scmp.eq.s32.totalorder %s38, 3
      %p292 = por %p290, %p291
      %p294 = scmp.ne.s32.totalorder %s279, %s293
      %p295 = scmp.eq.s32.totalorder %s38, 0
      %p296 = por %p294, %p295
      %s298 = sadd.s32 %s297, 1
      %p301 = scmp.eq.s32.totalorder %s32, 3
      %p302 = scmp.ne.s32.totalorder %s297, %s299
      %p303 = scmp.eq.s32.totalorder %s32, 0
      %p304 = por %p302, %p303
      %p305 = scmp.ne.s32.totalorder %s297, %s299
      %p306 = scmp.eq.s32.totalorder %s37, 3
      %p307 = por %p305, %p306
      %p308 = scmp.ne.s32.totalorder %s299, %s300
      %p309 = scmp.eq.s32.totalorder %s37, 0
      %p310 = por %p308, %p309
      %p311 = scmp.ne.s32.totalorder %s299, %s300
      %p312 = scmp.eq.s32.totalorder %s38, 3
      %p313 = por %p311, %p312
      %p315 = scmp.ne.s32.totalorder %s300, %s314
      %p316 = scmp.eq.s32.totalorder %s38, 0
      %p317 = por %p315, %p316
      %s318 = ssub.s32 %s32, %s39
      %p319 = scmp.eq.s32.totalorder %s318, 0
      %s321 = sadd.s32 %s320, 1
      %s322 = scalar_select %p319, %s320, %s321
      %p325 = pneg %p319
      %p326 = scmp.eq.s32.totalorder %s32, 3
      %p327 = por %p325, %p326
      %p328 = scmp.ne.s32.totalorder %s320, %s323
      %p329 = scmp.eq.s32.totalorder %s32, 0
      %p330 = por %p328, %p329
      %p331 = scmp.ne.s32.totalorder %s320, %s323
      %p332 = scmp.eq.s32.totalorder %s37, 3
      %p333 = por %p331, %p332
      %p334 = scmp.ne.s32.totalorder %s323, %s324
      %p335 = scmp.eq.s32.totalorder %s37, 0
      %p336 = por %p334, %p335
      %p337 = scmp.ne.s32.totalorder %s323, %s324
      %p338 = scmp.eq.s32.totalorder %s38, 3
      %p339 = por %p337, %p338
      %p341 = scmp.ne.s32.totalorder %s324, %s340
      %p342 = scmp.eq.s32.totalorder %s38, 0
      %p343 = por %p341, %p342
      %p344 = scmp.le.s32.totalorder 1, %s32
      %p345 = scmp.lt.s32.totalorder %s32, 5
      %p346 = pnand %p344, %p345
      %p347 = pneg %p346
      // Predicated region
      $region9: #{tpu_custom_call.1} parent=5 // pred_check
        _
      $region10: #{tpu_custom_call.1} parent=5 // pred_check_branch
        %349 = sbr.rel (%p346) target = $region12
      $region11: #{tpu_custom_call.1} parent=5 // pred_region
        %s350 = ssub.s32 %s32, 1
        // Predicated region
        $region13: #{tpu_custom_call.1} parent=11 // pred_check
          %p351 = pneg %p79
        $region14: #{tpu_custom_call.1} parent=11 // pred_check_branch
          %353 = sbr.rel (%p351) target = $region16
        $region15: #{tpu_custom_call.1} parent=11 // pred_region
          %s355 = ssub.s32 1024, 1024
          %356 = vsyncadd [#allocation7], %s355
          %s357 = sshll.u32 [#allocation6], 4
          %s358 = int_to_ptr.vmem [resolvable:$true] %s357
          %363 = dma.hbm_to_vmem [thread:$0]  %s1, 1024, %s358, [#allocation7], 128, 128, 8
        $region16: #{tpu_custom_call.1} parent=11 // pred_fallthru
          _
        // Predicated region
        $region17: #{tpu_custom_call.1} parent=11 // pred_check
          %p364 = pneg %p100
        $region18: #{tpu_custom_call.1} parent=11 // pred_check_branch
          %366 = sbr.rel (%p364) target = $region20
        $region19: #{tpu_custom_call.1} parent=11 // pred_region
          %s368 = ssub.s32 40960, 40960
          %369 = vsyncadd [#allocation7], %s368
          %s370 = sshll.u32 [#allocation8], 4
          %s371 = int_to_ptr.vmem [resolvable:$true] %s370
          %376 = dma.hbm_to_vmem [thread:$0]  %s2, 40960, %s371, [#allocation7], 2560, 2560, 160
        $region20: #{tpu_custom_call.1} parent=11 // pred_fallthru
          _
        // Predicated region
        $region21: #{tpu_custom_call.1} parent=11 // pred_check
          %p377 = pneg %p121
        $region22: #{tpu_custom_call.1} parent=11 // pred_check_branch
          %379 = sbr.rel (%p377) target = $region24
        $region23: #{tpu_custom_call.1} parent=11 // pred_region
          %s381 = ssub.s32 8192, 8192
          %382 = vsyncadd [#allocation10], %s381
          %s383 = sshll.u32 [#allocation9], 4
          %s384 = int_to_ptr.vmem [resolvable:$true] %s383
          %389 = dma.hbm_to_vmem [thread:$0]  %s3, 8192, %s384, [#allocation10], 1024, 1024, 64
        $region24: #{tpu_custom_call.1} parent=11 // pred_fallthru
          _
        // Predicated region
        $region25: #{tpu_custom_call.1} parent=11 // pred_check
          %p390 = pneg %p142
        $region26: #{tpu_custom_call.1} parent=11 // pred_check_branch
          %392 = sbr.rel (%p390) target = $region28
        $region27: #{tpu_custom_call.1} parent=11 // pred_region
          %s394 = ssub.s32 8192, 8192
          %395 = vsyncadd [#allocation10], %s394
          %s396 = sshll.u32 [#allocation11], 4
          %s397 = int_to_ptr.vmem [resolvable:$true] %s396
          %402 = dma.hbm_to_vmem [thread:$0]  %s4, 8192, %s397, [#allocation10], 1024, 1024, 64
        $region28: #{tpu_custom_call.1} parent=11 // pred_fallthru
          _
        // Predicated region
        $region29: #{tpu_custom_call.1} parent=11 // pred_check
          %p403 = pneg %p163
        $region30: #{tpu_custom_call.1} parent=11 // pred_check_branch
          %405 = sbr.rel (%p403) target = $region32
        $region31: #{tpu_custom_call.1} parent=11 // pred_region
          %s407 = ssub.s32 1024, 1024
          %408 = vsyncadd [#allocation13], %s407
          %s409 = sshll.u32 [#allocation12], 4
          %s410 = int_to_ptr.vmem [resolvable:$true] %s409
          %415 = dma.hbm_to_vmem [thread:$0]  %s5, 1024, %s410, [#allocation13], 128, 128, 8
        $region32: #{tpu_custom_call.1} parent=11 // pred_fallthru
          _
        // Predicated region
        $region33: #{tpu_custom_call.1} parent=11 // pred_check
          %p416 = pneg %p184
        $region34: #{tpu_custom_call.1} parent=11 // pred_check_branch
          %418 = sbr.rel (%p416) target = $region36
        $region35: #{tpu_custom_call.1} parent=11 // pred_region
          %s420 = ssub.s32 8192, 8192
          %421 = vsyncadd [#allocation13], %s420
          %s422 = sshll.u32 [#allocation14], 4
          %s423 = int_to_ptr.vmem [resolvable:$true] %s422
          %428 = dma.hbm_to_vmem [thread:$0]  %s6, 8192, %s423, [#allocation13], 64, 64, 4
        $region36: #{tpu_custom_call.1} parent=11 // pred_fallthru
          _
        // Predicated region
        $region37: #{tpu_custom_call.1} parent=11 // pred_check
          %p429 = pneg %p205
        $region38: #{tpu_custom_call.1} parent=11 // pred_check_branch
          %431 = sbr.rel (%p429) target = $region40
        $region39: #{tpu_custom_call.1} parent=11 // pred_region
          %s433 = ssub.s32 16, 16
          %434 = vsyncadd [#allocation16], %s433
          %s436 = sshll.u32 [#allocation15], 4
          %s437 = int_to_ptr.vmem [resolvable:$true] %s436
          %439 = dma.hbm_to_vmem [thread:$0]  %s7, 16, %s437, [#allocation16]
        $region40: #{tpu_custom_call.1} parent=11 // pred_fallthru
          _
        // Predicated region
        $region41: #{tpu_custom_call.1} parent=11 // pred_check
          %p440 = pneg %p226
        $region42: #{tpu_custom_call.1} parent=11 // pred_check_branch
          %442 = sbr.rel (%p440) target = $region44
        $region43: #{tpu_custom_call.1} parent=11 // pred_region
          %s444 = ssub.s32 1024, 1024
          %445 = vsyncadd [#allocation16], %s444
          %s446 = sshll.u32 [#allocation17], 4
          %s447 = int_to_ptr.vmem [resolvable:$true] %s446
          %452 = dma.hbm_to_vmem [thread:$0]  %s8, 1024, %s447, [#allocation16], 64, 64, 4
        $region44: #{tpu_custom_call.1} parent=11 // pred_fallthru
          _
        // Predicated region
        $region45: #{tpu_custom_call.1} parent=11 // pred_check
          %p453 = pneg %p247
        $region46: #{tpu_custom_call.1} parent=11 // pred_check_branch
          %455 = sbr.rel (%p453) target = $region48
        $region47: #{tpu_custom_call.1} parent=11 // pred_region
          %s457 = ssub.s32 16, 16
          %458 = vsyncadd [#allocation19], %s457
          %s460 = sshll.u32 [#allocation18], 4
          %s461 = int_to_ptr.vmem [resolvable:$true] %s460
          %463 = dma.hbm_to_vmem [thread:$0]  %s9, 16, %s461, [#allocation19]
        $region48: #{tpu_custom_call.1} parent=11 // pred_fallthru
          _
        // Predicated region
        $region49: #{tpu_custom_call.1} parent=11 // pred_check
          %p464 = pneg %p268
        $region50: #{tpu_custom_call.1} parent=11 // pred_check_branch
          %466 = sbr.rel (%p464) target = $region52
        $region51: #{tpu_custom_call.1} parent=11 // pred_region
          %s468 = ssub.s32 2048, 2048
          %469 = vsyncadd [#allocation19], %s468
          %s470 = sshll.u32 [#allocation20], 4
          %s471 = int_to_ptr.vmem [resolvable:$true] %s470
          %476 = dma.hbm_to_vmem [thread:$0]  %s10, 2048, %s471, [#allocation19], 128, 128, 8
        $region52: #{tpu_custom_call.1} parent=11 // pred_fallthru
          _
        // Predicated region
        $region53: #{tpu_custom_call.1} parent=11 // pred_check
          %p477 = pneg %p289
        $region54: #{tpu_custom_call.1} parent=11 // pred_check_branch
          %479 = sbr.rel (%p477) target = $region56
        $region55: #{tpu_custom_call.1} parent=11 // pred_region
          %s481 = ssub.s32 32, 32
          %482 = vsyncadd [#allocation22], %s481
          %s484 = sshll.u32 [#allocation21], 4
          %s485 = int_to_ptr.vmem [resolvable:$true] %s484
          %487 = dma.hbm_to_vmem [thread:$0]  %s11, 32, %s485, [#allocation22]
        $region56: #{tpu_custom_call.1} parent=11 // pred_fallthru
          _
        // Predicated region
        $region57: #{tpu_custom_call.1} parent=11 // pred_check
          %p488 = pneg %p310
        $region58: #{tpu_custom_call.1} parent=11 // pred_check_branch
          %490 = sbr.rel (%p488) target = $region60
        $region59: #{tpu_custom_call.1} parent=11 // pred_region
          _
        $region60: #{tpu_custom_call.1} parent=11 // pred_fallthru
          _
      $region12: #{tpu_custom_call.1} parent=5 // pred_fallthru
        _
      %p491 = scmp.lt.s32.totalorder %s32, 4
      // Predicated region
      $region61: #{tpu_custom_call.1} parent=5 // pred_check
        %p492 = pneg %p491
      $region62: #{tpu_custom_call.1} parent=5 // pred_check_branch
        %494 = sbr.rel (%p492) target = $region64
      $region63: #{tpu_custom_call.1} parent=5 // pred_region
        // Predicated region
        $region65: #{tpu_custom_call.1} parent=63 // pred_check
          %p495 = pneg %p52
        $region66: #{tpu_custom_call.1} parent=63 // pred_check_branch
          %497 = sbr.rel (%p495) target = $region68
        $region67: #{tpu_custom_call.1} parent=63 // pred_region
          %s498 = sand.u32 %s42, 1
          %s499 = scalar_lea.sflag [#allocation4], %s498
          %s500 = sand.u32 %s42, 1
          %s501 = smul.addr %s500, 64
          %s502 = scalar_lea.vmem [#allocation3], %s501
          %s504 = ssub.s32 1024, 1024
          %505 = vsyncadd %s499, %s504
          %s506 = smul.addr %s32, 8
          %s507 = smul.addr %s506, 128
          %s508 = scalar_lea.hbm %s0, %s507
          %s509 = sshll.u32 %s502, 4
          %s510 = int_to_ptr.vmem [resolvable:$true] %s509
          %515 = dma.hbm_to_vmem [thread:$0]  %s508, 1024, %s510, %s499, 128, 128, 8
        $region68: #{tpu_custom_call.1} parent=63 // pred_fallthru
          _
      $region64: #{tpu_custom_call.1} parent=5 // pred_fallthru
        _
      %p516 = scmp.le.s32.totalorder 1, %s32
      %p517 = scmp.lt.s32.totalorder %s32, 5
      %p518 = pnand %p516, %p517
      %p519 = pneg %p518
      // Predicated region
      $region69: #{tpu_custom_call.1} parent=5 // pred_check
        _
      $region70: #{tpu_custom_call.1} parent=5 // pred_check_branch
        %521 = sbr.rel (%p518) target = $region72
      $region71: #{tpu_custom_call.1} parent=5 // pred_region
        %s522 = ssub.s32 %s32, 1
        %s523 = sand.u32 %s45, 1
        %s524 = scalar_lea.sflag [#allocation4], %s523
        %s525 = sand.u32 %s45, 1
        %s526 = smul.addr %s525, 64
        %s527 = scalar_lea.vmem [#allocation3], %s526
        // Predicated region
        $region73: #{tpu_custom_call.1} parent=71 // pred_check
          %p528 = pneg %p58
        $region74: #{tpu_custom_call.1} parent=71 // pred_check_branch
          %530 = sbr.rel (%p528) target = $region76
        $region75: #{tpu_custom_call.1} parent=71 // pred_region
          %531 = dma.done %s524, 1024
        $region76: #{tpu_custom_call.1} parent=71 // pred_fallthru
          _
        // Predicated region
        $region77: #{tpu_custom_call.1} parent=71 // pred_check
          %p532 = pneg %p79
        $region78: #{tpu_custom_call.1} parent=71 // pred_check_branch
          %534 = sbr.rel (%p532) target = $region80
        $region79: #{tpu_custom_call.1} parent=71 // pred_region
          %535 = dma.done [#allocation7], 1024
        $region80: #{tpu_custom_call.1} parent=71 // pred_fallthru
          _
        // Predicated region
        $region81: #{tpu_custom_call.1} parent=71 // pred_check
          %p536 = pneg %p100
        $region82: #{tpu_custom_call.1} parent=71 // pred_check_branch
          %538 = sbr.rel (%p536) target = $region84
        $region83: #{tpu_custom_call.1} parent=71 // pred_region
          %539 = dma.done [#allocation7], 40960
        $region84: #{tpu_custom_call.1} parent=71 // pred_fallthru
          _
        // Predicated region
        $region85: #{tpu_custom_call.1} parent=71 // pred_check
          %p540 = pneg %p121
        $region86: #{tpu_custom_call.1} parent=71 // pred_check_branch
          %542 = sbr.rel (%p540) target = $region88
        $region87: #{tpu_custom_call.1} parent=71 // pred_region
          %543 = dma.done [#allocation10], 8192
        $region88: #{tpu_custom_call.1} parent=71 // pred_fallthru
          _
        // Predicated region
        $region89: #{tpu_custom_call.1} parent=71 // pred_check
          %p544 = pneg %p142
        $region90: #{tpu_custom_call.1} parent=71 // pred_check_branch
          %546 = sbr.rel (%p544) target = $region92
        $region91: #{tpu_custom_call.1} parent=71 // pred_region
          %547 = dma.done [#allocation10], 8192
        $region92: #{tpu_custom_call.1} parent=71 // pred_fallthru
          _
        // Predicated region
        $region93: #{tpu_custom_call.1} parent=71 // pred_check
          %p548 = pneg %p163
        $region94: #{tpu_custom_call.1} parent=71 // pred_check_branch
          %550 = sbr.rel (%p548) target = $region96
        $region95: #{tpu_custom_call.1} parent=71 // pred_region
          %551 = dma.done [#allocation13], 1024
        $region96: #{tpu_custom_call.1} parent=71 // pred_fallthru
          _
        // Predicated region
        $region97: #{tpu_custom_call.1} parent=71 // pred_check
          %p552 = pneg %p184
        $region98: #{tpu_custom_call.1} parent=71 // pred_check_branch
          %554 = sbr.rel (%p552) target = $region100
        $region99: #{tpu_custom_call.1} parent=71 // pred_region
          %555 = dma.done [#allocation13], 8192
        $region100: #{tpu_custom_call.1} parent=71 // pred_fallthru
          _
        // Predicated region
        $region101: #{tpu_custom_call.1} parent=71 // pred_check
          %p556 = pneg %p205
        $region102: #{tpu_custom_call.1} parent=71 // pred_check_branch
          %558 = sbr.rel (%p556) target = $region104
        $region103: #{tpu_custom_call.1} parent=71 // pred_region
          %559 = dma.done [#allocation16], 16
        $region104: #{tpu_custom_call.1} parent=71 // pred_fallthru
          _
        // Predicated region
        $region105: #{tpu_custom_call.1} parent=71 // pred_check
          %p560 = pneg %p226
        $region106: #{tpu_custom_call.1} parent=71 // pred_check_branch
          %562 = sbr.rel (%p560) target = $region108
        $region107: #{tpu_custom_call.1} parent=71 // pred_region
          %563 = dma.done [#allocation16], 1024
        $region108: #{tpu_custom_call.1} parent=71 // pred_fallthru
          _
        // Predicated region
        $region109: #{tpu_custom_call.1} parent=71 // pred_check
          %p564 = pneg %p247
        $region110: #{tpu_custom_call.1} parent=71 // pred_check_branch
          %566 = sbr.rel (%p564) target = $region112
        $region111: #{tpu_custom_call.1} parent=71 // pred_region
          %567 = dma.done [#allocation19], 16
        $region112: #{tpu_custom_call.1} parent=71 // pred_fallthru
          _
        // Predicated region
        $region113: #{tpu_custom_call.1} parent=71 // pred_check
          %p568 = pneg %p268
        $region114: #{tpu_custom_call.1} parent=71 // pred_check_branch
          %570 = sbr.rel (%p568) target = $region116
        $region115: #{tpu_custom_call.1} parent=71 // pred_region
          %571 = dma.done [#allocation19], 2048
        $region116: #{tpu_custom_call.1} parent=71 // pred_fallthru
          _
        // Predicated region
        $region117: #{tpu_custom_call.1} parent=71 // pred_check
          %p572 = pneg %p289
        $region118: #{tpu_custom_call.1} parent=71 // pred_check_branch
          %574 = sbr.rel (%p572) target = $region120
        $region119: #{tpu_custom_call.1} parent=71 // pred_region
          %575 = dma.done [#allocation22], 32
        $region120: #{tpu_custom_call.1} parent=71 // pred_fallthru
          _
        %s576 = sand.u32 %s45, 1
        %s577 = scalar_lea.sflag [#allocation4], %s576
        %s578 = sand.u32 %s45, 1
        %s579 = smul.addr %s578, 64
        %s580 = scalar_lea.vmem [#allocation3], %s579
        %p581 = pneg %p58
        %p582 = pneg %p55
        %p583 = pneg %p79
        %p584 = pneg %p76
        %p585 = pneg %p100
        %p586 = pneg %p97
        %p587 = pneg %p121
        %p588 = pneg %p118
        %p589 = pneg %p142
        %p590 = pneg %p139
        %p591 = pneg %p163
        %p592 = pneg %p160
        %p593 = pneg %p184
        %p594 = pneg %p181
        %p595 = pneg %p205
        %p596 = pneg %p202
        %p597 = pneg %p226
        %p598 = pneg %p223
        %p599 = pneg %p247
        %p600 = pneg %p244
        %p601 = pneg %p268
        %p602 = pneg %p265
        %p603 = pneg %p289
        %p604 = pneg %p286
        %p605 = pneg %p310
        %p606 = pneg %p307
        %p607 = pneg %p336
        %p608 = pneg %p333
        %s609 = sand.u32 %s323, 1
        %s610 = scalar_lea.sflag [#allocation5], %s609
        %s611 = sand.u32 %s323, 1
        %s612 = smul.addr %s611, 64
        %s613 = scalar_lea.vmem [#allocation23], %s612
        %v615 = vld [vmem:[%s527] sm:$0xff]
        %v616 = vld [vmem:[%s527 + $0x8] sm:$0xff]
        %v617 = vld [vmem:[%s527 + $0x10] sm:$0xff]
        %v618 = vld [vmem:[%s527 + $0x18] sm:$0xff]
        %v619 = vld [vmem:[%s527 + $0x20] sm:$0xff]
        %v620 = vld [vmem:[%s527 + $0x28] sm:$0xff]
        %v621 = vld [vmem:[%s527 + $0x30] sm:$0xff]
        %v622 = vld [vmem:[%s527 + $0x38] sm:$0xff]
        %v623 = vld [vmem:[#allocation6] sm:$0xff]
        %v624 = vld [vmem:[#allocation6 + $0x8] sm:$0xff]
        %v625 = vld [vmem:[#allocation6 + $0x10] sm:$0xff]
        %v626 = vld [vmem:[#allocation6 + $0x18] sm:$0xff]
        %v627 = vld [vmem:[#allocation6 + $0x20] sm:$0xff]
        %v628 = vld [vmem:[#allocation6 + $0x28] sm:$0xff]
        %v629 = vld [vmem:[#allocation6 + $0x30] sm:$0xff]
        %v630 = vld [vmem:[#allocation6 + $0x38] sm:$0xff]
        %v631 = vmul.f32 %v615, %v615
        %v632 = vmul.f32 %v616, %v616
        %v633 = vmul.f32 %v617, %v617
        %v634 = vmul.f32 %v618, %v618
        %v635 = vmul.f32 %v619, %v619
        %v636 = vmul.f32 %v620, %v620
        %v637 = vmul.f32 %v621, %v621
        %v638 = vmul.f32 %v622, %v622
        %639 = vadd.xlane.f32.xlu0 %v631
        %v640 = vpop.xlane.xlu0 %639
        %641 = vadd.xlane.f32.xlu0 %v632
        %v642 = vpop.xlane.xlu0 %641
        %643 = vadd.xlane.f32.xlu0 %v633
        %v644 = vpop.xlane.xlu0 %643
        %645 = vadd.xlane.f32.xlu0 %v634
        %v646 = vpop.xlane.xlu0 %645
        %647 = vadd.xlane.f32.xlu0 %v635
        %v648 = vpop.xlane.xlu0 %647
        %649 = vadd.xlane.f32.xlu0 %v636
        %v650 = vpop.xlane.xlu0 %649
        %651 = vadd.xlane.f32.xlu0 %v637
        %v652 = vpop.xlane.xlu0 %651
        %653 = vadd.xlane.f32.xlu0 %v638
        %v654 = vpop.xlane.xlu0 %653
        %v655 = vadd.f32 %v640, %v642
        %v656 = vadd.f32 %v655, %v644
        %v657 = vadd.f32 %v656, %v646
        %v658 = vadd.f32 %v657, %v648
        %v659 = vadd.f32 %v658, %v650
        %v660 = vadd.f32 %v659, %v652
        %v661 = vadd.f32 %v660, %v654
        %v662 = vrot.slane %v661, 4
        %v663 = vadd.f32 %v661, %v662
        %v664 = vrot.slane %v663, 2
        %v665 = vadd.f32 %v663, %v664
        %v666 = vrot.slane %v665, 1
        %v667 = vadd.f32 %v665, %v666
        %v668 = vrcp.pop 8192.0
        %v669 = vmul.f32 %v667, %v668
        %v670 = vrsqrt.pop %v669
        %v671 = vmul.f32 %v615, %v670
        %v672 = vmul.f32 %v616, %v670
        %v673 = vmul.f32 %v617, %v670
        %v674 = vmul.f32 %v618, %v670
        %v675 = vmul.f32 %v619, %v670
        %v676 = vmul.f32 %v620, %v670
        %v677 = vmul.f32 %v621, %v670
        %v678 = vmul.f32 %v622, %v670
        %v679 = vmul.f32 %v623, %v671
        %v680 = vmul.f32 %v624, %v672
        %v681 = vmul.f32 %v625, %v673
        %v682 = vmul.f32 %v626, %v674
        %v683 = vmul.f32 %v627, %v675
        %v684 = vmul.f32 %v628, %v676
        %v685 = vmul.f32 %v629, %v677
        %v686 = vmul.f32 %v630, %v678
        %v687 = vpack.c.bf16 %v680, %v679
        %v688 = vpack.c.bf16 %v682, %v681
        %v689 = vpack.c.bf16 %v684, %v683
        %v690 = vpack.c.bf16 %v686, %v685
        %v691 = vld [vmem:[#allocation8] sm:$0xff]
        %v692 = vld [vmem:[#allocation8 + $0x8] sm:$0xff]
        %v693 = vld [vmem:[#allocation8 + $0x10] sm:$0xff]
        %v694 = vld [vmem:[#allocation8 + $0x18] sm:$0xff]
        %v695 = vld [vmem:[#allocation8 + $0x20] sm:$0xff]
        %v696 = vld [vmem:[#allocation8 + $0x28] sm:$0xff]
        %v697 = vld [vmem:[#allocation8 + $0x30] sm:$0xff]
        %v698 = vld [vmem:[#allocation8 + $0x38] sm:$0xff]
        %v699 = vld [vmem:[#allocation8 + $0x40] sm:$0xff]
        %v700 = vld [vmem:[#allocation8 + $0x48] sm:$0xff]
        %v701 = vld [vmem:[#allocation8 + $0x50] sm:$0xff]
        %v702 = vld [vmem:[#allocation8 + $0x58] sm:$0xff]
        %v703 = vld [vmem:[#allocation8 + $0x60] sm:$0xff]
        %v704 = vld [vmem:[#allocation8 + $0x68] sm:$0xff]
        %v705 = vld [vmem:[#allocation8 + $0x70] sm:$0xff]
        %v706 = vld [vmem:[#allocation8 + $0x78] sm:$0xff]
        %v707 = vld [vmem:[#allocation8 + $0x80] sm:$0xff]
        %v708 = vld [vmem:[#allocation8 + $0x88] sm:$0xff]
        %v709 = vld [vmem:[#allocation8 + $0x90] sm:$0xff]
        %v710 = vld [vmem:[#allocation8 + $0x98] sm:$0xff]
        %v711 = vld [vmem:[#allocation8 + $0xa0] sm:$0xff]
        %v712 = vld [vmem:[#allocation8 + $0xa8] sm:$0xff]
        %v713 = vld [vmem:[#allocation8 + $0xb0] sm:$0xff]
        %v714 = vld [vmem:[#allocation8 + $0xb8] sm:$0xff]
        %v715 = vld [vmem:[#allocation8 + $0xc0] sm:$0xff]
        %v716 = vld [vmem:[#allocation8 + $0xc8] sm:$0xff]
        %v717 = vld [vmem:[#allocation8 + $0xd0] sm:$0xff]
        %v718 = vld [vmem:[#allocation8 + $0xd8] sm:$0xff]
        %v719 = vld [vmem:[#allocation8 + $0xe0] sm:$0xff]
        %v720 = vld [vmem:[#allocation8 + $0xe8] sm:$0xff]
        %v721 = vld [vmem:[#allocation8 + $0xf0] sm:$0xff]
        %v722 = vld [vmem:[#allocation8 + $0xf8] sm:$0xff]
        %v723 = vld [vmem:[#allocation8 + $0x100] sm:$0xff]
        %v724 = vld [vmem:[#allocation8 + $0x108] sm:$0xff]
        %v725 = vld [vmem:[#allocation8 + $0x110] sm:$0xff]
        %v726 = vld [vmem:[#allocation8 + $0x118] sm:$0xff]
        %v727 = vld [vmem:[#allocation8 + $0x120] sm:$0xff]
        %v728 = vld [vmem:[#allocation8 + $0x128] sm:$0xff]
        %v729 = vld [vmem:[#allocation8 + $0x130] sm:$0xff]
        %v730 = vld [vmem:[#allocation8 + $0x138] sm:$0xff]
        %v731 = vld [vmem:[#allocation8 + $0x140] sm:$0xff]
        %v732 = vld [vmem:[#allocation8 + $0x148] sm:$0xff]
        %v733 = vld [vmem:[#allocation8 + $0x150] sm:$0xff]
        %v734 = vld [vmem:[#allocation8 + $0x158] sm:$0xff]
        %v735 = vld [vmem:[#allocation8 + $0x160] sm:$0xff]
        %v736 = vld [vmem:[#allocation8 + $0x168] sm:$0xff]
        %v737 = vld [vmem:[#allocation8 + $0x170] sm:$0xff]
        %v738 = vld [vmem:[#allocation8 + $0x178] sm:$0xff]
        %v739 = vld [vmem:[#allocation8 + $0x180] sm:$0xff]
        %v740 = vld [vmem:[#allocation8 + $0x188] sm:$0xff]
        %v741 = vld [vmem:[#allocation8 + $0x190] sm:$0xff]
        %v742 = vld [vmem:[#allocation8 + $0x198] sm:$0xff]
        %v743 = vld [vmem:[#allocation8 + $0x1a0] sm:$0xff]
        %v744 = vld [vmem:[#allocation8 + $0x1a8] sm:$0xff]
        %v745 = vld [vmem:[#allocation8 + $0x1b0] sm:$0xff]
        %v746 = vld [vmem:[#allocation8 + $0x1b8] sm:$0xff]
        %v747 = vld [vmem:[#allocation8 + $0x1c0] sm:$0xff]
        %v748 = vld [vmem:[#allocation8 + $0x1c8] sm:$0xff]
        %v749 = vld [vmem:[#allocation8 + $0x1d0] sm:$0xff]
        %v750 = vld [vmem:[#allocation8 + $0x1d8] sm:$0xff]
        %v751 = vld [vmem:[#allocation8 + $0x1e0] sm:$0xff]
        %v752 = vld [vmem:[#allocation8 + $0x1e8] sm:$0xff]
        %v753 = vld [vmem:[#allocation8 + $0x1f0] sm:$0xff]
        %v754 = vld [vmem:[#allocation8 + $0x1f8] sm:$0xff]
        %v755 = vld [vmem:[#allocation8 + $0x200] sm:$0xff]
        %v756 = vld [vmem:[#allocation8 + $0x208] sm:$0xff]
        %v757 = vld [vmem:[#allocation8 + $0x210] sm:$0xff]
        %v758 = vld [vmem:[#allocation8 + $0x218] sm:$0xff]
        %v759 = vld [vmem:[#allocation8 + $0x220] sm:$0xff]
        %v760 = vld [vmem:[#allocation8 + $0x228] sm:$0xff]
        %v761 = vld [vmem:[#allocation8 + $0x230] sm:$0xff]
        %v762 = vld [vmem:[#allocation8 + $0x238] sm:$0xff]
        %v763 = vld [vmem:[#allocation8 + $0x240] sm:$0xff]
        %v764 = vld [vmem:[#allocation8 + $0x248] sm:$0xff]
        %v765 = vld [vmem:[#allocation8 + $0x250] sm:$0xff]
        %v766 = vld [vmem:[#allocation8 + $0x258] sm:$0xff]
        %v767 = vld [vmem:[#allocation8 + $0x260] sm:$0xff]
        %v768 = vld [vmem:[#allocation8 + $0x268] sm:$0xff]
        %v769 = vld [vmem:[#allocation8 + $0x270] sm:$0xff]
        %v770 = vld [vmem:[#allocation8 + $0x278] sm:$0xff]
        %v771 = vld [vmem:[#allocation8 + $0x280] sm:$0xff]
        %v772 = vld [vmem:[#allocation8 + $0x288] sm:$0xff]
        %v773 = vld [vmem:[#allocation8 + $0x290] sm:$0xff]
        %v774 = vld [vmem:[#allocation8 + $0x298] sm:$0xff]
        %v775 = vld [vmem:[#allocation8 + $0x2a0] sm:$0xff]
        %v776 = vld [vmem:[#allocation8 + $0x2a8] sm:$0xff]
        %v777 = vld [vmem:[#allocation8 + $0x2b0] sm:$0xff]
        %v778 = vld [vmem:[#allocation8 + $0x2b8] sm:$0xff]
        %v779 = vld [vmem:[#allocation8 + $0x2c0] sm:$0xff]
        %v780 = vld [vmem:[#allocation8 + $0x2c8] sm:$0xff]
        %v781 = vld [vmem:[#allocation8 + $0x2d0] sm:$0xff]
        %v782 = vld [vmem:[#allocation8 + $0x2d8] sm:$0xff]
        %v783 = vld [vmem:[#allocation8 + $0x2e0] sm:$0xff]
        %v784 = vld [vmem:[#allocation8 + $0x2e8] sm:$0xff]
        %v785 = vld [vmem:[#allocation8 + $0x2f0] sm:$0xff]
        %v786 = vld [vmem:[#allocation8 + $0x2f8] sm:$0xff]
        %v787 = vld [vmem:[#allocation8 + $0x300] sm:$0xff]
        %v788 = vld [vmem:[#allocation8 + $0x308] sm:$0xff]
        %v789 = vld [vmem:[#allocation8 + $0x310] sm:$0xff]
        %v790 = vld [vmem:[#allocation8 + $0x318] sm:$0xff]
        %v791 = vld [vmem:[#allocation8 + $0x320] sm:$0xff]
        %v792 = vld [vmem:[#allocation8 + $0x328] sm:$0xff]
        %v793 = vld [vmem:[#allocation8 + $0x330] sm:$0xff]
        %v794 = vld [vmem:[#allocation8 + $0x338] sm:$0xff]
        %v795 = vld [vmem:[#allocation8 + $0x340] sm:$0xff]
        %v796 = vld [vmem:[#allocation8 + $0x348] sm:$0xff]
        %v797 = vld [vmem:[#allocation8 + $0x350] sm:$0xff]
        %v798 = vld [vmem:[#allocation8 + $0x358] sm:$0xff]
        %v799 = vld [vmem:[#allocation8 + $0x360] sm:$0xff]
        %v800 = vld [vmem:[#allocation8 + $0x368] sm:$0xff]
        %v801 = vld [vmem:[#allocation8 + $0x370] sm:$0xff]
        %v802 = vld [vmem:[#allocation8 + $0x378] sm:$0xff]
        %v803 = vld [vmem:[#allocation8 + $0x380] sm:$0xff]
        %v804 = vld [vmem:[#allocation8 + $0x388] sm:$0xff]
        %v805 = vld [vmem:[#allocation8 + $0x390] sm:$0xff]
        %v806 = vld [vmem:[#allocation8 + $0x398] sm:$0xff]
        %v807 = vld [vmem:[#allocation8 + $0x3a0] sm:$0xff]
        %v808 = vld [vmem:[#allocation8 + $0x3a8] sm:$0xff]
        %v809 = vld [vmem:[#allocation8 + $0x3b0] sm:$0xff]
        %v810 = vld [vmem:[#allocation8 + $0x3b8] sm:$0xff]
        %v811 = vld [vmem:[#allocation8 + $0x3c0] sm:$0xff]
        %v812 = vld [vmem:[#allocation8 + $0x3c8] sm:$0xff]
        %v813 = vld [vmem:[#allocation8 + $0x3d0] sm:$0xff]
        %v814 = vld [vmem:[#allocation8 + $0x3d8] sm:$0xff]
        %v815 = vld [vmem:[#allocation8 + $0x3e0] sm:$0xff]
        %v816 = vld [vmem:[#allocation8 + $0x3e8] sm:$0xff]
        %v817 = vld [vmem:[#allocation8 + $0x3f0] sm:$0xff]
        %v818 = vld [vmem:[#allocation8 + $0x3f8] sm:$0xff]
        %v819 = vld [vmem:[#allocation8 + $0x400] sm:$0xff]
        %v820 = vld [vmem:[#allocation8 + $0x408] sm:$0xff]
        %v821 = vld [vmem:[#allocation8 + $0x410] sm:$0xff]
        %v822 = vld [vmem:[#allocation8 + $0x418] sm:$0xff]
        %v823 = vld [vmem:[#allocation8 + $0x420] sm:$0xff]
        %v824 = vld [vmem:[#allocation8 + $0x428] sm:$0xff]
        %v825 = vld [vmem:[#allocation8 + $0x430] sm:$0xff]
        %v826 = vld [vmem:[#allocation8 + $0x438] sm:$0xff]
        %v827 = vld [vmem:[#allocation8 + $0x440] sm:$0xff]
        %v828 = vld [vmem:[#allocation8 + $0x448] sm:$0xff]
        %v829 = vld [vmem:[#allocation8 + $0x450] sm:$0xff]
        %v830 = vld [vmem:[#allocation8 + $0x458] sm:$0xff]
        %v831 = vld [vmem:[#allocation8 + $0x460] sm:$0xff]
        %v832 = vld [vmem:[#allocation8 + $0x468] sm:$0xff]
        %v833 = vld [vmem:[#allocation8 + $0x470] sm:$0xff]
        %v834 = vld [vmem:[#allocation8 + $0x478] sm:$0xff]
        %v835 = vld [vmem:[#allocation8 + $0x480] sm:$0xff]
        %v836 = vld [vmem:[#allocation8 + $0x488] sm:$0xff]
        %v837 = vld [vmem:[#allocation8 + $0x490] sm:$0xff]
        %v838 = vld [vmem:[#allocation8 + $0x498] sm:$0xff]
        %v839 = vld [vmem:[#allocation8 + $0x4a0] sm:$0xff]
        %v840 = vld [vmem:[#allocation8 + $0x4a8] sm:$0xff]
        %v841 = vld [vmem:[#allocation8 + $0x4b0] sm:$0xff]
        %v842 = vld [vmem:[#allocation8 + $0x4b8] sm:$0xff]
        %v843 = vld [vmem:[#allocation8 + $0x4c0] sm:$0xff]
        %v844 = vld [vmem:[#allocation8 + $0x4c8] sm:$0xff]
        %v845 = vld [vmem:[#allocation8 + $0x4d0] sm:$0xff]
        %v846 = vld [vmem:[#allocation8 + $0x4d8] sm:$0xff]
        %v847 = vld [vmem:[#allocation8 + $0x4e0] sm:$0xff]
        %v848 = vld [vmem:[#allocation8 + $0x4e8] sm:$0xff]
        %v849 = vld [vmem:[#allocation8 + $0x4f0] sm:$0xff]
        %v850 = vld [vmem:[#allocation8 + $0x4f8] sm:$0xff]
        %v851 = vld [vmem:[#allocation8 + $0x500] sm:$0xff]
        %v852 = vld [vmem:[#allocation8 + $0x508] sm:$0xff]
        %v853 = vld [vmem:[#allocation8 + $0x510] sm:$0xff]
        %v854 = vld [vmem:[#allocation8 + $0x518] sm:$0xff]
        %v855 = vld [vmem:[#allocation8 + $0x520] sm:$0xff]
        %v856 = vld [vmem:[#allocation8 + $0x528] sm:$0xff]
        %v857 = vld [vmem:[#allocation8 + $0x530] sm:$0xff]
        %v858 = vld [vmem:[#allocation8 + $0x538] sm:$0xff]
        %v859 = vld [vmem:[#allocation8 + $0x540] sm:$0xff]
        %v860 = vld [vmem:[#allocation8 + $0x548] sm:$0xff]
        %v861 = vld [vmem:[#allocation8 + $0x550] sm:$0xff]
        %v862 = vld [vmem:[#allocation8 + $0x558] sm:$0xff]
        %v863 = vld [vmem:[#allocation8 + $0x560] sm:$0xff]
        %v864 = vld [vmem:[#allocation8 + $0x568] sm:$0xff]
        %v865 = vld [vmem:[#allocation8 + $0x570] sm:$0xff]
        %v866 = vld [vmem:[#allocation8 + $0x578] sm:$0xff]
        %v867 = vld [vmem:[#allocation8 + $0x580] sm:$0xff]
        %v868 = vld [vmem:[#allocation8 + $0x588] sm:$0xff]
        %v869 = vld [vmem:[#allocation8 + $0x590] sm:$0xff]
        %v870 = vld [vmem:[#allocation8 + $0x598] sm:$0xff]
        %v871 = vld [vmem:[#allocation8 + $0x5a0] sm:$0xff]
        %v872 = vld [vmem:[#allocation8 + $0x5a8] sm:$0xff]
        %v873 = vld [vmem:[#allocation8 + $0x5b0] sm:$0xff]
        %v874 = vld [vmem:[#allocation8 + $0x5b8] sm:$0xff]
        %v875 = vld [vmem:[#allocation8 + $0x5c0] sm:$0xff]
        %v876 = vld [vmem:[#allocation8 + $0x5c8] sm:$0xff]
        %v877 = vld [vmem:[#allocation8 + $0x5d0] sm:$0xff]
        %v878 = vld [vmem:[#allocation8 + $0x5d8] sm:$0xff]
        %v879 = vld [vmem:[#allocation8 + $0x5e0] sm:$0xff]
        %v880 = vld [vmem:[#allocation8 + $0x5e8] sm:$0xff]
        %v881 = vld [vmem:[#allocation8 + $0x5f0] sm:$0xff]
        %v882 = vld [vmem:[#allocation8 + $0x5f8] sm:$0xff]
        %v883 = vld [vmem:[#allocation8 + $0x600] sm:$0xff]
        %v884 = vld [vmem:[#allocation8 + $0x608] sm:$0xff]
        %v885 = vld [vmem:[#allocation8 + $0x610] sm:$0xff]
        %v886 = vld [vmem:[#allocation8 + $0x618] sm:$0xff]
        %v887 = vld [vmem:[#allocation8 + $0x620] sm:$0xff]
        %v888 = vld [vmem:[#allocation8 + $0x628] sm:$0xff]
        %v889 = vld [vmem:[#allocation8 + $0x630] sm:$0xff]
        %v890 = vld [vmem:[#allocation8 + $0x638] sm:$0xff]
        %v891 = vld [vmem:[#allocation8 + $0x640] sm:$0xff]
        %v892 = vld [vmem:[#allocation8 + $0x648] sm:$0xff]
        %v893 = vld [vmem:[#allocation8 + $0x650] sm:$0xff]
        %v894 = vld [vmem:[#allocation8 + $0x658] sm:$0xff]
        %v895 = vld [vmem:[#allocation8 + $0x660] sm:$0xff]
        %v896 = vld [vmem:[#allocation8 + $0x668] sm:$0xff]
        %v897 = vld [vmem:[#allocation8 + $0x670] sm:$0xff]
        %v898 = vld [vmem:[#allocation8 + $0x678] sm:$0xff]
        %v899 = vld [vmem:[#allocation8 + $0x680] sm:$0xff]
        %v900 = vld [vmem:[#allocation8 + $0x688] sm:$0xff]
        %v901 = vld [vmem:[#allocation8 + $0x690] sm:$0xff]
        %v902 = vld [vmem:[#allocation8 + $0x698] sm:$0xff]
        %v903 = vld [vmem:[#allocation8 + $0x6a0] sm:$0xff]
        %v904 = vld [vmem:[#allocation8 + $0x6a8] sm:$0xff]
        %v905 = vld [vmem:[#allocation8 + $0x6b0] sm:$0xff]
        %v906 = vld [vmem:[#allocation8 + $0x6b8] sm:$0xff]
        %v907 = vld [vmem:[#allocation8 + $0x6c0] sm:$0xff]
        %v908 = vld [vmem:[#allocation8 + $0x6c8] sm:$0xff]
        %v909 = vld [vmem:[#allocation8 + $0x6d0] sm:$0xff]
        %v910 = vld [vmem:[#allocation8 + $0x6d8] sm:$0xff]
        %v911 = vld [vmem:[#allocation8 + $0x6e0] sm:$0xff]
        %v912 = vld [vmem:[#allocation8 + $0x6e8] sm:$0xff]
        %v913 = vld [vmem:[#allocation8 + $0x6f0] sm:$0xff]
        %v914 = vld [vmem:[#allocation8 + $0x6f8] sm:$0xff]
        %v915 = vld [vmem:[#allocation8 + $0x700] sm:$0xff]
        %v916 = vld [vmem:[#allocation8 + $0x708] sm:$0xff]
        %v917 = vld [vmem:[#allocation8 + $0x710] sm:$0xff]
        %v918 = vld [vmem:[#allocation8 + $0x718] sm:$0xff]
        %v919 = vld [vmem:[#allocation8 + $0x720] sm:$0xff]
        %v920 = vld [vmem:[#allocation8 + $0x728] sm:$0xff]
        %v921 = vld [vmem:[#allocation8 + $0x730] sm:$0xff]
        %v922 = vld [vmem:[#allocation8 + $0x738] sm:$0xff]
        %v923 = vld [vmem:[#allocation8 + $0x740] sm:$0xff]
        %v924 = vld [vmem:[#allocation8 + $0x748] sm:$0xff]
        %v925 = vld [vmem:[#allocation8 + $0x750] sm:$0xff]
        %v926 = vld [vmem:[#allocation8 + $0x758] sm:$0xff]
        %v927 = vld [vmem:[#allocation8 + $0x760] sm:$0xff]
        %v928 = vld [vmem:[#allocation8 + $0x768] sm:$0xff]
        %v929 = vld [vmem:[#allocation8 + $0x770] sm:$0xff]
        %v930 = vld [vmem:[#allocation8 + $0x778] sm:$0xff]
        %v931 = vld [vmem:[#allocation8 + $0x780] sm:$0xff]
        %v932 = vld [vmem:[#allocation8 + $0x788] sm:$0xff]
        %v933 = vld [vmem:[#allocation8 + $0x790] sm:$0xff]
        %v934 = vld [vmem:[#allocation8 + $0x798] sm:$0xff]
        %v935 = vld [vmem:[#allocation8 + $0x7a0] sm:$0xff]
        %v936 = vld [vmem:[#allocation8 + $0x7a8] sm:$0xff]
        %v937 = vld [vmem:[#allocation8 + $0x7b0] sm:$0xff]
        %v938 = vld [vmem:[#allocation8 + $0x7b8] sm:$0xff]
        %v939 = vld [vmem:[#allocation8 + $0x7c0] sm:$0xff]
        %v940 = vld [vmem:[#allocation8 + $0x7c8] sm:$0xff]
        %v941 = vld [vmem:[#allocation8 + $0x7d0] sm:$0xff]
        %v942 = vld [vmem:[#allocation8 + $0x7d8] sm:$0xff]
        %v943 = vld [vmem:[#allocation8 + $0x7e0] sm:$0xff]
        %v944 = vld [vmem:[#allocation8 + $0x7e8] sm:$0xff]
        %v945 = vld [vmem:[#allocation8 + $0x7f0] sm:$0xff]
        %v946 = vld [vmem:[#allocation8 + $0x7f8] sm:$0xff]
        %v947 = vld [vmem:[#allocation8 + $0x800] sm:$0xff]
        %v948 = vld [vmem:[#allocation8 + $0x808] sm:$0xff]
        %v949 = vld [vmem:[#allocation8 + $0x810] sm:$0xff]
        %v950 = vld [vmem:[#allocation8 + $0x818] sm:$0xff]
        %v951 = vld [vmem:[#allocation8 + $0x820] sm:$0xff]
        %v952 = vld [vmem:[#allocation8 + $0x828] sm:$0xff]
        %v953 = vld [vmem:[#allocation8 + $0x830] sm:$0xff]
        %v954 = vld [vmem:[#allocation8 + $0x838] sm:$0xff]
        %v955 = vld [vmem:[#allocation8 + $0x840] sm:$0xff]
        %v956 = vld [vmem:[#allocation8 + $0x848] sm:$0xff]
        %v957 = vld [vmem:[#allocation8 + $0x850] sm:$0xff]
        %v958 = vld [vmem:[#allocation8 + $0x858] sm:$0xff]
        %v959 = vld [vmem:[#allocation8 + $0x860] sm:$0xff]
        %v960 = vld [vmem:[#allocation8 + $0x868] sm:$0xff]
        %v961 = vld [vmem:[#allocation8 + $0x870] sm:$0xff]
        %v962 = vld [vmem:[#allocation8 + $0x878] sm:$0xff]
        %v963 = vld [vmem:[#allocation8 + $0x880] sm:$0xff]
        %v964 = vld [vmem:[#allocation8 + $0x888] sm:$0xff]
        %v965 = vld [vmem:[#allocation8 + $0x890] sm:$0xff]
        %v966 = vld [vmem:[#allocation8 + $0x898] sm:$0xff]
        %v967 = vld [vmem:[#allocation8 + $0x8a0] sm:$0xff]
        %v968 = vld [vmem:[#allocation8 + $0x8a8] sm:$0xff]
        %v969 = vld [vmem:[#allocation8 + $0x8b0] sm:$0xff]
        %v970 = vld [vmem:[#allocation8 + $0x8b8] sm:$0xff]
        %v971 = vld [vmem:[#allocation8 + $0x8c0] sm:$0xff]
        %v972 = vld [vmem:[#allocation8 + $0x8c8] sm:$0xff]
        %v973 = vld [vmem:[#allocation8 + $0x8d0] sm:$0xff]
        %v974 = vld [vmem:[#allocation8 + $0x8d8] sm:$0xff]
        %v975 = vld [vmem:[#allocation8 + $0x8e0] sm:$0xff]
        %v976 = vld [vmem:[#allocation8 + $0x8e8] sm:$0xff]
        %v977 = vld [vmem:[#allocation8 + $0x8f0] sm:$0xff]
        %v978 = vld [vmem:[#allocation8 + $0x8f8] sm:$0xff]
        %v979 = vld [vmem:[#allocation8 + $0x900] sm:$0xff]
        %v980 = vld [vmem:[#allocation8 + $0x908] sm:$0xff]
        %v981 = vld [vmem:[#allocation8 + $0x910] sm:$0xff]
        %v982 = vld [vmem:[#allocation8 + $0x918] sm:$0xff]
        %v983 = vld [vmem:[#allocation8 + $0x920] sm:$0xff]
        %v984 = vld [vmem:[#allocation8 + $0x928] sm:$0xff]
        %v985 = vld [vmem:[#allocation8 + $0x930] sm:$0xff]
        %v986 = vld [vmem:[#allocation8 + $0x938] sm:$0xff]
        %v987 = vld [vmem:[#allocation8 + $0x940] sm:$0xff]
        %v988 = vld [vmem:[#allocation8 + $0x948] sm:$0xff]
        %v989 = vld [vmem:[#allocation8 + $0x950] sm:$0xff]
        %v990 = vld [vmem:[#allocation8 + $0x958] sm:$0xff]
        %v991 = vld [vmem:[#allocation8 + $0x960] sm:$0xff]
        %v992 = vld [vmem:[#allocation8 + $0x968] sm:$0xff]
        %v993 = vld [vmem:[#allocation8 + $0x970] sm:$0xff]
        %v994 = vld [vmem:[#allocation8 + $0x978] sm:$0xff]
        %v995 = vld [vmem:[#allocation8 + $0x980] sm:$0xff]
        %v996 = vld [vmem:[#allocation8 + $0x988] sm:$0xff]
        %v997 = vld [vmem:[#allocation8 + $0x990] sm:$0xff]
        %v998 = vld [vmem:[#allocation8 + $0x998] sm:$0xff]
        %v999 = vld [vmem:[#allocation8 + $0x9a0] sm:$0xff]
        %v1000 = vld [vmem:[#allocation8 + $0x9a8] sm:$0xff]
        %v1001 = vld [vmem:[#allocation8 + $0x9b0] sm:$0xff]
        %v1002 = vld [vmem:[#allocation8 + $0x9b8] sm:$0xff]
        %v1003 = vld [vmem:[#allocation8 + $0x9c0] sm:$0xff]
        %v1004 = vld [vmem:[#allocation8 + $0x9c8] sm:$0xff]
        %v1005 = vld [vmem:[#allocation8 + $0x9d0] sm:$0xff]
        %v1006 = vld [vmem:[#allocation8 + $0x9d8] sm:$0xff]
        %v1007 = vld [vmem:[#allocation8 + $0x9e0] sm:$0xff]
        %v1008 = vld [vmem:[#allocation8 + $0x9e8] sm:$0xff]
        %v1009 = vld [vmem:[#allocation8 + $0x9f0] sm:$0xff]
        %v1010 = vld [vmem:[#allocation8 + $0x9f8] sm:$0xff]
        %v1331 = vunpack.c.l.b16 %v691
        %v1332 = vunpack.c.h.b16 %v691
        %v1333 = vunpack.c.l.b16 %v692
        %v1334 = vunpack.c.h.b16 %v692
        %v1335 = vunpack.c.l.b16 %v693
        %v1336 = vunpack.c.h.b16 %v693
        %v1337 = vunpack.c.l.b16 %v694
        %v1338 = vunpack.c.h.b16 %v694
        %v1339 = vunpack.c.l.b16 %v695
        %v1340 = vunpack.c.h.b16 %v695
        %v1341 = vunpack.c.l.b16 %v696
        %v1342 = vunpack.c.h.b16 %v696
        %v1343 = vunpack.c.l.b16 %v697
        %v1344 = vunpack.c.h.b16 %v697
        %v1345 = vunpack.c.l.b16 %v698
        %v1346 = vunpack.c.h.b16 %v698
        %v1347 = vunpack.c.l.b16 %v699
        %v1348 = vunpack.c.h.b16 %v699
        %v1349 = vunpack.c.l.b16 %v700
        %v1350 = vunpack.c.h.b16 %v700
        %v1351 = vunpack.c.l.b16 %v701
        %v1352 = vunpack.c.h.b16 %v701
        %v1353 = vunpack.c.l.b16 %v702
        %v1354 = vunpack.c.h.b16 %v702
        %v1355 = vunpack.c.l.b16 %v703
        %v1356 = vunpack.c.h.b16 %v703
        %v1357 = vunpack.c.l.b16 %v704
        %v1358 = vunpack.c.h.b16 %v704
        %v1359 = vunpack.c.l.b16 %v705
        %v1360 = vunpack.c.h.b16 %v705
        %v1361 = vunpack.c.l.b16 %v706
        %v1362 = vunpack.c.h.b16 %v706
        %v1363 = vunpack.c.l.b16 %v707
        %v1364 = vunpack.c.h.b16 %v707
        %v1365 = vunpack.c.l.b16 %v708
        %v1366 = vunpack.c.h.b16 %v708
        %v1367 = vunpack.c.l.b16 %v709
        %v1368 = vunpack.c.h.b16 %v709
        %v1369 = vunpack.c.l.b16 %v710
        %v1370 = vunpack.c.h.b16 %v710
        %v1371 = vunpack.c.l.b16 %v711
        %v1372 = vunpack.c.h.b16 %v711
        %v1373 = vunpack.c.l.b16 %v712
        %v1374 = vunpack.c.h.b16 %v712
        %v1375 = vunpack.c.l.b16 %v713
        %v1376 = vunpack.c.h.b16 %v713
        %v1377 = vunpack.c.l.b16 %v714
        %v1378 = vunpack.c.h.b16 %v714
        %v1379 = vunpack.c.l.b16 %v715
        %v1380 = vunpack.c.h.b16 %v715
        %v1381 = vunpack.c.l.b16 %v716
        %v1382 = vunpack.c.h.b16 %v716
        %v1383 = vunpack.c.l.b16 %v717
        %v1384 = vunpack.c.h.b16 %v717
        %v1385 = vunpack.c.l.b16 %v718
        %v1386 = vunpack.c.h.b16 %v718
        %v1387 = vunpack.c.l.b16 %v719
        %v1388 = vunpack.c.h.b16 %v719
        %v1389 = vunpack.c.l.b16 %v720
        %v1390 = vunpack.c.h.b16 %v720
        %v1391 = vunpack.c.l.b16 %v721
        %v1392 = vunpack.c.h.b16 %v721
        %v1393 = vunpack.c.l.b16 %v722
        %v1394 = vunpack.c.h.b16 %v722
        %v1395 = vunpack.c.l.b16 %v723
        %v1396 = vunpack.c.h.b16 %v723
        %v1397 = vunpack.c.l.b16 %v724
        %v1398 = vunpack.c.h.b16 %v724
        %v1399 = vunpack.c.l.b16 %v725
        %v1400 = vunpack.c.h.b16 %v725
        %v1401 = vunpack.c.l.b16 %v726
        %v1402 = vunpack.c.h.b16 %v726
        %v1403 = vunpack.c.l.b16 %v727
        %v1404 = vunpack.c.h.b16 %v727
        %v1405 = vunpack.c.l.b16 %v728
        %v1406 = vunpack.c.h.b16 %v728
        %v1407 = vunpack.c.l.b16 %v729
        %v1408 = vunpack.c.h.b16 %v729
        %v1409 = vunpack.c.l.b16 %v730
        %v1410 = vunpack.c.h.b16 %v730
        %v1411 = vunpack.c.l.b16 %v731
        %v1412 = vunpack.c.h.b16 %v731
        %v1413 = vunpack.c.l.b16 %v732
        %v1414 = vunpack.c.h.b16 %v732
        %v1415 = vunpack.c.l.b16 %v733
        %v1416 = vunpack.c.h.b16 %v733
        %v1417 = vunpack.c.l.b16 %v734
        %v1418 = vunpack.c.h.b16 %v734
        %v1419 = vunpack.c.l.b16 %v735
        %v1420 = vunpack.c.h.b16 %v735
        %v1421 = vunpack.c.l.b16 %v736
        %v1422 = vunpack.c.h.b16 %v736
        %v1423 = vunpack.c.l.b16 %v737
        %v1424 = vunpack.c.h.b16 %v737
        %v1425 = vunpack.c.l.b16 %v738
        %v1426 = vunpack.c.h.b16 %v738
        %v1427 = vunpack.c.l.b16 %v739
        %v1428 = vunpack.c.h.b16 %v739
        %v1429 = vunpack.c.l.b16 %v740
        %v1430 = vunpack.c.h.b16 %v740
        %v1431 = vunpack.c.l.b16 %v741
        %v1432 = vunpack.c.h.b16 %v741
        %v1433 = vunpack.c.l.b16 %v742
        %v1434 = vunpack.c.h.b16 %v742
        %v1435 = vunpack.c.l.b16 %v743
        %v1436 = vunpack.c.h.b16 %v743
        %v1437 = vunpack.c.l.b16 %v744
        %v1438 = vunpack.c.h.b16 %v744
        %v1439 = vunpack.c.l.b16 %v745
        %v1440 = vunpack.c.h.b16 %v745
        %v1441 = vunpack.c.l.b16 %v746
        %v1442 = vunpack.c.h.b16 %v746
        %v1443 = vunpack.c.l.b16 %v747
        %v1444 = vunpack.c.h.b16 %v747
        %v1445 = vunpack.c.l.b16 %v748
        %v1446 = vunpack.c.h.b16 %v748
        %v1447 = vunpack.c.l.b16 %v749
        %v1448 = vunpack.c.h.b16 %v749
        %v1449 = vunpack.c.l.b16 %v750
        %v1450 = vunpack.c.h.b16 %v750
        %v1451 = vunpack.c.l.b16 %v751
        %v1452 = vunpack.c.h.b16 %v751
        %v1453 = vunpack.c.l.b16 %v752
        %v1454 = vunpack.c.h.b16 %v752
        %v1455 = vunpack.c.l.b16 %v753
        %v1456 = vunpack.c.h.b16 %v753
        %v1457 = vunpack.c.l.b16 %v754
        %v1458 = vunpack.c.h.b16 %v754
        %v1459 = vunpack.c.l.b16 %v755
        %v1460 = vunpack.c.h.b16 %v755
        %v1461 = vunpack.c.l.b16 %v756
        %v1462 = vunpack.c.h.b16 %v756
        %v1463 = vunpack.c.l.b16 %v757
        %v1464 = vunpack.c.h.b16 %v757
        %v1465 = vunpack.c.l.b16 %v758
        %v1466 = vunpack.c.h.b16 %v758
        %v1467 = vunpack.c.l.b16 %v759
        %v1468 = vunpack.c.h.b16 %v759
        %v1469 = vunpack.c.l.b16 %v760
        %v1470 = vunpack.c.h.b16 %v760
        %v1471 = vunpack.c.l.b16 %v761
        %v1472 = vunpack.c.h.b16 %v761
        %v1473 = vunpack.c.l.b16 %v762
        %v1474 = vunpack.c.h.b16 %v762
        %v1475 = vunpack.c.l.b16 %v763
        %v1476 = vunpack.c.h.b16 %v763
        %v1477 = vunpack.c.l.b16 %v764
        %v1478 = vunpack.c.h.b16 %v764
        %v1479 = vunpack.c.l.b16 %v765
        %v1480 = vunpack.c.h.b16 %v765
        %v1481 = vunpack.c.l.b16 %v766
        %v1482 = vunpack.c.h.b16 %v766
        %v1483 = vunpack.c.l.b16 %v767
        %v1484 = vunpack.c.h.b16 %v767
        %v1485 = vunpack.c.l.b16 %v768
        %v1486 = vunpack.c.h.b16 %v768
        %v1487 = vunpack.c.l.b16 %v769
        %v1488 = vunpack.c.h.b16 %v769
        %v1489 = vunpack.c.l.b16 %v770
        %v1490 = vunpack.c.h.b16 %v770
        %v1491 = vunpack.c.l.b16 %v771
        %v1492 = vunpack.c.h.b16 %v771
        %v1493 = vunpack.c.l.b16 %v772
        %v1494 = vunpack.c.h.b16 %v772
        %v1495 = vunpack.c.l.b16 %v773
        %v1496 = vunpack.c.h.b16 %v773
        %v1497 = vunpack.c.l.b16 %v774
        %v1498 = vunpack.c.h.b16 %v774
        %v1499 = vunpack.c.l.b16 %v775
        %v1500 = vunpack.c.h.b16 %v775
        %v1501 = vunpack.c.l.b16 %v776
        %v1502 = vunpack.c.h.b16 %v776
        %v1503 = vunpack.c.l.b16 %v777
        %v1504 = vunpack.c.h.b16 %v777
        %v1505 = vunpack.c.l.b16 %v778
        %v1506 = vunpack.c.h.b16 %v778
        %v1507 = vunpack.c.l.b16 %v779
        %v1508 = vunpack.c.h.b16 %v779
        %v1509 = vunpack.c.l.b16 %v780
        %v1510 = vunpack.c.h.b16 %v780
        %v1511 = vunpack.c.l.b16 %v781
        %v1512 = vunpack.c.h.b16 %v781
        %v1513 = vunpack.c.l.b16 %v782
        %v1514 = vunpack.c.h.b16 %v782
        %v1515 = vunpack.c.l.b16 %v783
        %v1516 = vunpack.c.h.b16 %v783
        %v1517 = vunpack.c.l.b16 %v784
        %v1518 = vunpack.c.h.b16 %v784
        %v1519 = vunpack.c.l.b16 %v785
        %v1520 = vunpack.c.h.b16 %v785
        %v1521 = vunpack.c.l.b16 %v786
        %v1522 = vunpack.c.h.b16 %v786
        %v1523 = vunpack.c.l.b16 %v787
        %v1524 = vunpack.c.h.b16 %v787
        %v1525 = vunpack.c.l.b16 %v788
        %v1526 = vunpack.c.h.b16 %v788
        %v1527 = vunpack.c.l.b16 %v789
        %v1528 = vunpack.c.h.b16 %v789
        %v1529 = vunpack.c.l.b16 %v790
        %v1530 = vunpack.c.h.b16 %v790
        %v1531 = vunpack.c.l.b16 %v791
        %v1532 = vunpack.c.h.b16 %v791
        %v1533 = vunpack.c.l.b16 %v792
        %v1534 = vunpack.c.h.b16 %v792
        %v1535 = vunpack.c.l.b16 %v793
        %v1536 = vunpack.c.h.b16 %v793
        %v1537 = vunpack.c.l.b16 %v794
        %v1538 = vunpack.c.h.b16 %v794
        %v1539 = vunpack.c.l.b16 %v795
        %v1540 = vunpack.c.h.b16 %v795
        %v1541 = vunpack.c.l.b16 %v796
        %v1542 = vunpack.c.h.b16 %v796
        %v1543 = vunpack.c.l.b16 %v797
        %v1544 = vunpack.c.h.b16 %v797
        %v1545 = vunpack.c.l.b16 %v798
        %v1546 = vunpack.c.h.b16 %v798
        %v1547 = vunpack.c.l.b16 %v799
        %v1548 = vunpack.c.h.b16 %v799
        %v1549 = vunpack.c.l.b16 %v800
        %v1550 = vunpack.c.h.b16 %v800
        %v1551 = vunpack.c.l.b16 %v801
        %v1552 = vunpack.c.h.b16 %v801
        %v1553 = vunpack.c.l.b16 %v802
        %v1554 = vunpack.c.h.b16 %v802
        %v1555 = vunpack.c.l.b16 %v803
        %v1556 = vunpack.c.h.b16 %v803
        %v1557 = vunpack.c.l.b16 %v804
        %v1558 = vunpack.c.h.b16 %v804
        %v1559 = vunpack.c.l.b16 %v805
        %v1560 = vunpack.c.h.b16 %v805
        %v1561 = vunpack.c.l.b16 %v806
        %v1562 = vunpack.c.h.b16 %v806
        %v1563 = vunpack.c.l.b16 %v807
        %v1564 = vunpack.c.h.b16 %v807
        %v1565 = vunpack.c.l.b16 %v808
        %v1566 = vunpack.c.h.b16 %v808
        %v1567 = vunpack.c.l.b16 %v809
        %v1568 = vunpack.c.h.b16 %v809
        %v1569 = vunpack.c.l.b16 %v810
        %v1570 = vunpack.c.h.b16 %v810
        %v1571 = vunpack.c.l.b16 %v811
        %v1572 = vunpack.c.h.b16 %v811
        %v1573 = vunpack.c.l.b16 %v812
        %v1574 = vunpack.c.h.b16 %v812
        %v1575 = vunpack.c.l.b16 %v813
        %v1576 = vunpack.c.h.b16 %v813
        %v1577 = vunpack.c.l.b16 %v814
        %v1578 = vunpack.c.h.b16 %v814
        %v1579 = vunpack.c.l.b16 %v815
        %v1580 = vunpack.c.h.b16 %v815
        %v1581 = vunpack.c.l.b16 %v816
        %v1582 = vunpack.c.h.b16 %v816
        %v1583 = vunpack.c.l.b16 %v817
        %v1584 = vunpack.c.h.b16 %v817
        %v1585 = vunpack.c.l.b16 %v818
        %v1586 = vunpack.c.h.b16 %v818
        %v1587 = vunpack.c.l.b16 %v819
        %v1588 = vunpack.c.h.b16 %v819
        %v1589 = vunpack.c.l.b16 %v820
        %v1590 = vunpack.c.h.b16 %v820
        %v1591 = vunpack.c.l.b16 %v821
        %v1592 = vunpack.c.h.b16 %v821
        %v1593 = vunpack.c.l.b16 %v822
        %v1594 = vunpack.c.h.b16 %v822
        %v1595 = vunpack.c.l.b16 %v823
        %v1596 = vunpack.c.h.b16 %v823
        %v1597 = vunpack.c.l.b16 %v824
        %v1598 = vunpack.c.h.b16 %v824
        %v1599 = vunpack.c.l.b16 %v825
        %v1600 = vunpack.c.h.b16 %v825
        %v1601 = vunpack.c.l.b16 %v826
        %v1602 = vunpack.c.h.b16 %v826
        %v1603 = vunpack.c.l.b16 %v827
        %v1604 = vunpack.c.h.b16 %v827
        %v1605 = vunpack.c.l.b16 %v828
        %v1606 = vunpack.c.h.b16 %v828
        %v1607 = vunpack.c.l.b16 %v829
        %v1608 = vunpack.c.h.b16 %v829
        %v1609 = vunpack.c.l.b16 %v830
        %v1610 = vunpack.c.h.b16 %v830
        %v1611 = vunpack.c.l.b16 %v831
        %v1612 = vunpack.c.h.b16 %v831
        %v1613 = vunpack.c.l.b16 %v832
        %v1614 = vunpack.c.h.b16 %v832
        %v1615 = vunpack.c.l.b16 %v833
        %v1616 = vunpack.c.h.b16 %v833
        %v1617 = vunpack.c.l.b16 %v834
        %v1618 = vunpack.c.h.b16 %v834
        %v1619 = vunpack.c.l.b16 %v835
        %v1620 = vunpack.c.h.b16 %v835
        %v1621 = vunpack.c.l.b16 %v836
        %v1622 = vunpack.c.h.b16 %v836
        %v1623 = vunpack.c.l.b16 %v837
        %v1624 = vunpack.c.h.b16 %v837
        %v1625 = vunpack.c.l.b16 %v838
        %v1626 = vunpack.c.h.b16 %v838
        %v1627 = vunpack.c.l.b16 %v839
        %v1628 = vunpack.c.h.b16 %v839
        %v1629 = vunpack.c.l.b16 %v840
        %v1630 = vunpack.c.h.b16 %v840
        %v1631 = vunpack.c.l.b16 %v841
        %v1632 = vunpack.c.h.b16 %v841
        %v1633 = vunpack.c.l.b16 %v842
        %v1634 = vunpack.c.h.b16 %v842
        %v1635 = vunpack.c.l.b16 %v843
        %v1636 = vunpack.c.h.b16 %v843
        %v1637 = vunpack.c.l.b16 %v844
        %v1638 = vunpack.c.h.b16 %v844
        %v1639 = vunpack.c.l.b16 %v845
        %v1640 = vunpack.c.h.b16 %v845
        %v1641 = vunpack.c.l.b16 %v846
        %v1642 = vunpack.c.h.b16 %v846
        %v1643 = vunpack.c.l.b16 %v847
        %v1644 = vunpack.c.h.b16 %v847
        %v1645 = vunpack.c.l.b16 %v848
        %v1646 = vunpack.c.h.b16 %v848
        %v1647 = vunpack.c.l.b16 %v849
        %v1648 = vunpack.c.h.b16 %v849
        %v1649 = vunpack.c.l.b16 %v850
        %v1650 = vunpack.c.h.b16 %v850
        %v1651 = vunpack.c.l.b16 %v851
        %v1652 = vunpack.c.h.b16 %v851
        %v1653 = vunpack.c.l.b16 %v852
        %v1654 = vunpack.c.h.b16 %v852
        %v1655 = vunpack.c.l.b16 %v853
        %v1656 = vunpack.c.h.b16 %v853
        %v1657 = vunpack.c.l.b16 %v854
        %v1658 = vunpack.c.h.b16 %v854
        %v1659 = vunpack.c.l.b16 %v855
        %v1660 = vunpack.c.h.b16 %v855
        %v1661 = vunpack.c.l.b16 %v856
        %v1662 = vunpack.c.h.b16 %v856
        %v1663 = vunpack.c.l.b16 %v857
        %v1664 = vunpack.c.h.b16 %v857
        %v1665 = vunpack.c.l.b16 %v858
        %v1666 = vunpack.c.h.b16 %v858
        %v1667 = vunpack.c.l.b16 %v859
        %v1668 = vunpack.c.h.b16 %v859
        %v1669 = vunpack.c.l.b16 %v860
        %v1670 = vunpack.c.h.b16 %v860
        %v1671 = vunpack.c.l.b16 %v861
        %v1672 = vunpack.c.h.b16 %v861
        %v1673 = vunpack.c.l.b16 %v862
        %v1674 = vunpack.c.h.b16 %v862
        %v1675 = vunpack.c.l.b16 %v863
        %v1676 = vunpack.c.h.b16 %v863
        %v1677 = vunpack.c.l.b16 %v864
        %v1678 = vunpack.c.h.b16 %v864
        %v1679 = vunpack.c.l.b16 %v865
        %v1680 = vunpack.c.h.b16 %v865
        %v1681 = vunpack.c.l.b16 %v866
        %v1682 = vunpack.c.h.b16 %v866
        %v1683 = vunpack.c.l.b16 %v867
        %v1684 = vunpack.c.h.b16 %v867
        %v1685 = vunpack.c.l.b16 %v868
        %v1686 = vunpack.c.h.b16 %v868
        %v1687 = vunpack.c.l.b16 %v869
        %v1688 = vunpack.c.h.b16 %v869
        %v1689 = vunpack.c.l.b16 %v870
        %v1690 = vunpack.c.h.b16 %v870
        %v1691 = vunpack.c.l.b16 %v871
        %v1692 = vunpack.c.h.b16 %v871
        %v1693 = vunpack.c.l.b16 %v872
        %v1694 = vunpack.c.h.b16 %v872
        %v1695 = vunpack.c.l.b16 %v873
        %v1696 = vunpack.c.h.b16 %v873
        %v1697 = vunpack.c.l.b16 %v874
        %v1698 = vunpack.c.h.b16 %v874
        %v1699 = vunpack.c.l.b16 %v875
        %v1700 = vunpack.c.h.b16 %v875
        %v1701 = vunpack.c.l.b16 %v876
        %v1702 = vunpack.c.h.b16 %v876
        %v1703 = vunpack.c.l.b16 %v877
        %v1704 = vunpack.c.h.b16 %v877
        %v1705 = vunpack.c.l.b16 %v878
        %v1706 = vunpack.c.h.b16 %v878
        %v1707 = vunpack.c.l.b16 %v879
        %v1708 = vunpack.c.h.b16 %v879
        %v1709 = vunpack.c.l.b16 %v880
        %v1710 = vunpack.c.h.b16 %v880
        %v1711 = vunpack.c.l.b16 %v881
        %v1712 = vunpack.c.h.b16 %v881
        %v1713 = vunpack.c.l.b16 %v882
        %v1714 = vunpack.c.h.b16 %v882
        %v1715 = vunpack.c.l.b16 %v883
        %v1716 = vunpack.c.h.b16 %v883
        %v1717 = vunpack.c.l.b16 %v884
        %v1718 = vunpack.c.h.b16 %v884
        %v1719 = vunpack.c.l.b16 %v885
        %v1720 = vunpack.c.h.b16 %v885
        %v1721 = vunpack.c.l.b16 %v886
        %v1722 = vunpack.c.h.b16 %v886
        %v1723 = vunpack.c.l.b16 %v887
        %v1724 = vunpack.c.h.b16 %v887
        %v1725 = vunpack.c.l.b16 %v888
        %v1726 = vunpack.c.h.b16 %v888
        %v1727 = vunpack.c.l.b16 %v889
        %v1728 = vunpack.c.h.b16 %v889
        %v1729 = vunpack.c.l.b16 %v890
        %v1730 = vunpack.c.h.b16 %v890
        %v1731 = vunpack.c.l.b16 %v891
        %v1732 = vunpack.c.h.b16 %v891
        %v1733 = vunpack.c.l.b16 %v892
        %v1734 = vunpack.c.h.b16 %v892
        %v1735 = vunpack.c.l.b16 %v893
        %v1736 = vunpack.c.h.b16 %v893
        %v1737 = vunpack.c.l.b16 %v894
        %v1738 = vunpack.c.h.b16 %v894
        %v1739 = vunpack.c.l.b16 %v895
        %v1740 = vunpack.c.h.b16 %v895
        %v1741 = vunpack.c.l.b16 %v896
        %v1742 = vunpack.c.h.b16 %v896
        %v1743 = vunpack.c.l.b16 %v897
        %v1744 = vunpack.c.h.b16 %v897
        %v1745 = vunpack.c.l.b16 %v898
        %v1746 = vunpack.c.h.b16 %v898
        %v1747 = vunpack.c.l.b16 %v899
        %v1748 = vunpack.c.h.b16 %v899
        %v1749 = vunpack.c.l.b16 %v900
        %v1750 = vunpack.c.h.b16 %v900
        %v1751 = vunpack.c.l.b16 %v901
        %v1752 = vunpack.c.h.b16 %v901
        %v1753 = vunpack.c.l.b16 %v902
        %v1754 = vunpack.c.h.b16 %v902
        %v1755 = vunpack.c.l.b16 %v903
        %v1756 = vunpack.c.h.b16 %v903
        %v1757 = vunpack.c.l.b16 %v904
        %v1758 = vunpack.c.h.b16 %v904
        %v1759 = vunpack.c.l.b16 %v905
        %v1760 = vunpack.c.h.b16 %v905
        %v1761 = vunpack.c.l.b16 %v906
        %v1762 = vunpack.c.h.b16 %v906
        %v1763 = vunpack.c.l.b16 %v907
        %v1764 = vunpack.c.h.b16 %v907
        %v1765 = vunpack.c.l.b16 %v908
        %v1766 = vunpack.c.h.b16 %v908
        %v1767 = vunpack.c.l.b16 %v909
        %v1768 = vunpack.c.h.b16 %v909
        %v1769 = vunpack.c.l.b16 %v910
        %v1770 = vunpack.c.h.b16 %v910
        %v1771 = vunpack.c.l.b16 %v911
        %v1772 = vunpack.c.h.b16 %v911
        %v1773 = vunpack.c.l.b16 %v912
        %v1774 = vunpack.c.h.b16 %v912
        %v1775 = vunpack.c.l.b16 %v913
        %v1776 = vunpack.c.h.b16 %v913
        %v1777 = vunpack.c.l.b16 %v914
        %v1778 = vunpack.c.h.b16 %v914
        %v1779 = vunpack.c.l.b16 %v915
        %v1780 = vunpack.c.h.b16 %v915
        %v1781 = vunpack.c.l.b16 %v916
        %v1782 = vunpack.c.h.b16 %v916
        %v1783 = vunpack.c.l.b16 %v917
        %v1784 = vunpack.c.h.b16 %v917
        %v1785 = vunpack.c.l.b16 %v918
        %v1786 = vunpack.c.h.b16 %v918
        %v1787 = vunpack.c.l.b16 %v919
        %v1788 = vunpack.c.h.b16 %v919
        %v1789 = vunpack.c.l.b16 %v920
        %v1790 = vunpack.c.h.b16 %v920
        %v1791 = vunpack.c.l.b16 %v921
        %v1792 = vunpack.c.h.b16 %v921
        %v1793 = vunpack.c.l.b16 %v922
        %v1794 = vunpack.c.h.b16 %v922
        %v1795 = vunpack.c.l.b16 %v923
        %v1796 = vunpack.c.h.b16 %v923
        %v1797 = vunpack.c.l.b16 %v924
        %v1798 = vunpack.c.h.b16 %v924
        %v1799 = vunpack.c.l.b16 %v925
        %v1800 = vunpack.c.h.b16 %v925
        %v1801 = vunpack.c.l.b16 %v926
        %v1802 = vunpack.c.h.b16 %v926
        %v1803 = vunpack.c.l.b16 %v927
        %v1804 = vunpack.c.h.b16 %v927
        %v1805 = vunpack.c.l.b16 %v928
        %v1806 = vunpack.c.h.b16 %v928
        %v1807 = vunpack.c.l.b16 %v929
        %v1808 = vunpack.c.h.b16 %v929
        %v1809 = vunpack.c.l.b16 %v930
        %v1810 = vunpack.c.h.b16 %v930
        %v1811 = vunpack.c.l.b16 %v931
        %v1812 = vunpack.c.h.b16 %v931
        %v1813 = vunpack.c.l.b16 %v932
        %v1814 = vunpack.c.h.b16 %v932
        %v1815 = vunpack.c.l.b16 %v933
        %v1816 = vunpack.c.h.b16 %v933
        %v1817 = vunpack.c.l.b16 %v934
        %v1818 = vunpack.c.h.b16 %v934
        %v1819 = vunpack.c.l.b16 %v935
        %v1820 = vunpack.c.h.b16 %v935
        %v1821 = vunpack.c.l.b16 %v936
        %v1822 = vunpack.c.h.b16 %v936
        %v1823 = vunpack.c.l.b16 %v937
        %v1824 = vunpack.c.h.b16 %v937
        %v1825 = vunpack.c.l.b16 %v938
        %v1826 = vunpack.c.h.b16 %v938
        %v1827 = vunpack.c.l.b16 %v939
        %v1828 = vunpack.c.h.b16 %v939
        %v1829 = vunpack.c.l.b16 %v940
        %v1830 = vunpack.c.h.b16 %v940
        %v1831 = vunpack.c.l.b16 %v941
        %v1832 = vunpack.c.h.b16 %v941
        %v1833 = vunpack.c.l.b16 %v942
        %v1834 = vunpack.c.h.b16 %v942
        %v1835 = vunpack.c.l.b16 %v943
        %v1836 = vunpack.c.h.b16 %v943
        %v1837 = vunpack.c.l.b16 %v944
        %v1838 = vunpack.c.h.b16 %v944
        %v1839 = vunpack.c.l.b16 %v945
        %v1840 = vunpack.c.h.b16 %v945
        %v1841 = vunpack.c.l.b16 %v946
        %v1842 = vunpack.c.h.b16 %v946
        %v1843 = vunpack.c.l.b16 %v947
        %v1844 = vunpack.c.h.b16 %v947
        %v1845 = vunpack.c.l.b16 %v948
        %v1846 = vunpack.c.h.b16 %v948
        %v1847 = vunpack.c.l.b16 %v949
        %v1848 = vunpack.c.h.b16 %v949
        %v1849 = vunpack.c.l.b16 %v950
        %v1850 = vunpack.c.h.b16 %v950
        %v1851 = vunpack.c.l.b16 %v951
        %v1852 = vunpack.c.h.b16 %v951
        %v1853 = vunpack.c.l.b16 %v952
        %v1854 = vunpack.c.h.b16 %v952
        %v1855 = vunpack.c.l.b16 %v953
        %v1856 = vunpack.c.h.b16 %v953
        %v1857 = vunpack.c.l.b16 %v954
        %v1858 = vunpack.c.h.b16 %v954
        %v1859 = vunpack.c.l.b16 %v955
        %v1860 = vunpack.c.h.b16 %v955
        %v1861 = vunpack.c.l.b16 %v956
        %v1862 = vunpack.c.h.b16 %v956
        %v1863 = vunpack.c.l.b16 %v957
        %v1864 = vunpack.c.h.b16 %v957
        %v1865 = vunpack.c.l.b16 %v958
        %v1866 = vunpack.c.h.b16 %v958
        %v1867 = vunpack.c.l.b16 %v959
        %v1868 = vunpack.c.h.b16 %v959
        %v1869 = vunpack.c.l.b16 %v960
        %v1870 = vunpack.c.h.b16 %v960
        %v1871 = vunpack.c.l.b16 %v961
        %v1872 = vunpack.c.h.b16 %v961
        %v1873 = vunpack.c.l.b16 %v962
        %v1874 = vunpack.c.h.b16 %v962
        %v1875 = vunpack.c.l.b16 %v963
        %v1876 = vunpack.c.h.b16 %v963
        %v1877 = vunpack.c.l.b16 %v964
        %v1878 = vunpack.c.h.b16 %v964
        %v1879 = vunpack.c.l.b16 %v965
        %v1880 = vunpack.c.h.b16 %v965
        %v1881 = vunpack.c.l.b16 %v966
        %v1882 = vunpack.c.h.b16 %v966
        %v1883 = vunpack.c.l.b16 %v967
        %v1884 = vunpack.c.h.b16 %v967
        %v1885 = vunpack.c.l.b16 %v968
        %v1886 = vunpack.c.h.b16 %v968
        %v1887 = vunpack.c.l.b16 %v969
        %v1888 = vunpack.c.h.b16 %v969
        %v1889 = vunpack.c.l.b16 %v970
        %v1890 = vunpack.c.h.b16 %v970
        %v1891 = vunpack.c.l.b16 %v971
        %v1892 = vunpack.c.h.b16 %v971
        %v1893 = vunpack.c.l.b16 %v972
        %v1894 = vunpack.c.h.b16 %v972
        %v1895 = vunpack.c.l.b16 %v973
        %v1896 = vunpack.c.h.b16 %v973
        %v1897 = vunpack.c.l.b16 %v974
        %v1898 = vunpack.c.h.b16 %v974
        %v1899 = vunpack.c.l.b16 %v975
        %v1900 = vunpack.c.h.b16 %v975
        %v1901 = vunpack.c.l.b16 %v976
        %v1902 = vunpack.c.h.b16 %v976
        %v1903 = vunpack.c.l.b16 %v977
        %v1904 = vunpack.c.h.b16 %v977
        %v1905 = vunpack.c.l.b16 %v978
        %v1906 = vunpack.c.h.b16 %v978
        %v1907 = vunpack.c.l.b16 %v979
        %v1908 = vunpack.c.h.b16 %v979
        %v1909 = vunpack.c.l.b16 %v980
        %v1910 = vunpack.c.h.b16 %v980
        %v1911 = vunpack.c.l.b16 %v981
        %v1912 = vunpack.c.h.b16 %v981
        %v1913 = vunpack.c.l.b16 %v982
        %v1914 = vunpack.c.h.b16 %v982
        %v1915 = vunpack.c.l.b16 %v983
        %v1916 = vunpack.c.h.b16 %v983
        %v1917 = vunpack.c.l.b16 %v984
        %v1918 = vunpack.c.h.b16 %v984
        %v1919 = vunpack.c.l.b16 %v985
        %v1920 = vunpack.c.h.b16 %v985
        %v1921 = vunpack.c.l.b16 %v986
        %v1922 = vunpack.c.h.b16 %v986
        %v1923 = vunpack.c.l.b16 %v987
        %v1924 = vunpack.c.h.b16 %v987
        %v1925 = vunpack.c.l.b16 %v988
        %v1926 = vunpack.c.h.b16 %v988
        %v1927 = vunpack.c.l.b16 %v989
        %v1928 = vunpack.c.h.b16 %v989
        %v1929 = vunpack.c.l.b16 %v990
        %v1930 = vunpack.c.h.b16 %v990
        %v1931 = vunpack.c.l.b16 %v991
        %v1932 = vunpack.c.h.b16 %v991
        %v1933 = vunpack.c.l.b16 %v992
        %v1934 = vunpack.c.h.b16 %v992
        %v1935 = vunpack.c.l.b16 %v993
        %v1936 = vunpack.c.h.b16 %v993
        %v1937 = vunpack.c.l.b16 %v994
        %v1938 = vunpack.c.h.b16 %v994
        %v1939 = vunpack.c.l.b16 %v995
        %v1940 = vunpack.c.h.b16 %v995
        %v1941 = vunpack.c.l.b16 %v996
        %v1942 = vunpack.c.h.b16 %v996
        %v1943 = vunpack.c.l.b16 %v997
        %v1944 = vunpack.c.h.b16 %v997
        %v1945 = vunpack.c.l.b16 %v998
        %v1946 = vunpack.c.h.b16 %v998
        %v1947 = vunpack.c.l.b16 %v999
        %v1948 = vunpack.c.h.b16 %v999
        %v1949 = vunpack.c.l.b16 %v1000
        %v1950 = vunpack.c.h.b16 %v1000
        %v1951 = vunpack.c.l.b16 %v1001
        %v1952 = vunpack.c.h.b16 %v1001
        %v1953 = vunpack.c.l.b16 %v1002
        %v1954 = vunpack.c.h.b16 %v1002
        %v1955 = vunpack.c.l.b16 %v1003
        %v1956 = vunpack.c.h.b16 %v1003
        %v1957 = vunpack.c.l.b16 %v1004
        %v1958 = vunpack.c.h.b16 %v1004
        %v1959 = vunpack.c.l.b16 %v1005
        %v1960 = vunpack.c.h.b16 %v1005
        %v1961 = vunpack.c.l.b16 %v1006
        %v1962 = vunpack.c.h.b16 %v1006
        %v1963 = vunpack.c.l.b16 %v1007
        %v1964 = vunpack.c.h.b16 %v1007
        %v1965 = vunpack.c.l.b16 %v1008
        %v1966 = vunpack.c.h.b16 %v1008
        %v1967 = vunpack.c.l.b16 %v1009
        %v1968 = vunpack.c.h.b16 %v1009
        %v1969 = vunpack.c.l.b16 %v1010
        %v1970 = vunpack.c.h.b16 %v1010
        %v1971 = vpack.c.b16 %v1371, %v1331
        %v1972 = vpack.c.b16 %v1372, %v1332
        %v1973 = vpack.c.b16 %v1373, %v1333
        %v1974 = vpack.c.b16 %v1374, %v1334
        %v1975 = vpack.c.b16 %v1375, %v1335
        %v1976 = vpack.c.b16 %v1376, %v1336
        %v1977 = vpack.c.b16 %v1377, %v1337
        %v1978 = vpack.c.b16 %v1378, %v1338
        %v1979 = vpack.c.b16 %v1379, %v1339
        %v1980 = vpack.c.b16 %v1380, %v1340
        %v1981 = vpack.c.b16 %v1381, %v1341
        %v1982 = vpack.c.b16 %v1382, %v1342
        %v1983 = vpack.c.b16 %v1383, %v1343
        %v1984 = vpack.c.b16 %v1384, %v1344
        %v1985 = vpack.c.b16 %v1385, %v1345
        %v1986 = vpack.c.b16 %v1386, %v1346
        %v1987 = vpack.c.b16 %v1387, %v1347
        %v1988 = vpack.c.b16 %v1388, %v1348
        %v1989 = vpack.c.b16 %v1389, %v1349
        %v1990 = vpack.c.b16 %v1390, %v1350
        %v1991 = vpack.c.b16 %v1391, %v1351
        %v1992 = vpack.c.b16 %v1392, %v1352
        %v1993 = vpack.c.b16 %v1393, %v1353
        %v1994 = vpack.c.b16 %v1394, %v1354
        %v1995 = vpack.c.b16 %v1395, %v1355
        %v1996 = vpack.c.b16 %v1396, %v1356
        %v1997 = vpack.c.b16 %v1397, %v1357
        %v1998 = vpack.c.b16 %v1398, %v1358
        %v1999 = vpack.c.b16 %v1399, %v1359
        %v2000 = vpack.c.b16 %v1400, %v1360
        %v2001 = vpack.c.b16 %v1401, %v1361
        %v2002 = vpack.c.b16 %v1402, %v1362
        %v2003 = vpack.c.b16 %v1403, %v1363
        %v2004 = vpack.c.b16 %v1404, %v1364
        %v2005 = vpack.c.b16 %v1405, %v1365
        %v2006 = vpack.c.b16 %v1406, %v1366
        %v2007 = vpack.c.b16 %v1407, %v1367
        %v2008 = vpack.c.b16 %v1408, %v1368
        %v2009 = vpack.c.b16 %v1409, %v1369
        %v2010 = vpack.c.b16 %v1410, %v1370
        %v2011 = vpack.c.b16 %v1451, %v1411
        %v2012 = vpack.c.b16 %v1452, %v1412
        %v2013 = vpack.c.b16 %v1453, %v1413
        %v2014 = vpack.c.b16 %v1454, %v1414
        %v2015 = vpack.c.b16 %v1455, %v1415
        %v2016 = vpack.c.b16 %v1456, %v1416
        %v2017 = vpack.c.b16 %v1457, %v1417
        %v2018 = vpack.c.b16 %v1458, %v1418
        %v2019 = vpack.c.b16 %v1459, %v1419
        %v2020 = vpack.c.b16 %v1460, %v1420
        %v2021 = vpack.c.b16 %v1461, %v1421
        %v2022 = vpack.c.b16 %v1462, %v1422
        %v2023 = vpack.c.b16 %v1463, %v1423
        %v2024 = vpack.c.b16 %v1464, %v1424
        %v2025 = vpack.c.b16 %v1465, %v1425
        %v2026 = vpack.c.b16 %v1466, %v1426
        %v2027 = vpack.c.b16 %v1467, %v1427
        %v2028 = vpack.c.b16 %v1468, %v1428
        %v2029 = vpack.c.b16 %v1469, %v1429
        %v2030 = vpack.c.b16 %v1470, %v1430
        %v2031 = vpack.c.b16 %v1471, %v1431
        %v2032 = vpack.c.b16 %v1472, %v1432
        %v2033 = vpack.c.b16 %v1473, %v1433
        %v2034 = vpack.c.b16 %v1474, %v1434
        %v2035 = vpack.c.b16 %v1475, %v1435
        %v2036 = vpack.c.b16 %v1476, %v1436
        %v2037 = vpack.c.b16 %v1477, %v1437
        %v2038 = vpack.c.b16 %v1478, %v1438
        %v2039 = vpack.c.b16 %v1479, %v1439
        %v2040 = vpack.c.b16 %v1480, %v1440
        %v2041 = vpack.c.b16 %v1481, %v1441
        %v2042 = vpack.c.b16 %v1482, %v1442
        %v2043 = vpack.c.b16 %v1483, %v1443
        %v2044 = vpack.c.b16 %v1484, %v1444
        %v2045 = vpack.c.b16 %v1485, %v1445
        %v2046 = vpack.c.b16 %v1486, %v1446
        %v2047 = vpack.c.b16 %v1487, %v1447
        %v2048 = vpack.c.b16 %v1488, %v1448
        %v2049 = vpack.c.b16 %v1489, %v1449
        %v2050 = vpack.c.b16 %v1490, %v1450
        %v2051 = vpack.c.b16 %v1531, %v1491
        %v2052 = vpack.c.b16 %v1532, %v1492
        %v2053 = vpack.c.b16 %v1533, %v1493
        %v2054 = vpack.c.b16 %v1534, %v1494
        %v2055 = vpack.c.b16 %v1535, %v1495
        %v2056 = vpack.c.b16 %v1536, %v1496
        %v2057 = vpack.c.b16 %v1537, %v1497
        %v2058 = vpack.c.b16 %v1538, %v1498
        %v2059 = vpack.c.b16 %v1539, %v1499
        %v2060 = vpack.c.b16 %v1540, %v1500
        %v2061 = vpack.c.b16 %v1541, %v1501
        %v2062 = vpack.c.b16 %v1542, %v1502
        %v2063 = vpack.c.b16 %v1543, %v1503
        %v2064 = vpack.c.b16 %v1544, %v1504
        %v2065 = vpack.c.b16 %v1545, %v1505
        %v2066 = vpack.c.b16 %v1546, %v1506
        %v2067 = vpack.c.b16 %v1547, %v1507
        %v2068 = vpack.c.b16 %v1548, %v1508
        %v2069 = vpack.c.b16 %v1549, %v1509
        %v2070 = vpack.c.b16 %v1550, %v1510
        %v2071 = vpack.c.b16 %v1551, %v1511
        %v2072 = vpack.c.b16 %v1552, %v1512
        %v2073 = vpack.c.b16 %v1553, %v1513
        %v2074 = vpack.c.b16 %v1554, %v1514
        %v2075 = vpack.c.b16 %v1555, %v1515
        %v2076 = vpack.c.b16 %v1556, %v1516
        %v2077 = vpack.c.b16 %v1557, %v1517
        %v2078 = vpack.c.b16 %v1558, %v1518
        %v2079 = vpack.c.b16 %v1559, %v1519
        %v2080 = vpack.c.b16 %v1560, %v1520
        %v2081 = vpack.c.b16 %v1561, %v1521
        %v2082 = vpack.c.b16 %v1562, %v1522
        %v2083 = vpack.c.b16 %v1563, %v1523
        %v2084 = vpack.c.b16 %v1564, %v1524
        %v2085 = vpack.c.b16 %v1565, %v1525
        %v2086 = vpack.c.b16 %v1566, %v1526
        %v2087 = vpack.c.b16 %v1567, %v1527
        %v2088 = vpack.c.b16 %v1568, %v1528
        %v2089 = vpack.c.b16 %v1569, %v1529
        %v2090 = vpack.c.b16 %v1570, %v1530
        %v2091 = vpack.c.b16 %v1611, %v1571
        %v2092 = vpack.c.b16 %v1612, %v1572
        %v2093 = vpack.c.b16 %v1613, %v1573
        %v2094 = vpack.c.b16 %v1614, %v1574
        %v2095 = vpack.c.b16 %v1615, %v1575
        %v2096 = vpack.c.b16 %v1616, %v1576
        %v2097 = vpack.c.b16 %v1617, %v1577
        %v2098 = vpack.c.b16 %v1618, %v1578
        %v2099 = vpack.c.b16 %v1619, %v1579
        %v2100 = vpack.c.b16 %v1620, %v1580
        %v2101 = vpack.c.b16 %v1621, %v1581
        %v2102 = vpack.c.b16 %v1622, %v1582
        %v2103 = vpack.c.b16 %v1623, %v1583
        %v2104 = vpack.c.b16 %v1624, %v1584
        %v2105 = vpack.c.b16 %v1625, %v1585
        %v2106 = vpack.c.b16 %v1626, %v1586
        %v2107 = vpack.c.b16 %v1627, %v1587
        %v2108 = vpack.c.b16 %v1628, %v1588
        %v2109 = vpack.c.b16 %v1629, %v1589
        %v2110 = vpack.c.b16 %v1630, %v1590
        %v2111 = vpack.c.b16 %v1631, %v1591
        %v2112 = vpack.c.b16 %v1632, %v1592
        %v2113 = vpack.c.b16 %v1633, %v1593
        %v2114 = vpack.c.b16 %v1634, %v1594
        %v2115 = vpack.c.b16 %v1635, %v1595
        %v2116 = vpack.c.b16 %v1636, %v1596
        %v2117 = vpack.c.b16 %v1637, %v1597
        %v2118 = vpack.c.b16 %v1638, %v1598
        %v2119 = vpack.c.b16 %v1639, %v1599
        %v2120 = vpack.c.b16 %v1640, %v1600
        %v2121 = vpack.c.b16 %v1641, %v1601
        %v2122 = vpack.c.b16 %v1642, %v1602
        %v2123 = vpack.c.b16 %v1643, %v1603
        %v2124 = vpack.c.b16 %v1644, %v1604
        %v2125 = vpack.c.b16 %v1645, %v1605
        %v2126 = vpack.c.b16 %v1646, %v1606
        %v2127 = vpack.c.b16 %v1647, %v1607
        %v2128 = vpack.c.b16 %v1648, %v1608
        %v2129 = vpack.c.b16 %v1649, %v1609
        %v2130 = vpack.c.b16 %v1650, %v1610
        %v2131 = vpack.c.b16 %v1691, %v1651
        %v2132 = vpack.c.b16 %v1692, %v1652
        %v2133 = vpack.c.b16 %v1693, %v1653
        %v2134 = vpack.c.b16 %v1694, %v1654
        %v2135 = vpack.c.b16 %v1695, %v1655
        %v2136 = vpack.c.b16 %v1696, %v1656
        %v2137 = vpack.c.b16 %v1697, %v1657
        %v2138 = vpack.c.b16 %v1698, %v1658
        %v2139 = vpack.c.b16 %v1699, %v1659
        %v2140 = vpack.c.b16 %v1700, %v1660
        %v2141 = vpack.c.b16 %v1701, %v1661
        %v2142 = vpack.c.b16 %v1702, %v1662
        %v2143 = vpack.c.b16 %v1703, %v1663
        %v2144 = vpack.c.b16 %v1704, %v1664
        %v2145 = vpack.c.b16 %v1705, %v1665
        %v2146 = vpack.c.b16 %v1706, %v1666
        %v2147 = vpack.c.b16 %v1707, %v1667
        %v2148 = vpack.c.b16 %v1708, %v1668
        %v2149 = vpack.c.b16 %v1709, %v1669
        %v2150 = vpack.c.b16 %v1710, %v1670
        %v2151 = vpack.c.b16 %v1711, %v1671
        %v2152 = vpack.c.b16 %v1712, %v1672
        %v2153 = vpack.c.b16 %v1713, %v1673
        %v2154 = vpack.c.b16 %v1714, %v1674
        %v2155 = vpack.c.b16 %v1715, %v1675
        %v2156 = vpack.c.b16 %v1716, %v1676
        %v2157 = vpack.c.b16 %v1717, %v1677
        %v2158 = vpack.c.b16 %v1718, %v1678
        %v2159 = vpack.c.b16 %v1719, %v1679
        %v2160 = vpack.c.b16 %v1720, %v1680
        %v2161 = vpack.c.b16 %v1721, %v1681
        %v2162 = vpack.c.b16 %v1722, %v1682
        %v2163 = vpack.c.b16 %v1723, %v1683
        %v2164 = vpack.c.b16 %v1724, %v1684
        %v2165 = vpack.c.b16 %v1725, %v1685
        %v2166 = vpack.c.b16 %v1726, %v1686
        %v2167 = vpack.c.b16 %v1727, %v1687
        %v2168 = vpack.c.b16 %v1728, %v1688
        %v2169 = vpack.c.b16 %v1729, %v1689
        %v2170 = vpack.c.b16 %v1730, %v1690
        %v2171 = vpack.c.b16 %v1771, %v1731
        %v2172 = vpack.c.b16 %v1772, %v1732
        %v2173 = vpack.c.b16 %v1773, %v1733
        %v2174 = vpack.c.b16 %v1774, %v1734
        %v2175 = vpack.c.b16 %v1775, %v1735
        %v2176 = vpack.c.b16 %v1776, %v1736
        %v2177 = vpack.c.b16 %v1777, %v1737
        %v2178 = vpack.c.b16 %v1778, %v1738
        %v2179 = vpack.c.b16 %v1779, %v1739
        %v2180 = vpack.c.b16 %v1780, %v1740
        %v2181 = vpack.c.b16 %v1781, %v1741
        %v2182 = vpack.c.b16 %v1782, %v1742
        %v2183 = vpack.c.b16 %v1783, %v1743
        %v2184 = vpack.c.b16 %v1784, %v1744
        %v2185 = vpack.c.b16 %v1785, %v1745
        %v2186 = vpack.c.b16 %v1786, %v1746
        %v2187 = vpack.c.b16 %v1787, %v1747
        %v2188 = vpack.c.b16 %v1788, %v1748
        %v2189 = vpack.c.b16 %v1789, %v1749
        %v2190 = vpack.c.b16 %v1790, %v1750
        %v2191 = vpack.c.b16 %v1791, %v1751
        %v2192 = vpack.c.b16 %v1792, %v1752
        %v2193 = vpack.c.b16 %v1793, %v1753
        %v2194 = vpack.c.b16 %v1794, %v1754
        %v2195 = vpack.c.b16 %v1795, %v1755
        %v2196 = vpack.c.b16 %v1796, %v1756
        %v2197 = vpack.c.b16 %v1797, %v1757
        %v2198 = vpack.c.b16 %v1798, %v1758
        %v2199 = vpack.c.b16 %v1799, %v1759
        %v2200 = vpack.c.b16 %v1800, %v1760
        %v2201 = vpack.c.b16 %v1801, %v1761
        %v2202 = vpack.c.b16 %v1802, %v1762
        %v2203 = vpack.c.b16 %v1803, %v1763
        %v2204 = vpack.c.b16 %v1804, %v1764
        %v2205 = vpack.c.b16 %v1805, %v1765
        %v2206 = vpack.c.b16 %v1806, %v1766
        %v2207 = vpack.c.b16 %v1807, %v1767
        %v2208 = vpack.c.b16 %v1808, %v1768
        %v2209 = vpack.c.b16 %v1809, %v1769
        %v2210 = vpack.c.b16 %v1810, %v1770
        %v2211 = vpack.c.b16 %v1851, %v1811
        %v2212 = vpack.c.b16 %v1852, %v1812
        %v2213 = vpack.c.b16 %v1853, %v1813
        %v2214 = vpack.c.b16 %v1854, %v1814
        %v2215 = vpack.c.b16 %v1855, %v1815
        %v2216 = vpack.c.b16 %v1856, %v1816
        %v2217 = vpack.c.b16 %v1857, %v1817
        %v2218 = vpack.c.b16 %v1858, %v1818
        %v2219 = vpack.c.b16 %v1859, %v1819
        %v2220 = vpack.c.b16 %v1860, %v1820
        %v2221 = vpack.c.b16 %v1861, %v1821
        %v2222 = vpack.c.b16 %v1862, %v1822
        %v2223 = vpack.c.b16 %v1863, %v1823
        %v2224 = vpack.c.b16 %v1864, %v1824
        %v2225 = vpack.c.b16 %v1865, %v1825
        %v2226 = vpack.c.b16 %v1866, %v1826
        %v2227 = vpack.c.b16 %v1867, %v1827
        %v2228 = vpack.c.b16 %v1868, %v1828
        %v2229 = vpack.c.b16 %v1869, %v1829
        %v2230 = vpack.c.b16 %v1870, %v1830
        %v2231 = vpack.c.b16 %v1871, %v1831
        %v2232 = vpack.c.b16 %v1872, %v1832
        %v2233 = vpack.c.b16 %v1873, %v1833
        %v2234 = vpack.c.b16 %v1874, %v1834
        %v2235 = vpack.c.b16 %v1875, %v1835
        %v2236 = vpack.c.b16 %v1876, %v1836
        %v2237 = vpack.c.b16 %v1877, %v1837
        %v2238 = vpack.c.b16 %v1878, %v1838
        %v2239 = vpack.c.b16 %v1879, %v1839
        %v2240 = vpack.c.b16 %v1880, %v1840
        %v2241 = vpack.c.b16 %v1881, %v1841
        %v2242 = vpack.c.b16 %v1882, %v1842
        %v2243 = vpack.c.b16 %v1883, %v1843
        %v2244 = vpack.c.b16 %v1884, %v1844
        %v2245 = vpack.c.b16 %v1885, %v1845
        %v2246 = vpack.c.b16 %v1886, %v1846
        %v2247 = vpack.c.b16 %v1887, %v1847
        %v2248 = vpack.c.b16 %v1888, %v1848
        %v2249 = vpack.c.b16 %v1889, %v1849
        %v2250 = vpack.c.b16 %v1890, %v1850
        %v2251 = vpack.c.b16 %v1931, %v1891
        %v2252 = vpack.c.b16 %v1932, %v1892
        %v2253 = vpack.c.b16 %v1933, %v1893
        %v2254 = vpack.c.b16 %v1934, %v1894
        %v2255 = vpack.c.b16 %v1935, %v1895
        %v2256 = vpack.c.b16 %v1936, %v1896
        %v2257 = vpack.c.b16 %v1937, %v1897
        %v2258 = vpack.c.b16 %v1938, %v1898
        %v2259 = vpack.c.b16 %v1939, %v1899
        %v2260 = vpack.c.b16 %v1940, %v1900
        %v2261 = vpack.c.b16 %v1941, %v1901
        %v2262 = vpack.c.b16 %v1942, %v1902
        %v2263 = vpack.c.b16 %v1943, %v1903
        %v2264 = vpack.c.b16 %v1944, %v1904
        %v2265 = vpack.c.b16 %v1945, %v1905
        %v2266 = vpack.c.b16 %v1946, %v1906
        %v2267 = vpack.c.b16 %v1947, %v1907
        %v2268 = vpack.c.b16 %v1948, %v1908
        %v2269 = vpack.c.b16 %v1949, %v1909
        %v2270 = vpack.c.b16 %v1950, %v1910
        %v2271 = vpack.c.b16 %v1951, %v1911
        %v2272 = vpack.c.b16 %v1952, %v1912
        %v2273 = vpack.c.b16 %v1953, %v1913
        %v2274 = vpack.c.b16 %v1954, %v1914
        %v2275 = vpack.c.b16 %v1955, %v1915
        %v2276 = vpack.c.b16 %v1956, %v1916
        %v2277 = vpack.c.b16 %v1957, %v1917
        %v2278 = vpack.c.b16 %v1958, %v1918
        %v2279 = vpack.c.b16 %v1959, %v1919
        %v2280 = vpack.c.b16 %v1960, %v1920
        %v2281 = vpack.c.b16 %v1961, %v1921
        %v2282 = vpack.c.b16 %v1962, %v1922
        %v2283 = vpack.c.b16 %v1963, %v1923
        %v2284 = vpack.c.b16 %v1964, %v1924
        %v2285 = vpack.c.b16 %v1965, %v1925
        %v2286 = vpack.c.b16 %v1966, %v1926
        %v2287 = vpack.c.b16 %v1967, %v1927
        %v2288 = vpack.c.b16 %v1968, %v1928
        %v2289 = vpack.c.b16 %v1969, %v1929
        %v2290 = vpack.c.b16 %v1970, %v1930
        %2611 = vmatprep.subr.bf16.mxu0 %v1972
        %2612 = vmatpush1.bf16.msra.mxu0 %v1971
        %2613 = vmatprep.subr.bf16.mxu0 %v2012
        %2614 = vmatpush1.bf16.msra.mxu0 %v2011
        %2615 = vmatprep.subr.bf16.mxu0 %v2052
        %2616 = vmatpush1.bf16.msra.mxu0 %v2051
        %2617 = vmatprep.subr.bf16.mxu0 %v2092
        %2618 = vmatpush1.bf16.msra.mxu0 %v2091
        %2619 = vmatprep.subr.bf16.mxu0 %v2132
        %2620 = vmatpush1.bf16.msra.mxu0 %v2131
        %2621 = vmatprep.subr.bf16.mxu0 %v2172
        %2622 = vmatpush1.bf16.msra.mxu0 %v2171
        %2623 = vmatprep.subr.bf16.mxu0 %v2212
        %2624 = vmatpush1.bf16.msra.mxu0 %v2211
        %2625 = vmatprep.subr.bf16.mxu0 %v2252
        %2626 = vmatpush1.bf16.msra.mxu0 %v2251
        %2627 = vmatprep.subr.bf16.mxu0 0
        %2628 = vmatpush1.bf16.msra.mxu0 0
        %2629 = vmatprep.subr.bf16.mxu0 0
        %2630 = vmatpush1.bf16.msra.mxu0 0
        %2631 = vmatprep.subr.bf16.mxu0 0
        %2632 = vmatpush1.bf16.msra.mxu0 0
        %2633 = vmatprep.subr.bf16.mxu0 0
        %2634 = vmatpush1.bf16.msra.mxu0 0
        %2635 = vmatprep.subr.bf16.mxu0 0
        %2636 = vmatpush1.bf16.msra.mxu0 0
        %2637 = vmatprep.subr.bf16.mxu0 0
        %2638 = vmatpush1.bf16.msra.mxu0 0
        %2639 = vmatprep.subr.bf16.mxu0 0
        %2640 = vmatpush1.bf16.msra.mxu0 0
        %2641 = vmatprep.subr.bf16.mxu0 0
        %2642 = vmatpush1.bf16.msra.mxu0 0
        %2643 = vmatprep.mubr.bf16.mxu0 0
        %2644 = vmatmul.mubr.bf16.gmra.mrb[0].mxu0 %v687
        %v2645 = vpop.f32.mrb[0].mxu0
        %v2646 = vadd.f32 0.0, %v2645
        %v2647 = vpop.f32.mrb[0].mxu0
        %v2648 = vadd.f32 0.0, %v2647
        %v2649 = vpop.f32.mrb[0].mxu0
        %v2650 = vadd.f32 0.0, %v2649
        %v2651 = vpop.f32.mrb[0].mxu0
        %v2652 = vadd.f32 0.0, %v2651
        %2653 = vmatprep.mubr.bf16.mxu0 0
        %2654 = vmatmul.mubr.bf16.gmra.mrb[0].mxu0 %v688
        %v2655 = vpop.f32.mrb[0].mxu0
        %v2656 = vadd.f32 0.0, %v2655
        %v2657 = vpop.f32.mrb[0].mxu0
        %v2658 = vadd.f32 0.0, %v2657
        %v2659 = vpop.f32.mrb[0].mxu0
        %v2660 = vadd.f32 0.0, %v2659
        %v2661 = vpop.f32.mrb[0].mxu0
        %v2662 = vadd.f32 0.0, %v2661
        %2663 = vmatprep.mubr.bf16.mxu0 0
        %2664 = vmatmul.mubr.bf16.gmra.mrb[0].mxu0 %v689
        %v2665 = vpop.f32.mrb[0].mxu0
        %v2666 = vadd.f32 0.0, %v2665
        %v2667 = vpop.f32.mrb[0].mxu0
        %v2668 = vadd.f32 0.0, %v2667
        %v2669 = vpop.f32.mrb[0].mxu0
        %v2670 = vadd.f32 0.0, %v2669
        %v2671 = vpop.f32.mrb[0].mxu0
        %v2672 = vadd.f32 0.0, %v2671
        %2673 = vmatprep.mubr.bf16.mxu0 0
        %2674 = vmatmul.mubr.bf16.gmra.mrb[0].mxu0 %v690
        %v2675 = vpop.f32.mrb[0].mxu0
        %v2676 = vadd.f32 0.0, %v2675
        %v2677 = vpop.f32.mrb[0].mxu0
        %v2678 = vadd.f32 0.0, %v2677
        %v2679 = vpop.f32.mrb[0].mxu0
        %v2680 = vadd.f32 0.0, %v2679
        %v2681 = vpop.f32.mrb[0].mxu0
        %v2682 = vadd.f32 0.0, %v2681
        %2683 = vdwg.mxu0
        %2684 = vmatprep.subr.bf16.mxu0 %v1974
        %2685 = vmatpush1.bf16.msra.mxu0 %v1973
        %2686 = vmatprep.subr.bf16.mxu0 %v2014
        %2687 = vmatpush1.bf16.msra.mxu0 %v2013
        %2688 = vmatprep.subr.bf16.mxu0 %v2054
        %2689 = vmatpush1.bf16.msra.mxu0 %v2053
        %2690 = vmatprep.subr.bf16.mxu0 %v2094
        %2691 = vmatpush1.bf16.msra.mxu0 %v2093
        %2692 = vmatprep.subr.bf16.mxu0 %v2134
        %2693 = vmatpush1.bf16.msra.mxu0 %v2133
        %2694 = vmatprep.subr.bf16.mxu0 %v2174
        %2695 = vmatpush1.bf16.msra.mxu0 %v2173
        %2696 = vmatprep.subr.bf16.mxu0 %v2214
        %2697 = vmatpush1.bf16.msra.mxu0 %v2213
        %2698 = vmatprep.subr.bf16.mxu0 %v2254
        %2699 = vmatpush1.bf16.msra.mxu0 %v2253
        %2700 = vmatprep.subr.bf16.mxu0 0
        %2701 = vmatpush1.bf16.msra.mxu0 0
        %2702 = vmatprep.subr.bf16.mxu0 0
        %2703 = vmatpush1.bf16.msra.mxu0 0
        %2704 = vmatprep.subr.bf16.mxu0 0
        %2705 = vmatpush1.bf16.msra.mxu0 0
        %2706 = vmatprep.subr.bf16.mxu0 0
        %2707 = vmatpush1.bf16.msra.mxu0 0
        %2708 = vmatprep.subr.bf16.mxu0 0
        %2709 = vmatpush1.bf16.msra.mxu0 0
        %2710 = vmatprep.subr.bf16.mxu0 0
        %2711 = vmatpush1.bf16.msra.mxu0 0
        %2712 = vmatprep.subr.bf16.mxu0 0
        %2713 = vmatpush1.bf16.msra.mxu0 0
        %2714 = vmatprep.subr.bf16.mxu0 0
        %2715 = vmatpush1.bf16.msra.mxu0 0
        %2716 = vmatprep.mubr.bf16.mxu0 0
        %2717 = vmatmul.mubr.bf16.gmra.mrb[0].mxu0 %v687
        %v2718 = vpop.f32.mrb[0].mxu0
        %v2719 = vadd.f32 0.0, %v2718
        %v2720 = vpop.f32.mrb[0].mxu0
        %v2721 = vadd.f32 0.0, %v2720
        %v2722 = vpop.f32.mrb[0].mxu0
        %v2723 = vadd.f32 0.0, %v2722
        %v2724 = vpop.f32.mrb[0].mxu0
        %v2725 = vadd.f32 0.0, %v2724
        %2726 = vmatprep.mubr.bf16.mxu0 0
        %2727 = vmatmul.mubr.bf16.gmra.mrb[0].mxu0 %v688
        %v2728 = vpop.f32.mrb[0].mxu0
        %v2729 = vadd.f32 0.0, %v2728
        %v2730 = vpop.f32.mrb[0].mxu0
        %v2731 = vadd.f32 0.0, %v2730
        %v2732 = vpop.f32.mrb[0].mxu0
        %v2733 = vadd.f32 0.0, %v2732
        %v2734 = vpop.f32.mrb[0].mxu0
        %v2735 = vadd.f32 0.0, %v2734
        %2736 = vmatprep.mubr.bf16.mxu0 0
        %2737 = vmatmul.mubr.bf16.gmra.mrb[0].mxu0 %v689
        %v2738 = vpop.f32.mrb[0].mxu0
        %v2739 = vadd.f32 0.0, %v2738
        %v2740 = vpop.f32.mrb[0].mxu0
        %v2741 = vadd.f32 0.0, %v2740
        %v2742 = vpop.f32.mrb[0].mxu0
        %v2743 = vadd.f32 0.0, %v2742
        %v2744 = vpop.f32.mrb[0].mxu0
        %v2745 = vadd.f32 0.0, %v2744
        %2746 = vmatprep.mubr.bf16.mxu0 0
        %2747 = vmatmul.mubr.bf16.gmra.mrb[0].mxu0 %v690
        %v2748 = vpop.f32.mrb[0].mxu0
        %v2749 = vadd.f32 0.0, %v2748
        %v2750 = vpop.f32.mrb[0].mxu0
        %v2751 = vadd.f32 0.0, %v2750
        %v2752 = vpop.f32.mrb[0].mxu0
        %v2753 = vadd.f32 0.0, %v2752
        %v2754 = vpop.f32.mrb[0].mxu0
        %v2755 = vadd.f32 0.0, %v2754
        %2756 = vdwg.mxu0
        %2757 = vmatprep.subr.bf16.mxu0 %v1976
        %2758 = vmatpush1.bf16.msra.mxu0 %v1975
        %2759 = vmatprep.subr.bf16.mxu0 %v2016
        %2760 = vmatpush1.bf16.msra.mxu0 %v2015
        %2761 = vmatprep.subr.bf16.mxu0 %v2056
        %2762 = vmatpush1.bf16.msra.mxu0 %v2055
        %2763 = vmatprep.subr.bf16.mxu0 %v2096
        %2764 = vmatpush1.bf16.msra.mxu0 %v2095
        %2765 = vmatprep.subr.bf16.mxu0 %v2136
        %2766 = vmatpush1.bf16.msra.mxu0 %v2135
        %2767 = vmatprep.subr.bf16.mxu0 %v2176
        %2768 = vmatpush1.bf16.msra.mxu0 %v2175
        %2769 = vmatprep.subr.bf16.mxu0 %v2216
        %2770 = vmatpush1.bf16.msra.mxu0 %v2215
        %2771 = vmatprep.subr.bf16.mxu0 %v2256
        %2772 = vmatpush1.bf16.msra.mxu0 %v2255
        %2773 = vmatprep.subr.bf16.mxu0 0
        %2774 = vmatpush1.bf16.msra.mxu0 0
        %2775 = vmatprep.subr.bf16.mxu0 0
        %2776 = vmatpush1.bf16.msra.mxu0 0
        %2777 = vmatprep.subr.bf16.mxu0 0
        %2778 = vmatpush1.bf16.msra.mxu0 0
        %2779 = vmatprep.subr.bf16.mxu0 0
        %2780 = vmatpush1.bf16.msra.mxu0 0
        %2781 = vmatprep.subr.bf16.mxu0 0
        %2782 = vmatpush1.bf16.msra.mxu0 0
        %2783 = vmatprep.subr.bf16.mxu0 0
        %2784 = vmatpush1.bf16.msra.mxu0 0
        %2785 = vmatprep.subr.bf16.mxu0 0
        %2786 = vmatpush1.bf16.msra.mxu0 0
        %2787 = vmatprep.subr.bf16.mxu0 0
        %2788 = vmatpush1.bf16.msra.mxu0 0
        %2789 = vmatprep.mubr.bf16.mxu0 0
        %2790 = vmatmul.mubr.bf16.gmra.mrb[0].mxu0 %v687
        %v2791 = vpop.f32.mrb[0].mxu0
        %v2792 = vadd.f32 0.0, %v2791
        %v2793 = vpop.f32.mrb[0].mxu0
        %v2794 = vadd.f32 0.0, %v2793
        %v2795 = vpop.f32.mrb[0].mxu0
        %v2796 = vadd.f32 0.0, %v2795
        %v2797 = vpop.f32.mrb[0].mxu0
        %v2798 = vadd.f32 0.0, %v2797
        %2799 = vmatprep.mubr.bf16.mxu0 0
        %2800 = vmatmul.mubr.bf16.gmra.mrb[0].mxu0 %v688
        %v2801 = vpop.f32.mrb[0].mxu0
        %v2802 = vadd.f32 0.0, %v2801
        %v2803 = vpop.f32.mrb[0].mxu0
        %v2804 = vadd.f32 0.0, %v2803
        %v2805 = vpop.f32.mrb[0].mxu0
        %v2806 = vadd.f32 0.0, %v2805
        %v2807 = vpop.f32.mrb[0].mxu0
        %v2808 = vadd.f32 0.0, %v2807
        %2809 = vmatprep.mubr.bf16.mxu0 0
        %2810 = vmatmul.mubr.bf16.gmra.mrb[0].mxu0 %v689
        %v2811 = vpop.f32.mrb[0].mxu0
        %v2812 = vadd.f32 0.0, %v2811
        %v2813 = vpop.f32.mrb[0].mxu0
        %v2814 = vadd.f32 0.0, %v2813
        %v2815 = vpop.f32.mrb[0].mxu0
        %v2816 = vadd.f32 0.0, %v2815
        %v2817 = vpop.f32.mrb[0].mxu0
        %v2818 = vadd.f32 0.0, %v2817
        %2819 = vmatprep.mubr.bf16.mxu0 0
        %2820 = vmatmul.mubr.bf16.gmra.mrb[0].mxu0 %v690
        %v2821 = vpop.f32.mrb[0].mxu0
        %v2822 = vadd.f32 0.0, %v2821
        %v2823 = vpop.f32.mrb[0].mxu0
        %v2824 = vadd.f32 0.0, %v2823
        %v2825 = vpop.f32.mrb[0].mxu0
        %v2826 = vadd.f32 0.0, %v2825
        %v2827 = vpop.f32.mrb[0].mxu0
        %v2828 = vadd.f32 0.0, %v2827
        %2829 = vdwg.mxu0
        %2830 = vmatprep.subr.bf16.mxu0 %v1978
        %2831 = vmatpush1.bf16.msra.mxu0 %v1977
        %2832 = vmatprep.subr.bf16.mxu0 %v2018
        %2833 = vmatpush1.bf16.msra.mxu0 %v2017
        %2834 = vmatprep.subr.bf16.mxu0 %v2058
        %2835 = vmatpush1.bf16.msra.mxu0 %v2057
        %2836 = vmatprep.subr.bf16.mxu0 %v2098
        %2837 = vmatpush1.bf16.msra.mxu0 %v2097
        %2838 = vmatprep.subr.bf16.mxu0 %v2138
        %2839 = vmatpush1.bf16.msra.mxu0 %v2137
        %2840 = vmatprep.subr.bf16.mxu0 %v2178
        %2841 = vmatpush1.bf16.msra.mxu0 %v2177
        %2842 = vmatprep.subr.bf16.mxu0 %v2218
        %2843 = vmatpush1.bf16.msra.mxu0 %v2217
        %2844 = vmatprep.subr.bf16.mxu0 %v2258
        %2845 = vmatpush1.bf16.msra.mxu0 %v2257
        %2846 = vmatprep.subr.bf16.mxu0 0
        %2847 = vmatpush1.bf16.msra.mxu0 0
        %2848 = vmatprep.subr.bf16.mxu0 0
        %2849 = vmatpush1.bf16.msra.mxu0 0
        %2850 = vmatprep.subr.bf16.mxu0 0
        %2851 = vmatpush1.bf16.msra.mxu0 0
        %2852 = vmatprep.subr.bf16.mxu0 0
        %2853 = vmatpush1.bf16.msra.mxu0 0
        %2854 = vmatprep.subr.bf16.mxu0 0
        %2855 = vmatpush1.bf16.msra.mxu0 0
        %2856 = vmatprep.subr.bf16.mxu0 0
        %2857 = vmatpush1.bf16.msra.mxu0 0
        %2858 = vmatprep.subr.bf16.mxu0 0
        %2859 = vmatpush1.bf16.msra.mxu0 0
        %2860 = vmatprep.subr.bf16.mxu0 0
        %2861 = vmatpush1.bf16.msra.mxu0 0
        %2862 = vmatprep.mubr.bf16.mxu0 0
        %2863 = vmatmul.mubr.bf16.gmra.mrb[0].mxu0 %v687
        %v2864 = vpop.f32.mrb[0].mxu0
        %v2865 = vadd.f32 0.0, %v2864
        %v2866 = vpop.f32.mrb[0].mxu0
        %v2867 = vadd.f32 0.0, %v2866
        %v2868 = vpop.f32.mrb[0].mxu0
        %v2869 = vadd.f32 0.0, %v2868
        %v2870 = vpop.f32.mrb[0].mxu0
        %v2871 = vadd.f32 0.0, %v2870
        %2872 = vmatprep.mubr.bf16.mxu0 0
        %2873 = vmatmul.mubr.bf16.gmra.mrb[0].mxu0 %v688
        %v2874 = vpop.f32.mrb[0].mxu0
        %v2875 = vadd.f32 0.0, %v2874
        %v2876 = vpop.f32.mrb[0].mxu0
        %v2877 = vadd.f32 0.0, %v2876
        %v2878 = vpop.f32.mrb[0].mxu0
        %v2879 = vadd.f32 0.0, %v2878
        %v2880 = vpop.f32.mrb[0].mxu0
        %v2881 = vadd.f32 0.0, %v2880
        %2882 = vmatprep.mubr.bf16.mxu0 0
        %2883 = vmatmul.mubr.bf16.gmra.mrb[0].mxu0 %v689
        %v2884 = vpop.f32.mrb[0].mxu0
        %v2885 = vadd.f32 0.0, %v2884
        %v2886 = vpop.f32.mrb[0].mxu0
        %v2887 = vadd.f32 0.0, %v2886
        %v2888 = vpop.f32.mrb[0].mxu0
        %v2889 = vadd.f32 0.0, %v2888
        %v2890 = vpop.f32.mrb[0].mxu0
        %v2891 = vadd.f32 0.0, %v2890
        %2892 = vmatprep.mubr.bf16.mxu0 0
        %2893 = vmatmul.mubr.bf16.gmra.mrb[0].mxu0 %v690
        %v2894 = vpop.f32.mrb[0].mxu0
        %v2895 = vadd.f32 0.0, %v2894
        %v2896 = vpop.f32.mrb[0].mxu0
        %v2897 = vadd.f32 0.0, %v2896
        %v2898 = vpop.f32.mrb[0].mxu0
        %v2899 = vadd.f32 0.0, %v2898
        %v2900 = vpop.f32.mrb[0].mxu0
        %v2901 = vadd.f32 0.0, %v2900
        %2902 = vdwg.mxu0
        %2903 = vmatprep.subr.bf16.mxu0 %v1980
        %2904 = vmatpush1.bf16.msra.mxu0 %v1979
        %2905 = vmatprep.subr.bf16.mxu0 %v2020
        %2906 = vmatpush1.bf16.msra.mxu0 %v2019
        %2907 = vmatprep.subr.bf16.mxu0 %v2060
        %2908 = vmatpush1.bf16.msra.mxu0 %v2059
        %2909 = vmatprep.subr.bf16.mxu0 %v2100
        %2910 = vmatpush1.bf16.msra.mxu0 %v2099
        %2911 = vmatprep.subr.bf16.mxu0 %v2140
        %2912 = vmatpush1.bf16.msra.mxu0 %v2139
        %2913 = vmatprep.subr.bf16.mxu0 %v2180
        %2914 = vmatpush1.bf16.msra.mxu0 %v2179
        %2915 = vmatprep.subr.bf16.mxu0 %v2220
        %2916 = vmatpush1.bf16.msra.mxu0 %v2219
        %2917 = vmatprep.subr.bf16.mxu0 %v2260
        %2918 = vmatpush1.bf16.msra.mxu0 %v2259
        %2919 = vmatprep.subr.bf16.mxu0 0
        %2920 = vmatpush1.bf16.msra.mxu0 0
        %2921 = vmatprep.subr.bf16.mxu0 0
        %2922 = vmatpush1.bf16.msra.mxu0 0
        %2923 = vmatprep.subr.bf16.mxu0 0
        %2924 = vmatpush1.bf16.msra.mxu0 0
        %2925 = vmatprep.subr.bf16.mxu0 0
        %2926 = vmatpush1.bf16.msra.mxu0 0
        %2927 = vmatprep.subr.bf16.mxu0 0
        %2928 = vmatpush1.bf16.msra.mxu0 0
        %2929 = vmatprep.subr.bf16.mxu0 0
        %2930 = vmatpush1.bf16.msra.mxu0 0
        %2931 = vmatprep.subr.bf16.mxu0 0
        %2932 = vmatpush1.bf16.msra.mxu0 0
        %2933 = vmatprep.subr.bf16.mxu0 0
        %2934 = vmatpush1.bf16.msra.mxu0 0
        %2935 = vmatprep.mubr.bf16.mxu0 0
        %2936 = vmatmul.mubr.bf16.gmra.mrb[0].mxu0 %v687
        %v2937 = vpop.f32.mrb[0].mxu0
        %v2938 = vadd.f32 0.0, %v2937
        %v2939 = vpop.f32.mrb[0].mxu0
        %v2940 = vadd.f32 0.0, %v2939
        %v2941 = vpop.f32.mrb[0].mxu0
        %v2942 = vadd.f32 0.0, %v2941
        %v2943 = vpop.f32.mrb[0].mxu0
        %v2944 = vadd.f32 0.0, %v2943
        %2945 = vmatprep.mubr.bf16.mxu0 0
        %2946 = vmatmul.mubr.bf16.gmra.mrb[0].mxu0 %v688
        %v2947 = vpop.f32.mrb[0].mxu0
        %v2948 = vadd.f32 0.0, %v2947
        %v2949 = vpop.f32.mrb[0].mxu0
        %v2950 = vadd.f32 0.0, %v2949
        %v2951 = vpop.f32.mrb[0].mxu0
        %v2952 = vadd.f32 0.0, %v2951
        %v2953 = vpop.f32.mrb[0].mxu0
        %v2954 = vadd.f32 0.0, %v2953
        %2955 = vmatprep.mubr.bf16.mxu0 0
        %2956 = vmatmul.mubr.bf16.gmra.mrb[0].mxu0 %v689
        %v2957 = vpop.f32.mrb[0].mxu0
        %v2958 = vadd.f32 0.0, %v2957
        %v2959 = vpop.f32.mrb[0].mxu0
        %v2960 = vadd.f32 0.0, %v2959
        %v2961 = vpop.f32.mrb[0].mxu0
        %v2962 = vadd.f32 0.0, %v2961
        %v2963 = vpop.f32.mrb[0].mxu0
        %v2964 = vadd.f32 0.0, %v2963
        %2965 = vmatprep.mubr.bf16.mxu0 0
        %2966 = vmatmul.mubr.bf16.gmra.mrb[0].mxu0 %v690
        %v2967 = vpop.f32.mrb[0].mxu0
        %v2968 = vadd.f32 0.0, %v2967
        %v2969 = vpop.f32.mrb[0].mxu0
        %v2970 = vadd.f32 0.0, %v2969
        %v2971 = vpop.f32.mrb[0].mxu0
        %v2972 = vadd.f32 0.0, %v2971
        %v2973 = vpop.f32.mrb[0].mxu0
        %v2974 = vadd.f32 0.0, %v2973
        %2975 = vdwg.mxu0
        %2976 = vmatprep.subr.bf16.mxu0 %v1982
        %2977 = vmatpush1.bf16.msra.mxu0 %v1981
        %2978 = vmatprep.subr.bf16.mxu0 %v2022
        %2979 = vmatpush1.bf16.msra.mxu0 %v2021
        %2980 = vmatprep.subr.bf16.mxu0 %v2062
        %2981 = vmatpush1.bf16.msra.mxu0 %v2061
        %2982 = vmatprep.subr.bf16.mxu0 %v2102
        %2983 = vmatpush1.bf16.msra.mxu0 %v2101
        %2984 = vmatprep.subr.bf16.mxu0 %v2142
        %2985 = vmatpush1.bf16.msra.mxu0 %v2141
        %2986 = vmatprep.subr.bf16.mxu0 %v2182
        %2987 = vmatpush1.bf16.msra.mxu0 %v2181
        %2988 = vmatprep.subr.bf16.mxu0 %v2222
        %2989 = vmatpush1.bf16.msra.mxu0 %v2221
        %2990 = vmatprep.subr.bf16.mxu0 %v2262
        %2991 = vmatpush1.bf16.msra.mxu0 %v2261
        %2992 = vmatprep.subr.bf16.mxu0 0
        %2993 = vmatpush1.bf16.msra.mxu0 0
        %2994 = vmatprep.subr.bf16.mxu0 0
        %2995 = vmatpush1.bf16.msra.mxu0 0
        %2996 = vmatprep.subr.bf16.mxu0 0
        %2997 = vmatpush1.bf16.msra.mxu0 0
        %2998 = vmatprep.subr.bf16.mxu0 0
        %2999 = vmatpush1.bf16.msra.mxu0 0
        %3000 = vmatprep.subr.bf16.mxu0 0
        %3001 = vmatpush1.bf16.msra.mxu0 0
        %3002 = vmatprep.subr.bf16.mxu0 0
        %3003 = vmatpush1.bf16.msra.mxu0 0
        %3004 = vmatprep.subr.bf16.mxu0 0
        %3005 = vmatpush1.bf16.msra.mxu0 0
        %3006 = vmatprep.subr.bf16.mxu0 0
        %3007 = vmatpush1.bf16.msra.mxu0 0
        %3008 = vmatprep.mubr.bf16.mxu0 0
        %3009 = vmatmul.mubr.bf16.gmra.mrb[0].mxu0 %v687
        %v3010 = vpop.f32.mrb[0].mxu0
        %v3011 = vadd.f32 0.0, %v3010
        %v3012 = vpop.f32.mrb[0].mxu0
        %v3013 = vadd.f32 0.0, %v3012
        %v3014 = vpop.f32.mrb[0].mxu0
        %v3015 = vadd.f32 0.0, %v3014
        %v3016 = vpop.f32.mrb[0].mxu0
        %v3017 = vadd.f32 0.0, %v3016
        %3018 = vmatprep.mubr.bf16.mxu0 0
        %3019 = vmatmul.mubr.bf16.gmra.mrb[0].mxu0 %v688
        %v3020 = vpop.f32.mrb[0].mxu0
        %v3021 = vadd.f32 0.0, %v3020
        %v3022 = vpop.f32.mrb[0].mxu0
        %v3023 = vadd.f32 0.0, %v3022
        %v3024 = vpop.f32.mrb[0].mxu0
        %v3025 = vadd.f32 0.0, %v3024
        %v3026 = vpop.f32.mrb[0].mxu0
        %v3027 = vadd.f32 0.0, %v3026
        %3028 = vmatprep.mubr.bf16.mxu0 0
        %3029 = vmatmul.mubr.bf16.gmra.mrb[0].mxu0 %v689
        %v3030 = vpop.f32.mrb[0].mxu0
        %v3031 = vadd.f32 0.0, %v3030
        %v3032 = vpop.f32.mrb[0].mxu0
        %v3033 = vadd.f32 0.0, %v3032
        %v3034 = vpop.f32.mrb[0].mxu0
        %v3035 = vadd.f32 0.0, %v3034
        %v3036 = vpop.f32.mrb[0].mxu0
        %v3037 = vadd.f32 0.0, %v3036
        %3038 = vmatprep.mubr.bf16.mxu0 0
        %3039 = vmatmul.mubr.bf16.gmra.mrb[0].mxu0 %v690
        %v3040 = vpop.f32.mrb[0].mxu0
        %v3041 = vadd.f32 0.0, %v3040
        %v3042 = vpop.f32.mrb[0].mxu0
        %v3043 = vadd.f32 0.0, %v3042
        %v3044 = vpop.f32.mrb[0].mxu0
        %v3045 = vadd.f32 0.0, %v3044
        %v3046 = vpop.f32.mrb[0].mxu0
        %v3047 = vadd.f32 0.0, %v3046
        %3048 = vdwg.mxu0
        %3049 = vmatprep.subr.bf16.mxu0 %v1984
        %3050 = vmatpush1.bf16.msra.mxu0 %v1983
        %3051 = vmatprep.subr.bf16.mxu0 %v2024
        %3052 = vmatpush1.bf16.msra.mxu0 %v2023
        %3053 = vmatprep.subr.bf16.mxu0 %v2064
        %3054 = vmatpush1.bf16.msra.mxu0 %v2063
        %3055 = vmatprep.subr.bf16.mxu0 %v2104
        %3056 = vmatpush1.bf16.msra.mxu0 %v2103
        %3057 = vmatprep.subr.bf16.mxu0 %v2144
        %3058 = vmatpush1.bf16.msra.mxu0 %v2143
        %3059 = vmatprep.subr.bf16.mxu0 %v2184
        %3060 = vmatpush1.bf16.msra.mxu0 %v2183
        %3061 = vmatprep.subr.bf16.mxu0 %v2224
        %3062 = vmatpush1.bf16.msra.mxu0 %v2223
        %3063 = vmatprep.subr.bf16.mxu0 %v2264
        %3064 = vmatpush1.bf16.msra.mxu0 %v2263
        %3065 = vmatprep.subr.bf16.mxu0 0
        %3066 = vmatpush1.bf16.msra.mxu0 0
        %3067 = vmatprep.subr.bf16.mxu0 0
        %3068 = vmatpush1.bf16.msra.mxu0 0
        %3069 = vmatprep.subr.bf16.mxu0 0
        %3070 = vmatpush1.bf16.msra.mxu0 0
        %3071 = vmatprep.subr.bf16.mxu0 0
        %3072 = vmatpush1.bf16.msra.mxu0 0
        %3073 = vmatprep.subr.bf16.mxu0 0
        %3074 = vmatpush1.bf16.msra.mxu0 0
        %3075 = vmatprep.subr.bf16.mxu0 0
        %3076 = vmatpush1.bf16.msra.mxu0 0
        %3077 = vmatprep.subr.bf16.mxu0 0
        %3078 = vmatpush1.bf16.msra.mxu0 0
        %3079 = vmatprep.subr.bf16.mxu0 0
        %3080 = vmatpush1.bf16.msra.mxu0 0
        %3081 = vmatprep.mubr.bf16.mxu0 0
        %3082 = vmatmul.mubr.bf16.gmra.mrb[0].mxu0 %v687
        %v3083 = vpop.f32.mrb[0].mxu0
        %v3084 = vadd.f32 0.0, %v3083
        %v3085 = vpop.f32.mrb[0].mxu0
        %v3086 = vadd.f32 0.0, %v3085
        %v3087 = vpop.f32.mrb[0].mxu0
        %v3088 = vadd.f32 0.0, %v3087
        %v3089 = vpop.f32.mrb[0].mxu0
        %v3090 = vadd.f32 0.0, %v3089
        %3091 = vmatprep.mubr.bf16.mxu0 0
        %3092 = vmatmul.mubr.bf16.gmra.mrb[0].mxu0 %v688
        %v3093 = vpop.f32.mrb[0].mxu0
        %v3094 = vadd.f32 0.0, %v3093
        %v3095 = vpop.f32.mrb[0].mxu0
        %v3096 = vadd.f32 0.0, %v3095
        %v3097 = vpop.f32.mrb[0].mxu0
        %v3098 = vadd.f32 0.0, %v3097
        %v3099 = vpop.f32.mrb[0].mxu0
        %v3100 = vadd.f32 0.0, %v3099
        %3101 = vmatprep.mubr.bf16.mxu0 0
        %3102 = vmatmul.mubr.bf16.gmra.mrb[0].mxu0 %v689
        %v3103 = vpop.f32.mrb[0].mxu0
        %v3104 = vadd.f32 0.0, %v3103
        %v3105 = vpop.f32.mrb[0].mxu0
        %v3106 = vadd.f32 0.0, %v3105
        %v3107 = vpop.f32.mrb[0].mxu0
        %v3108 = vadd.f32 0.0, %v3107
        %v3109 = vpop.f32.mrb[0].mxu0
        %v3110 = vadd.f32 0.0, %v3109
        %3111 = vmatprep.mubr.bf16.mxu0 0
        %3112 = vmatmul.mubr.bf16.gmra.mrb[0].mxu0 %v690
        %v3113 = vpop.f32.mrb[0].mxu0
        %v3114 = vadd.f32 0.0, %v3113
        %v3115 = vpop.f32.mrb[0].mxu0
        %v3116 = vadd.f32 0.0, %v3115
        %v3117 = vpop.f32.mrb[0].mxu0
        %v3118 = vadd.f32 0.0, %v3117
        %v3119 = vpop.f32.mrb[0].mxu0
        %v3120 = vadd.f32 0.0, %v3119
        %3121 = vdwg.mxu0
        %3122 = vmatprep.subr.bf16.mxu0 %v1986
        %3123 = vmatpush1.bf16.msra.mxu0 %v1985
        %3124 = vmatprep.subr.bf16.mxu0 %v2026
        %3125 = vmatpush1.bf16.msra.mxu0 %v2025
        %3126 = vmatprep.subr.bf16.mxu0 %v2066
        %3127 = vmatpush1.bf16.msra.mxu0 %v2065
        %3128 = vmatprep.subr.bf16.mxu0 %v2106
        %3129 = vmatpush1.bf16.msra.mxu0 %v2105
        %3130 = vmatprep.subr.bf16.mxu0 %v2146
        %3131 = vmatpush1.bf16.msra.mxu0 %v2145
        %3132 = vmatprep.subr.bf16.mxu0 %v2186
        %3133 = vmatpush1.bf16.msra.mxu0 %v2185
        %3134 = vmatprep.subr.bf16.mxu0 %v2226
        %3135 = vmatpush1.bf16.msra.mxu0 %v2225
        %3136 = vmatprep.subr.bf16.mxu0 %v2266
        %3137 = vmatpush1.bf16.msra.mxu0 %v2265
        %3138 = vmatprep.subr.bf16.mxu0 0
        %3139 = vmatpush1.bf16.msra.mxu0 0
        %3140 = vmatprep.subr.bf16.mxu0 0
        %3141 = vmatpush1.bf16.msra.mxu0 0
        %3142 = vmatprep.subr.bf16.mxu0 0
        %3143 = vmatpush1.bf16.msra.mxu0 0
        %3144 = vmatprep.subr.bf16.mxu0 0
        %3145 = vmatpush1.bf16.msra.mxu0 0
        %3146 = vmatprep.subr.bf16.mxu0 0
        %3147 = vmatpush1.bf16.msra.mxu0 0
        %3148 = vmatprep.subr.bf16.mxu0 0
        %3149 = vmatpush1.bf16.msra.mxu0 0
        %3150 = vmatprep.subr.bf16.mxu0 0
        %3151 = vmatpush1.bf16.msra.mxu0 0
        %3152 = vmatprep.subr.bf16.mxu0 0
        %3153 = vmatpush1.bf16.msra.mxu0 0
        %3154 = vmatprep.mubr.bf16.mxu0 0
        %3155 = vmatmul.mubr.bf16.gmra.mrb[0].mxu0 %v687
        %v3156 = vpop.f32.mrb[0].mxu0
        %v3157 = vadd.f32 0.0, %v3156
        %v3158 = vpop.f32.mrb[0].mxu0
        %v3159 = vadd.f32 0.0, %v3158
        %v3160 = vpop.f32.mrb[0].mxu0
        %v3161 = vadd.f32 0.0, %v3160
        %v3162 = vpop.f32.mrb[0].mxu0
        %v3163 = vadd.f32 0.0, %v3162
        %3164 = vmatprep.mubr.bf16.mxu0 0
        %3165 = vmatmul.mubr.bf16.gmra.mrb[0].mxu0 %v688
        %v3166 = vpop.f32.mrb[0].mxu0
        %v3167 = vadd.f32 0.0, %v3166
        %v3168 = vpop.f32.mrb[0].mxu0
        %v3169 = vadd.f32 0.0, %v3168
        %v3170 = vpop.f32.mrb[0].mxu0
        %v3171 = vadd.f32 0.0, %v3170
        %v3172 = vpop.f32.mrb[0].mxu0
        %v3173 = vadd.f32 0.0, %v3172
        %3174 = vmatprep.mubr.bf16.mxu0 0
        %3175 = vmatmul.mubr.bf16.gmra.mrb[0].mxu0 %v689
        %v3176 = vpop.f32.mrb[0].mxu0
        %v3177 = vadd.f32 0.0, %v3176
        %v3178 = vpop.f32.mrb[0].mxu0
        %v3179 = vadd.f32 0.0, %v3178
        %v3180 = vpop.f32.mrb[0].mxu0
        %v3181 = vadd.f32 0.0, %v3180
        %v3182 = vpop.f32.mrb[0].mxu0
        %v3183 = vadd.f32 0.0, %v3182
        %3184 = vmatprep.mubr.bf16.mxu0 0
        %3185 = vmatmul.mubr.bf16.gmra.mrb[0].mxu0 %v690
        %v3186 = vpop.f32.mrb[0].mxu0
        %v3187 = vadd.f32 0.0, %v3186
        %v3188 = vpop.f32.mrb[0].mxu0
        %v3189 = vadd.f32 0.0, %v3188
        %v3190 = vpop.f32.mrb[0].mxu0
        %v3191 = vadd.f32 0.0, %v3190
        %v3192 = vpop.f32.mrb[0].mxu0
        %v3193 = vadd.f32 0.0, %v3192
        %3194 = vdwg.mxu0
        %3195 = vmatprep.subr.bf16.mxu0 %v1988
        %3196 = vmatpush1.bf16.msra.mxu0 %v1987
        %3197 = vmatprep.subr.bf16.mxu0 %v2028
        %3198 = vmatpush1.bf16.msra.mxu0 %v2027
        %3199 = vmatprep.subr.bf16.mxu0 %v2068
        %3200 = vmatpush1.bf16.msra.mxu0 %v2067
        %3201 = vmatprep.subr.bf16.mxu0 %v2108
        %3202 = vmatpush1.bf16.msra.mxu0 %v2107
        %3203 = vmatprep.subr.bf16.mxu0 %v2148
        %3204 = vmatpush1.bf16.msra.mxu0 %v2147
        %3205 = vmatprep.subr.bf16.mxu0 %v2188
        %3206 = vmatpush1.bf16.msra.mxu0 %v2187
        %3207 = vmatprep.subr.bf16.mxu0 %v2228
        %3208 = vmatpush1.bf16.msra.mxu0 %v2227
        %3209 = vmatprep.subr.bf16.mxu0 %v2268
        %3210 = vmatpush1.bf16.msra.mxu0 %v2267
        %3211 = vmatprep.subr.bf16.mxu0 0
        %3212 = vmatpush1.bf16.msra.mxu0 0
        %3213 = vmatprep.subr.bf16.mxu0 0
        %3214 = vmatpush1.bf16.msra.mxu0 0
        %3215 = vmatprep.subr.bf16.mxu0 0
        %3216 = vmatpush1.bf16.msra.mxu0 0
        %3217 = vmatprep.subr.bf16.mxu0 0
        %3218 = vmatpush1.bf16.msra.mxu0 0
        %3219 = vmatprep.subr.bf16.mxu0 0
        %3220 = vmatpush1.bf16.msra.mxu0 0
        %3221 = vmatprep.subr.bf16.mxu0 0
        %3222 = vmatpush1.bf16.msra.mxu0 0
        %3223 = vmatprep.subr.bf16.mxu0 0
        %3224 = vmatpush1.bf16.msra.mxu0 0
        %3225 = vmatprep.subr.bf16.mxu0 0
        %3226 = vmatpush1.bf16.msra.mxu0 0
        %3227 = vmatprep.mubr.bf16.mxu0 0
        %3228 = vmatmul.mubr.bf16.gmra.mrb[0].mxu0 %v687
        %v3229 = vpop.f32.mrb[0].mxu0
        %v3230 = vadd.f32 0.0, %v3229
        %v3231 = vpop.f32.mrb[0].mxu0
        %v3232 = vadd.f32 0.0, %v3231
        %v3233 = vpop.f32.mrb[0].mxu0
        %v3234 = vadd.f32 0.0, %v3233
        %v3235 = vpop.f32.mrb[0].mxu0
        %v3236 = vadd.f32 0.0, %v3235
        %3237 = vmatprep.mubr.bf16.mxu0 0
        %3238 = vmatmul.mubr.bf16.gmra.mrb[0].mxu0 %v688
        %v3239 = vpop.f32.mrb[0].mxu0
        %v3240 = vadd.f32 0.0, %v3239
        %v3241 = vpop.f32.mrb[0].mxu0
        %v3242 = vadd.f32 0.0, %v3241
        %v3243 = vpop.f32.mrb[0].mxu0
        %v3244 = vadd.f32 0.0, %v3243
        %v3245 = vpop.f32.mrb[0].mxu0
        %v3246 = vadd.f32 0.0, %v3245
        %3247 = vmatprep.mubr.bf16.mxu0 0
        %3248 = vmatmul.mubr.bf16.gmra.mrb[0].mxu0 %v689
        %v3249 = vpop.f32.mrb[0].mxu0
        %v3250 = vadd.f32 0.0, %v3249
        %v3251 = vpop.f32.mrb[0].mxu0
        %v3252 = vadd.f32 0.0, %v3251
        %v3253 = vpop.f32.mrb[0].mxu0
        %v3254 = vadd.f32 0.0, %v3253
        %v3255 = vpop.f32.mrb[0].mxu0
        %v3256 = vadd.f32 0.0, %v3255
        %3257 = vmatprep.mubr.bf16.mxu0 0
        %3258 = vmatmul.mubr.bf16.gmra.mrb[0].mxu0 %v690
        %v3259 = vpop.f32.mrb[0].mxu0
        %v3260 = vadd.f32 0.0, %v3259
        %v3261 = vpop.f32.mrb[0].mxu0
        %v3262 = vadd.f32 0.0, %v3261
        %v3263 = vpop.f32.mrb[0].mxu0
        %v3264 = vadd.f32 0.0, %v3263
        %v3265 = vpop.f32.mrb[0].mxu0
        %v3266 = vadd.f32 0.0, %v3265
        %3267 = vdwg.mxu0
        %3268 = vmatprep.subr.bf16.mxu0 %v1990
        %3269 = vmatpush1.bf16.msra.mxu0 %v1989
        %3270 = vmatprep.subr.bf16.mxu0 %v2030
        %3271 = vmatpush1.bf16.msra.mxu0 %v2029
        %3272 = vmatprep.subr.bf16.mxu0 %v2070
        %3273 = vmatpush1.bf16.msra.mxu0 %v2069
        %3274 = vmatprep.subr.bf16.mxu0 %v2110
        %3275 = vmatpush1.bf16.msra.mxu0 %v2109
        %3276 = vmatprep.subr.bf16.mxu0 %v2150
        %3277 = vmatpush1.bf16.msra.mxu0 %v2149
        %3278 = vmatprep.subr.bf16.mxu0 %v2190
        %3279 = vmatpush1.bf16.msra.mxu0 %v2189
        %3280 = vmatprep.subr.bf16.mxu0 %v2230
        %3281 = vmatpush1.bf16.msra.mxu0 %v2229
        %3282 = vmatprep.subr.bf16.mxu0 %v2270
        %3283 = vmatpush1.bf16.msra.mxu0 %v2269
        %3284 = vmatprep.subr.bf16.mxu0 0
        %3285 = vmatpush1.bf16.msra.mxu0 0
        %3286 = vmatprep.subr.bf16.mxu0 0
        %3287 = vmatpush1.bf16.msra.mxu0 0
        %3288 = vmatprep.subr.bf16.mxu0 0
        %3289 = vmatpush1.bf16.msra.mxu0 0
        %3290 = vmatprep.subr.bf16.mxu0 0
        %3291 = vmatpush1.bf16.msra.mxu0 0
        %3292 = vmatprep.subr.bf16.mxu0 0
        %3293 = vmatpush1.bf16.msra.mxu0 0
        %3294 = vmatprep.subr.bf16.mxu0 0
        %3295 = vmatpush1.bf16.msra.mxu0 0
        %3296 = vmatprep.subr.bf16.mxu0 0
        %3297 = vmatpush1.bf16.msra.mxu0 0
        %3298 = vmatprep.subr.bf16.mxu0 0
        %3299 = vmatpush1.bf16.msra.mxu0 0
        %3300 = vmatprep.mubr.bf16.mxu0 0
        %3301 = vmatmul.mubr.bf16.gmra.mrb[0].mxu0 %v687
        %v3302 = vpop.f32.mrb[0].mxu0
        %v3303 = vadd.f32 0.0, %v3302
        %v3304 = vpop.f32.mrb[0].mxu0
        %v3305 = vadd.f32 0.0, %v3304
        %v3306 = vpop.f32.mrb[0].mxu0
        %v3307 = vadd.f32 0.0, %v3306
        %v3308 = vpop.f32.mrb[0].mxu0
        %v3309 = vadd.f32 0.0, %v3308
        %3310 = vmatprep.mubr.bf16.mxu0 0
        %3311 = vmatmul.mubr.bf16.gmra.mrb[0].mxu0 %v688
        %v3312 = vpop.f32.mrb[0].mxu0
        %v3313 = vadd.f32 0.0, %v3312
        %v3314 = vpop.f32.mrb[0].mxu0
        %v3315 = vadd.f32 0.0, %v3314
        %v3316 = vpop.f32.mrb[0].mxu0
        %v3317 = vadd.f32 0.0, %v3316
        %v3318 = vpop.f32.mrb[0].mxu0
        %v3319 = vadd.f32 0.0, %v3318
        %3320 = vmatprep.mubr.bf16.mxu0 0
        %3321 = vmatmul.mubr.bf16.gmra.mrb[0].mxu0 %v689
        %v3322 = vpop.f32.mrb[0].mxu0
        %v3323 = vadd.f32 0.0, %v3322
        %v3324 = vpop.f32.mrb[0].mxu0
        %v3325 = vadd.f32 0.0, %v3324
        %v3326 = vpop.f32.mrb[0].mxu0
        %v3327 = vadd.f32 0.0, %v3326
        %v3328 = vpop.f32.mrb[0].mxu0
        %v3329 = vadd.f32 0.0, %v3328
        %3330 = vmatprep.mubr.bf16.mxu0 0
        %3331 = vmatmul.mubr.bf16.gmra.mrb[0].mxu0 %v690
        %v3332 = vpop.f32.mrb[0].mxu0
        %v3333 = vadd.f32 0.0, %v3332
        %v3334 = vpop.f32.mrb[0].mxu0
        %v3335 = vadd.f32 0.0, %v3334
        %v3336 = vpop.f32.mrb[0].mxu0
        %v3337 = vadd.f32 0.0, %v3336
        %v3338 = vpop.f32.mrb[0].mxu0
        %v3339 = vadd.f32 0.0, %v3338
        %3340 = vdwg.mxu0
        %3341 = vmatprep.subr.bf16.mxu0 %v1992
        %3342 = vmatpush1.bf16.msra.mxu0 %v1991
        %3343 = vmatprep.subr.bf16.mxu0 %v2032
        %3344 = vmatpush1.bf16.msra.mxu0 %v2031
        %3345 = vmatprep.subr.bf16.mxu0 %v2072
        %3346 = vmatpush1.bf16.msra.mxu0 %v2071
        %3347 = vmatprep.subr.bf16.mxu0 %v2112
        %3348 = vmatpush1.bf16.msra.mxu0 %v2111
        %3349 = vmatprep.subr.bf16.mxu0 %v2152
        %3350 = vmatpush1.bf16.msra.mxu0 %v2151
        %3351 = vmatprep.subr.bf16.mxu0 %v2192
        %3352 = vmatpush1.bf16.msra.mxu0 %v2191
        %3353 = vmatprep.subr.bf16.mxu0 %v2232
        %3354 = vmatpush1.bf16.msra.mxu0 %v2231
        %3355 = vmatprep.subr.bf16.mxu0 %v2272
        %3356 = vmatpush1.bf16.msra.mxu0 %v2271
        %3357 = vmatprep.subr.bf16.mxu0 0
        %3358 = vmatpush1.bf16.msra.mxu0 0
        %3359 = vmatprep.subr.bf16.mxu0 0
        %3360 = vmatpush1.bf16.msra.mxu0 0
        %3361 = vmatprep.subr.bf16.mxu0 0
        %3362 = vmatpush1.bf16.msra.mxu0 0
        %3363 = vmatprep.subr.bf16.mxu0 0
        %3364 = vmatpush1.bf16.msra.mxu0 0
        %3365 = vmatprep.subr.bf16.mxu0 0
        %3366 = vmatpush1.bf16.msra.mxu0 0
        %3367 = vmatprep.subr.bf16.mxu0 0
        %3368 = vmatpush1.bf16.msra.mxu0 0
        %3369 = vmatprep.subr.bf16.mxu0 0
        %3370 = vmatpush1.bf16.msra.mxu0 0
        %3371 = vmatprep.subr.bf16.mxu0 0
        %3372 = vmatpush1.bf16.msra.mxu0 0
        %3373 = vmatprep.mubr.bf16.mxu0 0
        %3374 = vmatmul.mubr.bf16.gmra.mrb[0].mxu0 %v687
        %v3375 = vpop.f32.mrb[0].mxu0
        %v3376 = vadd.f32 0.0, %v3375
        %v3377 = vpop.f32.mrb[0].mxu0
        %v3378 = vadd.f32 0.0, %v3377
        %v3379 = vpop.f32.mrb[0].mxu0
        %v3380 = vadd.f32 0.0, %v3379
        %v3381 = vpop.f32.mrb[0].mxu0
        %v3382 = vadd.f32 0.0, %v3381
        %3383 = vmatprep.mubr.bf16.mxu0 0
        %3384 = vmatmul.mubr.bf16.gmra.mrb[0].mxu0 %v688
        %v3385 = vpop.f32.mrb[0].mxu0
        %v3386 = vadd.f32 0.0, %v3385
        %v3387 = vpop.f32.mrb[0].mxu0
        %v3388 = vadd.f32 0.0, %v3387
        %v3389 = vpop.f32.mrb[0].mxu0
        %v3390 = vadd.f32 0.0, %v3389
        %v3391 = vpop.f32.mrb[0].mxu0
        %v3392 = vadd.f32 0.0, %v3391
        %3393 = vmatprep.mubr.bf16.mxu0 0
        %3394 = vmatmul.mubr.bf16.gmra.mrb[0].mxu0 %v689
        %v3395 = vpop.f32.mrb[0].mxu0
        %v3396 = vadd.f32 0.0, %v3395
        %v3397 = vpop.f32.mrb[0].mxu0
        %v3398 = vadd.f32 0.0, %v3397
        %v3399 = vpop.f32.mrb[0].mxu0
        %v3400 = vadd.f32 0.0, %v3399
        %v3401 = vpop.f32.mrb[0].mxu0
        %v3402 = vadd.f32 0.0, %v3401
        %3403 = vmatprep.mubr.bf16.mxu0 0
        %3404 = vmatmul.mubr.bf16.gmra.mrb[0].mxu0 %v690
        %v3405 = vpop.f32.mrb[0].mxu0
        %v3406 = vadd.f32 0.0, %v3405
        %v3407 = vpop.f32.mrb[0].mxu0
        %v3408 = vadd.f32 0.0, %v3407
        %v3409 = vpop.f32.mrb[0].mxu0
        %v3410 = vadd.f32 0.0, %v3409
        %v3411 = vpop.f32.mrb[0].mxu0
        %v3412 = vadd.f32 0.0, %v3411
        %3413 = vdwg.mxu0
        %3414 = vmatprep.subr.bf16.mxu0 %v1994
        %3415 = vmatpush1.bf16.msra.mxu0 %v1993
        %3416 = vmatprep.subr.bf16.mxu0 %v2034
        %3417 = vmatpush1.bf16.msra.mxu0 %v2033
        %3418 = vmatprep.subr.bf16.mxu0 %v2074
        %3419 = vmatpush1.bf16.msra.mxu0 %v2073
        %3420 = vmatprep.subr.bf16.mxu0 %v2114
        %3421 = vmatpush1.bf16.msra.mxu0 %v2113
        %3422 = vmatprep.subr.bf16.mxu0 %v2154
        %3423 = vmatpush1.bf16.msra.mxu0 %v2153
        %3424 = vmatprep.subr.bf16.mxu0 %v2194
        %3425 = vmatpush1.bf16.msra.mxu0 %v2193
        %3426 = vmatprep.subr.bf16.mxu0 %v2234
        %3427 = vmatpush1.bf16.msra.mxu0 %v2233
        %3428 = vmatprep.subr.bf16.mxu0 %v2274
        %3429 = vmatpush1.bf16.msra.mxu0 %v2273
        %3430 = vmatprep.subr.bf16.mxu0 0
        %3431 = vmatpush1.bf16.msra.mxu0 0
        %3432 = vmatprep.subr.bf16.mxu0 0
        %3433 = vmatpush1.bf16.msra.mxu0 0
        %3434 = vmatprep.subr.bf16.mxu0 0
        %3435 = vmatpush1.bf16.msra.mxu0 0
        %3436 = vmatprep.subr.bf16.mxu0 0
        %3437 = vmatpush1.bf16.msra.mxu0 0
        %3438 = vmatprep.subr.bf16.mxu0 0
        %3439 = vmatpush1.bf16.msra.mxu0 0
        %3440 = vmatprep.subr.bf16.mxu0 0
        %3441 = vmatpush1.bf16.msra.mxu0 0
        %3442 = vmatprep.subr.bf16.mxu0 0
        %3443 = vmatpush1.bf16.msra.mxu0 0
        %3444 = vmatprep.subr.bf16.mxu0 0
        %3445 = vmatpush1.bf16.msra.mxu0 0
        %3446 = vmatprep.mubr.bf16.mxu0 0
        %3447 = vmatmul.mubr.bf16.gmra.mrb[0].mxu0 %v687
        %v3448 = vpop.f32.mrb[0].mxu0
        %v3449 = vadd.f32 0.0, %v3448
        %v3450 = vpop.f32.mrb[0].mxu0
        %v3451 = vadd.f32 0.0, %v3450
        %v3452 = vpop.f32.mrb[0].mxu0
        %v3453 = vadd.f32 0.0, %v3452
        %v3454 = vpop.f32.mrb[0].mxu0
        %v3455 = vadd.f32 0.0, %v3454
        %3456 = vmatprep.mubr.bf16.mxu0 0
        %3457 = vmatmul.mubr.bf16.gmra.mrb[0].mxu0 %v688
        %v3458 = vpop.f32.mrb[0].mxu0
        %v3459 = vadd.f32 0.0, %v3458
        %v3460 = vpop.f32.mrb[0].mxu0
        %v3461 = vadd.f32 0.0, %v3460
        %v3462 = vpop.f32.mrb[0].mxu0
        %v3463 = vadd.f32 0.0, %v3462
        %v3464 = vpop.f32.mrb[0].mxu0
        %v3465 = vadd.f32 0.0, %v3464
        %3466 = vmatprep.mubr.bf16.mxu0 0
        %3467 = vmatmul.mubr.bf16.gmra.mrb[0].mxu0 %v689
        %v3468 = vpop.f32.mrb[0].mxu0
        %v3469 = vadd.f32 0.0, %v3468
        %v3470 = vpop.f32.mrb[0].mxu0
        %v3471 = vadd.f32 0.0, %v3470
        %v3472 = vpop.f32.mrb[0].mxu0
        %v3473 = vadd.f32 0.0, %v3472
        %v3474 = vpop.f32.mrb[0].mxu0
        %v3475 = vadd.f32 0.0, %v3474
        %3476 = vmatprep.mubr.bf16.mxu0 0
        %3477 = vmatmul.mubr.bf16.gmra.mrb[0].mxu0 %v690
        %v3478 = vpop.f32.mrb[0].mxu0
        %v3479 = vadd.f32 0.0, %v3478
        %v3480 = vpop.f32.mrb[0].mxu0
        %v3481 = vadd.f32 0.0, %v3480
        %v3482 = vpop.f32.mrb[0].mxu0
        %v3483 = vadd.f32 0.0, %v3482
        %v3484 = vpop.f32.mrb[0].mxu0
        %v3485 = vadd.f32 0.0, %v3484
        %3486 = vdwg.mxu0
        %3487 = vmatprep.subr.bf16.mxu0 %v1996
        %3488 = vmatpush1.bf16.msra.mxu0 %v1995
        %3489 = vmatprep.subr.bf16.mxu0 %v2036
        %3490 = vmatpush1.bf16.msra.mxu0 %v2035
        %3491 = vmatprep.subr.bf16.mxu0 %v2076
        %3492 = vmatpush1.bf16.msra.mxu0 %v2075
        %3493 = vmatprep.subr.bf16.mxu0 %v2116
        %3494 = vmatpush1.bf16.msra.mxu0 %v2115
        %3495 = vmatprep.subr.bf16.mxu0 %v2156
        %3496 = vmatpush1.bf16.msra.mxu0 %v2155
        %3497 = vmatprep.subr.bf16.mxu0 %v2196
        %3498 = vmatpush1.bf16.msra.mxu0 %v2195
        %3499 = vmatprep.subr.bf16.mxu0 %v2236
        %3500 = vmatpush1.bf16.msra.mxu0 %v2235
        %3501 = vmatprep.subr.bf16.mxu0 %v2276
        %3502 = vmatpush1.bf16.msra.mxu0 %v2275
        %3503 = vmatprep.subr.bf16.mxu0 0
        %3504 = vmatpush1.bf16.msra.mxu0 0
        %3505 = vmatprep.subr.bf16.mxu0 0
        %3506 = vmatpush1.bf16.msra.mxu0 0
        %3507 = vmatprep.subr.bf16.mxu0 0
        %3508 = vmatpush1.bf16.msra.mxu0 0
        %3509 = vmatprep.subr.bf16.mxu0 0
        %3510 = vmatpush1.bf16.msra.mxu0 0
        %3511 = vmatprep.subr.bf16.mxu0 0
        %3512 = vmatpush1.bf16.msra.mxu0 0
        %3513 = vmatprep.subr.bf16.mxu0 0
        %3514 = vmatpush1.bf16.msra.mxu0 0
        %3515 = vmatprep.subr.bf16.mxu0 0
        %3516 = vmatpush1.bf16.msra.mxu0 0
        %3517 = vmatprep.subr.bf16.mxu0 0
        %3518 = vmatpush1.bf16.msra.mxu0 0
        %3519 = vmatprep.mubr.bf16.mxu0 0
        %3520 = vmatmul.mubr.bf16.gmra.mrb[0].mxu0 %v687
        %v3521 = vpop.f32.mrb[0].mxu0
        %v3522 = vadd.f32 0.0, %v3521
        %v3523 = vpop.f32.mrb[0].mxu0
        %v3524 = vadd.f32 0.0, %v3523
        %v3525 = vpop.f32.mrb[0].mxu0
        %v3526 = vadd.f32 0.0, %v3525
        %v3527 = vpop.f32.mrb[0].mxu0
        %v3528 = vadd.f32 0.0, %v3527
        %3529 = vmatprep.mubr.bf16.mxu0 0
        %3530 = vmatmul.mubr.bf16.gmra.mrb[0].mxu0 %v688
        %v3531 = vpop.f32.mrb[0].mxu0
        %v3532 = vadd.f32 0.0, %v3531
        %v3533 = vpop.f32.mrb[0].mxu0
        %v3534 = vadd.f32 0.0, %v3533
        %v3535 = vpop.f32.mrb[0].mxu0
        %v3536 = vadd.f32 0.0, %v3535
        %v3537 = vpop.f32.mrb[0].mxu0
        %v3538 = vadd.f32 0.0, %v3537
        %3539 = vmatprep.mubr.bf16.mxu0 0
        %3540 = vmatmul.mubr.bf16.gmra.mrb[0].mxu0 %v689
        %v3541 = vpop.f32.mrb[0].mxu0
        %v3542 = vadd.f32 0.0, %v3541
        %v3543 = vpop.f32.mrb[0].mxu0
        %v3544 = vadd.f32 0.0, %v3543
        %v3545 = vpop.f32.mrb[0].mxu0
        %v3546 = vadd.f32 0.0, %v3545
        %v3547 = vpop.f32.mrb[0].mxu0
        %v3548 = vadd.f32 0.0, %v3547
        %3549 = vmatprep.mubr.bf16.mxu0 0
        %3550 = vmatmul.mubr.bf16.gmra.mrb[0].mxu0 %v690
        %v3551 = vpop.f32.mrb[0].mxu0
        %v3552 = vadd.f32 0.0, %v3551
        %v3553 = vpop.f32.mrb[0].mxu0
        %v3554 = vadd.f32 0.0, %v3553
        %v3555 = vpop.f32.mrb[0].mxu0
        %v3556 = vadd.f32 0.0, %v3555
        %v3557 = vpop.f32.mrb[0].mxu0
        %v3558 = vadd.f32 0.0, %v3557
        %3559 = vdwg.mxu0
        %3560 = vmatprep.subr.bf16.mxu0 %v1998
        %3561 = vmatpush1.bf16.msra.mxu0 %v1997
        %3562 = vmatprep.subr.bf16.mxu0 %v2038
        %3563 = vmatpush1.bf16.msra.mxu0 %v2037
        %3564 = vmatprep.subr.bf16.mxu0 %v2078
        %3565 = vmatpush1.bf16.msra.mxu0 %v2077
        %3566 = vmatprep.subr.bf16.mxu0 %v2118
        %3567 = vmatpush1.bf16.msra.mxu0 %v2117
        %3568 = vmatprep.subr.bf16.mxu0 %v2158
        %3569 = vmatpush1.bf16.msra.mxu0 %v2157
        %3570 = vmatprep.subr.bf16.mxu0 %v2198
        %3571 = vmatpush1.bf16.msra.mxu0 %v2197
        %3572 = vmatprep.subr.bf16.mxu0 %v2238
        %3573 = vmatpush1.bf16.msra.mxu0 %v2237
        %3574 = vmatprep.subr.bf16.mxu0 %v2278
        %3575 = vmatpush1.bf16.msra.mxu0 %v2277
        %3576 = vmatprep.subr.bf16.mxu0 0
        %3577 = vmatpush1.bf16.msra.mxu0 0
        %3578 = vmatprep.subr.bf16.mxu0 0
        %3579 = vmatpush1.bf16.msra.mxu0 0
        %3580 = vmatprep.subr.bf16.mxu0 0
        %3581 = vmatpush1.bf16.msra.mxu0 0
        %3582 = vmatprep.subr.bf16.mxu0 0
        %3583 = vmatpush1.bf16.msra.mxu0 0
        %3584 = vmatprep.subr.bf16.mxu0 0
        %3585 = vmatpush1.bf16.msra.mxu0 0
        %3586 = vmatprep.subr.bf16.mxu0 0
        %3587 = vmatpush1.bf16.msra.mxu0 0
        %3588 = vmatprep.subr.bf16.mxu0 0
        %3589 = vmatpush1.bf16.msra.mxu0 0
        %3590 = vmatprep.subr.bf16.mxu0 0
        %3591 = vmatpush1.bf16.msra.mxu0 0
        %3592 = vmatprep.mubr.bf16.mxu0 0
        %3593 = vmatmul.mubr.bf16.gmra.mrb[0].mxu0 %v687
        %v3594 = vpop.f32.mrb[0].mxu0
        %v3595 = vadd.f32 0.0, %v3594
        %v3596 = vpop.f32.mrb[0].mxu0
        %v3597 = vadd.f32 0.0, %v3596
        %v3598 = vpop.f32.mrb[0].mxu0
        %v3599 = vadd.f32 0.0, %v3598
        %v3600 = vpop.f32.mrb[0].mxu0
        %v3601 = vadd.f32 0.0, %v3600
        %3602 = vmatprep.mubr.bf16.mxu0 0
        %3603 = vmatmul.mubr.bf16.gmra.mrb[0].mxu0 %v688
        %v3604 = vpop.f32.mrb[0].mxu0
        %v3605 = vadd.f32 0.0, %v3604
        %v3606 = vpop.f32.mrb[0].mxu0
        %v3607 = vadd.f32 0.0, %v3606
        %v3608 = vpop.f32.mrb[0].mxu0
        %v3609 = vadd.f32 0.0, %v3608
        %v3610 = vpop.f32.mrb[0].mxu0
        %v3611 = vadd.f32 0.0, %v3610
        %3612 = vmatprep.mubr.bf16.mxu0 0
        %3613 = vmatmul.mubr.bf16.gmra.mrb[0].mxu0 %v689
        %v3614 = vpop.f32.mrb[0].mxu0
        %v3615 = vadd.f32 0.0, %v3614
        %v3616 = vpop.f32.mrb[0].mxu0
        %v3617 = vadd.f32 0.0, %v3616
        %v3618 = vpop.f32.mrb[0].mxu0
        %v3619 = vadd.f32 0.0, %v3618
        %v3620 = vpop.f32.mrb[0].mxu0
        %v3621 = vadd.f32 0.0, %v3620
        %3622 = vmatprep.mubr.bf16.mxu0 0
        %3623 = vmatmul.mubr.bf16.gmra.mrb[0].mxu0 %v690
        %v3624 = vpop.f32.mrb[0].mxu0
        %v3625 = vadd.f32 0.0, %v3624
        %v3626 = vpop.f32.mrb[0].mxu0
        %v3627 = vadd.f32 0.0, %v3626
        %v3628 = vpop.f32.mrb[0].mxu0
        %v3629 = vadd.f32 0.0, %v3628
        %v3630 = vpop.f32.mrb[0].mxu0
        %v3631 = vadd.f32 0.0, %v3630
        %3632 = vdwg.mxu0
        %3633 = vmatprep.subr.bf16.mxu0 %v2000
        %3634 = vmatpush1.bf16.msra.mxu0 %v1999
        %3635 = vmatprep.subr.bf16.mxu0 %v2040
        %3636 = vmatpush1.bf16.msra.mxu0 %v2039
        %3637 = vmatprep.subr.bf16.mxu0 %v2080
        %3638 = vmatpush1.bf16.msra.mxu0 %v2079
        %3639 = vmatprep.subr.bf16.mxu0 %v2120
        %3640 = vmatpush1.bf16.msra.mxu0 %v2119
        %3641 = vmatprep.subr.bf16.mxu0 %v2160
        %3642 = vmatpush1.bf16.msra.mxu0 %v2159
        %3643 = vmatprep.subr.bf16.mxu0 %v2200
        %3644 = vmatpush1.bf16.msra.mxu0 %v2199
        %3645 = vmatprep.subr.bf16.mxu0 %v2240
        %3646 = vmatpush1.bf16.msra.mxu0 %v2239
        %3647 = vmatprep.subr.bf16.mxu0 %v2280
        %3648 = vmatpush1.bf16.msra.mxu0 %v2279
        %3649 = vmatprep.subr.bf16.mxu0 0
        %3650 = vmatpush1.bf16.msra.mxu0 0
        %3651 = vmatprep.subr.bf16.mxu0 0
        %3652 = vmatpush1.bf16.msra.mxu0 0
        %3653 = vmatprep.subr.bf16.mxu0 0
        %3654 = vmatpush1.bf16.msra.mxu0 0
        %3655 = vmatprep.subr.bf16.mxu0 0
        %3656 = vmatpush1.bf16.msra.mxu0 0
        %3657 = vmatprep.subr.bf16.mxu0 0
        %3658 = vmatpush1.bf16.msra.mxu0 0
        %3659 = vmatprep.subr.bf16.mxu0 0
        %3660 = vmatpush1.bf16.msra.mxu0 0
        %3661 = vmatprep.subr.bf16.mxu0 0
        %3662 = vmatpush1.bf16.msra.mxu0 0
        %3663 = vmatprep.subr.bf16.mxu0 0
        %3664 = vmatpush1.bf16.msra.mxu0 0
        %3665 = vmatprep.mubr.bf16.mxu0 0
        %3666 = vmatmul.mubr.bf16.gmra.mrb[0].mxu0 %v687
        %v3667 = vpop.f32.mrb[0].mxu0
        %v3668 = vadd.f32 0.0, %v3667
        %v3669 = vpop.f32.mrb[0].mxu0
        %v3670 = vadd.f32 0.0, %v3669
        %v3671 = vpop.f32.mrb[0].mxu0
        %v3672 = vadd.f32 0.0, %v3671
        %v3673 = vpop.f32.mrb[0].mxu0
        %v3674 = vadd.f32 0.0, %v3673
        %3675 = vmatprep.mubr.bf16.mxu0 0
        %3676 = vmatmul.mubr.bf16.gmra.mrb[0].mxu0 %v688
        %v3677 = vpop.f32.mrb[0].mxu0
        %v3678 = vadd.f32 0.0, %v3677
        %v3679 = vpop.f32.mrb[0].mxu0
        %v3680 = vadd.f32 0.0, %v3679
        %v3681 = vpop.f32.mrb[0].mxu0
        %v3682 = vadd.f32 0.0, %v3681
        %v3683 = vpop.f32.mrb[0].mxu0
        %v3684 = vadd.f32 0.0, %v3683
        %3685 = vmatprep.mubr.bf16.mxu0 0
        %3686 = vmatmul.mubr.bf16.gmra.mrb[0].mxu0 %v689
        %v3687 = vpop.f32.mrb[0].mxu0
        %v3688 = vadd.f32 0.0, %v3687
        %v3689 = vpop.f32.mrb[0].mxu0
        %v3690 = vadd.f32 0.0, %v3689
        %v3691 = vpop.f32.mrb[0].mxu0
        %v3692 = vadd.f32 0.0, %v3691
        %v3693 = vpop.f32.mrb[0].mxu0
        %v3694 = vadd.f32 0.0, %v3693
        %3695 = vmatprep.mubr.bf16.mxu0 0
        %3696 = vmatmul.mubr.bf16.gmra.mrb[0].mxu0 %v690
        %v3697 = vpop.f32.mrb[0].mxu0
        %v3698 = vadd.f32 0.0, %v3697
        %v3699 = vpop.f32.mrb[0].mxu0
        %v3700 = vadd.f32 0.0, %v3699
        %v3701 = vpop.f32.mrb[0].mxu0
        %v3702 = vadd.f32 0.0, %v3701
        %v3703 = vpop.f32.mrb[0].mxu0
        %v3704 = vadd.f32 0.0, %v3703
        %3705 = vdwg.mxu0
        %3706 = vmatprep.subr.bf16.mxu0 %v2002
        %3707 = vmatpush1.bf16.msra.mxu0 %v2001
        %3708 = vmatprep.subr.bf16.mxu0 %v2042
        %3709 = vmatpush1.bf16.msra.mxu0 %v2041
        %3710 = vmatprep.subr.bf16.mxu0 %v2082
        %3711 = vmatpush1.bf16.msra.mxu0 %v2081
        %3712 = vmatprep.subr.bf16.mxu0 %v2122
        %3713 = vmatpush1.bf16.msra.mxu0 %v2121
        %3714 = vmatprep.subr.bf16.mxu0 %v2162
        %3715 = vmatpush1.bf16.msra.mxu0 %v2161
        %3716 = vmatprep.subr.bf16.mxu0 %v2202
        %3717 = vmatpush1.bf16.msra.mxu0 %v2201
        %3718 = vmatprep.subr.bf16.mxu0 %v2242
        %3719 = vmatpush1.bf16.msra.mxu0 %v2241
        %3720 = vmatprep.subr.bf16.mxu0 %v2282
        %3721 = vmatpush1.bf16.msra.mxu0 %v2281
        %3722 = vmatprep.subr.bf16.mxu0 0
        %3723 = vmatpush1.bf16.msra.mxu0 0
        %3724 = vmatprep.subr.bf16.mxu0 0
        %3725 = vmatpush1.bf16.msra.mxu0 0
        %3726 = vmatprep.subr.bf16.mxu0 0
        %3727 = vmatpush1.bf16.msra.mxu0 0
        %3728 = vmatprep.subr.bf16.mxu0 0
        %3729 = vmatpush1.bf16.msra.mxu0 0
        %3730 = vmatprep.subr.bf16.mxu0 0
        %3731 = vmatpush1.bf16.msra.mxu0 0
        %3732 = vmatprep.subr.bf16.mxu0 0
        %3733 = vmatpush1.bf16.msra.mxu0 0
        %3734 = vmatprep.subr.bf16.mxu0 0
        %3735 = vmatpush1.bf16.msra.mxu0 0
        %3736 = vmatprep.subr.bf16.mxu0 0
        %3737 = vmatpush1.bf16.msra.mxu0 0
        %3738 = vmatprep.mubr.bf16.mxu0 0
        %3739 = vmatmul.mubr.bf16.gmra.mrb[0].mxu0 %v687
        %v3740 = vpop.f32.mrb[0].mxu0
        %v3741 = vadd.f32 0.0, %v3740
        %v3742 = vpop.f32.mrb[0].mxu0
        %v3743 = vadd.f32 0.0, %v3742
        %v3744 = vpop.f32.mrb[0].mxu0
        %v3745 = vadd.f32 0.0, %v3744
        %v3746 = vpop.f32.mrb[0].mxu0
        %v3747 = vadd.f32 0.0, %v3746
        %3748 = vmatprep.mubr.bf16.mxu0 0
        %3749 = vmatmul.mubr.bf16.gmra.mrb[0].mxu0 %v688
        %v3750 = vpop.f32.mrb[0].mxu0
        %v3751 = vadd.f32 0.0, %v3750
        %v3752 = vpop.f32.mrb[0].mxu0
        %v3753 = vadd.f32 0.0, %v3752
        %v3754 = vpop.f32.mrb[0].mxu0
        %v3755 = vadd.f32 0.0, %v3754
        %v3756 = vpop.f32.mrb[0].mxu0
        %v3757 = vadd.f32 0.0, %v3756
        %3758 = vmatprep.mubr.bf16.mxu0 0
        %3759 = vmatmul.mubr.bf16.gmra.mrb[0].mxu0 %v689
        %v3760 = vpop.f32.mrb[0].mxu0
        %v3761 = vadd.f32 0.0, %v3760
        %v3762 = vpop.f32.mrb[0].mxu0
        %v3763 = vadd.f32 0.0, %v3762
        %v3764 = vpop.f32.mrb[0].mxu0
        %v3765 = vadd.f32 0.0, %v3764
        %v3766 = vpop.f32.mrb[0].mxu0
        %v3767 = vadd.f32 0.0, %v3766
        %3768 = vmatprep.mubr.bf16.mxu0 0
        %3769 = vmatmul.mubr.bf16.gmra.mrb[0].mxu0 %v690
        %v3770 = vpop.f32.mrb[0].mxu0
        %v3771 = vadd.f32 0.0, %v3770
        %v3772 = vpop.f32.mrb[0].mxu0
        %v3773 = vadd.f32 0.0, %v3772
        %v3774 = vpop.f32.mrb[0].mxu0
        %v3775 = vadd.f32 0.0, %v3774
        %v3776 = vpop.f32.mrb[0].mxu0
        %v3777 = vadd.f32 0.0, %v3776
        %3778 = vdwg.mxu0
        %3779 = vmatprep.subr.bf16.mxu0 %v2004
        %3780 = vmatpush1.bf16.msra.mxu0 %v2003
        %3781 = vmatprep.subr.bf16.mxu0 %v2044
        %3782 = vmatpush1.bf16.msra.mxu0 %v2043
        %3783 = vmatprep.subr.bf16.mxu0 %v2084
        %3784 = vmatpush1.bf16.msra.mxu0 %v2083
        %3785 = vmatprep.subr.bf16.mxu0 %v2124
        %3786 = vmatpush1.bf16.msra.mxu0 %v2123
        %3787 = vmatprep.subr.bf16.mxu0 %v2164
        %3788 = vmatpush1.bf16.msra.mxu0 %v2163
        %3789 = vmatprep.subr.bf16.mxu0 %v2204
        %3790 = vmatpush1.bf16.msra.mxu0 %v2203
        %3791 = vmatprep.subr.bf16.mxu0 %v2244
        %3792 = vmatpush1.bf16.msra.mxu0 %v2243
        %3793 = vmatprep.subr.bf16.mxu0 %v2284
        %3794 = vmatpush1.bf16.msra.mxu0 %v2283
        %3795 = vmatprep.subr.bf16.mxu0 0
        %3796 = vmatpush1.bf16.msra.mxu0 0
        %3797 = vmatprep.subr.bf16.mxu0 0
        %3798 = vmatpush1.bf16.msra.mxu0 0
        %3799 = vmatprep.subr.bf16.mxu0 0
        %3800 = vmatpush1.bf16.msra.mxu0 0
        %3801 = vmatprep.subr.bf16.mxu0 0
        %3802 = vmatpush1.bf16.msra.mxu0 0
        %3803 = vmatprep.subr.bf16.mxu0 0
        %3804 = vmatpush1.bf16.msra.mxu0 0
        %3805 = vmatprep.subr.bf16.mxu0 0
        %3806 = vmatpush1.bf16.msra.mxu0 0
        %3807 = vmatprep.subr.bf16.mxu0 0
        %3808 = vmatpush1.bf16.msra.mxu0 0
        %3809 = vmatprep.subr.bf16.mxu0 0
        %3810 = vmatpush1.bf16.msra.mxu0 0
        %3811 = vmatprep.mubr.bf16.mxu0 0
        %3812 = vmatmul.mubr.bf16.gmra.mrb[0].mxu0 %v687
        %v3813 = vpop.f32.mrb[0].mxu0
        %v3814 = vadd.f32 0.0, %v3813
        %v3815 = vpop.f32.mrb[0].mxu0
        %v3816 = vadd.f32 0.0, %v3815
        %v3817 = vpop.f32.mrb[0].mxu0
        %v3818 = vadd.f32 0.0, %v3817
        %v3819 = vpop.f32.mrb[0].mxu0
        %v3820 = vadd.f32 0.0, %v3819
        %3821 = vmatprep.mubr.bf16.mxu0 0
        %3822 = vmatmul.mubr.bf16.gmra.mrb[0].mxu0 %v688
        %v3823 = vpop.f32.mrb[0].mxu0
        %v3824 = vadd.f32 0.0, %v3823
        %v3825 = vpop.f32.mrb[0].mxu0
        %v3826 = vadd.f32 0.0, %v3825
        %v3827 = vpop.f32.mrb[0].mxu0
        %v3828 = vadd.f32 0.0, %v3827
        %v3829 = vpop.f32.mrb[0].mxu0
        %v3830 = vadd.f32 0.0, %v3829
        %3831 = vmatprep.mubr.bf16.mxu0 0
        %3832 = vmatmul.mubr.bf16.gmra.mrb[0].mxu0 %v689
        %v3833 = vpop.f32.mrb[0].mxu0
        %v3834 = vadd.f32 0.0, %v3833
        %v3835 = vpop.f32.mrb[0].mxu0
        %v3836 = vadd.f32 0.0, %v3835
        %v3837 = vpop.f32.mrb[0].mxu0
        %v3838 = vadd.f32 0.0, %v3837
        %v3839 = vpop.f32.mrb[0].mxu0
        %v3840 = vadd.f32 0.0, %v3839
        %3841 = vmatprep.mubr.bf16.mxu0 0
        %3842 = vmatmul.mubr.bf16.gmra.mrb[0].mxu0 %v690
        %v3843 = vpop.f32.mrb[0].mxu0
        %v3844 = vadd.f32 0.0, %v3843
        %v3845 = vpop.f32.mrb[0].mxu0
        %v3846 = vadd.f32 0.0, %v3845
        %v3847 = vpop.f32.mrb[0].mxu0
        %v3848 = vadd.f32 0.0, %v3847
        %v3849 = vpop.f32.mrb[0].mxu0
        %v3850 = vadd.f32 0.0, %v3849
        %3851 = vdwg.mxu0
        %3852 = vmatprep.subr.bf16.mxu0 %v2006
        %3853 = vmatpush1.bf16.msra.mxu0 %v2005
        %3854 = vmatprep.subr.bf16.mxu0 %v2046
        %3855 = vmatpush1.bf16.msra.mxu0 %v2045
        %3856 = vmatprep.subr.bf16.mxu0 %v2086
        %3857 = vmatpush1.bf16.msra.mxu0 %v2085
        %3858 = vmatprep.subr.bf16.mxu0 %v2126
        %3859 = vmatpush1.bf16.msra.mxu0 %v2125
        %3860 = vmatprep.subr.bf16.mxu0 %v2166
        %3861 = vmatpush1.bf16.msra.mxu0 %v2165
        %3862 = vmatprep.subr.bf16.mxu0 %v2206
        %3863 = vmatpush1.bf16.msra.mxu0 %v2205
        %3864 = vmatprep.subr.bf16.mxu0 %v2246
        %3865 = vmatpush1.bf16.msra.mxu0 %v2245
        %3866 = vmatprep.subr.bf16.mxu0 %v2286
        %3867 = vmatpush1.bf16.msra.mxu0 %v2285
        %3868 = vmatprep.subr.bf16.mxu0 0
        %3869 = vmatpush1.bf16.msra.mxu0 0
        %3870 = vmatprep.subr.bf16.mxu0 0
        %3871 = vmatpush1.bf16.msra.mxu0 0
        %3872 = vmatprep.subr.bf16.mxu0 0
        %3873 = vmatpush1.bf16.msra.mxu0 0
        %3874 = vmatprep.subr.bf16.mxu0 0
        %3875 = vmatpush1.bf16.msra.mxu0 0
        %3876 = vmatprep.subr.bf16.mxu0 0
        %3877 = vmatpush1.bf16.msra.mxu0 0
        %3878 = vmatprep.subr.bf16.mxu0 0
        %3879 = vmatpush1.bf16.msra.mxu0 0
        %3880 = vmatprep.subr.bf16.mxu0 0
        %3881 = vmatpush1.bf16.msra.mxu0 0
        %3882 = vmatprep.subr.bf16.mxu0 0
        %3883 = vmatpush1.bf16.msra.mxu0 0
        %3884 = vmatprep.mubr.bf16.mxu0 0
        %3885 = vmatmul.mubr.bf16.gmra.mrb[0].mxu0 %v687
        %v3886 = vpop.f32.mrb[0].mxu0
        %v3887 = vadd.f32 0.0, %v3886
        %v3888 = vpop.f32.mrb[0].mxu0
        %v3889 = vadd.f32 0.0, %v3888
        %v3890 = vpop.f32.mrb[0].mxu0
        %v3891 = vadd.f32 0.0, %v3890
        %v3892 = vpop.f32.mrb[0].mxu0
        %v3893 = vadd.f32 0.0, %v3892
        %3894 = vmatprep.mubr.bf16.mxu0 0
        %3895 = vmatmul.mubr.bf16.gmra.mrb[0].mxu0 %v688
        %v3896 = vpop.f32.mrb[0].mxu0
        %v3897 = vadd.f32 0.0, %v3896
        %v3898 = vpop.f32.mrb[0].mxu0
        %v3899 = vadd.f32 0.0, %v3898
        %v3900 = vpop.f32.mrb[0].mxu0
        %v3901 = vadd.f32 0.0, %v3900
        %v3902 = vpop.f32.mrb[0].mxu0
        %v3903 = vadd.f32 0.0, %v3902
        %3904 = vmatprep.mubr.bf16.mxu0 0
        %3905 = vmatmul.mubr.bf16.gmra.mrb[0].mxu0 %v689
        %v3906 = vpop.f32.mrb[0].mxu0
        %v3907 = vadd.f32 0.0, %v3906
        %v3908 = vpop.f32.mrb[0].mxu0
        %v3909 = vadd.f32 0.0, %v3908
        %v3910 = vpop.f32.mrb[0].mxu0
        %v3911 = vadd.f32 0.0, %v3910
        %v3912 = vpop.f32.mrb[0].mxu0
        %v3913 = vadd.f32 0.0, %v3912
        %3914 = vmatprep.mubr.bf16.mxu0 0
        %3915 = vmatmul.mubr.bf16.gmra.mrb[0].mxu0 %v690
        %v3916 = vpop.f32.mrb[0].mxu0
        %v3917 = vadd.f32 0.0, %v3916
        %v3918 = vpop.f32.mrb[0].mxu0
        %v3919 = vadd.f32 0.0, %v3918
        %v3920 = vpop.f32.mrb[0].mxu0
        %v3921 = vadd.f32 0.0, %v3920
        %v3922 = vpop.f32.mrb[0].mxu0
        %v3923 = vadd.f32 0.0, %v3922
        %3924 = vdwg.mxu0
        %3925 = vmatprep.subr.bf16.mxu0 %v2008
        %3926 = vmatpush1.bf16.msra.mxu0 %v2007
        %3927 = vmatprep.subr.bf16.mxu0 %v2048
        %3928 = vmatpush1.bf16.msra.mxu0 %v2047
        %3929 = vmatprep.subr.bf16.mxu0 %v2088
        %3930 = vmatpush1.bf16.msra.mxu0 %v2087
        %3931 = vmatprep.subr.bf16.mxu0 %v2128
        %3932 = vmatpush1.bf16.msra.mxu0 %v2127
        %3933 = vmatprep.subr.bf16.mxu0 %v2168
        %3934 = vmatpush1.bf16.msra.mxu0 %v2167
        %3935 = vmatprep.subr.bf16.mxu0 %v2208
        %3936 = vmatpush1.bf16.msra.mxu0 %v2207
        %3937 = vmatprep.subr.bf16.mxu0 %v2248
        %3938 = vmatpush1.bf16.msra.mxu0 %v2247
        %3939 = vmatprep.subr.bf16.mxu0 %v2288
        %3940 = vmatpush1.bf16.msra.mxu0 %v2287
        %3941 = vmatprep.subr.bf16.mxu0 0
        %3942 = vmatpush1.bf16.msra.mxu0 0
        %3943 = vmatprep.subr.bf16.mxu0 0
        %3944 = vmatpush1.bf16.msra.mxu0 0
        %3945 = vmatprep.subr.bf16.mxu0 0
        %3946 = vmatpush1.bf16.msra.mxu0 0
        %3947 = vmatprep.subr.bf16.mxu0 0
        %3948 = vmatpush1.bf16.msra.mxu0 0
        %3949 = vmatprep.subr.bf16.mxu0 0
        %3950 = vmatpush1.bf16.msra.mxu0 0
        %3951 = vmatprep.subr.bf16.mxu0 0
        %3952 = vmatpush1.bf16.msra.mxu0 0
        %3953 = vmatprep.subr.bf16.mxu0 0
        %3954 = vmatpush1.bf16.msra.mxu0 0
        %3955 = vmatprep.subr.bf16.mxu0 0
        %3956 = vmatpush1.bf16.msra.mxu0 0
        %3957 = vmatprep.mubr.bf16.mxu0 0
        %3958 = vmatmul.mubr.bf16.gmra.mrb[0].mxu0 %v687
        %v3959 = vpop.f32.mrb[0].mxu0
        %v3960 = vadd.f32 0.0, %v3959
        %v3961 = vpop.f32.mrb[0].mxu0
        %v3962 = vadd.f32 0.0, %v3961
        %v3963 = vpop.f32.mrb[0].mxu0
        %v3964 = vadd.f32 0.0, %v3963
        %v3965 = vpop.f32.mrb[0].mxu0
        %v3966 = vadd.f32 0.0, %v3965
        %3967 = vmatprep.mubr.bf16.mxu0 0
        %3968 = vmatmul.mubr.bf16.gmra.mrb[0].mxu0 %v688
        %v3969 = vpop.f32.mrb[0].mxu0
        %v3970 = vadd.f32 0.0, %v3969
        %v3971 = vpop.f32.mrb[0].mxu0
        %v3972 = vadd.f32 0.0, %v3971
        %v3973 = vpop.f32.mrb[0].mxu0
        %v3974 = vadd.f32 0.0, %v3973
        %v3975 = vpop.f32.mrb[0].mxu0
        %v3976 = vadd.f32 0.0, %v3975
        %3977 = vmatprep.mubr.bf16.mxu0 0
        %3978 = vmatmul.mubr.bf16.gmra.mrb[0].mxu0 %v689
        %v3979 = vpop.f32.mrb[0].mxu0
        %v3980 = vadd.f32 0.0, %v3979
        %v3981 = vpop.f32.mrb[0].mxu0
        %v3982 = vadd.f32 0.0, %v3981
        %v3983 = vpop.f32.mrb[0].mxu0
        %v3984 = vadd.f32 0.0, %v3983
        %v3985 = vpop.f32.mrb[0].mxu0
        %v3986 = vadd.f32 0.0, %v3985
        %3987 = vmatprep.mubr.bf16.mxu0 0
        %3988 = vmatmul.mubr.bf16.gmra.mrb[0].mxu0 %v690
        %v3989 = vpop.f32.mrb[0].mxu0
        %v3990 = vadd.f32 0.0, %v3989
        %v3991 = vpop.f32.mrb[0].mxu0
        %v3992 = vadd.f32 0.0, %v3991
        %v3993 = vpop.f32.mrb[0].mxu0
        %v3994 = vadd.f32 0.0, %v3993
        %v3995 = vpop.f32.mrb[0].mxu0
        %v3996 = vadd.f32 0.0, %v3995
        %3997 = vdwg.mxu0
        %3998 = vmatprep.subr.bf16.mxu0 %v2010
        %3999 = vmatpush1.bf16.msra.mxu0 %v2009
        %4000 = vmatprep.subr.bf16.mxu0 %v2050
        %4001 = vmatpush1.bf16.msra.mxu0 %v2049
        %4002 = vmatprep.subr.bf16.mxu0 %v2090
        %4003 = vmatpush1.bf16.msra.mxu0 %v2089
        %4004 = vmatprep.subr.bf16.mxu0 %v2130
        %4005 = vmatpush1.bf16.msra.mxu0 %v2129
        %4006 = vmatprep.subr.bf16.mxu0 %v2170
        %4007 = vmatpush1.bf16.msra.mxu0 %v2169
        %4008 = vmatprep.subr.bf16.mxu0 %v2210
        %4009 = vmatpush1.bf16.msra.mxu0 %v2209
        %4010 = vmatprep.subr.bf16.mxu0 %v2250
        %4011 = vmatpush1.bf16.msra.mxu0 %v2249
        %4012 = vmatprep.subr.bf16.mxu0 %v2290
        %4013 = vmatpush1.bf16.msra.mxu0 %v2289
        %4014 = vmatprep.subr.bf16.mxu0 0
        %4015 = vmatpush1.bf16.msra.mxu0 0
        %4016 = vmatprep.subr.bf16.mxu0 0
        %4017 = vmatpush1.bf16.msra.mxu0 0
        %4018 = vmatprep.subr.bf16.mxu0 0
        %4019 = vmatpush1.bf16.msra.mxu0 0
        %4020 = vmatprep.subr.bf16.mxu0 0
        %4021 = vmatpush1.bf16.msra.mxu0 0
        %4022 = vmatprep.subr.bf16.mxu0 0
        %4023 = vmatpush1.bf16.msra.mxu0 0
        %4024 = vmatprep.subr.bf16.mxu0 0
        %4025 = vmatpush1.bf16.msra.mxu0 0
        %4026 = vmatprep.subr.bf16.mxu0 0
        %4027 = vmatpush1.bf16.msra.mxu0 0
        %4028 = vmatprep.subr.bf16.mxu0 0
        %4029 = vmatpush1.bf16.msra.mxu0 0
        %4030 = vmatprep.mubr.bf16.mxu0 0
        %4031 = vmatmul.mubr.bf16.gmra.mrb[0].mxu0 %v687
        %v4032 = vpop.f32.mrb[0].mxu0
        %v4033 = vadd.f32 0.0, %v4032
        %v4034 = vpop.f32.mrb[0].mxu0
        %v4035 = vadd.f32 0.0, %v4034
        %v4036 = vpop.f32.mrb[0].mxu0
        %v4037 = vadd.f32 0.0, %v4036
        %v4038 = vpop.f32.mrb[0].mxu0
        %v4039 = vadd.f32 0.0, %v4038
        %4040 = vmatprep.mubr.bf16.mxu0 0
        %4041 = vmatmul.mubr.bf16.gmra.mrb[0].mxu0 %v688
        %v4042 = vpop.f32.mrb[0].mxu0
        %v4043 = vadd.f32 0.0, %v4042
        %v4044 = vpop.f32.mrb[0].mxu0
        %v4045 = vadd.f32 0.0, %v4044
        %v4046 = vpop.f32.mrb[0].mxu0
        %v4047 = vadd.f32 0.0, %v4046
        %v4048 = vpop.f32.mrb[0].mxu0
        %v4049 = vadd.f32 0.0, %v4048
        %4050 = vmatprep.mubr.bf16.mxu0 0
        %4051 = vmatmul.mubr.bf16.gmra.mrb[0].mxu0 %v689
        %v4052 = vpop.f32.mrb[0].mxu0
        %v4053 = vadd.f32 0.0, %v4052
        %v4054 = vpop.f32.mrb[0].mxu0
        %v4055 = vadd.f32 0.0, %v4054
        %v4056 = vpop.f32.mrb[0].mxu0
        %v4057 = vadd.f32 0.0, %v4056
        %v4058 = vpop.f32.mrb[0].mxu0
        %v4059 = vadd.f32 0.0, %v4058
        %4060 = vmatprep.mubr.bf16.mxu0 0
        %4061 = vmatmul.mubr.bf16.gmra.mrb[0].mxu0 %v690
        %v4062 = vpop.f32.mrb[0].mxu0
        %v4063 = vadd.f32 0.0, %v4062
        %v4064 = vpop.f32.mrb[0].mxu0
        %v4065 = vadd.f32 0.0, %v4064
        %v4066 = vpop.f32.mrb[0].mxu0
        %v4067 = vadd.f32 0.0, %v4066
        %v4068 = vpop.f32.mrb[0].mxu0
        %v4069 = vadd.f32 0.0, %v4068
        %4070 = vdwg.mxu0
        %v4071 = vld [vmem:[#allocation9] sm:$0xff]
        %v4072 = vld [vmem:[#allocation9 + $0x8] sm:$0xff]
        %v4073 = vld [vmem:[#allocation9 + $0x10] sm:$0xff]
        %v4074 = vld [vmem:[#allocation9 + $0x18] sm:$0xff]
        %v4075 = vld [vmem:[#allocation9 + $0x20] sm:$0xff]
        %v4076 = vld [vmem:[#allocation9 + $0x28] sm:$0xff]
        %v4077 = vld [vmem:[#allocation9 + $0x30] sm:$0xff]
        %v4078 = vld [vmem:[#allocation9 + $0x38] sm:$0xff]
        %v4079 = vld [vmem:[#allocation9 + $0x40] sm:$0xff]
        %v4080 = vld [vmem:[#allocation9 + $0x48] sm:$0xff]
        %v4081 = vld [vmem:[#allocation9 + $0x50] sm:$0xff]
        %v4082 = vld [vmem:[#allocation9 + $0x58] sm:$0xff]
        %v4083 = vld [vmem:[#allocation9 + $0x60] sm:$0xff]
        %v4084 = vld [vmem:[#allocation9 + $0x68] sm:$0xff]
        %v4085 = vld [vmem:[#allocation9 + $0x70] sm:$0xff]
        %v4086 = vld [vmem:[#allocation9 + $0x78] sm:$0xff]
        %v4087 = vld [vmem:[#allocation9 + $0x80] sm:$0xff]
        %v4088 = vld [vmem:[#allocation9 + $0x88] sm:$0xff]
        %v4089 = vld [vmem:[#allocation9 + $0x90] sm:$0xff]
        %v4090 = vld [vmem:[#allocation9 + $0x98] sm:$0xff]
        %v4091 = vld [vmem:[#allocation9 + $0xa0] sm:$0xff]
        %v4092 = vld [vmem:[#allocation9 + $0xa8] sm:$0xff]
        %v4093 = vld [vmem:[#allocation9 + $0xb0] sm:$0xff]
        %v4094 = vld [vmem:[#allocation9 + $0xb8] sm:$0xff]
        %v4095 = vld [vmem:[#allocation9 + $0xc0] sm:$0xff]
        %v4096 = vld [vmem:[#allocation9 + $0xc8] sm:$0xff]
        %v4097 = vld [vmem:[#allocation9 + $0xd0] sm:$0xff]
        %v4098 = vld [vmem:[#allocation9 + $0xd8] sm:$0xff]
        %v4099 = vld [vmem:[#allocation9 + $0xe0] sm:$0xff]
        %v4100 = vld [vmem:[#allocation9 + $0xe8] sm:$0xff]
        %v4101 = vld [vmem:[#allocation9 + $0xf0] sm:$0xff]
        %v4102 = vld [vmem:[#allocation9 + $0xf8] sm:$0xff]
        %v4103 = vld [vmem:[#allocation9 + $0x100] sm:$0xff]
        %v4104 = vld [vmem:[#allocation9 + $0x108] sm:$0xff]
        %v4105 = vld [vmem:[#allocation9 + $0x110] sm:$0xff]
        %v4106 = vld [vmem:[#allocation9 + $0x118] sm:$0xff]
        %v4107 = vld [vmem:[#allocation9 + $0x120] sm:$0xff]
        %v4108 = vld [vmem:[#allocation9 + $0x128] sm:$0xff]
        %v4109 = vld [vmem:[#allocation9 + $0x130] sm:$0xff]
        %v4110 = vld [vmem:[#allocation9 + $0x138] sm:$0xff]
        %v4111 = vld [vmem:[#allocation9 + $0x140] sm:$0xff]
        %v4112 = vld [vmem:[#allocation9 + $0x148] sm:$0xff]
        %v4113 = vld [vmem:[#allocation9 + $0x150] sm:$0xff]
        %v4114 = vld [vmem:[#allocation9 + $0x158] sm:$0xff]
        %v4115 = vld [vmem:[#allocation9 + $0x160] sm:$0xff]
        %v4116 = vld [vmem:[#allocation9 + $0x168] sm:$0xff]
        %v4117 = vld [vmem:[#allocation9 + $0x170] sm:$0xff]
        %v4118 = vld [vmem:[#allocation9 + $0x178] sm:$0xff]
        %v4119 = vld [vmem:[#allocation9 + $0x180] sm:$0xff]
        %v4120 = vld [vmem:[#allocation9 + $0x188] sm:$0xff]
        %v4121 = vld [vmem:[#allocation9 + $0x190] sm:$0xff]
        %v4122 = vld [vmem:[#allocation9 + $0x198] sm:$0xff]
        %v4123 = vld [vmem:[#allocation9 + $0x1a0] sm:$0xff]
        %v4124 = vld [vmem:[#allocation9 + $0x1a8] sm:$0xff]
        %v4125 = vld [vmem:[#allocation9 + $0x1b0] sm:$0xff]
        %v4126 = vld [vmem:[#allocation9 + $0x1b8] sm:$0xff]
        %v4127 = vld [vmem:[#allocation9 + $0x1c0] sm:$0xff]
        %v4128 = vld [vmem:[#allocation9 + $0x1c8] sm:$0xff]
        %v4129 = vld [vmem:[#allocation9 + $0x1d0] sm:$0xff]
        %v4130 = vld [vmem:[#allocation9 + $0x1d8] sm:$0xff]
        %v4131 = vld [vmem:[#allocation9 + $0x1e0] sm:$0xff]
        %v4132 = vld [vmem:[#allocation9 + $0x1e8] sm:$0xff]
        %v4133 = vld [vmem:[#allocation9 + $0x1f0] sm:$0xff]
        %v4134 = vld [vmem:[#allocation9 + $0x1f8] sm:$0xff]
        %v4135 = vld [vmem:[#allocation11] sm:$0xff]
        %v4136 = vld [vmem:[#allocation11 + $0x8] sm:$0xff]
        %v4137 = vld [vmem:[#allocation11 + $0x10] sm:$0xff]
        %v4138 = vld [vmem:[#allocation11 + $0x18] sm:$0xff]
        %v4139 = vld [vmem:[#allocation11 + $0x20] sm:$0xff]
        %v4140 = vld [vmem:[#allocation11 + $0x28] sm:$0xff]
        %v4141 = vld [vmem:[#allocation11 + $0x30] sm:$0xff]
        %v4142 = vld [vmem:[#allocation11 + $0x38] sm:$0xff]
        %v4143 = vld [vmem:[#allocation11 + $0x40] sm:$0xff]
        %v4144 = vld [vmem:[#allocation11 + $0x48] sm:$0xff]
        %v4145 = vld [vmem:[#allocation11 + $0x50] sm:$0xff]
        %v4146 = vld [vmem:[#allocation11 + $0x58] sm:$0xff]
        %v4147 = vld [vmem:[#allocation11 + $0x60] sm:$0xff]
        %v4148 = vld [vmem:[#allocation11 + $0x68] sm:$0xff]
        %v4149 = vld [vmem:[#allocation11 + $0x70] sm:$0xff]
        %v4150 = vld [vmem:[#allocation11 + $0x78] sm:$0xff]
        %v4151 = vld [vmem:[#allocation11 + $0x80] sm:$0xff]
        %v4152 = vld [vmem:[#allocation11 + $0x88] sm:$0xff]
        %v4153 = vld [vmem:[#allocation11 + $0x90] sm:$0xff]
        %v4154 = vld [vmem:[#allocation11 + $0x98] sm:$0xff]
        %v4155 = vld [vmem:[#allocation11 + $0xa0] sm:$0xff]
        %v4156 = vld [vmem:[#allocation11 + $0xa8] sm:$0xff]
        %v4157 = vld [vmem:[#allocation11 + $0xb0] sm:$0xff]
        %v4158 = vld [vmem:[#allocation11 + $0xb8] sm:$0xff]
        %v4159 = vld [vmem:[#allocation11 + $0xc0] sm:$0xff]
        %v4160 = vld [vmem:[#allocation11 + $0xc8] sm:$0xff]
        %v4161 = vld [vmem:[#allocation11 + $0xd0] sm:$0xff]
        %v4162 = vld [vmem:[#allocation11 + $0xd8] sm:$0xff]
        %v4163 = vld [vmem:[#allocation11 + $0xe0] sm:$0xff]
        %v4164 = vld [vmem:[#allocation11 + $0xe8] sm:$0xff]
        %v4165 = vld [vmem:[#allocation11 + $0xf0] sm:$0xff]
        %v4166 = vld [vmem:[#allocation11 + $0xf8] sm:$0xff]
        %v4167 = vld [vmem:[#allocation11 + $0x100] sm:$0xff]
        %v4168 = vld [vmem:[#allocation11 + $0x108] sm:$0xff]
        %v4169 = vld [vmem:[#allocation11 + $0x110] sm:$0xff]
        %v4170 = vld [vmem:[#allocation11 + $0x118] sm:$0xff]
        %v4171 = vld [vmem:[#allocation11 + $0x120] sm:$0xff]
        %v4172 = vld [vmem:[#allocation11 + $0x128] sm:$0xff]
        %v4173 = vld [vmem:[#allocation11 + $0x130] sm:$0xff]
        %v4174 = vld [vmem:[#allocation11 + $0x138] sm:$0xff]
        %v4175 = vld [vmem:[#allocation11 + $0x140] sm:$0xff]
        %v4176 = vld [vmem:[#allocation11 + $0x148] sm:$0xff]
        %v4177 = vld [vmem:[#allocation11 + $0x150] sm:$0xff]
        %v4178 = vld [vmem:[#allocation11 + $0x158] sm:$0xff]
        %v4179 = vld [vmem:[#allocation11 + $0x160] sm:$0xff]
        %v4180 = vld [vmem:[#allocation11 + $0x168] sm:$0xff]
        %v4181 = vld [vmem:[#allocation11 + $0x170] sm:$0xff]
        %v4182 = vld [vmem:[#allocation11 + $0x178] sm:$0xff]
        %v4183 = vld [vmem:[#allocation11 + $0x180] sm:$0xff]
        %v4184 = vld [vmem:[#allocation11 + $0x188] sm:$0xff]
        %v4185 = vld [vmem:[#allocation11 + $0x190] sm:$0xff]
        %v4186 = vld [vmem:[#allocation11 + $0x198] sm:$0xff]
        %v4187 = vld [vmem:[#allocation11 + $0x1a0] sm:$0xff]
        %v4188 = vld [vmem:[#allocation11 + $0x1a8] sm:$0xff]
        %v4189 = vld [vmem:[#allocation11 + $0x1b0] sm:$0xff]
        %v4190 = vld [vmem:[#allocation11 + $0x1b8] sm:$0xff]
        %v4191 = vld [vmem:[#allocation11 + $0x1c0] sm:$0xff]
        %v4192 = vld [vmem:[#allocation11 + $0x1c8] sm:$0xff]
        %v4193 = vld [vmem:[#allocation11 + $0x1d0] sm:$0xff]
        %v4194 = vld [vmem:[#allocation11 + $0x1d8] sm:$0xff]
        %v4195 = vld [vmem:[#allocation11 + $0x1e0] sm:$0xff]
        %v4196 = vld [vmem:[#allocation11 + $0x1e8] sm:$0xff]
        %v4197 = vld [vmem:[#allocation11 + $0x1f0] sm:$0xff]
        %v4198 = vld [vmem:[#allocation11 + $0x1f8] sm:$0xff]
        %v4199 = vmul.f32 %v2646, %v4071
        %v4200 = vmul.f32 %v2648, %v4072
        %v4201 = vmul.f32 %v2719, %v4073
        %v4202 = vmul.f32 %v2721, %v4074
        %v4203 = vmul.f32 %v2792, %v4075
        %v4204 = vmul.f32 %v2794, %v4076
        %v4205 = vmul.f32 %v2865, %v4077
        %v4206 = vmul.f32 %v2867, %v4078
        %v4207 = vmul.f32 %v2650, %v4079
        %v4208 = vmul.f32 %v2652, %v4080
        %v4209 = vmul.f32 %v2723, %v4081
        %v4210 = vmul.f32 %v2725, %v4082
        %v4211 = vmul.f32 %v2796, %v4083
        %v4212 = vmul.f32 %v2798, %v4084
        %v4213 = vmul.f32 %v2869, %v4085
        %v4214 = vmul.f32 %v2871, %v4086
        %v4215 = vmul.f32 %v2656, %v4087
        %v4216 = vmul.f32 %v2658, %v4088
        %v4217 = vmul.f32 %v2729, %v4089
        %v4218 = vmul.f32 %v2731, %v4090
        %v4219 = vmul.f32 %v2802, %v4091
        %v4220 = vmul.f32 %v2804, %v4092
        %v4221 = vmul.f32 %v2875, %v4093
        %v4222 = vmul.f32 %v2877, %v4094
        %v4223 = vmul.f32 %v2660, %v4095
        %v4224 = vmul.f32 %v2662, %v4096
        %v4225 = vmul.f32 %v2733, %v4097
        %v4226 = vmul.f32 %v2735, %v4098
        %v4227 = vmul.f32 %v2806, %v4099
        %v4228 = vmul.f32 %v2808, %v4100
        %v4229 = vmul.f32 %v2879, %v4101
        %v4230 = vmul.f32 %v2881, %v4102
        %v4231 = vmul.f32 %v2666, %v4103
        %v4232 = vmul.f32 %v2668, %v4104
        %v4233 = vmul.f32 %v2739, %v4105
        %v4234 = vmul.f32 %v2741, %v4106
        %v4235 = vmul.f32 %v2812, %v4107
        %v4236 = vmul.f32 %v2814, %v4108
        %v4237 = vmul.f32 %v2885, %v4109
        %v4238 = vmul.f32 %v2887, %v4110
        %v4239 = vmul.f32 %v2670, %v4111
        %v4240 = vmul.f32 %v2672, %v4112
        %v4241 = vmul.f32 %v2743, %v4113
        %v4242 = vmul.f32 %v2745, %v4114
        %v4243 = vmul.f32 %v2816, %v4115
        %v4244 = vmul.f32 %v2818, %v4116
        %v4245 = vmul.f32 %v2889, %v4117
        %v4246 = vmul.f32 %v2891, %v4118
        %v4247 = vmul.f32 %v2676, %v4119
        %v4248 = vmul.f32 %v2678, %v4120
        %v4249 = vmul.f32 %v2749, %v4121
        %v4250 = vmul.f32 %v2751, %v4122
        %v4251 = vmul.f32 %v2822, %v4123
        %v4252 = vmul.f32 %v2824, %v4124
        %v4253 = vmul.f32 %v2895, %v4125
        %v4254 = vmul.f32 %v2897, %v4126
        %v4255 = vmul.f32 %v2680, %v4127
        %v4256 = vmul.f32 %v2682, %v4128
        %v4257 = vmul.f32 %v2753, %v4129
        %v4258 = vmul.f32 %v2755, %v4130
        %v4259 = vmul.f32 %v2826, %v4131
        %v4260 = vmul.f32 %v2828, %v4132
        %v4261 = vmul.f32 %v2899, %v4133
        %v4262 = vmul.f32 %v2901, %v4134
        %v4263 = vmul.f32 %v2938, %v4135
        %v4264 = vmul.f32 %v2940, %v4136
        %v4265 = vmul.f32 %v3011, %v4137
        %v4266 = vmul.f32 %v3013, %v4138
        %v4267 = vmul.f32 %v3084, %v4139
        %v4268 = vmul.f32 %v3086, %v4140
        %v4269 = vmul.f32 %v3157, %v4141
        %v4270 = vmul.f32 %v3159, %v4142
        %v4271 = vmul.f32 %v2942, %v4143
        %v4272 = vmul.f32 %v2944, %v4144
        %v4273 = vmul.f32 %v3015, %v4145
        %v4274 = vmul.f32 %v3017, %v4146
        %v4275 = vmul.f32 %v3088, %v4147
        %v4276 = vmul.f32 %v3090, %v4148
        %v4277 = vmul.f32 %v3161, %v4149
        %v4278 = vmul.f32 %v3163, %v4150
        %v4279 = vmul.f32 %v2948, %v4151
        %v4280 = vmul.f32 %v2950, %v4152
        %v4281 = vmul.f32 %v3021, %v4153
        %v4282 = vmul.f32 %v3023, %v4154
        %v4283 = vmul.f32 %v3094, %v4155
        %v4284 = vmul.f32 %v3096, %v4156
        %v4285 = vmul.f32 %v3167, %v4157
        %v4286 = vmul.f32 %v3169, %v4158
        %v4287 = vmul.f32 %v2952, %v4159
        %v4288 = vmul.f32 %v2954, %v4160
        %v4289 = vmul.f32 %v3025, %v4161
        %v4290 = vmul.f32 %v3027, %v4162
        %v4291 = vmul.f32 %v3098, %v4163
        %v4292 = vmul.f32 %v3100, %v4164
        %v4293 = vmul.f32 %v3171, %v4165
        %v4294 = vmul.f32 %v3173, %v4166
        %v4295 = vmul.f32 %v2958, %v4167
        %v4296 = vmul.f32 %v2960, %v4168
        %v4297 = vmul.f32 %v3031, %v4169
        %v4298 = vmul.f32 %v3033, %v4170
        %v4299 = vmul.f32 %v3104, %v4171
        %v4300 = vmul.f32 %v3106, %v4172
        %v4301 = vmul.f32 %v3177, %v4173
        %v4302 = vmul.f32 %v3179, %v4174
        %v4303 = vmul.f32 %v2962, %v4175
        %v4304 = vmul.f32 %v2964, %v4176
        %v4305 = vmul.f32 %v3035, %v4177
        %v4306 = vmul.f32 %v3037, %v4178
        %v4307 = vmul.f32 %v3108, %v4179
        %v4308 = vmul.f32 %v3110, %v4180
        %v4309 = vmul.f32 %v3181, %v4181
        %v4310 = vmul.f32 %v3183, %v4182
        %v4311 = vmul.f32 %v2968, %v4183
        %v4312 = vmul.f32 %v2970, %v4184
        %v4313 = vmul.f32 %v3041, %v4185
        %v4314 = vmul.f32 %v3043, %v4186
        %v4315 = vmul.f32 %v3114, %v4187
        %v4316 = vmul.f32 %v3116, %v4188
        %v4317 = vmul.f32 %v3187, %v4189
        %v4318 = vmul.f32 %v3189, %v4190
        %v4319 = vmul.f32 %v2972, %v4191
        %v4320 = vmul.f32 %v2974, %v4192
        %v4321 = vmul.f32 %v3045, %v4193
        %v4322 = vmul.f32 %v3047, %v4194
        %v4323 = vmul.f32 %v3118, %v4195
        %v4324 = vmul.f32 %v3120, %v4196
        %v4325 = vmul.f32 %v3191, %v4197
        %v4326 = vmul.f32 %v3193, %v4198
        %v4327 = vadd.f32 %v4199, %v4263
        %v4328 = vadd.f32 %v4200, %v4264
        %v4329 = vadd.f32 %v4201, %v4265
        %v4330 = vadd.f32 %v4202, %v4266
        %v4331 = vadd.f32 %v4203, %v4267
        %v4332 = vadd.f32 %v4204, %v4268
        %v4333 = vadd.f32 %v4205, %v4269
        %v4334 = vadd.f32 %v4206, %v4270
        %v4335 = vadd.f32 %v4207, %v4271
        %v4336 = vadd.f32 %v4208, %v4272
        %v4337 = vadd.f32 %v4209, %v4273
        %v4338 = vadd.f32 %v4210, %v4274
        %v4339 = vadd.f32 %v4211, %v4275
        %v4340 = vadd.f32 %v4212, %v4276
        %v4341 = vadd.f32 %v4213, %v4277
        %v4342 = vadd.f32 %v4214, %v4278
        %v4343 = vadd.f32 %v4215, %v4279
        %v4344 = vadd.f32 %v4216, %v4280
        %v4345 = vadd.f32 %v4217, %v4281
        %v4346 = vadd.f32 %v4218, %v4282
        %v4347 = vadd.f32 %v4219, %v4283
        %v4348 = vadd.f32 %v4220, %v4284
        %v4349 = vadd.f32 %v4221, %v4285
        %v4350 = vadd.f32 %v4222, %v4286
        %v4351 = vadd.f32 %v4223, %v4287
        %v4352 = vadd.f32 %v4224, %v4288
        %v4353 = vadd.f32 %v4225, %v4289
        %v4354 = vadd.f32 %v4226, %v4290
        %v4355 = vadd.f32 %v4227, %v4291
        %v4356 = vadd.f32 %v4228, %v4292
        %v4357 = vadd.f32 %v4229, %v4293
        %v4358 = vadd.f32 %v4230, %v4294
        %v4359 = vadd.f32 %v4231, %v4295
        %v4360 = vadd.f32 %v4232, %v4296
        %v4361 = vadd.f32 %v4233, %v4297
        %v4362 = vadd.f32 %v4234, %v4298
        %v4363 = vadd.f32 %v4235, %v4299
        %v4364 = vadd.f32 %v4236, %v4300
        %v4365 = vadd.f32 %v4237, %v4301
        %v4366 = vadd.f32 %v4238, %v4302
        %v4367 = vadd.f32 %v4239, %v4303
        %v4368 = vadd.f32 %v4240, %v4304
        %v4369 = vadd.f32 %v4241, %v4305
        %v4370 = vadd.f32 %v4242, %v4306
        %v4371 = vadd.f32 %v4243, %v4307
        %v4372 = vadd.f32 %v4244, %v4308
        %v4373 = vadd.f32 %v4245, %v4309
        %v4374 = vadd.f32 %v4246, %v4310
        %v4375 = vadd.f32 %v4247, %v4311
        %v4376 = vadd.f32 %v4248, %v4312
        %v4377 = vadd.f32 %v4249, %v4313
        %v4378 = vadd.f32 %v4250, %v4314
        %v4379 = vadd.f32 %v4251, %v4315
        %v4380 = vadd.f32 %v4252, %v4316
        %v4381 = vadd.f32 %v4253, %v4317
        %v4382 = vadd.f32 %v4254, %v4318
        %v4383 = vadd.f32 %v4255, %v4319
        %v4384 = vadd.f32 %v4256, %v4320
        %v4385 = vadd.f32 %v4257, %v4321
        %v4386 = vadd.f32 %v4258, %v4322
        %v4387 = vadd.f32 %v4259, %v4323
        %v4388 = vadd.f32 %v4260, %v4324
        %v4389 = vadd.f32 %v4261, %v4325
        %v4390 = vadd.f32 %v4262, %v4326
        %v4391 = vmul.f32 %v4327, 0.088388346
        %v4392 = vmul.f32 %v4328, 0.088388346
        %v4393 = vmul.f32 %v4329, 0.088388346
        %v4394 = vmul.f32 %v4330, 0.088388346
        %v4395 = vmul.f32 %v4331, 0.088388346
        %v4396 = vmul.f32 %v4332, 0.088388346
        %v4397 = vmul.f32 %v4333, 0.088388346
        %v4398 = vmul.f32 %v4334, 0.088388346
        %v4399 = vmul.f32 %v4335, 0.088388346
        %v4400 = vmul.f32 %v4336, 0.088388346
        %v4401 = vmul.f32 %v4337, 0.088388346
        %v4402 = vmul.f32 %v4338, 0.088388346
        %v4403 = vmul.f32 %v4339, 0.088388346
        %v4404 = vmul.f32 %v4340, 0.088388346
        %v4405 = vmul.f32 %v4341, 0.088388346
        %v4406 = vmul.f32 %v4342, 0.088388346
        %v4407 = vmul.f32 %v4343, 0.088388346
        %v4408 = vmul.f32 %v4344, 0.088388346
        %v4409 = vmul.f32 %v4345, 0.088388346
        %v4410 = vmul.f32 %v4346, 0.088388346
        %v4411 = vmul.f32 %v4347, 0.088388346
        %v4412 = vmul.f32 %v4348, 0.088388346
        %v4413 = vmul.f32 %v4349, 0.088388346
        %v4414 = vmul.f32 %v4350, 0.088388346
        %v4415 = vmul.f32 %v4351, 0.088388346
        %v4416 = vmul.f32 %v4352, 0.088388346
        %v4417 = vmul.f32 %v4353, 0.088388346
        %v4418 = vmul.f32 %v4354, 0.088388346
        %v4419 = vmul.f32 %v4355, 0.088388346
        %v4420 = vmul.f32 %v4356, 0.088388346
        %v4421 = vmul.f32 %v4357, 0.088388346
        %v4422 = vmul.f32 %v4358, 0.088388346
        %v4423 = vmul.f32 %v4359, 0.088388346
        %v4424 = vmul.f32 %v4360, 0.088388346
        %v4425 = vmul.f32 %v4361, 0.088388346
        %v4426 = vmul.f32 %v4362, 0.088388346
        %v4427 = vmul.f32 %v4363, 0.088388346
        %v4428 = vmul.f32 %v4364, 0.088388346
        %v4429 = vmul.f32 %v4365, 0.088388346
        %v4430 = vmul.f32 %v4366, 0.088388346
        %v4431 = vmul.f32 %v4367, 0.088388346
        %v4432 = vmul.f32 %v4368, 0.088388346
        %v4433 = vmul.f32 %v4369, 0.088388346
        %v4434 = vmul.f32 %v4370, 0.088388346
        %v4435 = vmul.f32 %v4371, 0.088388346
        %v4436 = vmul.f32 %v4372, 0.088388346
        %v4437 = vmul.f32 %v4373, 0.088388346
        %v4438 = vmul.f32 %v4374, 0.088388346
        %v4439 = vmul.f32 %v4375, 0.088388346
        %v4440 = vmul.f32 %v4376, 0.088388346
        %v4441 = vmul.f32 %v4377, 0.088388346
        %v4442 = vmul.f32 %v4378, 0.088388346
        %v4443 = vmul.f32 %v4379, 0.088388346
        %v4444 = vmul.f32 %v4380, 0.088388346
        %v4445 = vmul.f32 %v4381, 0.088388346
        %v4446 = vmul.f32 %v4382, 0.088388346
        %v4447 = vmul.f32 %v4383, 0.088388346
        %v4448 = vmul.f32 %v4384, 0.088388346
        %v4449 = vmul.f32 %v4385, 0.088388346
        %v4450 = vmul.f32 %v4386, 0.088388346
        %v4451 = vmul.f32 %v4387, 0.088388346
        %v4452 = vmul.f32 %v4388, 0.088388346
        %v4453 = vmul.f32 %v4389, 0.088388346
        %v4454 = vmul.f32 %v4390, 0.088388346
        %v4455 = vmul.f32 %v3230, %v4071
        %v4456 = vmul.f32 %v3232, %v4072
        %v4457 = vmul.f32 %v3303, %v4073
        %v4458 = vmul.f32 %v3305, %v4074
        %v4459 = vmul.f32 %v3376, %v4075
        %v4460 = vmul.f32 %v3378, %v4076
        %v4461 = vmul.f32 %v3449, %v4077
        %v4462 = vmul.f32 %v3451, %v4078
        %v4463 = vmul.f32 %v3234, %v4079
        %v4464 = vmul.f32 %v3236, %v4080
        %v4465 = vmul.f32 %v3307, %v4081
        %v4466 = vmul.f32 %v3309, %v4082
        %v4467 = vmul.f32 %v3380, %v4083
        %v4468 = vmul.f32 %v3382, %v4084
        %v4469 = vmul.f32 %v3453, %v4085
        %v4470 = vmul.f32 %v3455, %v4086
        %v4471 = vmul.f32 %v3240, %v4087
        %v4472 = vmul.f32 %v3242, %v4088
        %v4473 = vmul.f32 %v3313, %v4089
        %v4474 = vmul.f32 %v3315, %v4090
        %v4475 = vmul.f32 %v3386, %v4091
        %v4476 = vmul.f32 %v3388, %v4092
        %v4477 = vmul.f32 %v3459, %v4093
        %v4478 = vmul.f32 %v3461, %v4094
        %v4479 = vmul.f32 %v3244, %v4095
        %v4480 = vmul.f32 %v3246, %v4096
        %v4481 = vmul.f32 %v3317, %v4097
        %v4482 = vmul.f32 %v3319, %v4098
        %v4483 = vmul.f32 %v3390, %v4099
        %v4484 = vmul.f32 %v3392, %v4100
        %v4485 = vmul.f32 %v3463, %v4101
        %v4486 = vmul.f32 %v3465, %v4102
        %v4487 = vmul.f32 %v3250, %v4103
        %v4488 = vmul.f32 %v3252, %v4104
        %v4489 = vmul.f32 %v3323, %v4105
        %v4490 = vmul.f32 %v3325, %v4106
        %v4491 = vmul.f32 %v3396, %v4107
        %v4492 = vmul.f32 %v3398, %v4108
        %v4493 = vmul.f32 %v3469, %v4109
        %v4494 = vmul.f32 %v3471, %v4110
        %v4495 = vmul.f32 %v3254, %v4111
        %v4496 = vmul.f32 %v3256, %v4112
        %v4497 = vmul.f32 %v3327, %v4113
        %v4498 = vmul.f32 %v3329, %v4114
        %v4499 = vmul.f32 %v3400, %v4115
        %v4500 = vmul.f32 %v3402, %v4116
        %v4501 = vmul.f32 %v3473, %v4117
        %v4502 = vmul.f32 %v3475, %v4118
        %v4503 = vmul.f32 %v3260, %v4119
        %v4504 = vmul.f32 %v3262, %v4120
        %v4505 = vmul.f32 %v3333, %v4121
        %v4506 = vmul.f32 %v3335, %v4122
        %v4507 = vmul.f32 %v3406, %v4123
        %v4508 = vmul.f32 %v3408, %v4124
        %v4509 = vmul.f32 %v3479, %v4125
        %v4510 = vmul.f32 %v3481, %v4126
        %v4511 = vmul.f32 %v3264, %v4127
        %v4512 = vmul.f32 %v3266, %v4128
        %v4513 = vmul.f32 %v3337, %v4129
        %v4514 = vmul.f32 %v3339, %v4130
        %v4515 = vmul.f32 %v3410, %v4131
        %v4516 = vmul.f32 %v3412, %v4132
        %v4517 = vmul.f32 %v3483, %v4133
        %v4518 = vmul.f32 %v3485, %v4134
        %v4519 = vmul.f32 %v3522, %v4135
        %v4520 = vmul.f32 %v3524, %v4136
        %v4521 = vmul.f32 %v3595, %v4137
        %v4522 = vmul.f32 %v3597, %v4138
        %v4523 = vmul.f32 %v3668, %v4139
        %v4524 = vmul.f32 %v3670, %v4140
        %v4525 = vmul.f32 %v3741, %v4141
        %v4526 = vmul.f32 %v3743, %v4142
        %v4527 = vmul.f32 %v3526, %v4143
        %v4528 = vmul.f32 %v3528, %v4144
        %v4529 = vmul.f32 %v3599, %v4145
        %v4530 = vmul.f32 %v3601, %v4146
        %v4531 = vmul.f32 %v3672, %v4147
        %v4532 = vmul.f32 %v3674, %v4148
        %v4533 = vmul.f32 %v3745, %v4149
        %v4534 = vmul.f32 %v3747, %v4150
        %v4535 = vmul.f32 %v3532, %v4151
        %v4536 = vmul.f32 %v3534, %v4152
        %v4537 = vmul.f32 %v3605, %v4153
        %v4538 = vmul.f32 %v3607, %v4154
        %v4539 = vmul.f32 %v3678, %v4155
        %v4540 = vmul.f32 %v3680, %v4156
        %v4541 = vmul.f32 %v3751, %v4157
        %v4542 = vmul.f32 %v3753, %v4158
        %v4543 = vmul.f32 %v3536, %v4159
        %v4544 = vmul.f32 %v3538, %v4160
        %v4545 = vmul.f32 %v3609, %v4161
        %v4546 = vmul.f32 %v3611, %v4162
        %v4547 = vmul.f32 %v3682, %v4163
        %v4548 = vmul.f32 %v3684, %v4164
        %v4549 = vmul.f32 %v3755, %v4165
        %v4550 = vmul.f32 %v3757, %v4166
        %v4551 = vmul.f32 %v3542, %v4167
        %v4552 = vmul.f32 %v3544, %v4168
        %v4553 = vmul.f32 %v3615, %v4169
        %v4554 = vmul.f32 %v3617, %v4170
        %v4555 = vmul.f32 %v3688, %v4171
        %v4556 = vmul.f32 %v3690, %v4172
        %v4557 = vmul.f32 %v3761, %v4173
        %v4558 = vmul.f32 %v3763, %v4174
        %v4559 = vmul.f32 %v3546, %v4175
        %v4560 = vmul.f32 %v3548, %v4176
        %v4561 = vmul.f32 %v3619, %v4177
        %v4562 = vmul.f32 %v3621, %v4178
        %v4563 = vmul.f32 %v3692, %v4179
        %v4564 = vmul.f32 %v3694, %v4180
        %v4565 = vmul.f32 %v3765, %v4181
        %v4566 = vmul.f32 %v3767, %v4182
        %v4567 = vmul.f32 %v3552, %v4183
        %v4568 = vmul.f32 %v3554, %v4184
        %v4569 = vmul.f32 %v3625, %v4185
        %v4570 = vmul.f32 %v3627, %v4186
        %v4571 = vmul.f32 %v3698, %v4187
        %v4572 = vmul.f32 %v3700, %v4188
        %v4573 = vmul.f32 %v3771, %v4189
        %v4574 = vmul.f32 %v3773, %v4190
        %v4575 = vmul.f32 %v3556, %v4191
        %v4576 = vmul.f32 %v3558, %v4192
        %v4577 = vmul.f32 %v3629, %v4193
        %v4578 = vmul.f32 %v3631, %v4194
        %v4579 = vmul.f32 %v3702, %v4195
        %v4580 = vmul.f32 %v3704, %v4196
        %v4581 = vmul.f32 %v3775, %v4197
        %v4582 = vmul.f32 %v3777, %v4198
        %v4583 = vadd.f32 %v4455, %v4519
        %v4584 = vadd.f32 %v4456, %v4520
        %v4585 = vadd.f32 %v4457, %v4521
        %v4586 = vadd.f32 %v4458, %v4522
        %v4587 = vadd.f32 %v4459, %v4523
        %v4588 = vadd.f32 %v4460, %v4524
        %v4589 = vadd.f32 %v4461, %v4525
        %v4590 = vadd.f32 %v4462, %v4526
        %v4591 = vadd.f32 %v4463, %v4527
        %v4592 = vadd.f32 %v4464, %v4528
        %v4593 = vadd.f32 %v4465, %v4529
        %v4594 = vadd.f32 %v4466, %v4530
        %v4595 = vadd.f32 %v4467, %v4531
        %v4596 = vadd.f32 %v4468, %v4532
        %v4597 = vadd.f32 %v4469, %v4533
        %v4598 = vadd.f32 %v4470, %v4534
        %v4599 = vadd.f32 %v4471, %v4535
        %v4600 = vadd.f32 %v4472, %v4536
        %v4601 = vadd.f32 %v4473, %v4537
        %v4602 = vadd.f32 %v4474, %v4538
        %v4603 = vadd.f32 %v4475, %v4539
        %v4604 = vadd.f32 %v4476, %v4540
        %v4605 = vadd.f32 %v4477, %v4541
        %v4606 = vadd.f32 %v4478, %v4542
        %v4607 = vadd.f32 %v4479, %v4543
        %v4608 = vadd.f32 %v4480, %v4544
        %v4609 = vadd.f32 %v4481, %v4545
        %v4610 = vadd.f32 %v4482, %v4546
        %v4611 = vadd.f32 %v4483, %v4547
        %v4612 = vadd.f32 %v4484, %v4548
        %v4613 = vadd.f32 %v4485, %v4549
        %v4614 = vadd.f32 %v4486, %v4550
        %v4615 = vadd.f32 %v4487, %v4551
        %v4616 = vadd.f32 %v4488, %v4552
        %v4617 = vadd.f32 %v4489, %v4553
        %v4618 = vadd.f32 %v4490, %v4554
        %v4619 = vadd.f32 %v4491, %v4555
        %v4620 = vadd.f32 %v4492, %v4556
        %v4621 = vadd.f32 %v4493, %v4557
        %v4622 = vadd.f32 %v4494, %v4558
        %v4623 = vadd.f32 %v4495, %v4559
        %v4624 = vadd.f32 %v4496, %v4560
        %v4625 = vadd.f32 %v4497, %v4561
        %v4626 = vadd.f32 %v4498, %v4562
        %v4627 = vadd.f32 %v4499, %v4563
        %v4628 = vadd.f32 %v4500, %v4564
        %v4629 = vadd.f32 %v4501, %v4565
        %v4630 = vadd.f32 %v4502, %v4566
        %v4631 = vadd.f32 %v4503, %v4567
        %v4632 = vadd.f32 %v4504, %v4568
        %v4633 = vadd.f32 %v4505, %v4569
        %v4634 = vadd.f32 %v4506, %v4570
        %v4635 = vadd.f32 %v4507, %v4571
        %v4636 = vadd.f32 %v4508, %v4572
        %v4637 = vadd.f32 %v4509, %v4573
        %v4638 = vadd.f32 %v4510, %v4574
        %v4639 = vadd.f32 %v4511, %v4575
        %v4640 = vadd.f32 %v4512, %v4576
        %v4641 = vadd.f32 %v4513, %v4577
        %v4642 = vadd.f32 %v4514, %v4578
        %v4643 = vadd.f32 %v4515, %v4579
        %v4644 = vadd.f32 %v4516, %v4580
        %v4645 = vadd.f32 %v4517, %v4581
        %v4646 = vadd.f32 %v4518, %v4582
        %v4647 = vld [vmem:[#allocation12] sm:$0xff]
        %v4648 = vld [vmem:[#allocation12 + $0x8] sm:$0xff]
        %v4649 = vld [vmem:[#allocation12 + $0x10] sm:$0xff]
        %v4650 = vld [vmem:[#allocation12 + $0x18] sm:$0xff]
        %v4651 = vld [vmem:[#allocation12 + $0x20] sm:$0xff]
        %v4652 = vld [vmem:[#allocation12 + $0x28] sm:$0xff]
        %v4653 = vld [vmem:[#allocation12 + $0x30] sm:$0xff]
        %v4654 = vld [vmem:[#allocation12 + $0x38] sm:$0xff]
        %v4655 = vpack.c.bf16 %v4399, %v4391
        %v4656 = vpack.c.bf16 %v4400, %v4392
        %v4657 = vpack.c.bf16 %v4401, %v4393
        %v4658 = vpack.c.bf16 %v4402, %v4394
        %v4659 = vpack.c.bf16 %v4403, %v4395
        %v4660 = vpack.c.bf16 %v4404, %v4396
        %v4661 = vpack.c.bf16 %v4405, %v4397
        %v4662 = vpack.c.bf16 %v4406, %v4398
        %v4663 = vpack.c.bf16 %v4415, %v4407
        %v4664 = vpack.c.bf16 %v4416, %v4408
        %v4665 = vpack.c.bf16 %v4417, %v4409
        %v4666 = vpack.c.bf16 %v4418, %v4410
        %v4667 = vpack.c.bf16 %v4419, %v4411
        %v4668 = vpack.c.bf16 %v4420, %v4412
        %v4669 = vpack.c.bf16 %v4421, %v4413
        %v4670 = vpack.c.bf16 %v4422, %v4414
        %v4671 = vpack.c.bf16 %v4431, %v4423
        %v4672 = vpack.c.bf16 %v4432, %v4424
        %v4673 = vpack.c.bf16 %v4433, %v4425
        %v4674 = vpack.c.bf16 %v4434, %v4426
        %v4675 = vpack.c.bf16 %v4435, %v4427
        %v4676 = vpack.c.bf16 %v4436, %v4428
        %v4677 = vpack.c.bf16 %v4437, %v4429
        %v4678 = vpack.c.bf16 %v4438, %v4430
        %v4679 = vpack.c.bf16 %v4447, %v4439
        %v4680 = vpack.c.bf16 %v4448, %v4440
        %v4681 = vpack.c.bf16 %v4449, %v4441
        %v4682 = vpack.c.bf16 %v4450, %v4442
        %v4683 = vpack.c.bf16 %v4451, %v4443
        %v4684 = vpack.c.bf16 %v4452, %v4444
        %v4685 = vpack.c.bf16 %v4453, %v4445
        %v4686 = vpack.c.bf16 %v4454, %v4446
        %v4687 = vpack.c.bf16 %v4591, %v4583
        %v4688 = vpack.c.bf16 %v4592, %v4584
        %v4689 = vpack.c.bf16 %v4593, %v4585
        %v4690 = vpack.c.bf16 %v4594, %v4586
        %v4691 = vpack.c.bf16 %v4595, %v4587
        %v4692 = vpack.c.bf16 %v4596, %v4588
        %v4693 = vpack.c.bf16 %v4597, %v4589
        %v4694 = vpack.c.bf16 %v4598, %v4590
        %v4695 = vpack.c.bf16 %v4607, %v4599
        %v4696 = vpack.c.bf16 %v4608, %v4600
        %v4697 = vpack.c.bf16 %v4609, %v4601
        %v4698 = vpack.c.bf16 %v4610, %v4602
        %v4699 = vpack.c.bf16 %v4611, %v4603
        %v4700 = vpack.c.bf16 %v4612, %v4604
        %v4701 = vpack.c.bf16 %v4613, %v4605
        %v4702 = vpack.c.bf16 %v4614, %v4606
        %v4703 = vpack.c.bf16 %v4623, %v4615
        %v4704 = vpack.c.bf16 %v4624, %v4616
        %v4705 = vpack.c.bf16 %v4625, %v4617
        %v4706 = vpack.c.bf16 %v4626, %v4618
        %v4707 = vpack.c.bf16 %v4627, %v4619
        %v4708 = vpack.c.bf16 %v4628, %v4620
        %v4709 = vpack.c.bf16 %v4629, %v4621
        %v4710 = vpack.c.bf16 %v4630, %v4622
        %v4711 = vpack.c.bf16 %v4639, %v4631
        %v4712 = vpack.c.bf16 %v4640, %v4632
        %v4713 = vpack.c.bf16 %v4641, %v4633
        %v4714 = vpack.c.bf16 %v4642, %v4634
        %v4715 = vpack.c.bf16 %v4643, %v4635
        %v4716 = vpack.c.bf16 %v4644, %v4636
        %v4717 = vpack.c.bf16 %v4645, %v4637
        %v4718 = vpack.c.bf16 %v4646, %v4638
        %v4719 = vpack.c.bf16 %v3818, %v3814
        %v4720 = vpack.c.bf16 %v3820, %v3816
        %v4721 = vpack.c.bf16 %v3891, %v3887
        %v4722 = vpack.c.bf16 %v3893, %v3889
        %v4723 = vpack.c.bf16 %v3964, %v3960
        %v4724 = vpack.c.bf16 %v3966, %v3962
        %v4725 = vpack.c.bf16 %v4037, %v4033
        %v4726 = vpack.c.bf16 %v4039, %v4035
        %v4727 = vpack.c.bf16 %v3828, %v3824
        %v4728 = vpack.c.bf16 %v3830, %v3826
        %v4729 = vpack.c.bf16 %v3901, %v3897
        %v4730 = vpack.c.bf16 %v3903, %v3899
        %v4731 = vpack.c.bf16 %v3974, %v3970
        %v4732 = vpack.c.bf16 %v3976, %v3972
        %v4733 = vpack.c.bf16 %v4047, %v4043
        %v4734 = vpack.c.bf16 %v4049, %v4045
        %v4735 = vpack.c.bf16 %v3838, %v3834
        %v4736 = vpack.c.bf16 %v3840, %v3836
        %v4737 = vpack.c.bf16 %v3911, %v3907
        %v4738 = vpack.c.bf16 %v3913, %v3909
        %v4739 = vpack.c.bf16 %v3984, %v3980
        %v4740 = vpack.c.bf16 %v3986, %v3982
        %v4741 = vpack.c.bf16 %v4057, %v4053
        %v4742 = vpack.c.bf16 %v4059, %v4055
        %v4743 = vpack.c.bf16 %v3848, %v3844
        %v4744 = vpack.c.bf16 %v3850, %v3846
        %v4745 = vpack.c.bf16 %v3921, %v3917
        %v4746 = vpack.c.bf16 %v3923, %v3919
        %v4747 = vpack.c.bf16 %v3994, %v3990
        %v4748 = vpack.c.bf16 %v3996, %v3992
        %v4749 = vpack.c.bf16 %v4067, %v4063
        %v4750 = vpack.c.bf16 %v4069, %v4065
        %4751 = vmatprep.subr.bf16.mxu0 0
        %4752 = vmatpush1.bf16.xpose.msra.mxu0 %v4687
        %4753 = vmatprep.subr.bf16.mxu0 0
        %4754 = vmatpush1.bf16.xpose.msra.mxu0 %v4695
        %4755 = vmatprep.subr.bf16.mxu0 0
        %4756 = vmatpush1.bf16.xpose.msra.mxu0 %v4703
        %4757 = vmatprep.subr.bf16.mxu0 0
        %4758 = vmatpush1.bf16.xpose.msra.mxu0 %v4711
        %4759 = vmatprep.subr.bf16.mxu0 0
        %4760 = vmatpush1.bf16.xpose.msra.mxu0 0
        %4761 = vmatprep.subr.bf16.mxu0 0
        %4762 = vmatpush1.bf16.xpose.msra.mxu0 0
        %4763 = vmatprep.subr.bf16.mxu0 0
        %4764 = vmatpush1.bf16.xpose.msra.mxu0 0
        %4765 = vmatprep.subr.bf16.mxu0 0
        %4766 = vmatpush1.bf16.xpose.msra.mxu0 0
        %4767 = vmatprep.subr.bf16.mxu0 0
        %4768 = vmatpush1.bf16.xpose.msra.mxu0 0
        %4769 = vmatprep.subr.bf16.mxu0 0
        %4770 = vmatpush1.bf16.xpose.msra.mxu0 0
        %4771 = vmatprep.subr.bf16.mxu0 0
        %4772 = vmatpush1.bf16.xpose.msra.mxu0 0
        %4773 = vmatprep.subr.bf16.mxu0 0
        %4774 = vmatpush1.bf16.xpose.msra.mxu0 0
        %4775 = vmatprep.subr.bf16.mxu0 0
        %4776 = vmatpush1.bf16.xpose.msra.mxu0 0
        %4777 = vmatprep.subr.bf16.mxu0 0
        %4778 = vmatpush1.bf16.xpose.msra.mxu0 0
        %4779 = vmatprep.subr.bf16.mxu0 0
        %4780 = vmatpush1.bf16.xpose.msra.mxu0 0
        %4781 = vmatprep.subr.bf16.mxu0 0
        %4782 = vmatpush1.bf16.xpose.msra.mxu0 0
        %4783 = vmatprep.mubr.bf16.mxu0 0
        %4784 = vmatmul.mubr.bf16.gmra.mrb[0].mxu0 %v4655
        %v4785 = vpop.f32.mrb[0].mxu0
        %v4786 = vadd.f32 %v4647, %v4785
        %v4787 = vpop.f32.mrb[0].mxu0
        %v4788 = vpop.f32.mrb[0].mxu0
        %v4789 = vadd.f32 %v4648, %v4788
        %v4790 = vpop.f32.mrb[0].mxu0
        %4791 = vmatprep.mubr.bf16.mxu0 0
        %4792 = vmatmul.mubr.bf16.gmra.mrb[0].mxu0 %v4663
        %v4793 = vpop.f32.mrb[0].mxu0
        %v4794 = vadd.f32 %v4649, %v4793
        %v4795 = vpop.f32.mrb[0].mxu0
        %v4796 = vpop.f32.mrb[0].mxu0
        %v4797 = vadd.f32 %v4650, %v4796
        %v4798 = vpop.f32.mrb[0].mxu0
        %4799 = vmatprep.mubr.bf16.mxu0 0
        %4800 = vmatmul.mubr.bf16.gmra.mrb[0].mxu0 %v4671
        %v4801 = vpop.f32.mrb[0].mxu0
        %v4802 = vadd.f32 %v4651, %v4801
        %v4803 = vpop.f32.mrb[0].mxu0
        %v4804 = vpop.f32.mrb[0].mxu0
        %v4805 = vadd.f32 %v4652, %v4804
        %v4806 = vpop.f32.mrb[0].mxu0
        %4807 = vmatprep.mubr.bf16.mxu0 0
        %4808 = vmatmul.mubr.bf16.gmra.mrb[0].mxu0 %v4679
        %v4809 = vpop.f32.mrb[0].mxu0
        %v4810 = vadd.f32 %v4653, %v4809
        %v4811 = vpop.f32.mrb[0].mxu0
        %v4812 = vpop.f32.mrb[0].mxu0
        %v4813 = vadd.f32 %v4654, %v4812
        %v4814 = vpop.f32.mrb[0].mxu0
        %4815 = vdwg.mxu0
        %vm4816 = vcmask 523264
        %v4817 = vsel %vm4816, %v4786, -inf
        %4818 = vmax.xlane.f32.xlu0 %v4817
        %v4819 = vpop.xlane.xlu0 %4818
        %v4820 = vsel %vm4816, %v4789, -inf
        %4821 = vmax.xlane.f32.xlu0 %v4820
        %v4822 = vpop.xlane.xlu0 %4821
        %v4823 = vsel %vm4816, %v4794, -inf
        %4824 = vmax.xlane.f32.xlu0 %v4823
        %v4825 = vpop.xlane.xlu0 %4824
        %v4826 = vsel %vm4816, %v4797, -inf
        %4827 = vmax.xlane.f32.xlu0 %v4826
        %v4828 = vpop.xlane.xlu0 %4827
        %v4829 = vsel %vm4816, %v4802, -inf
        %4830 = vmax.xlane.f32.xlu0 %v4829
        %v4831 = vpop.xlane.xlu0 %4830
        %v4832 = vsel %vm4816, %v4805, -inf
        %4833 = vmax.xlane.f32.xlu0 %v4832
        %v4834 = vpop.xlane.xlu0 %4833
        %v4835 = vsel %vm4816, %v4810, -inf
        %4836 = vmax.xlane.f32.xlu0 %v4835
        %v4837 = vpop.xlane.xlu0 %4836
        %v4838 = vsel %vm4816, %v4813, -inf
        %4839 = vmax.xlane.f32.xlu0 %v4838
        %v4840 = vpop.xlane.xlu0 %4839
        %v4841 = vsub.f32 %v4786, %v4819
        %v4842 = vsub.f32 %v4789, %v4822
        %v4843 = vsub.f32 %v4794, %v4825
        %v4844 = vsub.f32 %v4797, %v4828
        %v4845 = vsub.f32 %v4802, %v4831
        %v4846 = vsub.f32 %v4805, %v4834
        %v4847 = vsub.f32 %v4810, %v4837
        %v4848 = vsub.f32 %v4813, %v4840
        %v4849 = vmul.f32 %v4841, 1.442695
        %v4850 = vpow.pop %v4849
        %v4851 = vmul.f32 %v4842, 1.442695
        %v4852 = vpow.pop %v4851
        %v4853 = vmul.f32 %v4843, 1.442695
        %v4854 = vpow.pop %v4853
        %v4855 = vmul.f32 %v4844, 1.442695
        %v4856 = vpow.pop %v4855
        %v4857 = vmul.f32 %v4845, 1.442695
        %v4858 = vpow.pop %v4857
        %v4859 = vmul.f32 %v4846, 1.442695
        %v4860 = vpow.pop %v4859
        %v4861 = vmul.f32 %v4847, 1.442695
        %v4862 = vpow.pop %v4861
        %v4863 = vmul.f32 %v4848, 1.442695
        %v4864 = vpow.pop %v4863
        %v4865 = vsel %vm4816, %v4850, 0.0
        %4866 = vadd.xlane.f32.xlu0 %v4865
        %v4867 = vpop.xlane.xlu0 %4866
        %v4868 = vsel %vm4816, %v4852, 0.0
        %4869 = vadd.xlane.f32.xlu0 %v4868
        %v4870 = vpop.xlane.xlu0 %4869
        %v4871 = vsel %vm4816, %v4854, 0.0
        %4872 = vadd.xlane.f32.xlu0 %v4871
        %v4873 = vpop.xlane.xlu0 %4872
        %v4874 = vsel %vm4816, %v4856, 0.0
        %4875 = vadd.xlane.f32.xlu0 %v4874
        %v4876 = vpop.xlane.xlu0 %4875
        %v4877 = vsel %vm4816, %v4858, 0.0
        %4878 = vadd.xlane.f32.xlu0 %v4877
        %v4879 = vpop.xlane.xlu0 %4878
        %v4880 = vsel %vm4816, %v4860, 0.0
        %4881 = vadd.xlane.f32.xlu0 %v4880
        %v4882 = vpop.xlane.xlu0 %4881
        %v4883 = vsel %vm4816, %v4862, 0.0
        %4884 = vadd.xlane.f32.xlu0 %v4883
        %v4885 = vpop.xlane.xlu0 %4884
        %v4886 = vsel %vm4816, %v4864, 0.0
        %4887 = vadd.xlane.f32.xlu0 %v4886
        %v4888 = vpop.xlane.xlu0 %4887
        %v4889 = vrcp.pop %v4867
        %v4890 = vrcp.pop %v4870
        %v4891 = vrcp.pop %v4873
        %v4892 = vrcp.pop %v4876
        %v4893 = vrcp.pop %v4879
        %v4894 = vrcp.pop %v4882
        %v4895 = vrcp.pop %v4885
        %v4896 = vrcp.pop %v4888
        %v4897 = vmul.f32 %v4850, %v4889
        %v4898 = vmul.f32 %v4852, %v4890
        %v4899 = vmul.f32 %v4854, %v4891
        %v4900 = vmul.f32 %v4856, %v4892
        %v4901 = vmul.f32 %v4858, %v4893
        %v4902 = vmul.f32 %v4860, %v4894
        %v4903 = vmul.f32 %v4862, %v4895
        %v4904 = vmul.f32 %v4864, %v4896
        %v4905 = vpack.c.bf16 %v4898, %v4897
        %v4906 = vpack.c.bf16 %v4900, %v4899
        %v4907 = vpack.c.bf16 %v4902, %v4901
        %v4908 = vpack.c.bf16 %v4904, %v4903
        %v4910 = vsel %vm4816, %v4905, 0
        %v4913 = vsel %vm4816, %v4906, 0
        %v4916 = vsel %vm4816, %v4907, 0
        %v4919 = vsel %vm4816, %v4908, 0
        %4921 = vmatprep.subr.bf16.mxu0 0
        %4922 = vmatpush1.bf16.msra.mxu0 %v4719
        %4923 = vmatprep.subr.bf16.mxu0 0
        %4924 = vmatpush1.bf16.msra.mxu0 %v4727
        %4925 = vmatprep.subr.bf16.mxu0 0
        %4926 = vmatpush1.bf16.msra.mxu0 %v4735
        %4927 = vmatprep.subr.bf16.mxu0 0
        %4928 = vmatpush1.bf16.msra.mxu0 %v4743
        %4929 = vmatprep.subr.bf16.mxu0 0
        %4930 = vmatpush1.bf16.msra.mxu0 0
        %4931 = vmatprep.subr.bf16.mxu0 0
        %4932 = vmatpush1.bf16.msra.mxu0 0
        %4933 = vmatprep.subr.bf16.mxu0 0
        %4934 = vmatpush1.bf16.msra.mxu0 0
        %4935 = vmatprep.subr.bf16.mxu0 0
        %4936 = vmatpush1.bf16.msra.mxu0 0
        %4937 = vmatprep.subr.bf16.mxu0 0
        %4938 = vmatpush1.bf16.msra.mxu0 0
        %4939 = vmatprep.subr.bf16.mxu0 0
        %4940 = vmatpush1.bf16.msra.mxu0 0
        %4941 = vmatprep.subr.bf16.mxu0 0
        %4942 = vmatpush1.bf16.msra.mxu0 0
        %4943 = vmatprep.subr.bf16.mxu0 0
        %4944 = vmatpush1.bf16.msra.mxu0 0
        %4945 = vmatprep.subr.bf16.mxu0 0
        %4946 = vmatpush1.bf16.msra.mxu0 0
        %4947 = vmatprep.subr.bf16.mxu0 0
        %4948 = vmatpush1.bf16.msra.mxu0 0
        %4949 = vmatprep.subr.bf16.mxu0 0
        %4950 = vmatpush1.bf16.msra.mxu0 0
        %4951 = vmatprep.subr.bf16.mxu0 0
        %4952 = vmatpush1.bf16.msra.mxu0 0
        %4953 = vmatprep.mubr.bf16.mxu0 0
        %4954 = vmatmul.mubr.bf16.gmra.mrb[0].mxu0 %v4910
        %v4955 = vpop.f32.mrb[0].mxu0
        %v4956 = vadd.f32 0.0, %v4955
        %v4957 = vpop.f32.mrb[0].mxu0
        %v4958 = vpop.f32.mrb[0].mxu0
        %v4959 = vadd.f32 0.0, %v4958
        %v4960 = vpop.f32.mrb[0].mxu0
        %4961 = vmatprep.mubr.bf16.mxu0 0
        %4962 = vmatmul.mubr.bf16.gmra.mrb[0].mxu0 %v4913
        %v4963 = vpop.f32.mrb[0].mxu0
        %v4964 = vadd.f32 0.0, %v4963
        %v4965 = vpop.f32.mrb[0].mxu0
        %v4966 = vpop.f32.mrb[0].mxu0
        %v4967 = vadd.f32 0.0, %v4966
        %v4968 = vpop.f32.mrb[0].mxu0
        %4969 = vmatprep.mubr.bf16.mxu0 0
        %4970 = vmatmul.mubr.bf16.gmra.mrb[0].mxu0 %v4916
        %v4971 = vpop.f32.mrb[0].mxu0
        %v4972 = vadd.f32 0.0, %v4971
        %v4973 = vpop.f32.mrb[0].mxu0
        %v4974 = vpop.f32.mrb[0].mxu0
        %v4975 = vadd.f32 0.0, %v4974
        %v4976 = vpop.f32.mrb[0].mxu0
        %4977 = vmatprep.mubr.bf16.mxu0 0
        %4978 = vmatmul.mubr.bf16.gmra.mrb[0].mxu0 %v4919
        %v4979 = vpop.f32.mrb[0].mxu0
        %v4980 = vadd.f32 0.0, %v4979
        %v4981 = vpop.f32.mrb[0].mxu0
        %v4982 = vpop.f32.mrb[0].mxu0
        %v4983 = vadd.f32 0.0, %v4982
        %v4984 = vpop.f32.mrb[0].mxu0
        %4985 = vdwg.mxu0
        %4986 = vmatprep.subr.bf16.mxu0 0
        %4987 = vmatpush1.bf16.xpose.msra.mxu0 %v4688
        %4988 = vmatprep.subr.bf16.mxu0 0
        %4989 = vmatpush1.bf16.xpose.msra.mxu0 %v4696
        %4990 = vmatprep.subr.bf16.mxu0 0
        %4991 = vmatpush1.bf16.xpose.msra.mxu0 %v4704
        %4992 = vmatprep.subr.bf16.mxu0 0
        %4993 = vmatpush1.bf16.xpose.msra.mxu0 %v4712
        %4994 = vmatprep.subr.bf16.mxu0 0
        %4995 = vmatpush1.bf16.xpose.msra.mxu0 0
        %4996 = vmatprep.subr.bf16.mxu0 0
        %4997 = vmatpush1.bf16.xpose.msra.mxu0 0
        %4998 = vmatprep.subr.bf16.mxu0 0
        %4999 = vmatpush1.bf16.xpose.msra.mxu0 0
        %5000 = vmatprep.subr.bf16.mxu0 0
        %5001 = vmatpush1.bf16.xpose.msra.mxu0 0
        %5002 = vmatprep.subr.bf16.mxu0 0
        %5003 = vmatpush1.bf16.xpose.msra.mxu0 0
        %5004 = vmatprep.subr.bf16.mxu0 0
        %5005 = vmatpush1.bf16.xpose.msra.mxu0 0
        %5006 = vmatprep.subr.bf16.mxu0 0
        %5007 = vmatpush1.bf16.xpose.msra.mxu0 0
        %5008 = vmatprep.subr.bf16.mxu0 0
        %5009 = vmatpush1.bf16.xpose.msra.mxu0 0
        %5010 = vmatprep.subr.bf16.mxu0 0
        %5011 = vmatpush1.bf16.xpose.msra.mxu0 0
        %5012 = vmatprep.subr.bf16.mxu0 0
        %5013 = vmatpush1.bf16.xpose.msra.mxu0 0
        %5014 = vmatprep.subr.bf16.mxu0 0
        %5015 = vmatpush1.bf16.xpose.msra.mxu0 0
        %5016 = vmatprep.subr.bf16.mxu0 0
        %5017 = vmatpush1.bf16.xpose.msra.mxu0 0
        %5018 = vmatprep.mubr.bf16.mxu0 0
        %5019 = vmatmul.mubr.bf16.gmra.mrb[0].mxu0 %v4656
        %v5020 = vpop.f32.mrb[0].mxu0
        %v5021 = vadd.f32 %v4647, %v5020
        %v5022 = vpop.f32.mrb[0].mxu0
        %v5023 = vpop.f32.mrb[0].mxu0
        %v5024 = vadd.f32 %v4648, %v5023
        %v5025 = vpop.f32.mrb[0].mxu0
        %5026 = vmatprep.mubr.bf16.mxu0 0
        %5027 = vmatmul.mubr.bf16.gmra.mrb[0].mxu0 %v4664
        %v5028 = vpop.f32.mrb[0].mxu0
        %v5029 = vadd.f32 %v4649, %v5028
        %v5030 = vpop.f32.mrb[0].mxu0
        %v5031 = vpop.f32.mrb[0].mxu0
        %v5032 = vadd.f32 %v4650, %v5031
        %v5033 = vpop.f32.mrb[0].mxu0
        %5034 = vmatprep.mubr.bf16.mxu0 0
        %5035 = vmatmul.mubr.bf16.gmra.mrb[0].mxu0 %v4672
        %v5036 = vpop.f32.mrb[0].mxu0
        %v5037 = vadd.f32 %v4651, %v5036
        %v5038 = vpop.f32.mrb[0].mxu0
        %v5039 = vpop.f32.mrb[0].mxu0
        %v5040 = vadd.f32 %v4652, %v5039
        %v5041 = vpop.f32.mrb[0].mxu0
        %5042 = vmatprep.mubr.bf16.mxu0 0
        %5043 = vmatmul.mubr.bf16.gmra.mrb[0].mxu0 %v4680
        %v5044 = vpop.f32.mrb[0].mxu0
        %v5045 = vadd.f32 %v4653, %v5044
        %v5046 = vpop.f32.mrb[0].mxu0
        %v5047 = vpop.f32.mrb[0].mxu0
        %v5048 = vadd.f32 %v4654, %v5047
        %v5049 = vpop.f32.mrb[0].mxu0
        %5050 = vdwg.mxu0
        %v5051 = vsel %vm4816, %v5021, -inf
        %5052 = vmax.xlane.f32.xlu0 %v5051
        %v5053 = vpop.xlane.xlu0 %5052
        %v5054 = vsel %vm4816, %v5024, -inf
        %5055 = vmax.xlane.f32.xlu0 %v5054
        %v5056 = vpop.xlane.xlu0 %5055
        %v5057 = vsel %vm4816, %v5029, -inf
        %5058 = vmax.xlane.f32.xlu0 %v5057
        %v5059 = vpop.xlane.xlu0 %5058
        %v5060 = vsel %vm4816, %v5032, -inf
        %5061 = vmax.xlane.f32.xlu0 %v5060
        %v5062 = vpop.xlane.xlu0 %5061
        %v5063 = vsel %vm4816, %v5037, -inf
        %5064 = vmax.xlane.f32.xlu0 %v5063
        %v5065 = vpop.xlane.xlu0 %5064
        %v5066 = vsel %vm4816, %v5040, -inf
        %5067 = vmax.xlane.f32.xlu0 %v5066
        %v5068 = vpop.xlane.xlu0 %5067
        %v5069 = vsel %vm4816, %v5045, -inf
        %5070 = vmax.xlane.f32.xlu0 %v5069
        %v5071 = vpop.xlane.xlu0 %5070
        %v5072 = vsel %vm4816, %v5048, -inf
        %5073 = vmax.xlane.f32.xlu0 %v5072
        %v5074 = vpop.xlane.xlu0 %5073
        %v5075 = vsub.f32 %v5021, %v5053
        %v5076 = vsub.f32 %v5024, %v5056
        %v5077 = vsub.f32 %v5029, %v5059
        %v5078 = vsub.f32 %v5032, %v5062
        %v5079 = vsub.f32 %v5037, %v5065
        %v5080 = vsub.f32 %v5040, %v5068
        %v5081 = vsub.f32 %v5045, %v5071
        %v5082 = vsub.f32 %v5048, %v5074
        %v5083 = vmul.f32 %v5075, 1.442695
        %v5084 = vpow.pop %v5083
        %v5085 = vmul.f32 %v5076, 1.442695
        %v5086 = vpow.pop %v5085
        %v5087 = vmul.f32 %v5077, 1.442695
        %v5088 = vpow.pop %v5087
        %v5089 = vmul.f32 %v5078, 1.442695
        %v5090 = vpow.pop %v5089
        %v5091 = vmul.f32 %v5079, 1.442695
        %v5092 = vpow.pop %v5091
        %v5093 = vmul.f32 %v5080, 1.442695
        %v5094 = vpow.pop %v5093
        %v5095 = vmul.f32 %v5081, 1.442695
        %v5096 = vpow.pop %v5095
        %v5097 = vmul.f32 %v5082, 1.442695
        %v5098 = vpow.pop %v5097
        %v5099 = vsel %vm4816, %v5084, 0.0
        %5100 = vadd.xlane.f32.xlu0 %v5099
        %v5101 = vpop.xlane.xlu0 %5100
        %v5102 = vsel %vm4816, %v5086, 0.0
        %5103 = vadd.xlane.f32.xlu0 %v5102
        %v5104 = vpop.xlane.xlu0 %5103
        %v5105 = vsel %vm4816, %v5088, 0.0
        %5106 = vadd.xlane.f32.xlu0 %v5105
        %v5107 = vpop.xlane.xlu0 %5106
        %v5108 = vsel %vm4816, %v5090, 0.0
        %5109 = vadd.xlane.f32.xlu0 %v5108
        %v5110 = vpop.xlane.xlu0 %5109
        %v5111 = vsel %vm4816, %v5092, 0.0
        %5112 = vadd.xlane.f32.xlu0 %v5111
        %v5113 = vpop.xlane.xlu0 %5112
        %v5114 = vsel %vm4816, %v5094, 0.0
        %5115 = vadd.xlane.f32.xlu0 %v5114
        %v5116 = vpop.xlane.xlu0 %5115
        %v5117 = vsel %vm4816, %v5096, 0.0
        %5118 = vadd.xlane.f32.xlu0 %v5117
        %v5119 = vpop.xlane.xlu0 %5118
        %v5120 = vsel %vm4816, %v5098, 0.0
        %5121 = vadd.xlane.f32.xlu0 %v5120
        %v5122 = vpop.xlane.xlu0 %5121
        %v5123 = vrcp.pop %v5101
        %v5124 = vrcp.pop %v5104
        %v5125 = vrcp.pop %v5107
        %v5126 = vrcp.pop %v5110
        %v5127 = vrcp.pop %v5113
        %v5128 = vrcp.pop %v5116
        %v5129 = vrcp.pop %v5119
        %v5130 = vrcp.pop %v5122
        %v5131 = vmul.f32 %v5084, %v5123
        %v5132 = vmul.f32 %v5086, %v5124
        %v5133 = vmul.f32 %v5088, %v5125
        %v5134 = vmul.f32 %v5090, %v5126
        %v5135 = vmul.f32 %v5092, %v5127
        %v5136 = vmul.f32 %v5094, %v5128
        %v5137 = vmul.f32 %v5096, %v5129
        %v5138 = vmul.f32 %v5098, %v5130
        %v5139 = vpack.c.bf16 %v5132, %v5131
        %v5140 = vpack.c.bf16 %v5134, %v5133
        %v5141 = vpack.c.bf16 %v5136, %v5135
        %v5142 = vpack.c.bf16 %v5138, %v5137
        %v5144 = vsel %vm4816, %v5139, 0
        %v5147 = vsel %vm4816, %v5140, 0
        %v5150 = vsel %vm4816, %v5141, 0
        %v5153 = vsel %vm4816, %v5142, 0
        %5155 = vmatprep.subr.bf16.mxu0 0
        %5156 = vmatpush1.bf16.msra.mxu0 %v4720
        %5157 = vmatprep.subr.bf16.mxu0 0
        %5158 = vmatpush1.bf16.msra.mxu0 %v4728
        %5159 = vmatprep.subr.bf16.mxu0 0
        %5160 = vmatpush1.bf16.msra.mxu0 %v4736
        %5161 = vmatprep.subr.bf16.mxu0 0
        %5162 = vmatpush1.bf16.msra.mxu0 %v4744
        %5163 = vmatprep.subr.bf16.mxu0 0
        %5164 = vmatpush1.bf16.msra.mxu0 0
        %5165 = vmatprep.subr.bf16.mxu0 0
        %5166 = vmatpush1.bf16.msra.mxu0 0
        %5167 = vmatprep.subr.bf16.mxu0 0
        %5168 = vmatpush1.bf16.msra.mxu0 0
        %5169 = vmatprep.subr.bf16.mxu0 0
        %5170 = vmatpush1.bf16.msra.mxu0 0
        %5171 = vmatprep.subr.bf16.mxu0 0
        %5172 = vmatpush1.bf16.msra.mxu0 0
        %5173 = vmatprep.subr.bf16.mxu0 0
        %5174 = vmatpush1.bf16.msra.mxu0 0
        %5175 = vmatprep.subr.bf16.mxu0 0
        %5176 = vmatpush1.bf16.msra.mxu0 0
        %5177 = vmatprep.subr.bf16.mxu0 0
        %5178 = vmatpush1.bf16.msra.mxu0 0
        %5179 = vmatprep.subr.bf16.mxu0 0
        %5180 = vmatpush1.bf16.msra.mxu0 0
        %5181 = vmatprep.subr.bf16.mxu0 0
        %5182 = vmatpush1.bf16.msra.mxu0 0
        %5183 = vmatprep.subr.bf16.mxu0 0
        %5184 = vmatpush1.bf16.msra.mxu0 0
        %5185 = vmatprep.subr.bf16.mxu0 0
        %5186 = vmatpush1.bf16.msra.mxu0 0
        %5187 = vmatprep.mubr.bf16.mxu0 0
        %5188 = vmatmul.mubr.bf16.gmra.mrb[0].mxu0 %v5144
        %v5189 = vpop.f32.mrb[0].mxu0
        %v5190 = vadd.f32 0.0, %v5189
        %v5191 = vpop.f32.mrb[0].mxu0
        %v5192 = vpop.f32.mrb[0].mxu0
        %v5193 = vadd.f32 0.0, %v5192
        %v5194 = vpop.f32.mrb[0].mxu0
        %5195 = vmatprep.mubr.bf16.mxu0 0
        %5196 = vmatmul.mubr.bf16.gmra.mrb[0].mxu0 %v5147
        %v5197 = vpop.f32.mrb[0].mxu0
        %v5198 = vadd.f32 0.0, %v5197
        %v5199 = vpop.f32.mrb[0].mxu0
        %v5200 = vpop.f32.mrb[0].mxu0
        %v5201 = vadd.f32 0.0, %v5200
        %v5202 = vpop.f32.mrb[0].mxu0
        %5203 = vmatprep.mubr.bf16.mxu0 0
        %5204 = vmatmul.mubr.bf16.gmra.mrb[0].mxu0 %v5150
        %v5205 = vpop.f32.mrb[0].mxu0
        %v5206 = vadd.f32 0.0, %v5205
        %v5207 = vpop.f32.mrb[0].mxu0
        %v5208 = vpop.f32.mrb[0].mxu0
        %v5209 = vadd.f32 0.0, %v5208
        %v5210 = vpop.f32.mrb[0].mxu0
        %5211 = vmatprep.mubr.bf16.mxu0 0
        %5212 = vmatmul.mubr.bf16.gmra.mrb[0].mxu0 %v5153
        %v5213 = vpop.f32.mrb[0].mxu0
        %v5214 = vadd.f32 0.0, %v5213
        %v5215 = vpop.f32.mrb[0].mxu0
        %v5216 = vpop.f32.mrb[0].mxu0
        %v5217 = vadd.f32 0.0, %v5216
        %v5218 = vpop.f32.mrb[0].mxu0
        %5219 = vdwg.mxu0
        %5220 = vmatprep.subr.bf16.mxu0 0
        %5221 = vmatpush1.bf16.xpose.msra.mxu0 %v4689
        %5222 = vmatprep.subr.bf16.mxu0 0
        %5223 = vmatpush1.bf16.xpose.msra.mxu0 %v4697
        %5224 = vmatprep.subr.bf16.mxu0 0
        %5225 = vmatpush1.bf16.xpose.msra.mxu0 %v4705
        %5226 = vmatprep.subr.bf16.mxu0 0
        %5227 = vmatpush1.bf16.xpose.msra.mxu0 %v4713
        %5228 = vmatprep.subr.bf16.mxu0 0
        %5229 = vmatpush1.bf16.xpose.msra.mxu0 0
        %5230 = vmatprep.subr.bf16.mxu0 0
        %5231 = vmatpush1.bf16.xpose.msra.mxu0 0
        %5232 = vmatprep.subr.bf16.mxu0 0
        %5233 = vmatpush1.bf16.xpose.msra.mxu0 0
        %5234 = vmatprep.subr.bf16.mxu0 0
        %5235 = vmatpush1.bf16.xpose.msra.mxu0 0
        %5236 = vmatprep.subr.bf16.mxu0 0
        %5237 = vmatpush1.bf16.xpose.msra.mxu0 0
        %5238 = vmatprep.subr.bf16.mxu0 0
        %5239 = vmatpush1.bf16.xpose.msra.mxu0 0
        %5240 = vmatprep.subr.bf16.mxu0 0
        %5241 = vmatpush1.bf16.xpose.msra.mxu0 0
        %5242 = vmatprep.subr.bf16.mxu0 0
        %5243 = vmatpush1.bf16.xpose.msra.mxu0 0
        %5244 = vmatprep.subr.bf16.mxu0 0
        %5245 = vmatpush1.bf16.xpose.msra.mxu0 0
        %5246 = vmatprep.subr.bf16.mxu0 0
        %5247 = vmatpush1.bf16.xpose.msra.mxu0 0
        %5248 = vmatprep.subr.bf16.mxu0 0
        %5249 = vmatpush1.bf16.xpose.msra.mxu0 0
        %5250 = vmatprep.subr.bf16.mxu0 0
        %5251 = vmatpush1.bf16.xpose.msra.mxu0 0
        %5252 = vmatprep.mubr.bf16.mxu0 0
        %5253 = vmatmul.mubr.bf16.gmra.mrb[0].mxu0 %v4657
        %v5254 = vpop.f32.mrb[0].mxu0
        %v5255 = vadd.f32 %v4647, %v5254
        %v5256 = vpop.f32.mrb[0].mxu0
        %v5257 = vpop.f32.mrb[0].mxu0
        %v5258 = vadd.f32 %v4648, %v5257
        %v5259 = vpop.f32.mrb[0].mxu0
        %5260 = vmatprep.mubr.bf16.mxu0 0
        %5261 = vmatmul.mubr.bf16.gmra.mrb[0].mxu0 %v4665
        %v5262 = vpop.f32.mrb[0].mxu0
        %v5263 = vadd.f32 %v4649, %v5262
        %v5264 = vpop.f32.mrb[0].mxu0
        %v5265 = vpop.f32.mrb[0].mxu0
        %v5266 = vadd.f32 %v4650, %v5265
        %v5267 = vpop.f32.mrb[0].mxu0
        %5268 = vmatprep.mubr.bf16.mxu0 0
        %5269 = vmatmul.mubr.bf16.gmra.mrb[0].mxu0 %v4673
        %v5270 = vpop.f32.mrb[0].mxu0
        %v5271 = vadd.f32 %v4651, %v5270
        %v5272 = vpop.f32.mrb[0].mxu0
        %v5273 = vpop.f32.mrb[0].mxu0
        %v5274 = vadd.f32 %v4652, %v5273
        %v5275 = vpop.f32.mrb[0].mxu0
        %5276 = vmatprep.mubr.bf16.mxu0 0
        %5277 = vmatmul.mubr.bf16.gmra.mrb[0].mxu0 %v4681
        %v5278 = vpop.f32.mrb[0].mxu0
        %v5279 = vadd.f32 %v4653, %v5278
        %v5280 = vpop.f32.mrb[0].mxu0
        %v5281 = vpop.f32.mrb[0].mxu0
        %v5282 = vadd.f32 %v4654, %v5281
        %v5283 = vpop.f32.mrb[0].mxu0
        %5284 = vdwg.mxu0
        %v5285 = vsel %vm4816, %v5255, -inf
        %5286 = vmax.xlane.f32.xlu0 %v5285
        %v5287 = vpop.xlane.xlu0 %5286
        %v5288 = vsel %vm4816, %v5258, -inf
        %5289 = vmax.xlane.f32.xlu0 %v5288
        %v5290 = vpop.xlane.xlu0 %5289
        %v5291 = vsel %vm4816, %v5263, -inf
        %5292 = vmax.xlane.f32.xlu0 %v5291
        %v5293 = vpop.xlane.xlu0 %5292
        %v5294 = vsel %vm4816, %v5266, -inf
        %5295 = vmax.xlane.f32.xlu0 %v5294
        %v5296 = vpop.xlane.xlu0 %5295
        %v5297 = vsel %vm4816, %v5271, -inf
        %5298 = vmax.xlane.f32.xlu0 %v5297
        %v5299 = vpop.xlane.xlu0 %5298
        %v5300 = vsel %vm4816, %v5274, -inf
        %5301 = vmax.xlane.f32.xlu0 %v5300
        %v5302 = vpop.xlane.xlu0 %5301
        %v5303 = vsel %vm4816, %v5279, -inf
        %5304 = vmax.xlane.f32.xlu0 %v5303
        %v5305 = vpop.xlane.xlu0 %5304
        %v5306 = vsel %vm4816, %v5282, -inf
        %5307 = vmax.xlane.f32.xlu0 %v5306
        %v5308 = vpop.xlane.xlu0 %5307
        %v5309 = vsub.f32 %v5255, %v5287
        %v5310 = vsub.f32 %v5258, %v5290
        %v5311 = vsub.f32 %v5263, %v5293
        %v5312 = vsub.f32 %v5266, %v5296
        %v5313 = vsub.f32 %v5271, %v5299
        %v5314 = vsub.f32 %v5274, %v5302
        %v5315 = vsub.f32 %v5279, %v5305
        %v5316 = vsub.f32 %v5282, %v5308
        %v5317 = vmul.f32 %v5309, 1.442695
        %v5318 = vpow.pop %v5317
        %v5319 = vmul.f32 %v5310, 1.442695
        %v5320 = vpow.pop %v5319
        %v5321 = vmul.f32 %v5311, 1.442695
        %v5322 = vpow.pop %v5321
        %v5323 = vmul.f32 %v5312, 1.442695
        %v5324 = vpow.pop %v5323
        %v5325 = vmul.f32 %v5313, 1.442695
        %v5326 = vpow.pop %v5325
        %v5327 = vmul.f32 %v5314, 1.442695
        %v5328 = vpow.pop %v5327
        %v5329 = vmul.f32 %v5315, 1.442695
        %v5330 = vpow.pop %v5329
        %v5331 = vmul.f32 %v5316, 1.442695
        %v5332 = vpow.pop %v5331
        %v5333 = vsel %vm4816, %v5318, 0.0
        %5334 = vadd.xlane.f32.xlu0 %v5333
        %v5335 = vpop.xlane.xlu0 %5334
        %v5336 = vsel %vm4816, %v5320, 0.0
        %5337 = vadd.xlane.f32.xlu0 %v5336
        %v5338 = vpop.xlane.xlu0 %5337
        %v5339 = vsel %vm4816, %v5322, 0.0
        %5340 = vadd.xlane.f32.xlu0 %v5339
        %v5341 = vpop.xlane.xlu0 %5340
        %v5342 = vsel %vm4816, %v5324, 0.0
        %5343 = vadd.xlane.f32.xlu0 %v5342
        %v5344 = vpop.xlane.xlu0 %5343
        %v5345 = vsel %vm4816, %v5326, 0.0
        %5346 = vadd.xlane.f32.xlu0 %v5345
        %v5347 = vpop.xlane.xlu0 %5346
        %v5348 = vsel %vm4816, %v5328, 0.0
        %5349 = vadd.xlane.f32.xlu0 %v5348
        %v5350 = vpop.xlane.xlu0 %5349
        %v5351 = vsel %vm4816, %v5330, 0.0
        %5352 = vadd.xlane.f32.xlu0 %v5351
        %v5353 = vpop.xlane.xlu0 %5352
        %v5354 = vsel %vm4816, %v5332, 0.0
        %5355 = vadd.xlane.f32.xlu0 %v5354
        %v5356 = vpop.xlane.xlu0 %5355
        %v5357 = vrcp.pop %v5335
        %v5358 = vrcp.pop %v5338
        %v5359 = vrcp.pop %v5341
        %v5360 = vrcp.pop %v5344
        %v5361 = vrcp.pop %v5347
        %v5362 = vrcp.pop %v5350
        %v5363 = vrcp.pop %v5353
        %v5364 = vrcp.pop %v5356
        %v5365 = vmul.f32 %v5318, %v5357
        %v5366 = vmul.f32 %v5320, %v5358
        %v5367 = vmul.f32 %v5322, %v5359
        %v5368 = vmul.f32 %v5324, %v5360
        %v5369 = vmul.f32 %v5326, %v5361
        %v5370 = vmul.f32 %v5328, %v5362
        %v5371 = vmul.f32 %v5330, %v5363
        %v5372 = vmul.f32 %v5332, %v5364
        %v5373 = vpack.c.bf16 %v5366, %v5365
        %v5374 = vpack.c.bf16 %v5368, %v5367
        %v5375 = vpack.c.bf16 %v5370, %v5369
        %v5376 = vpack.c.bf16 %v5372, %v5371
        %v5378 = vsel %vm4816, %v5373, 0
        %v5381 = vsel %vm4816, %v5374, 0
        %v5384 = vsel %vm4816, %v5375, 0
        %v5387 = vsel %vm4816, %v5376, 0
        %5389 = vmatprep.subr.bf16.mxu0 0
        %5390 = vmatpush1.bf16.msra.mxu0 %v4721
        %5391 = vmatprep.subr.bf16.mxu0 0
        %5392 = vmatpush1.bf16.msra.mxu0 %v4729
        %5393 = vmatprep.subr.bf16.mxu0 0
        %5394 = vmatpush1.bf16.msra.mxu0 %v4737
        %5395 = vmatprep.subr.bf16.mxu0 0
        %5396 = vmatpush1.bf16.msra.mxu0 %v4745
        %5397 = vmatprep.subr.bf16.mxu0 0
        %5398 = vmatpush1.bf16.msra.mxu0 0
        %5399 = vmatprep.subr.bf16.mxu0 0
        %5400 = vmatpush1.bf16.msra.mxu0 0
        %5401 = vmatprep.subr.bf16.mxu0 0
        %5402 = vmatpush1.bf16.msra.mxu0 0
        %5403 = vmatprep.subr.bf16.mxu0 0
        %5404 = vmatpush1.bf16.msra.mxu0 0
        %5405 = vmatprep.subr.bf16.mxu0 0
        %5406 = vmatpush1.bf16.msra.mxu0 0
        %5407 = vmatprep.subr.bf16.mxu0 0
        %5408 = vmatpush1.bf16.msra.mxu0 0
        %5409 = vmatprep.subr.bf16.mxu0 0
        %5410 = vmatpush1.bf16.msra.mxu0 0
        %5411 = vmatprep.subr.bf16.mxu0 0
        %5412 = vmatpush1.bf16.msra.mxu0 0
        %5413 = vmatprep.subr.bf16.mxu0 0
        %5414 = vmatpush1.bf16.msra.mxu0 0
        %5415 = vmatprep.subr.bf16.mxu0 0
        %5416 = vmatpush1.bf16.msra.mxu0 0
        %5417 = vmatprep.subr.bf16.mxu0 0
        %5418 = vmatpush1.bf16.msra.mxu0 0
        %5419 = vmatprep.subr.bf16.mxu0 0
        %5420 = vmatpush1.bf16.msra.mxu0 0
        %5421 = vmatprep.mubr.bf16.mxu0 0
        %5422 = vmatmul.mubr.bf16.gmra.mrb[0].mxu0 %v5378
        %v5423 = vpop.f32.mrb[0].mxu0
        %v5424 = vadd.f32 0.0, %v5423
        %v5425 = vpop.f32.mrb[0].mxu0
        %v5426 = vpop.f32.mrb[0].mxu0
        %v5427 = vadd.f32 0.0, %v5426
        %v5428 = vpop.f32.mrb[0].mxu0
        %5429 = vmatprep.mubr.bf16.mxu0 0
        %5430 = vmatmul.mubr.bf16.gmra.mrb[0].mxu0 %v5381
        %v5431 = vpop.f32.mrb[0].mxu0
        %v5432 = vadd.f32 0.0, %v5431
        %v5433 = vpop.f32.mrb[0].mxu0
        %v5434 = vpop.f32.mrb[0].mxu0
        %v5435 = vadd.f32 0.0, %v5434
        %v5436 = vpop.f32.mrb[0].mxu0
        %5437 = vmatprep.mubr.bf16.mxu0 0
        %5438 = vmatmul.mubr.bf16.gmra.mrb[0].mxu0 %v5384
        %v5439 = vpop.f32.mrb[0].mxu0
        %v5440 = vadd.f32 0.0, %v5439
        %v5441 = vpop.f32.mrb[0].mxu0
        %v5442 = vpop.f32.mrb[0].mxu0
        %v5443 = vadd.f32 0.0, %v5442
        %v5444 = vpop.f32.mrb[0].mxu0
        %5445 = vmatprep.mubr.bf16.mxu0 0
        %5446 = vmatmul.mubr.bf16.gmra.mrb[0].mxu0 %v5387
        %v5447 = vpop.f32.mrb[0].mxu0
        %v5448 = vadd.f32 0.0, %v5447
        %v5449 = vpop.f32.mrb[0].mxu0
        %v5450 = vpop.f32.mrb[0].mxu0
        %v5451 = vadd.f32 0.0, %v5450
        %v5452 = vpop.f32.mrb[0].mxu0
        %5453 = vdwg.mxu0
        %5454 = vmatprep.subr.bf16.mxu0 0
        %5455 = vmatpush1.bf16.xpose.msra.mxu0 %v4690
        %5456 = vmatprep.subr.bf16.mxu0 0
        %5457 = vmatpush1.bf16.xpose.msra.mxu0 %v4698
        %5458 = vmatprep.subr.bf16.mxu0 0
        %5459 = vmatpush1.bf16.xpose.msra.mxu0 %v4706
        %5460 = vmatprep.subr.bf16.mxu0 0
        %5461 = vmatpush1.bf16.xpose.msra.mxu0 %v4714
        %5462 = vmatprep.subr.bf16.mxu0 0
        %5463 = vmatpush1.bf16.xpose.msra.mxu0 0
        %5464 = vmatprep.subr.bf16.mxu0 0
        %5465 = vmatpush1.bf16.xpose.msra.mxu0 0
        %5466 = vmatprep.subr.bf16.mxu0 0
        %5467 = vmatpush1.bf16.xpose.msra.mxu0 0
        %5468 = vmatprep.subr.bf16.mxu0 0
        %5469 = vmatpush1.bf16.xpose.msra.mxu0 0
        %5470 = vmatprep.subr.bf16.mxu0 0
        %5471 = vmatpush1.bf16.xpose.msra.mxu0 0
        %5472 = vmatprep.subr.bf16.mxu0 0
        %5473 = vmatpush1.bf16.xpose.msra.mxu0 0
        %5474 = vmatprep.subr.bf16.mxu0 0
        %5475 = vmatpush1.bf16.xpose.msra.mxu0 0
        %5476 = vmatprep.subr.bf16.mxu0 0
        %5477 = vmatpush1.bf16.xpose.msra.mxu0 0
        %5478 = vmatprep.subr.bf16.mxu0 0
        %5479 = vmatpush1.bf16.xpose.msra.mxu0 0
        %5480 = vmatprep.subr.bf16.mxu0 0
        %5481 = vmatpush1.bf16.xpose.msra.mxu0 0
        %5482 = vmatprep.subr.bf16.mxu0 0
        %5483 = vmatpush1.bf16.xpose.msra.mxu0 0
        %5484 = vmatprep.subr.bf16.mxu0 0
        %5485 = vmatpush1.bf16.xpose.msra.mxu0 0
        %5486 = vmatprep.mubr.bf16.mxu0 0
        %5487 = vmatmul.mubr.bf16.gmra.mrb[0].mxu0 %v4658
        %v5488 = vpop.f32.mrb[0].mxu0
        %v5489 = vadd.f32 %v4647, %v5488
        %v5490 = vpop.f32.mrb[0].mxu0
        %v5491 = vpop.f32.mrb[0].mxu0
        %v5492 = vadd.f32 %v4648, %v5491
        %v5493 = vpop.f32.mrb[0].mxu0
        %5494 = vmatprep.mubr.bf16.mxu0 0
        %5495 = vmatmul.mubr.bf16.gmra.mrb[0].mxu0 %v4666
        %v5496 = vpop.f32.mrb[0].mxu0
        %v5497 = vadd.f32 %v4649, %v5496
        %v5498 = vpop.f32.mrb[0].mxu0
        %v5499 = vpop.f32.mrb[0].mxu0
        %v5500 = vadd.f32 %v4650, %v5499
        %v5501 = vpop.f32.mrb[0].mxu0
        %5502 = vmatprep.mubr.bf16.mxu0 0
        %5503 = vmatmul.mubr.bf16.gmra.mrb[0].mxu0 %v4674
        %v5504 = vpop.f32.mrb[0].mxu0
        %v5505 = vadd.f32 %v4651, %v5504
        %v5506 = vpop.f32.mrb[0].mxu0
        %v5507 = vpop.f32.mrb[0].mxu0
        %v5508 = vadd.f32 %v4652, %v5507
        %v5509 = vpop.f32.mrb[0].mxu0
        %5510 = vmatprep.mubr.bf16.mxu0 0
        %5511 = vmatmul.mubr.bf16.gmra.mrb[0].mxu0 %v4682
        %v5512 = vpop.f32.mrb[0].mxu0
        %v5513 = vadd.f32 %v4653, %v5512
        %v5514 = vpop.f32.mrb[0].mxu0
        %v5515 = vpop.f32.mrb[0].mxu0
        %v5516 = vadd.f32 %v4654, %v5515
        %v5517 = vpop.f32.mrb[0].mxu0
        %5518 = vdwg.mxu0
        %v5519 = vsel %vm4816, %v5489, -inf
        %5520 = vmax.xlane.f32.xlu0 %v5519
        %v5521 = vpop.xlane.xlu0 %5520
        %v5522 = vsel %vm4816, %v5492, -inf
        %5523 = vmax.xlane.f32.xlu0 %v5522
        %v5524 = vpop.xlane.xlu0 %5523
        %v5525 = vsel %vm4816, %v5497, -inf
        %5526 = vmax.xlane.f32.xlu0 %v5525
        %v5527 = vpop.xlane.xlu0 %5526
        %v5528 = vsel %vm4816, %v5500, -inf
        %5529 = vmax.xlane.f32.xlu0 %v5528
        %v5530 = vpop.xlane.xlu0 %5529
        %v5531 = vsel %vm4816, %v5505, -inf
        %5532 = vmax.xlane.f32.xlu0 %v5531
        %v5533 = vpop.xlane.xlu0 %5532
        %v5534 = vsel %vm4816, %v5508, -inf
        %5535 = vmax.xlane.f32.xlu0 %v5534
        %v5536 = vpop.xlane.xlu0 %5535
        %v5537 = vsel %vm4816, %v5513, -inf
        %5538 = vmax.xlane.f32.xlu0 %v5537
        %v5539 = vpop.xlane.xlu0 %5538
        %v5540 = vsel %vm4816, %v5516, -inf
        %5541 = vmax.xlane.f32.xlu0 %v5540
        %v5542 = vpop.xlane.xlu0 %5541
        %v5543 = vsub.f32 %v5489, %v5521
        %v5544 = vsub.f32 %v5492, %v5524
        %v5545 = vsub.f32 %v5497, %v5527
        %v5546 = vsub.f32 %v5500, %v5530
        %v5547 = vsub.f32 %v5505, %v5533
        %v5548 = vsub.f32 %v5508, %v5536
        %v5549 = vsub.f32 %v5513, %v5539
        %v5550 = vsub.f32 %v5516, %v5542
        %v5551 = vmul.f32 %v5543, 1.442695
        %v5552 = vpow.pop %v5551
        %v5553 = vmul.f32 %v5544, 1.442695
        %v5554 = vpow.pop %v5553
        %v5555 = vmul.f32 %v5545, 1.442695
        %v5556 = vpow.pop %v5555
        %v5557 = vmul.f32 %v5546, 1.442695
        %v5558 = vpow.pop %v5557
        %v5559 = vmul.f32 %v5547, 1.442695
        %v5560 = vpow.pop %v5559
        %v5561 = vmul.f32 %v5548, 1.442695
        %v5562 = vpow.pop %v5561
        %v5563 = vmul.f32 %v5549, 1.442695
        %v5564 = vpow.pop %v5563
        %v5565 = vmul.f32 %v5550, 1.442695
        %v5566 = vpow.pop %v5565
        %v5567 = vsel %vm4816, %v5552, 0.0
        %5568 = vadd.xlane.f32.xlu0 %v5567
        %v5569 = vpop.xlane.xlu0 %5568
        %v5570 = vsel %vm4816, %v5554, 0.0
        %5571 = vadd.xlane.f32.xlu0 %v5570
        %v5572 = vpop.xlane.xlu0 %5571
        %v5573 = vsel %vm4816, %v5556, 0.0
        %5574 = vadd.xlane.f32.xlu0 %v5573
        %v5575 = vpop.xlane.xlu0 %5574
        %v5576 = vsel %vm4816, %v5558, 0.0
        %5577 = vadd.xlane.f32.xlu0 %v5576
        %v5578 = vpop.xlane.xlu0 %5577
        %v5579 = vsel %vm4816, %v5560, 0.0
        %5580 = vadd.xlane.f32.xlu0 %v5579
        %v5581 = vpop.xlane.xlu0 %5580
        %v5582 = vsel %vm4816, %v5562, 0.0
        %5583 = vadd.xlane.f32.xlu0 %v5582
        %v5584 = vpop.xlane.xlu0 %5583
        %v5585 = vsel %vm4816, %v5564, 0.0
        %5586 = vadd.xlane.f32.xlu0 %v5585
        %v5587 = vpop.xlane.xlu0 %5586
        %v5588 = vsel %vm4816, %v5566, 0.0
        %5589 = vadd.xlane.f32.xlu0 %v5588
        %v5590 = vpop.xlane.xlu0 %5589
        %v5591 = vrcp.pop %v5569
        %v5592 = vrcp.pop %v5572
        %v5593 = vrcp.pop %v5575
        %v5594 = vrcp.pop %v5578
        %v5595 = vrcp.pop %v5581
        %v5596 = vrcp.pop %v5584
        %v5597 = vrcp.pop %v5587
        %v5598 = vrcp.pop %v5590
        %v5599 = vmul.f32 %v5552, %v5591
        %v5600 = vmul.f32 %v5554, %v5592
        %v5601 = vmul.f32 %v5556, %v5593
        %v5602 = vmul.f32 %v5558, %v5594
        %v5603 = vmul.f32 %v5560, %v5595
        %v5604 = vmul.f32 %v5562, %v5596
        %v5605 = vmul.f32 %v5564, %v5597
        %v5606 = vmul.f32 %v5566, %v5598
        %v5607 = vpack.c.bf16 %v5600, %v5599
        %v5608 = vpack.c.bf16 %v5602, %v5601
        %v5609 = vpack.c.bf16 %v5604, %v5603
        %v5610 = vpack.c.bf16 %v5606, %v5605
        %v5612 = vsel %vm4816, %v5607, 0
        %v5615 = vsel %vm4816, %v5608, 0
        %v5618 = vsel %vm4816, %v5609, 0
        %v5621 = vsel %vm4816, %v5610, 0
        %5623 = vmatprep.subr.bf16.mxu0 0
        %5624 = vmatpush1.bf16.msra.mxu0 %v4722
        %5625 = vmatprep.subr.bf16.mxu0 0
        %5626 = vmatpush1.bf16.msra.mxu0 %v4730
        %5627 = vmatprep.subr.bf16.mxu0 0
        %5628 = vmatpush1.bf16.msra.mxu0 %v4738
        %5629 = vmatprep.subr.bf16.mxu0 0
        %5630 = vmatpush1.bf16.msra.mxu0 %v4746
        %5631 = vmatprep.subr.bf16.mxu0 0
        %5632 = vmatpush1.bf16.msra.mxu0 0
        %5633 = vmatprep.subr.bf16.mxu0 0
        %5634 = vmatpush1.bf16.msra.mxu0 0
        %5635 = vmatprep.subr.bf16.mxu0 0
        %5636 = vmatpush1.bf16.msra.mxu0 0
        %5637 = vmatprep.subr.bf16.mxu0 0
        %5638 = vmatpush1.bf16.msra.mxu0 0
        %5639 = vmatprep.subr.bf16.mxu0 0
        %5640 = vmatpush1.bf16.msra.mxu0 0
        %5641 = vmatprep.subr.bf16.mxu0 0
        %5642 = vmatpush1.bf16.msra.mxu0 0
        %5643 = vmatprep.subr.bf16.mxu0 0
        %5644 = vmatpush1.bf16.msra.mxu0 0
        %5645 = vmatprep.subr.bf16.mxu0 0
        %5646 = vmatpush1.bf16.msra.mxu0 0
        %5647 = vmatprep.subr.bf16.mxu0 0
        %5648 = vmatpush1.bf16.msra.mxu0 0
        %5649 = vmatprep.subr.bf16.mxu0 0
        %5650 = vmatpush1.bf16.msra.mxu0 0
        %5651 = vmatprep.subr.bf16.mxu0 0
        %5652 = vmatpush1.bf16.msra.mxu0 0
        %5653 = vmatprep.subr.bf16.mxu0 0
        %5654 = vmatpush1.bf16.msra.mxu0 0
        %5655 = vmatprep.mubr.bf16.mxu0 0
        %5656 = vmatmul.mubr.bf16.gmra.mrb[0].mxu0 %v5612
        %v5657 = vpop.f32.mrb[0].mxu0
        %v5658 = vadd.f32 0.0, %v5657
        %v5659 = vpop.f32.mrb[0].mxu0
        %v5660 = vpop.f32.mrb[0].mxu0
        %v5661 = vadd.f32 0.0, %v5660
        %v5662 = vpop.f32.mrb[0].mxu0
        %5663 = vmatprep.mubr.bf16.mxu0 0
        %5664 = vmatmul.mubr.bf16.gmra.mrb[0].mxu0 %v5615
        %v5665 = vpop.f32.mrb[0].mxu0
        %v5666 = vadd.f32 0.0, %v5665
        %v5667 = vpop.f32.mrb[0].mxu0
        %v5668 = vpop.f32.mrb[0].mxu0
        %v5669 = vadd.f32 0.0, %v5668
        %v5670 = vpop.f32.mrb[0].mxu0
        %5671 = vmatprep.mubr.bf16.mxu0 0
        %5672 = vmatmul.mubr.bf16.gmra.mrb[0].mxu0 %v5618
        %v5673 = vpop.f32.mrb[0].mxu0
        %v5674 = vadd.f32 0.0, %v5673
        %v5675 = vpop.f32.mrb[0].mxu0
        %v5676 = vpop.f32.mrb[0].mxu0
        %v5677 = vadd.f32 0.0, %v5676
        %v5678 = vpop.f32.mrb[0].mxu0
        %5679 = vmatprep.mubr.bf16.mxu0 0
        %5680 = vmatmul.mubr.bf16.gmra.mrb[0].mxu0 %v5621
        %v5681 = vpop.f32.mrb[0].mxu0
        %v5682 = vadd.f32 0.0, %v5681
        %v5683 = vpop.f32.mrb[0].mxu0
        %v5684 = vpop.f32.mrb[0].mxu0
        %v5685 = vadd.f32 0.0, %v5684
        %v5686 = vpop.f32.mrb[0].mxu0
        %5687 = vdwg.mxu0
        %5688 = vmatprep.subr.bf16.mxu0 0
        %5689 = vmatpush1.bf16.xpose.msra.mxu0 %v4691
        %5690 = vmatprep.subr.bf16.mxu0 0
        %5691 = vmatpush1.bf16.xpose.msra.mxu0 %v4699
        %5692 = vmatprep.subr.bf16.mxu0 0
        %5693 = vmatpush1.bf16.xpose.msra.mxu0 %v4707
        %5694 = vmatprep.subr.bf16.mxu0 0
        %5695 = vmatpush1.bf16.xpose.msra.mxu0 %v4715
        %5696 = vmatprep.subr.bf16.mxu0 0
        %5697 = vmatpush1.bf16.xpose.msra.mxu0 0
        %5698 = vmatprep.subr.bf16.mxu0 0
        %5699 = vmatpush1.bf16.xpose.msra.mxu0 0
        %5700 = vmatprep.subr.bf16.mxu0 0
        %5701 = vmatpush1.bf16.xpose.msra.mxu0 0
        %5702 = vmatprep.subr.bf16.mxu0 0
        %5703 = vmatpush1.bf16.xpose.msra.mxu0 0
        %5704 = vmatprep.subr.bf16.mxu0 0
        %5705 = vmatpush1.bf16.xpose.msra.mxu0 0
        %5706 = vmatprep.subr.bf16.mxu0 0
        %5707 = vmatpush1.bf16.xpose.msra.mxu0 0
        %5708 = vmatprep.subr.bf16.mxu0 0
        %5709 = vmatpush1.bf16.xpose.msra.mxu0 0
        %5710 = vmatprep.subr.bf16.mxu0 0
        %5711 = vmatpush1.bf16.xpose.msra.mxu0 0
        %5712 = vmatprep.subr.bf16.mxu0 0
        %5713 = vmatpush1.bf16.xpose.msra.mxu0 0
        %5714 = vmatprep.subr.bf16.mxu0 0
        %5715 = vmatpush1.bf16.xpose.msra.mxu0 0
        %5716 = vmatprep.subr.bf16.mxu0 0
        %5717 = vmatpush1.bf16.xpose.msra.mxu0 0
        %5718 = vmatprep.subr.bf16.mxu0 0
        %5719 = vmatpush1.bf16.xpose.msra.mxu0 0
        %5720 = vmatprep.mubr.bf16.mxu0 0
        %5721 = vmatmul.mubr.bf16.gmra.mrb[0].mxu0 %v4659
        %v5722 = vpop.f32.mrb[0].mxu0
        %v5723 = vadd.f32 %v4647, %v5722
        %v5724 = vpop.f32.mrb[0].mxu0
        %v5725 = vpop.f32.mrb[0].mxu0
        %v5726 = vadd.f32 %v4648, %v5725
        %v5727 = vpop.f32.mrb[0].mxu0
        %5728 = vmatprep.mubr.bf16.mxu0 0
        %5729 = vmatmul.mubr.bf16.gmra.mrb[0].mxu0 %v4667
        %v5730 = vpop.f32.mrb[0].mxu0
        %v5731 = vadd.f32 %v4649, %v5730
        %v5732 = vpop.f32.mrb[0].mxu0
        %v5733 = vpop.f32.mrb[0].mxu0
        %v5734 = vadd.f32 %v4650, %v5733
        %v5735 = vpop.f32.mrb[0].mxu0
        %5736 = vmatprep.mubr.bf16.mxu0 0
        %5737 = vmatmul.mubr.bf16.gmra.mrb[0].mxu0 %v4675
        %v5738 = vpop.f32.mrb[0].mxu0
        %v5739 = vadd.f32 %v4651, %v5738
        %v5740 = vpop.f32.mrb[0].mxu0
        %v5741 = vpop.f32.mrb[0].mxu0
        %v5742 = vadd.f32 %v4652, %v5741
        %v5743 = vpop.f32.mrb[0].mxu0
        %5744 = vmatprep.mubr.bf16.mxu0 0
        %5745 = vmatmul.mubr.bf16.gmra.mrb[0].mxu0 %v4683
        %v5746 = vpop.f32.mrb[0].mxu0
        %v5747 = vadd.f32 %v4653, %v5746
        %v5748 = vpop.f32.mrb[0].mxu0
        %v5749 = vpop.f32.mrb[0].mxu0
        %v5750 = vadd.f32 %v4654, %v5749
        %v5751 = vpop.f32.mrb[0].mxu0
        %5752 = vdwg.mxu0
        %v5753 = vsel %vm4816, %v5723, -inf
        %5754 = vmax.xlane.f32.xlu0 %v5753
        %v5755 = vpop.xlane.xlu0 %5754
        %v5756 = vsel %vm4816, %v5726, -inf
        %5757 = vmax.xlane.f32.xlu0 %v5756
        %v5758 = vpop.xlane.xlu0 %5757
        %v5759 = vsel %vm4816, %v5731, -inf
        %5760 = vmax.xlane.f32.xlu0 %v5759
        %v5761 = vpop.xlane.xlu0 %5760
        %v5762 = vsel %vm4816, %v5734, -inf
        %5763 = vmax.xlane.f32.xlu0 %v5762
        %v5764 = vpop.xlane.xlu0 %5763
        %v5765 = vsel %vm4816, %v5739, -inf
        %5766 = vmax.xlane.f32.xlu0 %v5765
        %v5767 = vpop.xlane.xlu0 %5766
        %v5768 = vsel %vm4816, %v5742, -inf
        %5769 = vmax.xlane.f32.xlu0 %v5768
        %v5770 = vpop.xlane.xlu0 %5769
        %v5771 = vsel %vm4816, %v5747, -inf
        %5772 = vmax.xlane.f32.xlu0 %v5771
        %v5773 = vpop.xlane.xlu0 %5772
        %v5774 = vsel %vm4816, %v5750, -inf
        %5775 = vmax.xlane.f32.xlu0 %v5774
        %v5776 = vpop.xlane.xlu0 %5775
        %v5777 = vsub.f32 %v5723, %v5755
        %v5778 = vsub.f32 %v5726, %v5758
        %v5779 = vsub.f32 %v5731, %v5761
        %v5780 = vsub.f32 %v5734, %v5764
        %v5781 = vsub.f32 %v5739, %v5767
        %v5782 = vsub.f32 %v5742, %v5770
        %v5783 = vsub.f32 %v5747, %v5773
        %v5784 = vsub.f32 %v5750, %v5776
        %v5785 = vmul.f32 %v5777, 1.442695
        %v5786 = vpow.pop %v5785
        %v5787 = vmul.f32 %v5778, 1.442695
        %v5788 = vpow.pop %v5787
        %v5789 = vmul.f32 %v5779, 1.442695
        %v5790 = vpow.pop %v5789
        %v5791 = vmul.f32 %v5780, 1.442695
        %v5792 = vpow.pop %v5791
        %v5793 = vmul.f32 %v5781, 1.442695
        %v5794 = vpow.pop %v5793
        %v5795 = vmul.f32 %v5782, 1.442695
        %v5796 = vpow.pop %v5795
        %v5797 = vmul.f32 %v5783, 1.442695
        %v5798 = vpow.pop %v5797
        %v5799 = vmul.f32 %v5784, 1.442695
        %v5800 = vpow.pop %v5799
        %v5801 = vsel %vm4816, %v5786, 0.0
        %5802 = vadd.xlane.f32.xlu0 %v5801
        %v5803 = vpop.xlane.xlu0 %5802
        %v5804 = vsel %vm4816, %v5788, 0.0
        %5805 = vadd.xlane.f32.xlu0 %v5804
        %v5806 = vpop.xlane.xlu0 %5805
        %v5807 = vsel %vm4816, %v5790, 0.0
        %5808 = vadd.xlane.f32.xlu0 %v5807
        %v5809 = vpop.xlane.xlu0 %5808
        %v5810 = vsel %vm4816, %v5792, 0.0
        %5811 = vadd.xlane.f32.xlu0 %v5810
        %v5812 = vpop.xlane.xlu0 %5811
        %v5813 = vsel %vm4816, %v5794, 0.0
        %5814 = vadd.xlane.f32.xlu0 %v5813
        %v5815 = vpop.xlane.xlu0 %5814
        %v5816 = vsel %vm4816, %v5796, 0.0
        %5817 = vadd.xlane.f32.xlu0 %v5816
        %v5818 = vpop.xlane.xlu0 %5817
        %v5819 = vsel %vm4816, %v5798, 0.0
        %5820 = vadd.xlane.f32.xlu0 %v5819
        %v5821 = vpop.xlane.xlu0 %5820
        %v5822 = vsel %vm4816, %v5800, 0.0
        %5823 = vadd.xlane.f32.xlu0 %v5822
        %v5824 = vpop.xlane.xlu0 %5823
        %v5825 = vrcp.pop %v5803
        %v5826 = vrcp.pop %v5806
        %v5827 = vrcp.pop %v5809
        %v5828 = vrcp.pop %v5812
        %v5829 = vrcp.pop %v5815
        %v5830 = vrcp.pop %v5818
        %v5831 = vrcp.pop %v5821
        %v5832 = vrcp.pop %v5824
        %v5833 = vmul.f32 %v5786, %v5825
        %v5834 = vmul.f32 %v5788, %v5826
        %v5835 = vmul.f32 %v5790, %v5827
        %v5836 = vmul.f32 %v5792, %v5828
        %v5837 = vmul.f32 %v5794, %v5829
        %v5838 = vmul.f32 %v5796, %v5830
        %v5839 = vmul.f32 %v5798, %v5831
        %v5840 = vmul.f32 %v5800, %v5832
        %v5841 = vpack.c.bf16 %v5834, %v5833
        %v5842 = vpack.c.bf16 %v5836, %v5835
        %v5843 = vpack.c.bf16 %v5838, %v5837
        %v5844 = vpack.c.bf16 %v5840, %v5839
        %v5846 = vsel %vm4816, %v5841, 0
        %v5849 = vsel %vm4816, %v5842, 0
        %v5852 = vsel %vm4816, %v5843, 0
        %v5855 = vsel %vm4816, %v5844, 0
        %5857 = vmatprep.subr.bf16.mxu0 0
        %5858 = vmatpush1.bf16.msra.mxu0 %v4723
        %5859 = vmatprep.subr.bf16.mxu0 0
        %5860 = vmatpush1.bf16.msra.mxu0 %v4731
        %5861 = vmatprep.subr.bf16.mxu0 0
        %5862 = vmatpush1.bf16.msra.mxu0 %v4739
        %5863 = vmatprep.subr.bf16.mxu0 0
        %5864 = vmatpush1.bf16.msra.mxu0 %v4747
        %5865 = vmatprep.subr.bf16.mxu0 0
        %5866 = vmatpush1.bf16.msra.mxu0 0
        %5867 = vmatprep.subr.bf16.mxu0 0
        %5868 = vmatpush1.bf16.msra.mxu0 0
        %5869 = vmatprep.subr.bf16.mxu0 0
        %5870 = vmatpush1.bf16.msra.mxu0 0
        %5871 = vmatprep.subr.bf16.mxu0 0
        %5872 = vmatpush1.bf16.msra.mxu0 0
        %5873 = vmatprep.subr.bf16.mxu0 0
        %5874 = vmatpush1.bf16.msra.mxu0 0
        %5875 = vmatprep.subr.bf16.mxu0 0
        %5876 = vmatpush1.bf16.msra.mxu0 0
        %5877 = vmatprep.subr.bf16.mxu0 0
        %5878 = vmatpush1.bf16.msra.mxu0 0
        %5879 = vmatprep.subr.bf16.mxu0 0
        %5880 = vmatpush1.bf16.msra.mxu0 0
        %5881 = vmatprep.subr.bf16.mxu0 0
        %5882 = vmatpush1.bf16.msra.mxu0 0
        %5883 = vmatprep.subr.bf16.mxu0 0
        %5884 = vmatpush1.bf16.msra.mxu0 0
        %5885 = vmatprep.subr.bf16.mxu0 0
        %5886 = vmatpush1.bf16.msra.mxu0 0
        %5887 = vmatprep.subr.bf16.mxu0 0
        %5888 = vmatpush1.bf16.msra.mxu0 0
        %5889 = vmatprep.mubr.bf16.mxu0 0
        %5890 = vmatmul.mubr.bf16.gmra.mrb[0].mxu0 %v5846
        %v5891 = vpop.f32.mrb[0].mxu0
        %v5892 = vadd.f32 0.0, %v5891
        %v5893 = vpop.f32.mrb[0].mxu0
        %v5894 = vpop.f32.mrb[0].mxu0
        %v5895 = vadd.f32 0.0, %v5894
        %v5896 = vpop.f32.mrb[0].mxu0
        %5897 = vmatprep.mubr.bf16.mxu0 0
        %5898 = vmatmul.mubr.bf16.gmra.mrb[0].mxu0 %v5849
        %v5899 = vpop.f32.mrb[0].mxu0
        %v5900 = vadd.f32 0.0, %v5899
        %v5901 = vpop.f32.mrb[0].mxu0
        %v5902 = vpop.f32.mrb[0].mxu0
        %v5903 = vadd.f32 0.0, %v5902
        %v5904 = vpop.f32.mrb[0].mxu0
        %5905 = vmatprep.mubr.bf16.mxu0 0
        %5906 = vmatmul.mubr.bf16.gmra.mrb[0].mxu0 %v5852
        %v5907 = vpop.f32.mrb[0].mxu0
        %v5908 = vadd.f32 0.0, %v5907
        %v5909 = vpop.f32.mrb[0].mxu0
        %v5910 = vpop.f32.mrb[0].mxu0
        %v5911 = vadd.f32 0.0, %v5910
        %v5912 = vpop.f32.mrb[0].mxu0
        %5913 = vmatprep.mubr.bf16.mxu0 0
        %5914 = vmatmul.mubr.bf16.gmra.mrb[0].mxu0 %v5855
        %v5915 = vpop.f32.mrb[0].mxu0
        %v5916 = vadd.f32 0.0, %v5915
        %v5917 = vpop.f32.mrb[0].mxu0
        %v5918 = vpop.f32.mrb[0].mxu0
        %v5919 = vadd.f32 0.0, %v5918
        %v5920 = vpop.f32.mrb[0].mxu0
        %5921 = vdwg.mxu0
        %5922 = vmatprep.subr.bf16.mxu0 0
        %5923 = vmatpush1.bf16.xpose.msra.mxu0 %v4692
        %5924 = vmatprep.subr.bf16.mxu0 0
        %5925 = vmatpush1.bf16.xpose.msra.mxu0 %v4700
        %5926 = vmatprep.subr.bf16.mxu0 0
        %5927 = vmatpush1.bf16.xpose.msra.mxu0 %v4708
        %5928 = vmatprep.subr.bf16.mxu0 0
        %5929 = vmatpush1.bf16.xpose.msra.mxu0 %v4716
        %5930 = vmatprep.subr.bf16.mxu0 0
        %5931 = vmatpush1.bf16.xpose.msra.mxu0 0
        %5932 = vmatprep.subr.bf16.mxu0 0
        %5933 = vmatpush1.bf16.xpose.msra.mxu0 0
        %5934 = vmatprep.subr.bf16.mxu0 0
        %5935 = vmatpush1.bf16.xpose.msra.mxu0 0
        %5936 = vmatprep.subr.bf16.mxu0 0
        %5937 = vmatpush1.bf16.xpose.msra.mxu0 0
        %5938 = vmatprep.subr.bf16.mxu0 0
        %5939 = vmatpush1.bf16.xpose.msra.mxu0 0
        %5940 = vmatprep.subr.bf16.mxu0 0
        %5941 = vmatpush1.bf16.xpose.msra.mxu0 0
        %5942 = vmatprep.subr.bf16.mxu0 0
        %5943 = vmatpush1.bf16.xpose.msra.mxu0 0
        %5944 = vmatprep.subr.bf16.mxu0 0
        %5945 = vmatpush1.bf16.xpose.msra.mxu0 0
        %5946 = vmatprep.subr.bf16.mxu0 0
        %5947 = vmatpush1.bf16.xpose.msra.mxu0 0
        %5948 = vmatprep.subr.bf16.mxu0 0
        %5949 = vmatpush1.bf16.xpose.msra.mxu0 0
        %5950 = vmatprep.subr.bf16.mxu0 0
        %5951 = vmatpush1.bf16.xpose.msra.mxu0 0
        %5952 = vmatprep.subr.bf16.mxu0 0
        %5953 = vmatpush1.bf16.xpose.msra.mxu0 0
        %5954 = vmatprep.mubr.bf16.mxu0 0
        %5955 = vmatmul.mubr.bf16.gmra.mrb[0].mxu0 %v4660
        %v5956 = vpop.f32.mrb[0].mxu0
        %v5957 = vadd.f32 %v4647, %v5956
        %v5958 = vpop.f32.mrb[0].mxu0
        %v5959 = vpop.f32.mrb[0].mxu0
        %v5960 = vadd.f32 %v4648, %v5959
        %v5961 = vpop.f32.mrb[0].mxu0
        %5962 = vmatprep.mubr.bf16.mxu0 0
        %5963 = vmatmul.mubr.bf16.gmra.mrb[0].mxu0 %v4668
        %v5964 = vpop.f32.mrb[0].mxu0
        %v5965 = vadd.f32 %v4649, %v5964
        %v5966 = vpop.f32.mrb[0].mxu0
        %v5967 = vpop.f32.mrb[0].mxu0
        %v5968 = vadd.f32 %v4650, %v5967
        %v5969 = vpop.f32.mrb[0].mxu0
        %5970 = vmatprep.mubr.bf16.mxu0 0
        %5971 = vmatmul.mubr.bf16.gmra.mrb[0].mxu0 %v4676
        %v5972 = vpop.f32.mrb[0].mxu0
        %v5973 = vadd.f32 %v4651, %v5972
        %v5974 = vpop.f32.mrb[0].mxu0
        %v5975 = vpop.f32.mrb[0].mxu0
        %v5976 = vadd.f32 %v4652, %v5975
        %v5977 = vpop.f32.mrb[0].mxu0
        %5978 = vmatprep.mubr.bf16.mxu0 0
        %5979 = vmatmul.mubr.bf16.gmra.mrb[0].mxu0 %v4684
        %v5980 = vpop.f32.mrb[0].mxu0
        %v5981 = vadd.f32 %v4653, %v5980
        %v5982 = vpop.f32.mrb[0].mxu0
        %v5983 = vpop.f32.mrb[0].mxu0
        %v5984 = vadd.f32 %v4654, %v5983
        %v5985 = vpop.f32.mrb[0].mxu0
        %5986 = vdwg.mxu0
        %v5987 = vsel %vm4816, %v5957, -inf
        %5988 = vmax.xlane.f32.xlu0 %v5987
        %v5989 = vpop.xlane.xlu0 %5988
        %v5990 = vsel %vm4816, %v5960, -inf
        %5991 = vmax.xlane.f32.xlu0 %v5990
        %v5992 = vpop.xlane.xlu0 %5991
        %v5993 = vsel %vm4816, %v5965, -inf
        %5994 = vmax.xlane.f32.xlu0 %v5993
        %v5995 = vpop.xlane.xlu0 %5994
        %v5996 = vsel %vm4816, %v5968, -inf
        %5997 = vmax.xlane.f32.xlu0 %v5996
        %v5998 = vpop.xlane.xlu0 %5997
        %v5999 = vsel %vm4816, %v5973, -inf
        %6000 = vmax.xlane.f32.xlu0 %v5999
        %v6001 = vpop.xlane.xlu0 %6000
        %v6002 = vsel %vm4816, %v5976, -inf
        %6003 = vmax.xlane.f32.xlu0 %v6002
        %v6004 = vpop.xlane.xlu0 %6003
        %v6005 = vsel %vm4816, %v5981, -inf
        %6006 = vmax.xlane.f32.xlu0 %v6005
        %v6007 = vpop.xlane.xlu0 %6006
        %v6008 = vsel %vm4816, %v5984, -inf
        %6009 = vmax.xlane.f32.xlu0 %v6008
        %v6010 = vpop.xlane.xlu0 %6009
        %v6011 = vsub.f32 %v5957, %v5989
        %v6012 = vsub.f32 %v5960, %v5992
        %v6013 = vsub.f32 %v5965, %v5995
        %v6014 = vsub.f32 %v5968, %v5998
        %v6015 = vsub.f32 %v5973, %v6001
        %v6016 = vsub.f32 %v5976, %v6004
        %v6017 = vsub.f32 %v5981, %v6007
        %v6018 = vsub.f32 %v5984, %v6010
        %v6019 = vmul.f32 %v6011, 1.442695
        %v6020 = vpow.pop %v6019
        %v6021 = vmul.f32 %v6012, 1.442695
        %v6022 = vpow.pop %v6021
        %v6023 = vmul.f32 %v6013, 1.442695
        %v6024 = vpow.pop %v6023
        %v6025 = vmul.f32 %v6014, 1.442695
        %v6026 = vpow.pop %v6025
        %v6027 = vmul.f32 %v6015, 1.442695
        %v6028 = vpow.pop %v6027
        %v6029 = vmul.f32 %v6016, 1.442695
        %v6030 = vpow.pop %v6029
        %v6031 = vmul.f32 %v6017, 1.442695
        %v6032 = vpow.pop %v6031
        %v6033 = vmul.f32 %v6018, 1.442695
        %v6034 = vpow.pop %v6033
        %v6035 = vsel %vm4816, %v6020, 0.0
        %6036 = vadd.xlane.f32.xlu0 %v6035
        %v6037 = vpop.xlane.xlu0 %6036
        %v6038 = vsel %vm4816, %v6022, 0.0
        %6039 = vadd.xlane.f32.xlu0 %v6038
        %v6040 = vpop.xlane.xlu0 %6039
        %v6041 = vsel %vm4816, %v6024, 0.0
        %6042 = vadd.xlane.f32.xlu0 %v6041
        %v6043 = vpop.xlane.xlu0 %6042
        %v6044 = vsel %vm4816, %v6026, 0.0
        %6045 = vadd.xlane.f32.xlu0 %v6044
        %v6046 = vpop.xlane.xlu0 %6045
        %v6047 = vsel %vm4816, %v6028, 0.0
        %6048 = vadd.xlane.f32.xlu0 %v6047
        %v6049 = vpop.xlane.xlu0 %6048
        %v6050 = vsel %vm4816, %v6030, 0.0
        %6051 = vadd.xlane.f32.xlu0 %v6050
        %v6052 = vpop.xlane.xlu0 %6051
        %v6053 = vsel %vm4816, %v6032, 0.0
        %6054 = vadd.xlane.f32.xlu0 %v6053
        %v6055 = vpop.xlane.xlu0 %6054
        %v6056 = vsel %vm4816, %v6034, 0.0
        %6057 = vadd.xlane.f32.xlu0 %v6056
        %v6058 = vpop.xlane.xlu0 %6057
        %v6059 = vrcp.pop %v6037
        %v6060 = vrcp.pop %v6040
        %v6061 = vrcp.pop %v6043
        %v6062 = vrcp.pop %v6046
        %v6063 = vrcp.pop %v6049
        %v6064 = vrcp.pop %v6052
        %v6065 = vrcp.pop %v6055
        %v6066 = vrcp.pop %v6058
        %v6067 = vmul.f32 %v6020, %v6059
        %v6068 = vmul.f32 %v6022, %v6060
        %v6069 = vmul.f32 %v6024, %v6061
        %v6070 = vmul.f32 %v6026, %v6062
        %v6071 = vmul.f32 %v6028, %v6063
        %v6072 = vmul.f32 %v6030, %v6064
        %v6073 = vmul.f32 %v6032, %v6065
        %v6074 = vmul.f32 %v6034, %v6066
        %v6075 = vpack.c.bf16 %v6068, %v6067
        %v6076 = vpack.c.bf16 %v6070, %v6069
        %v6077 = vpack.c.bf16 %v6072, %v6071
        %v6078 = vpack.c.bf16 %v6074, %v6073
        %v6080 = vsel %vm4816, %v6075, 0
        %v6083 = vsel %vm4816, %v6076, 0
        %v6086 = vsel %vm4816, %v6077, 0
        %v6089 = vsel %vm4816, %v6078, 0
        %6091 = vmatprep.subr.bf16.mxu0 0
        %6092 = vmatpush1.bf16.msra.mxu0 %v4724
        %6093 = vmatprep.subr.bf16.mxu0 0
        %6094 = vmatpush1.bf16.msra.mxu0 %v4732
        %6095 = vmatprep.subr.bf16.mxu0 0
        %6096 = vmatpush1.bf16.msra.mxu0 %v4740
        %6097 = vmatprep.subr.bf16.mxu0 0
        %6098 = vmatpush1.bf16.msra.mxu0 %v4748
        %6099 = vmatprep.subr.bf16.mxu0 0
        %6100 = vmatpush1.bf16.msra.mxu0 0
        %6101 = vmatprep.subr.bf16.mxu0 0
        %6102 = vmatpush1.bf16.msra.mxu0 0
        %6103 = vmatprep.subr.bf16.mxu0 0
        %6104 = vmatpush1.bf16.msra.mxu0 0
        %6105 = vmatprep.subr.bf16.mxu0 0
        %6106 = vmatpush1.bf16.msra.mxu0 0
        %6107 = vmatprep.subr.bf16.mxu0 0
        %6108 = vmatpush1.bf16.msra.mxu0 0
        %6109 = vmatprep.subr.bf16.mxu0 0
        %6110 = vmatpush1.bf16.msra.mxu0 0
        %6111 = vmatprep.subr.bf16.mxu0 0
        %6112 = vmatpush1.bf16.msra.mxu0 0
        %6113 = vmatprep.subr.bf16.mxu0 0
        %6114 = vmatpush1.bf16.msra.mxu0 0
        %6115 = vmatprep.subr.bf16.mxu0 0
        %6116 = vmatpush1.bf16.msra.mxu0 0
        %6117 = vmatprep.subr.bf16.mxu0 0
        %6118 = vmatpush1.bf16.msra.mxu0 0
        %6119 = vmatprep.subr.bf16.mxu0 0
        %6120 = vmatpush1.bf16.msra.mxu0 0
        %6121 = vmatprep.subr.bf16.mxu0 0
        %6122 = vmatpush1.bf16.msra.mxu0 0
        %6123 = vmatprep.mubr.bf16.mxu0 0
        %6124 = vmatmul.mubr.bf16.gmra.mrb[0].mxu0 %v6080
        %v6125 = vpop.f32.mrb[0].mxu0
        %v6126 = vadd.f32 0.0, %v6125
        %v6127 = vpop.f32.mrb[0].mxu0
        %v6128 = vpop.f32.mrb[0].mxu0
        %v6129 = vadd.f32 0.0, %v6128
        %v6130 = vpop.f32.mrb[0].mxu0
        %6131 = vmatprep.mubr.bf16.mxu0 0
        %6132 = vmatmul.mubr.bf16.gmra.mrb[0].mxu0 %v6083
        %v6133 = vpop.f32.mrb[0].mxu0
        %v6134 = vadd.f32 0.0, %v6133
        %v6135 = vpop.f32.mrb[0].mxu0
        %v6136 = vpop.f32.mrb[0].mxu0
        %v6137 = vadd.f32 0.0, %v6136
        %v6138 = vpop.f32.mrb[0].mxu0
        %6139 = vmatprep.mubr.bf16.mxu0 0
        %6140 = vmatmul.mubr.bf16.gmra.mrb[0].mxu0 %v6086
        %v6141 = vpop.f32.mrb[0].mxu0
        %v6142 = vadd.f32 0.0, %v6141
        %v6143 = vpop.f32.mrb[0].mxu0
        %v6144 = vpop.f32.mrb[0].mxu0
        %v6145 = vadd.f32 0.0, %v6144
        %v6146 = vpop.f32.mrb[0].mxu0
        %6147 = vmatprep.mubr.bf16.mxu0 0
        %6148 = vmatmul.mubr.bf16.gmra.mrb[0].mxu0 %v6089
        %v6149 = vpop.f32.mrb[0].mxu0
        %v6150 = vadd.f32 0.0, %v6149
        %v6151 = vpop.f32.mrb[0].mxu0
        %v6152 = vpop.f32.mrb[0].mxu0
        %v6153 = vadd.f32 0.0, %v6152
        %v6154 = vpop.f32.mrb[0].mxu0
        %6155 = vdwg.mxu0
        %6156 = vmatprep.subr.bf16.mxu0 0
        %6157 = vmatpush1.bf16.xpose.msra.mxu0 %v4693
        %6158 = vmatprep.subr.bf16.mxu0 0
        %6159 = vmatpush1.bf16.xpose.msra.mxu0 %v4701
        %6160 = vmatprep.subr.bf16.mxu0 0
        %6161 = vmatpush1.bf16.xpose.msra.mxu0 %v4709
        %6162 = vmatprep.subr.bf16.mxu0 0
        %6163 = vmatpush1.bf16.xpose.msra.mxu0 %v4717
        %6164 = vmatprep.subr.bf16.mxu0 0
        %6165 = vmatpush1.bf16.xpose.msra.mxu0 0
        %6166 = vmatprep.subr.bf16.mxu0 0
        %6167 = vmatpush1.bf16.xpose.msra.mxu0 0
        %6168 = vmatprep.subr.bf16.mxu0 0
        %6169 = vmatpush1.bf16.xpose.msra.mxu0 0
        %6170 = vmatprep.subr.bf16.mxu0 0
        %6171 = vmatpush1.bf16.xpose.msra.mxu0 0
        %6172 = vmatprep.subr.bf16.mxu0 0
        %6173 = vmatpush1.bf16.xpose.msra.mxu0 0
        %6174 = vmatprep.subr.bf16.mxu0 0
        %6175 = vmatpush1.bf16.xpose.msra.mxu0 0
        %6176 = vmatprep.subr.bf16.mxu0 0
        %6177 = vmatpush1.bf16.xpose.msra.mxu0 0
        %6178 = vmatprep.subr.bf16.mxu0 0
        %6179 = vmatpush1.bf16.xpose.msra.mxu0 0
        %6180 = vmatprep.subr.bf16.mxu0 0
        %6181 = vmatpush1.bf16.xpose.msra.mxu0 0
        %6182 = vmatprep.subr.bf16.mxu0 0
        %6183 = vmatpush1.bf16.xpose.msra.mxu0 0
        %6184 = vmatprep.subr.bf16.mxu0 0
        %6185 = vmatpush1.bf16.xpose.msra.mxu0 0
        %6186 = vmatprep.subr.bf16.mxu0 0
        %6187 = vmatpush1.bf16.xpose.msra.mxu0 0
        %6188 = vmatprep.mubr.bf16.mxu0 0
        %6189 = vmatmul.mubr.bf16.gmra.mrb[0].mxu0 %v4661
        %v6190 = vpop.f32.mrb[0].mxu0
        %v6191 = vadd.f32 %v4647, %v6190
        %v6192 = vpop.f32.mrb[0].mxu0
        %v6193 = vpop.f32.mrb[0].mxu0
        %v6194 = vadd.f32 %v4648, %v6193
        %v6195 = vpop.f32.mrb[0].mxu0
        %6196 = vmatprep.mubr.bf16.mxu0 0
        %6197 = vmatmul.mubr.bf16.gmra.mrb[0].mxu0 %v4669
        %v6198 = vpop.f32.mrb[0].mxu0
        %v6199 = vadd.f32 %v4649, %v6198
        %v6200 = vpop.f32.mrb[0].mxu0
        %v6201 = vpop.f32.mrb[0].mxu0
        %v6202 = vadd.f32 %v4650, %v6201
        %v6203 = vpop.f32.mrb[0].mxu0
        %6204 = vmatprep.mubr.bf16.mxu0 0
        %6205 = vmatmul.mubr.bf16.gmra.mrb[0].mxu0 %v4677
        %v6206 = vpop.f32.mrb[0].mxu0
        %v6207 = vadd.f32 %v4651, %v6206
        %v6208 = vpop.f32.mrb[0].mxu0
        %v6209 = vpop.f32.mrb[0].mxu0
        %v6210 = vadd.f32 %v4652, %v6209
        %v6211 = vpop.f32.mrb[0].mxu0
        %6212 = vmatprep.mubr.bf16.mxu0 0
        %6213 = vmatmul.mubr.bf16.gmra.mrb[0].mxu0 %v4685
        %v6214 = vpop.f32.mrb[0].mxu0
        %v6215 = vadd.f32 %v4653, %v6214
        %v6216 = vpop.f32.mrb[0].mxu0
        %v6217 = vpop.f32.mrb[0].mxu0
        %v6218 = vadd.f32 %v4654, %v6217
        %v6219 = vpop.f32.mrb[0].mxu0
        %6220 = vdwg.mxu0
        %v6221 = vsel %vm4816, %v6191, -inf
        %6222 = vmax.xlane.f32.xlu0 %v6221
        %v6223 = vpop.xlane.xlu0 %6222
        %v6224 = vsel %vm4816, %v6194, -inf
        %6225 = vmax.xlane.f32.xlu0 %v6224
        %v6226 = vpop.xlane.xlu0 %6225
        %v6227 = vsel %vm4816, %v6199, -inf
        %6228 = vmax.xlane.f32.xlu0 %v6227
        %v6229 = vpop.xlane.xlu0 %6228
        %v6230 = vsel %vm4816, %v6202, -inf
        %6231 = vmax.xlane.f32.xlu0 %v6230
        %v6232 = vpop.xlane.xlu0 %6231
        %v6233 = vsel %vm4816, %v6207, -inf
        %6234 = vmax.xlane.f32.xlu0 %v6233
        %v6235 = vpop.xlane.xlu0 %6234
        %v6236 = vsel %vm4816, %v6210, -inf
        %6237 = vmax.xlane.f32.xlu0 %v6236
        %v6238 = vpop.xlane.xlu0 %6237
        %v6239 = vsel %vm4816, %v6215, -inf
        %6240 = vmax.xlane.f32.xlu0 %v6239
        %v6241 = vpop.xlane.xlu0 %6240
        %v6242 = vsel %vm4816, %v6218, -inf
        %6243 = vmax.xlane.f32.xlu0 %v6242
        %v6244 = vpop.xlane.xlu0 %6243
        %v6245 = vsub.f32 %v6191, %v6223
        %v6246 = vsub.f32 %v6194, %v6226
        %v6247 = vsub.f32 %v6199, %v6229
        %v6248 = vsub.f32 %v6202, %v6232
        %v6249 = vsub.f32 %v6207, %v6235
        %v6250 = vsub.f32 %v6210, %v6238
        %v6251 = vsub.f32 %v6215, %v6241
        %v6252 = vsub.f32 %v6218, %v6244
        %v6253 = vmul.f32 %v6245, 1.442695
        %v6254 = vpow.pop %v6253
        %v6255 = vmul.f32 %v6246, 1.442695
        %v6256 = vpow.pop %v6255
        %v6257 = vmul.f32 %v6247, 1.442695
        %v6258 = vpow.pop %v6257
        %v6259 = vmul.f32 %v6248, 1.442695
        %v6260 = vpow.pop %v6259
        %v6261 = vmul.f32 %v6249, 1.442695
        %v6262 = vpow.pop %v6261
        %v6263 = vmul.f32 %v6250, 1.442695
        %v6264 = vpow.pop %v6263
        %v6265 = vmul.f32 %v6251, 1.442695
        %v6266 = vpow.pop %v6265
        %v6267 = vmul.f32 %v6252, 1.442695
        %v6268 = vpow.pop %v6267
        %v6269 = vsel %vm4816, %v6254, 0.0
        %6270 = vadd.xlane.f32.xlu0 %v6269
        %v6271 = vpop.xlane.xlu0 %6270
        %v6272 = vsel %vm4816, %v6256, 0.0
        %6273 = vadd.xlane.f32.xlu0 %v6272
        %v6274 = vpop.xlane.xlu0 %6273
        %v6275 = vsel %vm4816, %v6258, 0.0
        %6276 = vadd.xlane.f32.xlu0 %v6275
        %v6277 = vpop.xlane.xlu0 %6276
        %v6278 = vsel %vm4816, %v6260, 0.0
        %6279 = vadd.xlane.f32.xlu0 %v6278
        %v6280 = vpop.xlane.xlu0 %6279
        %v6281 = vsel %vm4816, %v6262, 0.0
        %6282 = vadd.xlane.f32.xlu0 %v6281
        %v6283 = vpop.xlane.xlu0 %6282
        %v6284 = vsel %vm4816, %v6264, 0.0
        %6285 = vadd.xlane.f32.xlu0 %v6284
        %v6286 = vpop.xlane.xlu0 %6285
        %v6287 = vsel %vm4816, %v6266, 0.0
        %6288 = vadd.xlane.f32.xlu0 %v6287
        %v6289 = vpop.xlane.xlu0 %6288
        %v6290 = vsel %vm4816, %v6268, 0.0
        %6291 = vadd.xlane.f32.xlu0 %v6290
        %v6292 = vpop.xlane.xlu0 %6291
        %v6293 = vrcp.pop %v6271
        %v6294 = vrcp.pop %v6274
        %v6295 = vrcp.pop %v6277
        %v6296 = vrcp.pop %v6280
        %v6297 = vrcp.pop %v6283
        %v6298 = vrcp.pop %v6286
        %v6299 = vrcp.pop %v6289
        %v6300 = vrcp.pop %v6292
        %v6301 = vmul.f32 %v6254, %v6293
        %v6302 = vmul.f32 %v6256, %v6294
        %v6303 = vmul.f32 %v6258, %v6295
        %v6304 = vmul.f32 %v6260, %v6296
        %v6305 = vmul.f32 %v6262, %v6297
        %v6306 = vmul.f32 %v6264, %v6298
        %v6307 = vmul.f32 %v6266, %v6299
        %v6308 = vmul.f32 %v6268, %v6300
        %v6309 = vpack.c.bf16 %v6302, %v6301
        %v6310 = vpack.c.bf16 %v6304, %v6303
        %v6311 = vpack.c.bf16 %v6306, %v6305
        %v6312 = vpack.c.bf16 %v6308, %v6307
        %v6314 = vsel %vm4816, %v6309, 0
        %v6317 = vsel %vm4816, %v6310, 0
        %v6320 = vsel %vm4816, %v6311, 0
        %v6323 = vsel %vm4816, %v6312, 0
        %6325 = vmatprep.subr.bf16.mxu0 0
        %6326 = vmatpush1.bf16.msra.mxu0 %v4725
        %6327 = vmatprep.subr.bf16.mxu0 0
        %6328 = vmatpush1.bf16.msra.mxu0 %v4733
        %6329 = vmatprep.subr.bf16.mxu0 0
        %6330 = vmatpush1.bf16.msra.mxu0 %v4741
        %6331 = vmatprep.subr.bf16.mxu0 0
        %6332 = vmatpush1.bf16.msra.mxu0 %v4749
        %6333 = vmatprep.subr.bf16.mxu0 0
        %6334 = vmatpush1.bf16.msra.mxu0 0
        %6335 = vmatprep.subr.bf16.mxu0 0
        %6336 = vmatpush1.bf16.msra.mxu0 0
        %6337 = vmatprep.subr.bf16.mxu0 0
        %6338 = vmatpush1.bf16.msra.mxu0 0
        %6339 = vmatprep.subr.bf16.mxu0 0
        %6340 = vmatpush1.bf16.msra.mxu0 0
        %6341 = vmatprep.subr.bf16.mxu0 0
        %6342 = vmatpush1.bf16.msra.mxu0 0
        %6343 = vmatprep.subr.bf16.mxu0 0
        %6344 = vmatpush1.bf16.msra.mxu0 0
        %6345 = vmatprep.subr.bf16.mxu0 0
        %6346 = vmatpush1.bf16.msra.mxu0 0
        %6347 = vmatprep.subr.bf16.mxu0 0
        %6348 = vmatpush1.bf16.msra.mxu0 0
        %6349 = vmatprep.subr.bf16.mxu0 0
        %6350 = vmatpush1.bf16.msra.mxu0 0
        %6351 = vmatprep.subr.bf16.mxu0 0
        %6352 = vmatpush1.bf16.msra.mxu0 0
        %6353 = vmatprep.subr.bf16.mxu0 0
        %6354 = vmatpush1.bf16.msra.mxu0 0
        %6355 = vmatprep.subr.bf16.mxu0 0
        %6356 = vmatpush1.bf16.msra.mxu0 0
        %6357 = vmatprep.mubr.bf16.mxu0 0
        %6358 = vmatmul.mubr.bf16.gmra.mrb[0].mxu0 %v6314
        %v6359 = vpop.f32.mrb[0].mxu0
        %v6360 = vadd.f32 0.0, %v6359
        %v6361 = vpop.f32.mrb[0].mxu0
        %v6362 = vpop.f32.mrb[0].mxu0
        %v6363 = vadd.f32 0.0, %v6362
        %v6364 = vpop.f32.mrb[0].mxu0
        %6365 = vmatprep.mubr.bf16.mxu0 0
        %6366 = vmatmul.mubr.bf16.gmra.mrb[0].mxu0 %v6317
        %v6367 = vpop.f32.mrb[0].mxu0
        %v6368 = vadd.f32 0.0, %v6367
        %v6369 = vpop.f32.mrb[0].mxu0
        %v6370 = vpop.f32.mrb[0].mxu0
        %v6371 = vadd.f32 0.0, %v6370
        %v6372 = vpop.f32.mrb[0].mxu0
        %6373 = vmatprep.mubr.bf16.mxu0 0
        %6374 = vmatmul.mubr.bf16.gmra.mrb[0].mxu0 %v6320
        %v6375 = vpop.f32.mrb[0].mxu0
        %v6376 = vadd.f32 0.0, %v6375
        %v6377 = vpop.f32.mrb[0].mxu0
        %v6378 = vpop.f32.mrb[0].mxu0
        %v6379 = vadd.f32 0.0, %v6378
        %v6380 = vpop.f32.mrb[0].mxu0
        %6381 = vmatprep.mubr.bf16.mxu0 0
        %6382 = vmatmul.mubr.bf16.gmra.mrb[0].mxu0 %v6323
        %v6383 = vpop.f32.mrb[0].mxu0
        %v6384 = vadd.f32 0.0, %v6383
        %v6385 = vpop.f32.mrb[0].mxu0
        %v6386 = vpop.f32.mrb[0].mxu0
        %v6387 = vadd.f32 0.0, %v6386
        %v6388 = vpop.f32.mrb[0].mxu0
        %6389 = vdwg.mxu0
        %6390 = vmatprep.subr.bf16.mxu0 0
        %6391 = vmatpush1.bf16.xpose.msra.mxu0 %v4694
        %6392 = vmatprep.subr.bf16.mxu0 0
        %6393 = vmatpush1.bf16.xpose.msra.mxu0 %v4702
        %6394 = vmatprep.subr.bf16.mxu0 0
        %6395 = vmatpush1.bf16.xpose.msra.mxu0 %v4710
        %6396 = vmatprep.subr.bf16.mxu0 0
        %6397 = vmatpush1.bf16.xpose.msra.mxu0 %v4718
        %6398 = vmatprep.subr.bf16.mxu0 0
        %6399 = vmatpush1.bf16.xpose.msra.mxu0 0
        %6400 = vmatprep.subr.bf16.mxu0 0
        %6401 = vmatpush1.bf16.xpose.msra.mxu0 0
        %6402 = vmatprep.subr.bf16.mxu0 0
        %6403 = vmatpush1.bf16.xpose.msra.mxu0 0
        %6404 = vmatprep.subr.bf16.mxu0 0
        %6405 = vmatpush1.bf16.xpose.msra.mxu0 0
        %6406 = vmatprep.subr.bf16.mxu0 0
        %6407 = vmatpush1.bf16.xpose.msra.mxu0 0
        %6408 = vmatprep.subr.bf16.mxu0 0
        %6409 = vmatpush1.bf16.xpose.msra.mxu0 0
        %6410 = vmatprep.subr.bf16.mxu0 0
        %6411 = vmatpush1.bf16.xpose.msra.mxu0 0
        %6412 = vmatprep.subr.bf16.mxu0 0
        %6413 = vmatpush1.bf16.xpose.msra.mxu0 0
        %6414 = vmatprep.subr.bf16.mxu0 0
        %6415 = vmatpush1.bf16.xpose.msra.mxu0 0
        %6416 = vmatprep.subr.bf16.mxu0 0
        %6417 = vmatpush1.bf16.xpose.msra.mxu0 0
        %6418 = vmatprep.subr.bf16.mxu0 0
        %6419 = vmatpush1.bf16.xpose.msra.mxu0 0
        %6420 = vmatprep.subr.bf16.mxu0 0
        %6421 = vmatpush1.bf16.xpose.msra.mxu0 0
        %6422 = vmatprep.mubr.bf16.mxu0 0
        %6423 = vmatmul.mubr.bf16.gmra.mrb[0].mxu0 %v4662
        %v6424 = vpop.f32.mrb[0].mxu0
        %v6425 = vadd.f32 %v4647, %v6424
        %v6426 = vpop.f32.mrb[0].mxu0
        %v6427 = vpop.f32.mrb[0].mxu0
        %v6428 = vadd.f32 %v4648, %v6427
        %v6429 = vpop.f32.mrb[0].mxu0
        %6430 = vmatprep.mubr.bf16.mxu0 0
        %6431 = vmatmul.mubr.bf16.gmra.mrb[0].mxu0 %v4670
        %v6432 = vpop.f32.mrb[0].mxu0
        %v6433 = vadd.f32 %v4649, %v6432
        %v6434 = vpop.f32.mrb[0].mxu0
        %v6435 = vpop.f32.mrb[0].mxu0
        %v6436 = vadd.f32 %v4650, %v6435
        %v6437 = vpop.f32.mrb[0].mxu0
        %6438 = vmatprep.mubr.bf16.mxu0 0
        %6439 = vmatmul.mubr.bf16.gmra.mrb[0].mxu0 %v4678
        %v6440 = vpop.f32.mrb[0].mxu0
        %v6441 = vadd.f32 %v4651, %v6440
        %v6442 = vpop.f32.mrb[0].mxu0
        %v6443 = vpop.f32.mrb[0].mxu0
        %v6444 = vadd.f32 %v4652, %v6443
        %v6445 = vpop.f32.mrb[0].mxu0
        %6446 = vmatprep.mubr.bf16.mxu0 0
        %6447 = vmatmul.mubr.bf16.gmra.mrb[0].mxu0 %v4686
        %v6448 = vpop.f32.mrb[0].mxu0
        %v6449 = vadd.f32 %v4653, %v6448
        %v6450 = vpop.f32.mrb[0].mxu0
        %v6451 = vpop.f32.mrb[0].mxu0
        %v6452 = vadd.f32 %v4654, %v6451
        %v6453 = vpop.f32.mrb[0].mxu0
        %6454 = vdwg.mxu0
        %v6455 = vsel %vm4816, %v6425, -inf
        %6456 = vmax.xlane.f32.xlu0 %v6455
        %v6457 = vpop.xlane.xlu0 %6456
        %v6458 = vsel %vm4816, %v6428, -inf
        %6459 = vmax.xlane.f32.xlu0 %v6458
        %v6460 = vpop.xlane.xlu0 %6459
        %v6461 = vsel %vm4816, %v6433, -inf
        %6462 = vmax.xlane.f32.xlu0 %v6461
        %v6463 = vpop.xlane.xlu0 %6462
        %v6464 = vsel %vm4816, %v6436, -inf
        %6465 = vmax.xlane.f32.xlu0 %v6464
        %v6466 = vpop.xlane.xlu0 %6465
        %v6467 = vsel %vm4816, %v6441, -inf
        %6468 = vmax.xlane.f32.xlu0 %v6467
        %v6469 = vpop.xlane.xlu0 %6468
        %v6470 = vsel %vm4816, %v6444, -inf
        %6471 = vmax.xlane.f32.xlu0 %v6470
        %v6472 = vpop.xlane.xlu0 %6471
        %v6473 = vsel %vm4816, %v6449, -inf
        %6474 = vmax.xlane.f32.xlu0 %v6473
        %v6475 = vpop.xlane.xlu0 %6474
        %v6476 = vsel %vm4816, %v6452, -inf
        %6477 = vmax.xlane.f32.xlu0 %v6476
        %v6478 = vpop.xlane.xlu0 %6477
        %v6479 = vsub.f32 %v6425, %v6457
        %v6480 = vsub.f32 %v6428, %v6460
        %v6481 = vsub.f32 %v6433, %v6463
        %v6482 = vsub.f32 %v6436, %v6466
        %v6483 = vsub.f32 %v6441, %v6469
        %v6484 = vsub.f32 %v6444, %v6472
        %v6485 = vsub.f32 %v6449, %v6475
        %v6486 = vsub.f32 %v6452, %v6478
        %v6487 = vmul.f32 %v6479, 1.442695
        %v6488 = vpow.pop %v6487
        %v6489 = vmul.f32 %v6480, 1.442695
        %v6490 = vpow.pop %v6489
        %v6491 = vmul.f32 %v6481, 1.442695
        %v6492 = vpow.pop %v6491
        %v6493 = vmul.f32 %v6482, 1.442695
        %v6494 = vpow.pop %v6493
        %v6495 = vmul.f32 %v6483, 1.442695
        %v6496 = vpow.pop %v6495
        %v6497 = vmul.f32 %v6484, 1.442695
        %v6498 = vpow.pop %v6497
        %v6499 = vmul.f32 %v6485, 1.442695
        %v6500 = vpow.pop %v6499
        %v6501 = vmul.f32 %v6486, 1.442695
        %v6502 = vpow.pop %v6501
        %v6503 = vsel %vm4816, %v6488, 0.0
        %6504 = vadd.xlane.f32.xlu0 %v6503
        %v6505 = vpop.xlane.xlu0 %6504
        %v6506 = vsel %vm4816, %v6490, 0.0
        %6507 = vadd.xlane.f32.xlu0 %v6506
        %v6508 = vpop.xlane.xlu0 %6507
        %v6509 = vsel %vm4816, %v6492, 0.0
        %6510 = vadd.xlane.f32.xlu0 %v6509
        %v6511 = vpop.xlane.xlu0 %6510
        %v6512 = vsel %vm4816, %v6494, 0.0
        %6513 = vadd.xlane.f32.xlu0 %v6512
        %v6514 = vpop.xlane.xlu0 %6513
        %v6515 = vsel %vm4816, %v6496, 0.0
        %6516 = vadd.xlane.f32.xlu0 %v6515
        %v6517 = vpop.xlane.xlu0 %6516
        %v6518 = vsel %vm4816, %v6498, 0.0
        %6519 = vadd.xlane.f32.xlu0 %v6518
        %v6520 = vpop.xlane.xlu0 %6519
        %v6521 = vsel %vm4816, %v6500, 0.0
        %6522 = vadd.xlane.f32.xlu0 %v6521
        %v6523 = vpop.xlane.xlu0 %6522
        %v6524 = vsel %vm4816, %v6502, 0.0
        %6525 = vadd.xlane.f32.xlu0 %v6524
        %v6526 = vpop.xlane.xlu0 %6525
        %v6527 = vrcp.pop %v6505
        %v6528 = vrcp.pop %v6508
        %v6529 = vrcp.pop %v6511
        %v6530 = vrcp.pop %v6514
        %v6531 = vrcp.pop %v6517
        %v6532 = vrcp.pop %v6520
        %v6533 = vrcp.pop %v6523
        %v6534 = vrcp.pop %v6526
        %v6535 = vmul.f32 %v6488, %v6527
        %v6536 = vmul.f32 %v6490, %v6528
        %v6537 = vmul.f32 %v6492, %v6529
        %v6538 = vmul.f32 %v6494, %v6530
        %v6539 = vmul.f32 %v6496, %v6531
        %v6540 = vmul.f32 %v6498, %v6532
        %v6541 = vmul.f32 %v6500, %v6533
        %v6542 = vmul.f32 %v6502, %v6534
        %v6543 = vpack.c.bf16 %v6536, %v6535
        %v6544 = vpack.c.bf16 %v6538, %v6537
        %v6545 = vpack.c.bf16 %v6540, %v6539
        %v6546 = vpack.c.bf16 %v6542, %v6541
        %v6548 = vsel %vm4816, %v6543, 0
        %v6551 = vsel %vm4816, %v6544, 0
        %v6554 = vsel %vm4816, %v6545, 0
        %v6557 = vsel %vm4816, %v6546, 0
        %6559 = vmatprep.subr.bf16.mxu0 0
        %6560 = vmatpush1.bf16.msra.mxu0 %v4726
        %6561 = vmatprep.subr.bf16.mxu0 0
        %6562 = vmatpush1.bf16.msra.mxu0 %v4734
        %6563 = vmatprep.subr.bf16.mxu0 0
        %6564 = vmatpush1.bf16.msra.mxu0 %v4742
        %6565 = vmatprep.subr.bf16.mxu0 0
        %6566 = vmatpush1.bf16.msra.mxu0 %v4750
        %6567 = vmatprep.subr.bf16.mxu0 0
        %6568 = vmatpush1.bf16.msra.mxu0 0
        %6569 = vmatprep.subr.bf16.mxu0 0
        %6570 = vmatpush1.bf16.msra.mxu0 0
        %6571 = vmatprep.subr.bf16.mxu0 0
        %6572 = vmatpush1.bf16.msra.mxu0 0
        %6573 = vmatprep.subr.bf16.mxu0 0
        %6574 = vmatpush1.bf16.msra.mxu0 0
        %6575 = vmatprep.subr.bf16.mxu0 0
        %6576 = vmatpush1.bf16.msra.mxu0 0
        %6577 = vmatprep.subr.bf16.mxu0 0
        %6578 = vmatpush1.bf16.msra.mxu0 0
        %6579 = vmatprep.subr.bf16.mxu0 0
        %6580 = vmatpush1.bf16.msra.mxu0 0
        %6581 = vmatprep.subr.bf16.mxu0 0
        %6582 = vmatpush1.bf16.msra.mxu0 0
        %6583 = vmatprep.subr.bf16.mxu0 0
        %6584 = vmatpush1.bf16.msra.mxu0 0
        %6585 = vmatprep.subr.bf16.mxu0 0
        %6586 = vmatpush1.bf16.msra.mxu0 0
        %6587 = vmatprep.subr.bf16.mxu0 0
        %6588 = vmatpush1.bf16.msra.mxu0 0
        %6589 = vmatprep.subr.bf16.mxu0 0
        %6590 = vmatpush1.bf16.msra.mxu0 0
        %6591 = vmatprep.mubr.bf16.mxu0 0
        %6592 = vmatmul.mubr.bf16.gmra.mrb[0].mxu0 %v6548
        %v6593 = vpop.f32.mrb[0].mxu0
        %v6594 = vadd.f32 0.0, %v6593
        %v6595 = vpop.f32.mrb[0].mxu0
        %v6596 = vpop.f32.mrb[0].mxu0
        %v6597 = vadd.f32 0.0, %v6596
        %v6598 = vpop.f32.mrb[0].mxu0
        %6599 = vmatprep.mubr.bf16.mxu0 0
        %6600 = vmatmul.mubr.bf16.gmra.mrb[0].mxu0 %v6551
        %v6601 = vpop.f32.mrb[0].mxu0
        %v6602 = vadd.f32 0.0, %v6601
        %v6603 = vpop.f32.mrb[0].mxu0
        %v6604 = vpop.f32.mrb[0].mxu0
        %v6605 = vadd.f32 0.0, %v6604
        %v6606 = vpop.f32.mrb[0].mxu0
        %6607 = vmatprep.mubr.bf16.mxu0 0
        %6608 = vmatmul.mubr.bf16.gmra.mrb[0].mxu0 %v6554
        %v6609 = vpop.f32.mrb[0].mxu0
        %v6610 = vadd.f32 0.0, %v6609
        %v6611 = vpop.f32.mrb[0].mxu0
        %v6612 = vpop.f32.mrb[0].mxu0
        %v6613 = vadd.f32 0.0, %v6612
        %v6614 = vpop.f32.mrb[0].mxu0
        %6615 = vmatprep.mubr.bf16.mxu0 0
        %6616 = vmatmul.mubr.bf16.gmra.mrb[0].mxu0 %v6557
        %v6617 = vpop.f32.mrb[0].mxu0
        %v6618 = vadd.f32 0.0, %v6617
        %v6619 = vpop.f32.mrb[0].mxu0
        %v6620 = vpop.f32.mrb[0].mxu0
        %v6621 = vadd.f32 0.0, %v6620
        %v6622 = vpop.f32.mrb[0].mxu0
        %6623 = vdwg.mxu0
        %v6624 = vpack.c.bf16 %v4959, %v4956
        %v6625 = vpack.c.bf16 %v5193, %v5190
        %v6626 = vpack.c.bf16 %v5427, %v5424
        %v6627 = vpack.c.bf16 %v5661, %v5658
        %v6628 = vpack.c.bf16 %v5895, %v5892
        %v6629 = vpack.c.bf16 %v6129, %v6126
        %v6630 = vpack.c.bf16 %v6363, %v6360
        %v6631 = vpack.c.bf16 %v6597, %v6594
        %v6632 = vpack.c.bf16 %v4967, %v4964
        %v6633 = vpack.c.bf16 %v5201, %v5198
        %v6634 = vpack.c.bf16 %v5435, %v5432
        %v6635 = vpack.c.bf16 %v5669, %v5666
        %v6636 = vpack.c.bf16 %v5903, %v5900
        %v6637 = vpack.c.bf16 %v6137, %v6134
        %v6638 = vpack.c.bf16 %v6371, %v6368
        %v6639 = vpack.c.bf16 %v6605, %v6602
        %v6640 = vpack.c.bf16 %v4975, %v4972
        %v6641 = vpack.c.bf16 %v5209, %v5206
        %v6642 = vpack.c.bf16 %v5443, %v5440
        %v6643 = vpack.c.bf16 %v5677, %v5674
        %v6644 = vpack.c.bf16 %v5911, %v5908
        %v6645 = vpack.c.bf16 %v6145, %v6142
        %v6646 = vpack.c.bf16 %v6379, %v6376
        %v6647 = vpack.c.bf16 %v6613, %v6610
        %v6648 = vpack.c.bf16 %v4983, %v4980
        %v6649 = vpack.c.bf16 %v5217, %v5214
        %v6650 = vpack.c.bf16 %v5451, %v5448
        %v6651 = vpack.c.bf16 %v5685, %v5682
        %v6652 = vpack.c.bf16 %v5919, %v5916
        %v6653 = vpack.c.bf16 %v6153, %v6150
        %v6654 = vpack.c.bf16 %v6387, %v6384
        %v6655 = vpack.c.bf16 %v6621, %v6618
        %v6656 = vld [vmem:[#allocation14] sm:$0xf]
        %v6657 = vld [vmem:[#allocation14 + $0x4] sm:$0xf]
        %v6658 = vld [vmem:[#allocation14 + $0x8] sm:$0xf]
        %v6659 = vld [vmem:[#allocation14 + $0xc] sm:$0xf]
        %v6660 = vld [vmem:[#allocation14 + $0x10] sm:$0xf]
        %v6661 = vld [vmem:[#allocation14 + $0x14] sm:$0xf]
        %v6662 = vld [vmem:[#allocation14 + $0x18] sm:$0xf]
        %v6663 = vld [vmem:[#allocation14 + $0x1c] sm:$0xf]
        %v6664 = vld [vmem:[#allocation14 + $0x20] sm:$0xf]
        %v6665 = vld [vmem:[#allocation14 + $0x24] sm:$0xf]
        %v6666 = vld [vmem:[#allocation14 + $0x28] sm:$0xf]
        %v6667 = vld [vmem:[#allocation14 + $0x2c] sm:$0xf]
        %v6668 = vld [vmem:[#allocation14 + $0x30] sm:$0xf]
        %v6669 = vld [vmem:[#allocation14 + $0x34] sm:$0xf]
        %v6670 = vld [vmem:[#allocation14 + $0x38] sm:$0xf]
        %v6671 = vld [vmem:[#allocation14 + $0x3c] sm:$0xf]
        %v6672 = vld [vmem:[#allocation14 + $0x40] sm:$0xf]
        %v6673 = vld [vmem:[#allocation14 + $0x44] sm:$0xf]
        %v6674 = vld [vmem:[#allocation14 + $0x48] sm:$0xf]
        %v6675 = vld [vmem:[#allocation14 + $0x4c] sm:$0xf]
        %v6676 = vld [vmem:[#allocation14 + $0x50] sm:$0xf]
        %v6677 = vld [vmem:[#allocation14 + $0x54] sm:$0xf]
        %v6678 = vld [vmem:[#allocation14 + $0x58] sm:$0xf]
        %v6679 = vld [vmem:[#allocation14 + $0x5c] sm:$0xf]
        %v6680 = vld [vmem:[#allocation14 + $0x60] sm:$0xf]
        %v6681 = vld [vmem:[#allocation14 + $0x64] sm:$0xf]
        %v6682 = vld [vmem:[#allocation14 + $0x68] sm:$0xf]
        %v6683 = vld [vmem:[#allocation14 + $0x6c] sm:$0xf]
        %v6684 = vld [vmem:[#allocation14 + $0x70] sm:$0xf]
        %v6685 = vld [vmem:[#allocation14 + $0x74] sm:$0xf]
        %v6686 = vld [vmem:[#allocation14 + $0x78] sm:$0xf]
        %v6687 = vld [vmem:[#allocation14 + $0x7c] sm:$0xf]
        %v6688 = vld [vmem:[#allocation14 + $0x80] sm:$0xf]
        %v6689 = vld [vmem:[#allocation14 + $0x84] sm:$0xf]
        %v6690 = vld [vmem:[#allocation14 + $0x88] sm:$0xf]
        %v6691 = vld [vmem:[#allocation14 + $0x8c] sm:$0xf]
        %v6692 = vld [vmem:[#allocation14 + $0x90] sm:$0xf]
        %v6693 = vld [vmem:[#allocation14 + $0x94] sm:$0xf]
        %v6694 = vld [vmem:[#allocation14 + $0x98] sm:$0xf]
        %v6695 = vld [vmem:[#allocation14 + $0x9c] sm:$0xf]
        %v6696 = vld [vmem:[#allocation14 + $0xa0] sm:$0xf]
        %v6697 = vld [vmem:[#allocation14 + $0xa4] sm:$0xf]
        %v6698 = vld [vmem:[#allocation14 + $0xa8] sm:$0xf]
        %v6699 = vld [vmem:[#allocation14 + $0xac] sm:$0xf]
        %v6700 = vld [vmem:[#allocation14 + $0xb0] sm:$0xf]
        %v6701 = vld [vmem:[#allocation14 + $0xb4] sm:$0xf]
        %v6702 = vld [vmem:[#allocation14 + $0xb8] sm:$0xf]
        %v6703 = vld [vmem:[#allocation14 + $0xbc] sm:$0xf]
        %v6704 = vld [vmem:[#allocation14 + $0xc0] sm:$0xf]
        %v6705 = vld [vmem:[#allocation14 + $0xc4] sm:$0xf]
        %v6706 = vld [vmem:[#allocation14 + $0xc8] sm:$0xf]
        %v6707 = vld [vmem:[#allocation14 + $0xcc] sm:$0xf]
        %v6708 = vld [vmem:[#allocation14 + $0xd0] sm:$0xf]
        %v6709 = vld [vmem:[#allocation14 + $0xd4] sm:$0xf]
        %v6710 = vld [vmem:[#allocation14 + $0xd8] sm:$0xf]
        %v6711 = vld [vmem:[#allocation14 + $0xdc] sm:$0xf]
        %v6712 = vld [vmem:[#allocation14 + $0xe0] sm:$0xf]
        %v6713 = vld [vmem:[#allocation14 + $0xe4] sm:$0xf]
        %v6714 = vld [vmem:[#allocation14 + $0xe8] sm:$0xf]
        %v6715 = vld [vmem:[#allocation14 + $0xec] sm:$0xf]
        %v6716 = vld [vmem:[#allocation14 + $0xf0] sm:$0xf]
        %v6717 = vld [vmem:[#allocation14 + $0xf4] sm:$0xf]
        %v6718 = vld [vmem:[#allocation14 + $0xf8] sm:$0xf]
        %v6719 = vld [vmem:[#allocation14 + $0xfc] sm:$0xf]
        %v6720 = vld [vmem:[#allocation14 + $0x100] sm:$0xf]
        %v6721 = vld [vmem:[#allocation14 + $0x104] sm:$0xf]
        %v6722 = vld [vmem:[#allocation14 + $0x108] sm:$0xf]
        %v6723 = vld [vmem:[#allocation14 + $0x10c] sm:$0xf]
        %v6724 = vld [vmem:[#allocation14 + $0x110] sm:$0xf]
        %v6725 = vld [vmem:[#allocation14 + $0x114] sm:$0xf]
        %v6726 = vld [vmem:[#allocation14 + $0x118] sm:$0xf]
        %v6727 = vld [vmem:[#allocation14 + $0x11c] sm:$0xf]
        %v6728 = vld [vmem:[#allocation14 + $0x120] sm:$0xf]
        %v6729 = vld [vmem:[#allocation14 + $0x124] sm:$0xf]
        %v6730 = vld [vmem:[#allocation14 + $0x128] sm:$0xf]
        %v6731 = vld [vmem:[#allocation14 + $0x12c] sm:$0xf]
        %v6732 = vld [vmem:[#allocation14 + $0x130] sm:$0xf]
        %v6733 = vld [vmem:[#allocation14 + $0x134] sm:$0xf]
        %v6734 = vld [vmem:[#allocation14 + $0x138] sm:$0xf]
        %v6735 = vld [vmem:[#allocation14 + $0x13c] sm:$0xf]
        %v6736 = vld [vmem:[#allocation14 + $0x140] sm:$0xf]
        %v6737 = vld [vmem:[#allocation14 + $0x144] sm:$0xf]
        %v6738 = vld [vmem:[#allocation14 + $0x148] sm:$0xf]
        %v6739 = vld [vmem:[#allocation14 + $0x14c] sm:$0xf]
        %v6740 = vld [vmem:[#allocation14 + $0x150] sm:$0xf]
        %v6741 = vld [vmem:[#allocation14 + $0x154] sm:$0xf]
        %v6742 = vld [vmem:[#allocation14 + $0x158] sm:$0xf]
        %v6743 = vld [vmem:[#allocation14 + $0x15c] sm:$0xf]
        %v6744 = vld [vmem:[#allocation14 + $0x160] sm:$0xf]
        %v6745 = vld [vmem:[#allocation14 + $0x164] sm:$0xf]
        %v6746 = vld [vmem:[#allocation14 + $0x168] sm:$0xf]
        %v6747 = vld [vmem:[#allocation14 + $0x16c] sm:$0xf]
        %v6748 = vld [vmem:[#allocation14 + $0x170] sm:$0xf]
        %v6749 = vld [vmem:[#allocation14 + $0x174] sm:$0xf]
        %v6750 = vld [vmem:[#allocation14 + $0x178] sm:$0xf]
        %v6751 = vld [vmem:[#allocation14 + $0x17c] sm:$0xf]
        %v6752 = vld [vmem:[#allocation14 + $0x180] sm:$0xf]
        %v6753 = vld [vmem:[#allocation14 + $0x184] sm:$0xf]
        %v6754 = vld [vmem:[#allocation14 + $0x188] sm:$0xf]
        %v6755 = vld [vmem:[#allocation14 + $0x18c] sm:$0xf]
        %v6756 = vld [vmem:[#allocation14 + $0x190] sm:$0xf]
        %v6757 = vld [vmem:[#allocation14 + $0x194] sm:$0xf]
        %v6758 = vld [vmem:[#allocation14 + $0x198] sm:$0xf]
        %v6759 = vld [vmem:[#allocation14 + $0x19c] sm:$0xf]
        %v6760 = vld [vmem:[#allocation14 + $0x1a0] sm:$0xf]
        %v6761 = vld [vmem:[#allocation14 + $0x1a4] sm:$0xf]
        %v6762 = vld [vmem:[#allocation14 + $0x1a8] sm:$0xf]
        %v6763 = vld [vmem:[#allocation14 + $0x1ac] sm:$0xf]
        %v6764 = vld [vmem:[#allocation14 + $0x1b0] sm:$0xf]
        %v6765 = vld [vmem:[#allocation14 + $0x1b4] sm:$0xf]
        %v6766 = vld [vmem:[#allocation14 + $0x1b8] sm:$0xf]
        %v6767 = vld [vmem:[#allocation14 + $0x1bc] sm:$0xf]
        %v6768 = vld [vmem:[#allocation14 + $0x1c0] sm:$0xf]
        %v6769 = vld [vmem:[#allocation14 + $0x1c4] sm:$0xf]
        %v6770 = vld [vmem:[#allocation14 + $0x1c8] sm:$0xf]
        %v6771 = vld [vmem:[#allocation14 + $0x1cc] sm:$0xf]
        %v6772 = vld [vmem:[#allocation14 + $0x1d0] sm:$0xf]
        %v6773 = vld [vmem:[#allocation14 + $0x1d4] sm:$0xf]
        %v6774 = vld [vmem:[#allocation14 + $0x1d8] sm:$0xf]
        %v6775 = vld [vmem:[#allocation14 + $0x1dc] sm:$0xf]
        %v6776 = vld [vmem:[#allocation14 + $0x1e0] sm:$0xf]
        %v6777 = vld [vmem:[#allocation14 + $0x1e4] sm:$0xf]
        %v6778 = vld [vmem:[#allocation14 + $0x1e8] sm:$0xf]
        %v6779 = vld [vmem:[#allocation14 + $0x1ec] sm:$0xf]
        %v6780 = vld [vmem:[#allocation14 + $0x1f0] sm:$0xf]
        %v6781 = vld [vmem:[#allocation14 + $0x1f4] sm:$0xf]
        %v6782 = vld [vmem:[#allocation14 + $0x1f8] sm:$0xf]
        %v6783 = vld [vmem:[#allocation14 + $0x1fc] sm:$0xf]
        %v6784 = vld [vmem:[#allocation15] sm:$0x1]
        %v6786 = vlaneseq
        %v6787 = vshrl.u32 %v6786, 7
        %v6788 = vsub.s32 0, %v6787
        %v6789 = vrot.slane %v6784, %v6788
        %v6919 = vunpack.c.l.b16 %v6656
        %v6920 = vunpack.c.l.b16 %v6657
        %v6921 = vunpack.c.l.b16 %v6658
        %v6922 = vunpack.c.l.b16 %v6659
        %v6923 = vunpack.c.l.b16 %v6660
        %v6924 = vunpack.c.l.b16 %v6661
        %v6925 = vunpack.c.l.b16 %v6662
        %v6926 = vunpack.c.l.b16 %v6663
        %v6927 = vunpack.c.l.b16 %v6664
        %v6928 = vunpack.c.l.b16 %v6665
        %v6929 = vunpack.c.l.b16 %v6666
        %v6930 = vunpack.c.l.b16 %v6667
        %v6931 = vunpack.c.l.b16 %v6668
        %v6932 = vunpack.c.l.b16 %v6669
        %v6933 = vunpack.c.l.b16 %v6670
        %v6934 = vunpack.c.l.b16 %v6671
        %v6935 = vunpack.c.l.b16 %v6672
        %v6936 = vunpack.c.l.b16 %v6673
        %v6937 = vunpack.c.l.b16 %v6674
        %v6938 = vunpack.c.l.b16 %v6675
        %v6939 = vunpack.c.l.b16 %v6676
        %v6940 = vunpack.c.l.b16 %v6677
        %v6941 = vunpack.c.l.b16 %v6678
        %v6942 = vunpack.c.l.b16 %v6679
        %v6943 = vunpack.c.l.b16 %v6680
        %v6944 = vunpack.c.l.b16 %v6681
        %v6945 = vunpack.c.l.b16 %v6682
        %v6946 = vunpack.c.l.b16 %v6683
        %v6947 = vunpack.c.l.b16 %v6684
        %v6948 = vunpack.c.l.b16 %v6685
        %v6949 = vunpack.c.l.b16 %v6686
        %v6950 = vunpack.c.l.b16 %v6687
        %v6951 = vunpack.c.l.b16 %v6688
        %v6952 = vunpack.c.l.b16 %v6689
        %v6953 = vunpack.c.l.b16 %v6690
        %v6954 = vunpack.c.l.b16 %v6691
        %v6955 = vunpack.c.l.b16 %v6692
        %v6956 = vunpack.c.l.b16 %v6693
        %v6957 = vunpack.c.l.b16 %v6694
        %v6958 = vunpack.c.l.b16 %v6695
        %v6959 = vunpack.c.l.b16 %v6696
        %v6960 = vunpack.c.l.b16 %v6697
        %v6961 = vunpack.c.l.b16 %v6698
        %v6962 = vunpack.c.l.b16 %v6699
        %v6963 = vunpack.c.l.b16 %v6700
        %v6964 = vunpack.c.l.b16 %v6701
        %v6965 = vunpack.c.l.b16 %v6702
        %v6966 = vunpack.c.l.b16 %v6703
        %v6967 = vunpack.c.l.b16 %v6704
        %v6968 = vunpack.c.l.b16 %v6705
        %v6969 = vunpack.c.l.b16 %v6706
        %v6970 = vunpack.c.l.b16 %v6707
        %v6971 = vunpack.c.l.b16 %v6708
        %v6972 = vunpack.c.l.b16 %v6709
        %v6973 = vunpack.c.l.b16 %v6710
        %v6974 = vunpack.c.l.b16 %v6711
        %v6975 = vunpack.c.l.b16 %v6712
        %v6976 = vunpack.c.l.b16 %v6713
        %v6977 = vunpack.c.l.b16 %v6714
        %v6978 = vunpack.c.l.b16 %v6715
        %v6979 = vunpack.c.l.b16 %v6716
        %v6980 = vunpack.c.l.b16 %v6717
        %v6981 = vunpack.c.l.b16 %v6718
        %v6982 = vunpack.c.l.b16 %v6719
        %v6983 = vunpack.c.l.b16 %v6720
        %v6984 = vunpack.c.l.b16 %v6721
        %v6985 = vunpack.c.l.b16 %v6722
        %v6986 = vunpack.c.l.b16 %v6723
        %v6987 = vunpack.c.l.b16 %v6724
        %v6988 = vunpack.c.l.b16 %v6725
        %v6989 = vunpack.c.l.b16 %v6726
        %v6990 = vunpack.c.l.b16 %v6727
        %v6991 = vunpack.c.l.b16 %v6728
        %v6992 = vunpack.c.l.b16 %v6729
        %v6993 = vunpack.c.l.b16 %v6730
        %v6994 = vunpack.c.l.b16 %v6731
        %v6995 = vunpack.c.l.b16 %v6732
        %v6996 = vunpack.c.l.b16 %v6733
        %v6997 = vunpack.c.l.b16 %v6734
        %v6998 = vunpack.c.l.b16 %v6735
        %v6999 = vunpack.c.l.b16 %v6736
        %v7000 = vunpack.c.l.b16 %v6737
        %v7001 = vunpack.c.l.b16 %v6738
        %v7002 = vunpack.c.l.b16 %v6739
        %v7003 = vunpack.c.l.b16 %v6740
        %v7004 = vunpack.c.l.b16 %v6741
        %v7005 = vunpack.c.l.b16 %v6742
        %v7006 = vunpack.c.l.b16 %v6743
        %v7007 = vunpack.c.l.b16 %v6744
        %v7008 = vunpack.c.l.b16 %v6745
        %v7009 = vunpack.c.l.b16 %v6746
        %v7010 = vunpack.c.l.b16 %v6747
        %v7011 = vunpack.c.l.b16 %v6748
        %v7012 = vunpack.c.l.b16 %v6749
        %v7013 = vunpack.c.l.b16 %v6750
        %v7014 = vunpack.c.l.b16 %v6751
        %v7015 = vunpack.c.l.b16 %v6752
        %v7016 = vunpack.c.l.b16 %v6753
        %v7017 = vunpack.c.l.b16 %v6754
        %v7018 = vunpack.c.l.b16 %v6755
        %v7019 = vunpack.c.l.b16 %v6756
        %v7020 = vunpack.c.l.b16 %v6757
        %v7021 = vunpack.c.l.b16 %v6758
        %v7022 = vunpack.c.l.b16 %v6759
        %v7023 = vunpack.c.l.b16 %v6760
        %v7024 = vunpack.c.l.b16 %v6761
        %v7025 = vunpack.c.l.b16 %v6762
        %v7026 = vunpack.c.l.b16 %v6763
        %v7027 = vunpack.c.l.b16 %v6764
        %v7028 = vunpack.c.l.b16 %v6765
        %v7029 = vunpack.c.l.b16 %v6766
        %v7030 = vunpack.c.l.b16 %v6767
        %v7031 = vunpack.c.l.b16 %v6768
        %v7032 = vunpack.c.l.b16 %v6769
        %v7033 = vunpack.c.l.b16 %v6770
        %v7034 = vunpack.c.l.b16 %v6771
        %v7035 = vunpack.c.l.b16 %v6772
        %v7036 = vunpack.c.l.b16 %v6773
        %v7037 = vunpack.c.l.b16 %v6774
        %v7038 = vunpack.c.l.b16 %v6775
        %v7039 = vunpack.c.l.b16 %v6776
        %v7040 = vunpack.c.l.b16 %v6777
        %v7041 = vunpack.c.l.b16 %v6778
        %v7042 = vunpack.c.l.b16 %v6779
        %v7043 = vunpack.c.l.b16 %v6780
        %v7044 = vunpack.c.l.b16 %v6781
        %v7045 = vunpack.c.l.b16 %v6782
        %v7046 = vunpack.c.l.b16 %v6783
        %v7047 = vpack.c.b16 %v6920, %v6919
        %v7048 = vpack.c.b16 %v6922, %v6921
        %v7049 = vpack.c.b16 %v6924, %v6923
        %v7050 = vpack.c.b16 %v6926, %v6925
        %v7051 = vpack.c.b16 %v6928, %v6927
        %v7052 = vpack.c.b16 %v6930, %v6929
        %v7053 = vpack.c.b16 %v6932, %v6931
        %v7054 = vpack.c.b16 %v6934, %v6933
        %v7055 = vpack.c.b16 %v6936, %v6935
        %v7056 = vpack.c.b16 %v6938, %v6937
        %v7057 = vpack.c.b16 %v6940, %v6939
        %v7058 = vpack.c.b16 %v6942, %v6941
        %v7059 = vpack.c.b16 %v6944, %v6943
        %v7060 = vpack.c.b16 %v6946, %v6945
        %v7061 = vpack.c.b16 %v6948, %v6947
        %v7062 = vpack.c.b16 %v6950, %v6949
        %v7063 = vpack.c.b16 %v6952, %v6951
        %v7064 = vpack.c.b16 %v6954, %v6953
        %v7065 = vpack.c.b16 %v6956, %v6955
        %v7066 = vpack.c.b16 %v6958, %v6957
        %v7067 = vpack.c.b16 %v6960, %v6959
        %v7068 = vpack.c.b16 %v6962, %v6961
        %v7069 = vpack.c.b16 %v6964, %v6963
        %v7070 = vpack.c.b16 %v6966, %v6965
        %v7071 = vpack.c.b16 %v6968, %v6967
        %v7072 = vpack.c.b16 %v6970, %v6969
        %v7073 = vpack.c.b16 %v6972, %v6971
        %v7074 = vpack.c.b16 %v6974, %v6973
        %v7075 = vpack.c.b16 %v6976, %v6975
        %v7076 = vpack.c.b16 %v6978, %v6977
        %v7077 = vpack.c.b16 %v6980, %v6979
        %v7078 = vpack.c.b16 %v6982, %v6981
        %v7079 = vpack.c.b16 %v6984, %v6983
        %v7080 = vpack.c.b16 %v6986, %v6985
        %v7081 = vpack.c.b16 %v6988, %v6987
        %v7082 = vpack.c.b16 %v6990, %v6989
        %v7083 = vpack.c.b16 %v6992, %v6991
        %v7084 = vpack.c.b16 %v6994, %v6993
        %v7085 = vpack.c.b16 %v6996, %v6995
        %v7086 = vpack.c.b16 %v6998, %v6997
        %v7087 = vpack.c.b16 %v7000, %v6999
        %v7088 = vpack.c.b16 %v7002, %v7001
        %v7089 = vpack.c.b16 %v7004, %v7003
        %v7090 = vpack.c.b16 %v7006, %v7005
        %v7091 = vpack.c.b16 %v7008, %v7007
        %v7092 = vpack.c.b16 %v7010, %v7009
        %v7093 = vpack.c.b16 %v7012, %v7011
        %v7094 = vpack.c.b16 %v7014, %v7013
        %v7095 = vpack.c.b16 %v7016, %v7015
        %v7096 = vpack.c.b16 %v7018, %v7017
        %v7097 = vpack.c.b16 %v7020, %v7019
        %v7098 = vpack.c.b16 %v7022, %v7021
        %v7099 = vpack.c.b16 %v7024, %v7023
        %v7100 = vpack.c.b16 %v7026, %v7025
        %v7101 = vpack.c.b16 %v7028, %v7027
        %v7102 = vpack.c.b16 %v7030, %v7029
        %v7103 = vpack.c.b16 %v7032, %v7031
        %v7104 = vpack.c.b16 %v7034, %v7033
        %v7105 = vpack.c.b16 %v7036, %v7035
        %v7106 = vpack.c.b16 %v7038, %v7037
        %v7107 = vpack.c.b16 %v7040, %v7039
        %v7108 = vpack.c.b16 %v7042, %v7041
        %v7109 = vpack.c.b16 %v7044, %v7043
        %v7110 = vpack.c.b16 %v7046, %v7045
        %7175 = vmatprep.subr.bf16.mxu0 0
        %7176 = vmatpush1.bf16.msra.mxu0 %v7047
        %7177 = vmatprep.subr.bf16.mxu0 0
        %7178 = vmatpush1.bf16.msra.mxu0 %v7048
        %7179 = vmatprep.subr.bf16.mxu0 0
        %7180 = vmatpush1.bf16.msra.mxu0 %v7049
        %7181 = vmatprep.subr.bf16.mxu0 0
        %7182 = vmatpush1.bf16.msra.mxu0 %v7050
        %7183 = vmatprep.subr.bf16.mxu0 0
        %7184 = vmatpush1.bf16.msra.mxu0 %v7051
        %7185 = vmatprep.subr.bf16.mxu0 0
        %7186 = vmatpush1.bf16.msra.mxu0 %v7052
        %7187 = vmatprep.subr.bf16.mxu0 0
        %7188 = vmatpush1.bf16.msra.mxu0 %v7053
        %7189 = vmatprep.subr.bf16.mxu0 0
        %7190 = vmatpush1.bf16.msra.mxu0 %v7054
        %7191 = vmatprep.subr.bf16.mxu0 0
        %7192 = vmatpush1.bf16.msra.mxu0 %v7055
        %7193 = vmatprep.subr.bf16.mxu0 0
        %7194 = vmatpush1.bf16.msra.mxu0 %v7056
        %7195 = vmatprep.subr.bf16.mxu0 0
        %7196 = vmatpush1.bf16.msra.mxu0 %v7057
        %7197 = vmatprep.subr.bf16.mxu0 0
        %7198 = vmatpush1.bf16.msra.mxu0 %v7058
        %7199 = vmatprep.subr.bf16.mxu0 0
        %7200 = vmatpush1.bf16.msra.mxu0 %v7059
        %7201 = vmatprep.subr.bf16.mxu0 0
        %7202 = vmatpush1.bf16.msra.mxu0 %v7060
        %7203 = vmatprep.subr.bf16.mxu0 0
        %7204 = vmatpush1.bf16.msra.mxu0 %v7061
        %7205 = vmatprep.subr.bf16.mxu0 0
        %7206 = vmatpush1.bf16.msra.mxu0 %v7062
        %7207 = vmatprep.mubr.bf16.mxu0 %v6625
        %7208 = vmatmul.mubr.bf16.gmra.mrb[0].mxu0 %v6624
        %v7209 = vpop.f32.mrb[0].mxu0
        %v7210 = vadd.f32 %v6789, %v7209
        %v7211 = vpop.f32.mrb[0].mxu0
        %v7212 = vpop.f32.mrb[0].mxu0
        %v7213 = vadd.f32 %v6789, %v7212
        %v7214 = vpop.f32.mrb[0].mxu0
        %7215 = vmatprep.mubr.bf16.mxu0 %v6633
        %7216 = vmatmul.mubr.bf16.gmra.mrb[0].mxu0 %v6632
        %v7217 = vpop.f32.mrb[0].mxu0
        %v7218 = vadd.f32 %v6789, %v7217
        %v7219 = vpop.f32.mrb[0].mxu0
        %v7220 = vpop.f32.mrb[0].mxu0
        %v7221 = vadd.f32 %v6789, %v7220
        %v7222 = vpop.f32.mrb[0].mxu0
        %7223 = vmatprep.mubr.bf16.mxu0 %v6641
        %7224 = vmatmul.mubr.bf16.gmra.mrb[0].mxu0 %v6640
        %v7225 = vpop.f32.mrb[0].mxu0
        %v7226 = vadd.f32 %v6789, %v7225
        %v7227 = vpop.f32.mrb[0].mxu0
        %v7228 = vpop.f32.mrb[0].mxu0
        %v7229 = vadd.f32 %v6789, %v7228
        %v7230 = vpop.f32.mrb[0].mxu0
        %7231 = vmatprep.mubr.bf16.mxu0 %v6649
        %7232 = vmatmul.mubr.bf16.gmra.mrb[0].mxu0 %v6648
        %v7233 = vpop.f32.mrb[0].mxu0
        %v7234 = vadd.f32 %v6789, %v7233
        %v7235 = vpop.f32.mrb[0].mxu0
        %v7236 = vpop.f32.mrb[0].mxu0
        %v7237 = vadd.f32 %v6789, %v7236
        %v7238 = vpop.f32.mrb[0].mxu0
        %7239 = vdwg.mxu0
        %7240 = vmatprep.subr.bf16.mxu0 0
        %7241 = vmatpush1.bf16.msra.mxu0 %v7063
        %7242 = vmatprep.subr.bf16.mxu0 0
        %7243 = vmatpush1.bf16.msra.mxu0 %v7064
        %7244 = vmatprep.subr.bf16.mxu0 0
        %7245 = vmatpush1.bf16.msra.mxu0 %v7065
        %7246 = vmatprep.subr.bf16.mxu0 0
        %7247 = vmatpush1.bf16.msra.mxu0 %v7066
        %7248 = vmatprep.subr.bf16.mxu0 0
        %7249 = vmatpush1.bf16.msra.mxu0 %v7067
        %7250 = vmatprep.subr.bf16.mxu0 0
        %7251 = vmatpush1.bf16.msra.mxu0 %v7068
        %7252 = vmatprep.subr.bf16.mxu0 0
        %7253 = vmatpush1.bf16.msra.mxu0 %v7069
        %7254 = vmatprep.subr.bf16.mxu0 0
        %7255 = vmatpush1.bf16.msra.mxu0 %v7070
        %7256 = vmatprep.subr.bf16.mxu0 0
        %7257 = vmatpush1.bf16.msra.mxu0 %v7071
        %7258 = vmatprep.subr.bf16.mxu0 0
        %7259 = vmatpush1.bf16.msra.mxu0 %v7072
        %7260 = vmatprep.subr.bf16.mxu0 0
        %7261 = vmatpush1.bf16.msra.mxu0 %v7073
        %7262 = vmatprep.subr.bf16.mxu0 0
        %7263 = vmatpush1.bf16.msra.mxu0 %v7074
        %7264 = vmatprep.subr.bf16.mxu0 0
        %7265 = vmatpush1.bf16.msra.mxu0 %v7075
        %7266 = vmatprep.subr.bf16.mxu0 0
        %7267 = vmatpush1.bf16.msra.mxu0 %v7076
        %7268 = vmatprep.subr.bf16.mxu0 0
        %7269 = vmatpush1.bf16.msra.mxu0 %v7077
        %7270 = vmatprep.subr.bf16.mxu0 0
        %7271 = vmatpush1.bf16.msra.mxu0 %v7078
        %7272 = vmatprep.mubr.bf16.mxu0 %v6627
        %7273 = vmatmul.mubr.bf16.gmra.mrb[0].mxu0 %v6626
        %v7274 = vpop.f32.mrb[0].mxu0
        %v7275 = vadd.f32 %v7210, %v7274
        %v7276 = vpop.f32.mrb[0].mxu0
        %v7277 = vpop.f32.mrb[0].mxu0
        %v7278 = vadd.f32 %v7213, %v7277
        %v7279 = vpop.f32.mrb[0].mxu0
        %7280 = vmatprep.mubr.bf16.mxu0 %v6635
        %7281 = vmatmul.mubr.bf16.gmra.mrb[0].mxu0 %v6634
        %v7282 = vpop.f32.mrb[0].mxu0
        %v7283 = vadd.f32 %v7218, %v7282
        %v7284 = vpop.f32.mrb[0].mxu0
        %v7285 = vpop.f32.mrb[0].mxu0
        %v7286 = vadd.f32 %v7221, %v7285
        %v7287 = vpop.f32.mrb[0].mxu0
        %7288 = vmatprep.mubr.bf16.mxu0 %v6643
        %7289 = vmatmul.mubr.bf16.gmra.mrb[0].mxu0 %v6642
        %v7290 = vpop.f32.mrb[0].mxu0
        %v7291 = vadd.f32 %v7226, %v7290
        %v7292 = vpop.f32.mrb[0].mxu0
        %v7293 = vpop.f32.mrb[0].mxu0
        %v7294 = vadd.f32 %v7229, %v7293
        %v7295 = vpop.f32.mrb[0].mxu0
        %7296 = vmatprep.mubr.bf16.mxu0 %v6651
        %7297 = vmatmul.mubr.bf16.gmra.mrb[0].mxu0 %v6650
        %v7298 = vpop.f32.mrb[0].mxu0
        %v7299 = vadd.f32 %v7234, %v7298
        %v7300 = vpop.f32.mrb[0].mxu0
        %v7301 = vpop.f32.mrb[0].mxu0
        %v7302 = vadd.f32 %v7237, %v7301
        %v7303 = vpop.f32.mrb[0].mxu0
        %7304 = vdwg.mxu0
        %7305 = vmatprep.subr.bf16.mxu0 0
        %7306 = vmatpush1.bf16.msra.mxu0 %v7079
        %7307 = vmatprep.subr.bf16.mxu0 0
        %7308 = vmatpush1.bf16.msra.mxu0 %v7080
        %7309 = vmatprep.subr.bf16.mxu0 0
        %7310 = vmatpush1.bf16.msra.mxu0 %v7081
        %7311 = vmatprep.subr.bf16.mxu0 0
        %7312 = vmatpush1.bf16.msra.mxu0 %v7082
        %7313 = vmatprep.subr.bf16.mxu0 0
        %7314 = vmatpush1.bf16.msra.mxu0 %v7083
        %7315 = vmatprep.subr.bf16.mxu0 0
        %7316 = vmatpush1.bf16.msra.mxu0 %v7084
        %7317 = vmatprep.subr.bf16.mxu0 0
        %7318 = vmatpush1.bf16.msra.mxu0 %v7085
        %7319 = vmatprep.subr.bf16.mxu0 0
        %7320 = vmatpush1.bf16.msra.mxu0 %v7086
        %7321 = vmatprep.subr.bf16.mxu0 0
        %7322 = vmatpush1.bf16.msra.mxu0 %v7087
        %7323 = vmatprep.subr.bf16.mxu0 0
        %7324 = vmatpush1.bf16.msra.mxu0 %v7088
        %7325 = vmatprep.subr.bf16.mxu0 0
        %7326 = vmatpush1.bf16.msra.mxu0 %v7089
        %7327 = vmatprep.subr.bf16.mxu0 0
        %7328 = vmatpush1.bf16.msra.mxu0 %v7090
        %7329 = vmatprep.subr.bf16.mxu0 0
        %7330 = vmatpush1.bf16.msra.mxu0 %v7091
        %7331 = vmatprep.subr.bf16.mxu0 0
        %7332 = vmatpush1.bf16.msra.mxu0 %v7092
        %7333 = vmatprep.subr.bf16.mxu0 0
        %7334 = vmatpush1.bf16.msra.mxu0 %v7093
        %7335 = vmatprep.subr.bf16.mxu0 0
        %7336 = vmatpush1.bf16.msra.mxu0 %v7094
        %7337 = vmatprep.mubr.bf16.mxu0 %v6629
        %7338 = vmatmul.mubr.bf16.gmra.mrb[0].mxu0 %v6628
        %v7339 = vpop.f32.mrb[0].mxu0
        %v7340 = vadd.f32 %v7275, %v7339
        %v7341 = vpop.f32.mrb[0].mxu0
        %v7342 = vpop.f32.mrb[0].mxu0
        %v7343 = vadd.f32 %v7278, %v7342
        %v7344 = vpop.f32.mrb[0].mxu0
        %7345 = vmatprep.mubr.bf16.mxu0 %v6637
        %7346 = vmatmul.mubr.bf16.gmra.mrb[0].mxu0 %v6636
        %v7347 = vpop.f32.mrb[0].mxu0
        %v7348 = vadd.f32 %v7283, %v7347
        %v7349 = vpop.f32.mrb[0].mxu0
        %v7350 = vpop.f32.mrb[0].mxu0
        %v7351 = vadd.f32 %v7286, %v7350
        %v7352 = vpop.f32.mrb[0].mxu0
        %7353 = vmatprep.mubr.bf16.mxu0 %v6645
        %7354 = vmatmul.mubr.bf16.gmra.mrb[0].mxu0 %v6644
        %v7355 = vpop.f32.mrb[0].mxu0
        %v7356 = vadd.f32 %v7291, %v7355
        %v7357 = vpop.f32.mrb[0].mxu0
        %v7358 = vpop.f32.mrb[0].mxu0
        %v7359 = vadd.f32 %v7294, %v7358
        %v7360 = vpop.f32.mrb[0].mxu0
        %7361 = vmatprep.mubr.bf16.mxu0 %v6653
        %7362 = vmatmul.mubr.bf16.gmra.mrb[0].mxu0 %v6652
        %v7363 = vpop.f32.mrb[0].mxu0
        %v7364 = vadd.f32 %v7299, %v7363
        %v7365 = vpop.f32.mrb[0].mxu0
        %v7366 = vpop.f32.mrb[0].mxu0
        %v7367 = vadd.f32 %v7302, %v7366
        %v7368 = vpop.f32.mrb[0].mxu0
        %7369 = vdwg.mxu0
        %7370 = vmatprep.subr.bf16.mxu0 0
        %7371 = vmatpush1.bf16.msra.mxu0 %v7095
        %7372 = vmatprep.subr.bf16.mxu0 0
        %7373 = vmatpush1.bf16.msra.mxu0 %v7096
        %7374 = vmatprep.subr.bf16.mxu0 0
        %7375 = vmatpush1.bf16.msra.mxu0 %v7097
        %7376 = vmatprep.subr.bf16.mxu0 0
        %7377 = vmatpush1.bf16.msra.mxu0 %v7098
        %7378 = vmatprep.subr.bf16.mxu0 0
        %7379 = vmatpush1.bf16.msra.mxu0 %v7099
        %7380 = vmatprep.subr.bf16.mxu0 0
        %7381 = vmatpush1.bf16.msra.mxu0 %v7100
        %7382 = vmatprep.subr.bf16.mxu0 0
        %7383 = vmatpush1.bf16.msra.mxu0 %v7101
        %7384 = vmatprep.subr.bf16.mxu0 0
        %7385 = vmatpush1.bf16.msra.mxu0 %v7102
        %7386 = vmatprep.subr.bf16.mxu0 0
        %7387 = vmatpush1.bf16.msra.mxu0 %v7103
        %7388 = vmatprep.subr.bf16.mxu0 0
        %7389 = vmatpush1.bf16.msra.mxu0 %v7104
        %7390 = vmatprep.subr.bf16.mxu0 0
        %7391 = vmatpush1.bf16.msra.mxu0 %v7105
        %7392 = vmatprep.subr.bf16.mxu0 0
        %7393 = vmatpush1.bf16.msra.mxu0 %v7106
        %7394 = vmatprep.subr.bf16.mxu0 0
        %7395 = vmatpush1.bf16.msra.mxu0 %v7107
        %7396 = vmatprep.subr.bf16.mxu0 0
        %7397 = vmatpush1.bf16.msra.mxu0 %v7108
        %7398 = vmatprep.subr.bf16.mxu0 0
        %7399 = vmatpush1.bf16.msra.mxu0 %v7109
        %7400 = vmatprep.subr.bf16.mxu0 0
        %7401 = vmatpush1.bf16.msra.mxu0 %v7110
        %7402 = vmatprep.mubr.bf16.mxu0 %v6631
        %7403 = vmatmul.mubr.bf16.gmra.mrb[0].mxu0 %v6630
        %v7404 = vpop.f32.mrb[0].mxu0
        %v7405 = vadd.f32 %v7340, %v7404
        %v7406 = vpop.f32.mrb[0].mxu0
        %v7407 = vpop.f32.mrb[0].mxu0
        %v7408 = vadd.f32 %v7343, %v7407
        %v7409 = vpop.f32.mrb[0].mxu0
        %7410 = vmatprep.mubr.bf16.mxu0 %v6639
        %7411 = vmatmul.mubr.bf16.gmra.mrb[0].mxu0 %v6638
        %v7412 = vpop.f32.mrb[0].mxu0
        %v7413 = vadd.f32 %v7348, %v7412
        %v7414 = vpop.f32.mrb[0].mxu0
        %v7415 = vpop.f32.mrb[0].mxu0
        %v7416 = vadd.f32 %v7351, %v7415
        %v7417 = vpop.f32.mrb[0].mxu0
        %7418 = vmatprep.mubr.bf16.mxu0 %v6647
        %7419 = vmatmul.mubr.bf16.gmra.mrb[0].mxu0 %v6646
        %v7420 = vpop.f32.mrb[0].mxu0
        %v7421 = vadd.f32 %v7356, %v7420
        %v7422 = vpop.f32.mrb[0].mxu0
        %v7423 = vpop.f32.mrb[0].mxu0
        %v7424 = vadd.f32 %v7359, %v7423
        %v7425 = vpop.f32.mrb[0].mxu0
        %7426 = vmatprep.mubr.bf16.mxu0 %v6655
        %7427 = vmatmul.mubr.bf16.gmra.mrb[0].mxu0 %v6654
        %v7428 = vpop.f32.mrb[0].mxu0
        %v7429 = vadd.f32 %v7364, %v7428
        %v7430 = vpop.f32.mrb[0].mxu0
        %v7431 = vpop.f32.mrb[0].mxu0
        %v7432 = vadd.f32 %v7367, %v7431
        %v7433 = vpop.f32.mrb[0].mxu0
        %7434 = vdwg.mxu0
        %v7435 = vadd.f32 %v679, %v7405
        %v7436 = vadd.f32 %v680, %v7408
        %v7437 = vadd.f32 %v681, %v7413
        %v7438 = vadd.f32 %v682, %v7416
        %v7439 = vadd.f32 %v683, %v7421
        %v7440 = vadd.f32 %v684, %v7424
        %v7441 = vadd.f32 %v685, %v7429
        %v7442 = vadd.f32 %v686, %v7432
        %v7443 = vmul.f32 %v7435, %v7435
        %v7444 = vmul.f32 %v7436, %v7436
        %v7445 = vmul.f32 %v7437, %v7437
        %v7446 = vmul.f32 %v7438, %v7438
        %v7447 = vmul.f32 %v7439, %v7439
        %v7448 = vmul.f32 %v7440, %v7440
        %v7449 = vmul.f32 %v7441, %v7441
        %v7450 = vmul.f32 %v7442, %v7442
        %7451 = vadd.xlane.f32.xlu0 %v7443
        %v7452 = vpop.xlane.xlu0 %7451
        %7453 = vadd.xlane.f32.xlu0 %v7444
        %v7454 = vpop.xlane.xlu0 %7453
        %7455 = vadd.xlane.f32.xlu0 %v7445
        %v7456 = vpop.xlane.xlu0 %7455
        %7457 = vadd.xlane.f32.xlu0 %v7446
        %v7458 = vpop.xlane.xlu0 %7457
        %7459 = vadd.xlane.f32.xlu0 %v7447
        %v7460 = vpop.xlane.xlu0 %7459
        %7461 = vadd.xlane.f32.xlu0 %v7448
        %v7462 = vpop.xlane.xlu0 %7461
        %7463 = vadd.xlane.f32.xlu0 %v7449
        %v7464 = vpop.xlane.xlu0 %7463
        %7465 = vadd.xlane.f32.xlu0 %v7450
        %v7466 = vpop.xlane.xlu0 %7465
        %v7467 = vadd.f32 %v7452, %v7454
        %v7468 = vadd.f32 %v7467, %v7456
        %v7469 = vadd.f32 %v7468, %v7458
        %v7470 = vadd.f32 %v7469, %v7460
        %v7471 = vadd.f32 %v7470, %v7462
        %v7472 = vadd.f32 %v7471, %v7464
        %v7473 = vadd.f32 %v7472, %v7466
        %v7474 = vrot.slane %v7473, 4
        %v7475 = vadd.f32 %v7473, %v7474
        %v7476 = vrot.slane %v7475, 2
        %v7477 = vadd.f32 %v7475, %v7476
        %v7478 = vrot.slane %v7477, 1
        %v7479 = vadd.f32 %v7477, %v7478
        %v7480 = vmul.f32 %v7479, %v668
        %v7481 = vrsqrt.pop %v7480
        %v7482 = vmul.f32 %v7435, %v7481
        %v7483 = vmul.f32 %v7436, %v7481
        %v7484 = vmul.f32 %v7437, %v7481
        %v7485 = vmul.f32 %v7438, %v7481
        %v7486 = vmul.f32 %v7439, %v7481
        %v7487 = vmul.f32 %v7440, %v7481
        %v7488 = vmul.f32 %v7441, %v7481
        %v7489 = vmul.f32 %v7442, %v7481
        %v7490 = vmul.f32 %v623, %v7482
        %v7491 = vmul.f32 %v624, %v7483
        %v7492 = vmul.f32 %v625, %v7484
        %v7493 = vmul.f32 %v626, %v7485
        %v7494 = vmul.f32 %v627, %v7486
        %v7495 = vmul.f32 %v628, %v7487
        %v7496 = vmul.f32 %v629, %v7488
        %v7497 = vmul.f32 %v630, %v7489
        %v7498 = vpack.c.bf16 %v7491, %v7490
        %v7499 = vpack.c.bf16 %v7493, %v7492
        %v7500 = vpack.c.bf16 %v7495, %v7494
        %v7501 = vpack.c.bf16 %v7497, %v7496
        %v7502 = vld [vmem:[#allocation17] sm:$0xf]
        %v7503 = vld [vmem:[#allocation17 + $0x4] sm:$0xf]
        %v7504 = vld [vmem:[#allocation17 + $0x8] sm:$0xf]
        %v7505 = vld [vmem:[#allocation17 + $0xc] sm:$0xf]
        %v7506 = vld [vmem:[#allocation17 + $0x10] sm:$0xf]
        %v7507 = vld [vmem:[#allocation17 + $0x14] sm:$0xf]
        %v7508 = vld [vmem:[#allocation17 + $0x18] sm:$0xf]
        %v7509 = vld [vmem:[#allocation17 + $0x1c] sm:$0xf]
        %v7510 = vld [vmem:[#allocation17 + $0x20] sm:$0xf]
        %v7511 = vld [vmem:[#allocation17 + $0x24] sm:$0xf]
        %v7512 = vld [vmem:[#allocation17 + $0x28] sm:$0xf]
        %v7513 = vld [vmem:[#allocation17 + $0x2c] sm:$0xf]
        %v7514 = vld [vmem:[#allocation17 + $0x30] sm:$0xf]
        %v7515 = vld [vmem:[#allocation17 + $0x34] sm:$0xf]
        %v7516 = vld [vmem:[#allocation17 + $0x38] sm:$0xf]
        %v7517 = vld [vmem:[#allocation17 + $0x3c] sm:$0xf]
        %v7518 = vld [vmem:[#allocation18] sm:$0x1]
        %v7520 = vlaneseq
        %v7521 = vshrl.u32 %v7520, 7
        %v7522 = vsub.s32 0, %v7521
        %v7523 = vrot.slane %v7518, %v7522
        %v7541 = vunpack.c.l.b16 %v7502
        %v7542 = vunpack.c.l.b16 %v7503
        %v7543 = vunpack.c.l.b16 %v7504
        %v7544 = vunpack.c.l.b16 %v7505
        %v7545 = vunpack.c.l.b16 %v7506
        %v7546 = vunpack.c.l.b16 %v7507
        %v7547 = vunpack.c.l.b16 %v7508
        %v7548 = vunpack.c.l.b16 %v7509
        %v7549 = vunpack.c.l.b16 %v7510
        %v7550 = vunpack.c.l.b16 %v7511
        %v7551 = vunpack.c.l.b16 %v7512
        %v7552 = vunpack.c.l.b16 %v7513
        %v7553 = vunpack.c.l.b16 %v7514
        %v7554 = vunpack.c.l.b16 %v7515
        %v7555 = vunpack.c.l.b16 %v7516
        %v7556 = vunpack.c.l.b16 %v7517
        %v7557 = vpack.c.b16 %v7542, %v7541
        %v7558 = vpack.c.b16 %v7544, %v7543
        %v7559 = vpack.c.b16 %v7546, %v7545
        %v7560 = vpack.c.b16 %v7548, %v7547
        %v7561 = vpack.c.b16 %v7550, %v7549
        %v7562 = vpack.c.b16 %v7552, %v7551
        %v7563 = vpack.c.b16 %v7554, %v7553
        %v7564 = vpack.c.b16 %v7556, %v7555
        %7573 = vmatprep.subr.bf16.mxu0 0
        %7574 = vmatpush1.bf16.msra.mxu0 %v7557
        %7575 = vmatprep.subr.bf16.mxu0 0
        %7576 = vmatpush1.bf16.msra.mxu0 %v7558
        %7577 = vmatprep.subr.bf16.mxu0 0
        %7578 = vmatpush1.bf16.msra.mxu0 %v7559
        %7579 = vmatprep.subr.bf16.mxu0 0
        %7580 = vmatpush1.bf16.msra.mxu0 %v7560
        %7581 = vmatprep.subr.bf16.mxu0 0
        %7582 = vmatpush1.bf16.msra.mxu0 %v7561
        %7583 = vmatprep.subr.bf16.mxu0 0
        %7584 = vmatpush1.bf16.msra.mxu0 %v7562
        %7585 = vmatprep.subr.bf16.mxu0 0
        %7586 = vmatpush1.bf16.msra.mxu0 %v7563
        %7587 = vmatprep.subr.bf16.mxu0 0
        %7588 = vmatpush1.bf16.msra.mxu0 %v7564
        %7589 = vmatprep.subr.bf16.mxu0 0
        %7590 = vmatpush1.bf16.msra.mxu0 0
        %7591 = vmatprep.subr.bf16.mxu0 0
        %7592 = vmatpush1.bf16.msra.mxu0 0
        %7593 = vmatprep.subr.bf16.mxu0 0
        %7594 = vmatpush1.bf16.msra.mxu0 0
        %7595 = vmatprep.subr.bf16.mxu0 0
        %7596 = vmatpush1.bf16.msra.mxu0 0
        %7597 = vmatprep.subr.bf16.mxu0 0
        %7598 = vmatpush1.bf16.msra.mxu0 0
        %7599 = vmatprep.subr.bf16.mxu0 0
        %7600 = vmatpush1.bf16.msra.mxu0 0
        %7601 = vmatprep.subr.bf16.mxu0 0
        %7602 = vmatpush1.bf16.msra.mxu0 0
        %7603 = vmatprep.subr.bf16.mxu0 0
        %7604 = vmatpush1.bf16.msra.mxu0 0
        %7605 = vmatprep.mubr.bf16.mxu0 0
        %7606 = vmatmul.mubr.bf16.gmra.mrb[0].mxu0 %v7498
        %v7607 = vpop.f32.mrb[0].mxu0
        %v7608 = vadd.f32 %v7523, %v7607
        %v7609 = vpop.f32.mrb[0].mxu0
        %v7610 = vpop.f32.mrb[0].mxu0
        %v7611 = vadd.f32 %v7523, %v7610
        %v7612 = vpop.f32.mrb[0].mxu0
        %7613 = vmatprep.mubr.bf16.mxu0 0
        %7614 = vmatmul.mubr.bf16.gmra.mrb[0].mxu0 %v7499
        %v7615 = vpop.f32.mrb[0].mxu0
        %v7616 = vadd.f32 %v7523, %v7615
        %v7617 = vpop.f32.mrb[0].mxu0
        %v7618 = vpop.f32.mrb[0].mxu0
        %v7619 = vadd.f32 %v7523, %v7618
        %v7620 = vpop.f32.mrb[0].mxu0
        %7621 = vmatprep.mubr.bf16.mxu0 0
        %7622 = vmatmul.mubr.bf16.gmra.mrb[0].mxu0 %v7500
        %v7623 = vpop.f32.mrb[0].mxu0
        %v7624 = vadd.f32 %v7523, %v7623
        %v7625 = vpop.f32.mrb[0].mxu0
        %v7626 = vpop.f32.mrb[0].mxu0
        %v7627 = vadd.f32 %v7523, %v7626
        %v7628 = vpop.f32.mrb[0].mxu0
        %7629 = vmatprep.mubr.bf16.mxu0 0
        %7630 = vmatmul.mubr.bf16.gmra.mrb[0].mxu0 %v7501
        %v7631 = vpop.f32.mrb[0].mxu0
        %v7632 = vadd.f32 %v7523, %v7631
        %v7633 = vpop.f32.mrb[0].mxu0
        %v7634 = vpop.f32.mrb[0].mxu0
        %v7635 = vadd.f32 %v7523, %v7634
        %v7636 = vpop.f32.mrb[0].mxu0
        %7637 = vdwg.mxu0
        %v7638 = vpack.c.bf16 %v7611, %v7608
        %v7639 = vpack.c.bf16 %v7619, %v7616
        %v7640 = vpack.c.bf16 %v7627, %v7624
        %v7641 = vpack.c.bf16 %v7635, %v7632
        %v7642 = vld [vmem:[#allocation20] sm:$0xff]
        %v7643 = vld [vmem:[#allocation20 + $0x8] sm:$0xff]
        %v7644 = vld [vmem:[#allocation20 + $0x10] sm:$0xff]
        %v7645 = vld [vmem:[#allocation20 + $0x18] sm:$0xff]
        %v7646 = vld [vmem:[#allocation20 + $0x20] sm:$0xff]
        %v7647 = vld [vmem:[#allocation20 + $0x28] sm:$0xff]
        %v7648 = vld [vmem:[#allocation20 + $0x30] sm:$0xff]
        %v7649 = vld [vmem:[#allocation20 + $0x38] sm:$0xff]
        %v7650 = vld [vmem:[#allocation20 + $0x40] sm:$0xff]
        %v7651 = vld [vmem:[#allocation20 + $0x48] sm:$0xff]
        %v7652 = vld [vmem:[#allocation20 + $0x50] sm:$0xff]
        %v7653 = vld [vmem:[#allocation20 + $0x58] sm:$0xff]
        %v7654 = vld [vmem:[#allocation20 + $0x60] sm:$0xff]
        %v7655 = vld [vmem:[#allocation20 + $0x68] sm:$0xff]
        %v7656 = vld [vmem:[#allocation20 + $0x70] sm:$0xff]
        %v7657 = vld [vmem:[#allocation20 + $0x78] sm:$0xff]
        %v7658 = vld [vmem:[#allocation21] sm:$0x3]
        %v7660 = vlaneseq
        %v7661 = vshrl.u32 %v7660, 7
        %v7662 = vsub.s32 0, %v7661
        %v7663 = vrot.slane %v7658, %v7662
        %v7664 = vlaneseq
        %v7665 = vshrl.u32 %v7664, 7
        %v7666 = vsub.s32 1, %v7665
        %v7667 = vrot.slane %v7658, %v7666
        %v7686 = vunpack.c.l.b16 %v7642
        %v7687 = vunpack.c.h.b16 %v7642
        %v7688 = vunpack.c.l.b16 %v7643
        %v7689 = vunpack.c.h.b16 %v7643
        %v7690 = vunpack.c.l.b16 %v7644
        %v7691 = vunpack.c.h.b16 %v7644
        %v7692 = vunpack.c.l.b16 %v7645
        %v7693 = vunpack.c.h.b16 %v7645
        %v7694 = vunpack.c.l.b16 %v7646
        %v7695 = vunpack.c.h.b16 %v7646
        %v7696 = vunpack.c.l.b16 %v7647
        %v7697 = vunpack.c.h.b16 %v7647
        %v7698 = vunpack.c.l.b16 %v7648
        %v7699 = vunpack.c.h.b16 %v7648
        %v7700 = vunpack.c.l.b16 %v7649
        %v7701 = vunpack.c.h.b16 %v7649
        %v7702 = vunpack.c.l.b16 %v7650
        %v7703 = vunpack.c.h.b16 %v7650
        %v7704 = vunpack.c.l.b16 %v7651
        %v7705 = vunpack.c.h.b16 %v7651
        %v7706 = vunpack.c.l.b16 %v7652
        %v7707 = vunpack.c.h.b16 %v7652
        %v7708 = vunpack.c.l.b16 %v7653
        %v7709 = vunpack.c.h.b16 %v7653
        %v7710 = vunpack.c.l.b16 %v7654
        %v7711 = vunpack.c.h.b16 %v7654
        %v7712 = vunpack.c.l.b16 %v7655
        %v7713 = vunpack.c.h.b16 %v7655
        %v7714 = vunpack.c.l.b16 %v7656
        %v7715 = vunpack.c.h.b16 %v7656
        %v7716 = vunpack.c.l.b16 %v7657
        %v7717 = vunpack.c.h.b16 %v7657
        %v7718 = vpack.c.b16 %v7688, %v7686
        %v7719 = vpack.c.b16 %v7689, %v7687
        %v7720 = vpack.c.b16 %v7692, %v7690
        %v7721 = vpack.c.b16 %v7693, %v7691
        %v7722 = vpack.c.b16 %v7696, %v7694
        %v7723 = vpack.c.b16 %v7697, %v7695
        %v7724 = vpack.c.b16 %v7700, %v7698
        %v7725 = vpack.c.b16 %v7701, %v7699
        %v7726 = vpack.c.b16 %v7704, %v7702
        %v7727 = vpack.c.b16 %v7705, %v7703
        %v7728 = vpack.c.b16 %v7708, %v7706
        %v7729 = vpack.c.b16 %v7709, %v7707
        %v7730 = vpack.c.b16 %v7712, %v7710
        %v7731 = vpack.c.b16 %v7713, %v7711
        %v7732 = vpack.c.b16 %v7716, %v7714
        %v7733 = vpack.c.b16 %v7717, %v7715
        %7750 = vmatprep.subr.bf16.mxu0 %v7719
        %7751 = vmatpush1.bf16.msra.mxu0 %v7718
        %7752 = vmatprep.subr.bf16.mxu0 %v7721
        %7753 = vmatpush1.bf16.msra.mxu0 %v7720
        %7754 = vmatprep.subr.bf16.mxu0 %v7723
        %7755 = vmatpush1.bf16.msra.mxu0 %v7722
        %7756 = vmatprep.subr.bf16.mxu0 %v7725
        %7757 = vmatpush1.bf16.msra.mxu0 %v7724
        %7758 = vmatprep.subr.bf16.mxu0 %v7727
        %7759 = vmatpush1.bf16.msra.mxu0 %v7726
        %7760 = vmatprep.subr.bf16.mxu0 %v7729
        %7761 = vmatpush1.bf16.msra.mxu0 %v7728
        %7762 = vmatprep.subr.bf16.mxu0 %v7731
        %7763 = vmatpush1.bf16.msra.mxu0 %v7730
        %7764 = vmatprep.subr.bf16.mxu0 %v7733
        %7765 = vmatpush1.bf16.msra.mxu0 %v7732
        %7766 = vmatprep.subr.bf16.mxu0 0
        %7767 = vmatpush1.bf16.msra.mxu0 0
        %7768 = vmatprep.subr.bf16.mxu0 0
        %7769 = vmatpush1.bf16.msra.mxu0 0
        %7770 = vmatprep.subr.bf16.mxu0 0
        %7771 = vmatpush1.bf16.msra.mxu0 0
        %7772 = vmatprep.subr.bf16.mxu0 0
        %7773 = vmatpush1.bf16.msra.mxu0 0
        %7774 = vmatprep.subr.bf16.mxu0 0
        %7775 = vmatpush1.bf16.msra.mxu0 0
        %7776 = vmatprep.subr.bf16.mxu0 0
        %7777 = vmatpush1.bf16.msra.mxu0 0
        %7778 = vmatprep.subr.bf16.mxu0 0
        %7779 = vmatpush1.bf16.msra.mxu0 0
        %7780 = vmatprep.subr.bf16.mxu0 0
        %7781 = vmatpush1.bf16.msra.mxu0 0
        %7782 = vmatprep.mubr.bf16.mxu0 0
        %7783 = vmatmul.mubr.bf16.gmra.mrb[0].mxu0 %v7638
        %v7784 = vpop.f32.mrb[0].mxu0
        %v7785 = vadd.f32 %v7663, %v7784
        %v7786 = vpop.f32.mrb[0].mxu0
        %v7787 = vadd.f32 %v7667, %v7786
        %v7788 = vpop.f32.mrb[0].mxu0
        %v7789 = vadd.f32 %v7663, %v7788
        %v7790 = vpop.f32.mrb[0].mxu0
        %v7791 = vadd.f32 %v7667, %v7790
        %7792 = vmatprep.mubr.bf16.mxu0 0
        %7793 = vmatmul.mubr.bf16.gmra.mrb[0].mxu0 %v7639
        %v7794 = vpop.f32.mrb[0].mxu0
        %v7795 = vadd.f32 %v7663, %v7794
        %v7796 = vpop.f32.mrb[0].mxu0
        %v7797 = vadd.f32 %v7667, %v7796
        %v7798 = vpop.f32.mrb[0].mxu0
        %v7799 = vadd.f32 %v7663, %v7798
        %v7800 = vpop.f32.mrb[0].mxu0
        %v7801 = vadd.f32 %v7667, %v7800
        %7802 = vmatprep.mubr.bf16.mxu0 0
        %7803 = vmatmul.mubr.bf16.gmra.mrb[0].mxu0 %v7640
        %v7804 = vpop.f32.mrb[0].mxu0
        %v7805 = vadd.f32 %v7663, %v7804
        %v7806 = vpop.f32.mrb[0].mxu0
        %v7807 = vadd.f32 %v7667, %v7806
        %v7808 = vpop.f32.mrb[0].mxu0
        %v7809 = vadd.f32 %v7663, %v7808
        %v7810 = vpop.f32.mrb[0].mxu0
        %v7811 = vadd.f32 %v7667, %v7810
        %7812 = vmatprep.mubr.bf16.mxu0 0
        %7813 = vmatmul.mubr.bf16.gmra.mrb[0].mxu0 %v7641
        %v7814 = vpop.f32.mrb[0].mxu0
        %v7815 = vadd.f32 %v7663, %v7814
        %v7816 = vpop.f32.mrb[0].mxu0
        %v7817 = vadd.f32 %v7667, %v7816
        %v7818 = vpop.f32.mrb[0].mxu0
        %v7819 = vadd.f32 %v7663, %v7818
        %v7820 = vpop.f32.mrb[0].mxu0
        %v7821 = vadd.f32 %v7667, %v7820
        %7822 = vdwg.mxu0
        %s7823 = sld [smem:[#allocation2]]
        %s7824 = ssub.f32 0.0, %s7823
        %v7825 = vstv %s7824
        %v7826 = vmul.f32 %v7825, %v7785
        %v7827 = vmul.f32 %v7825, %v7789
        %v7828 = vmul.f32 %v7825, %v7795
        %v7829 = vmul.f32 %v7825, %v7799
        %v7830 = vmul.f32 %v7825, %v7805
        %v7831 = vmul.f32 %v7825, %v7809
        %v7832 = vmul.f32 %v7825, %v7815
        %v7833 = vmul.f32 %v7825, %v7819
        %v7834 = vmul.f32 %v7826, 1.442695
        %v7835 = vpow.pop %v7834
        %v7836 = vmul.f32 %v7827, 1.442695
        %v7837 = vpow.pop %v7836
        %v7838 = vmul.f32 %v7828, 1.442695
        %v7839 = vpow.pop %v7838
        %v7840 = vmul.f32 %v7829, 1.442695
        %v7841 = vpow.pop %v7840
        %v7842 = vmul.f32 %v7830, 1.442695
        %v7843 = vpow.pop %v7842
        %v7844 = vmul.f32 %v7831, 1.442695
        %v7845 = vpow.pop %v7844
        %v7846 = vmul.f32 %v7832, 1.442695
        %v7847 = vpow.pop %v7846
        %v7848 = vmul.f32 %v7833, 1.442695
        %v7849 = vpow.pop %v7848
        %v7850 = vadd.f32 %v7835, 1.0
        %v7851 = vadd.f32 %v7837, 1.0
        %v7852 = vadd.f32 %v7839, 1.0
        %v7853 = vadd.f32 %v7841, 1.0
        %v7854 = vadd.f32 %v7843, 1.0
        %v7855 = vadd.f32 %v7845, 1.0
        %v7856 = vadd.f32 %v7847, 1.0
        %v7857 = vadd.f32 %v7849, 1.0
        %v7858 = vrcp.pop %v7850
        %v7859 = vrcp.pop %v7851
        %v7860 = vrcp.pop %v7852
        %v7861 = vrcp.pop %v7853
        %v7862 = vrcp.pop %v7854
        %v7863 = vrcp.pop %v7855
        %v7864 = vrcp.pop %v7856
        %v7865 = vrcp.pop %v7857
        %v7866 = vmul.f32 %v7785, %v7858
        %v7867 = vmul.f32 %v7789, %v7859
        %v7868 = vmul.f32 %v7795, %v7860
        %v7869 = vmul.f32 %v7799, %v7861
        %v7870 = vmul.f32 %v7805, %v7862
        %v7871 = vmul.f32 %v7809, %v7863
        %v7872 = vmul.f32 %v7815, %v7864
        %v7873 = vmul.f32 %v7819, %v7865
        %v7874 = vmul.f32 %v7866, %v7787
        %v7875 = vmul.f32 %v7867, %v7791
        %v7876 = vmul.f32 %v7868, %v7797
        %v7877 = vmul.f32 %v7869, %v7801
        %v7878 = vmul.f32 %v7870, %v7807
        %v7879 = vmul.f32 %v7871, %v7811
        %v7880 = vmul.f32 %v7872, %v7817
        %v7881 = vmul.f32 %v7873, %v7821
        %v7882 = vadd.f32 %v7490, %v7874
        %v7883 = vadd.f32 %v7491, %v7875
        %v7884 = vadd.f32 %v7492, %v7876
        %v7885 = vadd.f32 %v7493, %v7877
        %v7886 = vadd.f32 %v7494, %v7878
        %v7887 = vadd.f32 %v7495, %v7879
        %v7888 = vadd.f32 %v7496, %v7880
        %v7889 = vadd.f32 %v7497, %v7881
        %7890 = vst [vmem:[%s613] sm:$0xff] %v7882
        %7891 = vst [vmem:[%s613 + $0x8] sm:$0xff] %v7883
        %7892 = vst [vmem:[%s613 + $0x10] sm:$0xff] %v7884
        %7893 = vst [vmem:[%s613 + $0x18] sm:$0xff] %v7885
        %7894 = vst [vmem:[%s613 + $0x20] sm:$0xff] %v7886
        %7895 = vst [vmem:[%s613 + $0x28] sm:$0xff] %v7887
        %7896 = vst [vmem:[%s613 + $0x30] sm:$0xff] %v7888
        %7897 = vst [vmem:[%s613 + $0x38] sm:$0xff] %v7889
        %s7898 = sand.u32 %s323, 1
        %s7899 = scalar_lea.sflag [#allocation5], %s7898
        %s7900 = sand.u32 %s323, 1
        %s7901 = smul.addr %s7900, 64
        %s7902 = scalar_lea.vmem [#allocation23], %s7901
        // Predicated region
        $region121: #{tpu_custom_call.1} parent=71 // pred_check
          %p7903 = pneg %p333
        $region122: #{tpu_custom_call.1} parent=71 // pred_check_branch
          %7905 = sbr.rel (%p7903) target = $region124
        $region123: #{tpu_custom_call.1} parent=71 // pred_region
          %s7907 = ssub.s32 1024, 1024
          %7908 = vsyncadd %s7899, %s7907
          %s7909 = smul.addr %s37, 8
          %s7910 = smul.addr %s7909, 128
          %s7911 = scalar_lea.hbm %s13, %s7910
          %s7912 = sshll.u32 %s7902, 4
          %s7913 = int_to_ptr.vmem [resolvable:$true] %s7912
          %7918 = dma.vmem_to_hbm [thread:$0]  %s7913, 1024, %s7911, %s7899, 128, 128, 8
        $region124: #{tpu_custom_call.1} parent=71 // pred_fallthru
          _
      $region72: #{tpu_custom_call.1} parent=5 // pred_fallthru
        _
      %p7919 = scmp.le.s32.totalorder 2, %s32
      // Predicated region
      $region125: #{tpu_custom_call.1} parent=5 // pred_check
        %p7920 = pneg %p7919
      $region126: #{tpu_custom_call.1} parent=5 // pred_check_branch
        %7922 = sbr.rel (%p7920) target = $region128
      $region127: #{tpu_custom_call.1} parent=5 // pred_region
        %s7923 = ssub.s32 %s32, 2
        // Predicated region
        $region129: #{tpu_custom_call.1} parent=127 // pred_check
          %p7924 = pneg %p339
        $region130: #{tpu_custom_call.1} parent=127 // pred_check_branch
          %7926 = sbr.rel (%p7924) target = $region132
        $region131: #{tpu_custom_call.1} parent=127 // pred_region
          %s7927 = sand.u32 %s324, 1
          %s7928 = scalar_lea.sflag [#allocation5], %s7927
          %s7929 = sand.u32 %s324, 1
          %s7930 = smul.addr %s7929, 64
          %s7931 = scalar_lea.vmem [#allocation23], %s7930
          %7932 = dma.done %s7928, 1024
        $region132: #{tpu_custom_call.1} parent=127 // pred_fallthru
          _
      $region128: #{tpu_custom_call.1} parent=5 // pred_fallthru
        _
    $region6: #{tpu_custom_call.1} parent=1 // loop_footer
      %s36 = sadd.s32 1, %s32
    $region7: #{tpu_custom_call.1} parent=1 // loop_footer_branch
      %31 = sbr.rel target = $region3
    $region8: #{tpu_custom_call.1} parent=1 // loop_exit
      _
    %7933 = vsyncpa [#allocation4], 1
    %s7934 = scalar_lea.sflag [#allocation4], 1
    %7935 = vsyncpa %s7934, 1
    %7936 = vsyncpa [#allocation7], 1
    %7937 = vsyncpa [#allocation10], 1
    %7938 = vsyncpa [#allocation13], 1
    %7939 = vsyncpa [#allocation16], 1
    %7940 = vsyncpa [#allocation19], 1
    %7941 = vsyncpa [#allocation22], 1
    %7942 = vsyncpa [#allocation5], 1
    %s7943 = scalar_lea.sflag [#allocation5], 1
    %7944 = vsyncpa %s7943, 1

</llo_original>
